<compile_context>
chip_gen: v5e
topology: v5e:2x2
jax: 0.10.0
libtpu: 0.0.40
codegen_flags: <defaults>
</compile_context>

<pallas_src>
import functools

import numpy as np
import jax
import jax.numpy as jnp
from jax import lax
from jax.experimental import pallas as pl
from jax.experimental.pallas import tpu as pltpu

BN_EPS = 1e-5  # nn.BatchNorm3d default eps


# ------------------------------- fused kernel ------------------------------- #

def _critic_fused_kernel(xu_ref, w1_ref, w2_ref, s1_ref, s1t_ref, s2_ref,
                         s2t_ref, g1_ref, b1_ref, g2_ref, b2_ref,
                         o_ref, y1_ref, *, cin):
    """Whole Critic forward, both Q branches merged along the channel axis.

    Layout: lanes hold (w, channel) pairs (w-major), sublanes hold H, leading
    dims hold (N, D).  Each 3x3x3 conv is 9 banded matmuls over the (kd, kh)
    taps; the kw taps are folded into the band structure of the weights.
    """
    n, d, h, wc = xu_ref.shape
    win = wc // cin
    d1, h1, w1 = d - 2, h - 2, win - 2
    c1 = g1_ref.shape[-1]                       # 32 = 2 branches x 16
    d2, h2, w2 = d1 - 2, h1 - 2, w1 - 2
    c2 = g2_ref.shape[-1]                       # 2 * action_dim

    # ---------------- layer 1: merged conv1 / conv1a as banded matmuls ------
    acc1 = jnp.zeros((n * d1, h1, w1 * c1), jnp.float32)
    for kd in range(3):
        for kh in range(3):
            t = kd * 3 + kh
            lhs = xu_ref[:, kd:kd + d1, kh:kh + h1, :].reshape(n * d1, h1, wc)
            rhs = jnp.broadcast_to(w1_ref[t], (n * d1, wc, w1 * c1))
            acc1 = acc1 + jnp.einsum('bhx,bxk->bhk', lhs, rhs,
                                     preferred_element_type=jnp.float32)

    # BN1 (training-mode batch stats; conv bias cancels) + ReLU.  Per-channel
    # stats fold the w lane-groups with a 0/1 selection matmul.
    inv_m1 = 1.0 / float(n * d1 * h1 * w1)
    col_s = jnp.sum(jnp.sum(acc1, axis=1, keepdims=True), axis=0,
                    keepdims=True).reshape(1, w1 * c1)
    col_q = jnp.sum(jnp.sum(acc1 * acc1, axis=1, keepdims=True), axis=0,
                    keepdims=True).reshape(1, w1 * c1)
    mean = jnp.dot(col_s, s1_ref[...], preferred_element_type=jnp.float32) * inv_m1
    ex2 = jnp.dot(col_q, s1_ref[...], preferred_element_type=jnp.float32) * inv_m1
    var = jnp.maximum(ex2 - mean * mean, 0.0)
    scale_c = g1_ref[...] * lax.rsqrt(var + BN_EPS)
    shift_c = b1_ref[...] - mean * scale_c
    scale = jnp.dot(scale_c, s1t_ref[...], preferred_element_type=jnp.float32)
    shift = jnp.dot(shift_c, s1t_ref[...], preferred_element_type=jnp.float32)
    y1 = jnp.maximum(acc1 * scale + shift, 0.0)
    y1_ref[...] = y1.reshape(n, d1, h1, w1 * c1).astype(y1_ref.dtype)

    # ---------------- layer 2: merged (block-diagonal) conv2 / conv2a -------
    acc2 = jnp.zeros((n * d2, h2, w2 * c2), jnp.float32)
    for kd in range(3):
        for kh in range(3):
            t = kd * 3 + kh
            lhs = y1_ref[:, kd:kd + d2, kh:kh + h2, :].reshape(n * d2, h2,
                                                               w1 * c1)
            rhs = jnp.broadcast_to(w2_ref[t], (n * d2, w1 * c1, w2 * c2))
            acc2 = acc2 + jnp.einsum('bhx,bxk->bhk', lhs, rhs,
                                     preferred_element_type=jnp.float32)

    inv_m2 = 1.0 / float(n * d2 * h2 * w2)
    col_s2 = jnp.sum(jnp.sum(acc2, axis=1, keepdims=True), axis=0,
                     keepdims=True).reshape(1, w2 * c2)
    col_q2 = jnp.sum(jnp.sum(acc2 * acc2, axis=1, keepdims=True), axis=0,
                     keepdims=True).reshape(1, w2 * c2)
    mean2 = jnp.dot(col_s2, s2_ref[...], preferred_element_type=jnp.float32) * inv_m2
    ex22 = jnp.dot(col_q2, s2_ref[...], preferred_element_type=jnp.float32) * inv_m2
    var2 = jnp.maximum(ex22 - mean2 * mean2, 0.0)
    scale_c2 = g2_ref[...] * lax.rsqrt(var2 + BN_EPS)
    shift_c2 = b2_ref[...] - mean2 * scale_c2
    scale2 = jnp.dot(scale_c2, s2t_ref[...], preferred_element_type=jnp.float32)
    shift2 = jnp.dot(shift_c2, s2t_ref[...], preferred_element_type=jnp.float32)
    a2 = jnp.maximum(acc2 * scale2 + shift2, 0.0)     # (n*d2, h2, w2*c2)

    # -------- AdaptiveMaxPool3d(1) + tanh + squeeze, both branches at once --
    a2 = a2.reshape(n, d2, h2, w2 * c2)
    pooled = jnp.max(jnp.max(a2, axis=1), axis=1)     # (n, w2*c2)
    gmax = pooled[:, 0:c2]
    for wg in range(1, w2):                           # fold the w lane-groups
        gmax = jnp.maximum(gmax, pooled[:, wg * c2:(wg + 1) * c2])
    o_ref[...] = jnp.tanh(gmax)


# --------------------------- host-side weight packing ----------------------- #

def pack_params(params, *, width):
    """Build (once, on the host) the merged banded weights + BN vectors."""
    w1a = np.asarray(params["conv1"][0], np.float32)   # (16, cin, 3, 3, 3)
    w1b = np.asarray(params["conv1a"][0], np.float32)
    w2a = np.asarray(params["conv2"][0], np.float32)   # (A, 16, 3, 3, 3)
    w2b = np.asarray(params["conv2a"][0], np.float32)
    cin = w1a.shape[1]
    c1h = w1a.shape[0]
    c1 = 2 * c1h
    a_dim = w2a.shape[0]
    c2 = 2 * a_dim
    w1o, w2o = width - 2, width - 4

    wcat = np.concatenate([w1a, w1b], axis=0)          # (32, cin, 3, 3, 3)
    W1 = np.zeros((9, width * cin, w1o * c1), np.float32)
    W2 = np.zeros((9, w1o * c1, w2o * c2), np.float32)
    for kd in range(3):
        for kh in range(3):
            t = kd * 3 + kh
            for kw in range(3):
                tap1 = wcat[:, :, kd, kh, kw].T        # (cin, 32)
                tap2 = np.zeros((c1, c2), np.float32)  # block-diagonal branches
                tap2[:c1h, :a_dim] = w2a[:, :, kd, kh, kw].T
                tap2[c1h:, a_dim:] = w2b[:, :, kd, kh, kw].T
                for wo in range(w1o):
                    wi = wo + kw
                    W1[t, wi * cin:(wi + 1) * cin, wo * c1:(wo + 1) * c1] = tap1
                for wo in range(w2o):
                    wi = wo + kw
                    W2[t, wi * c1:(wi + 1) * c1, wo * c2:(wo + 1) * c2] = tap2

    S1 = np.tile(np.eye(c1, dtype=np.float32), (w1o, 1))   # (w1o*c1, c1)
    S2 = np.tile(np.eye(c2, dtype=np.float32), (w2o, 1))   # (w2o*c2, c2)

    def cat(a, b):
        return np.concatenate([np.asarray(a, np.float32),
                               np.asarray(b, np.float32)]).reshape(1, -1)

    # NOTE: conv biases are intentionally dropped — training-mode BatchNorm's
    # mean subtraction cancels a per-channel conv bias exactly.
    return dict(
        w1=jnp.asarray(W1, jnp.bfloat16), w2=jnp.asarray(W2, jnp.bfloat16),
        s1=jnp.asarray(S1), s1t=jnp.asarray(np.ascontiguousarray(S1.T)),
        s2=jnp.asarray(S2), s2t=jnp.asarray(np.ascontiguousarray(S2.T)),
        g1=jnp.asarray(cat(params["bn1"][0], params["bn1a"][0])),
        b1=jnp.asarray(cat(params["bn1"][1], params["bn1a"][1])),
        g2=jnp.asarray(cat(params["bn2"][0], params["bn2a"][0])),
        b2=jnp.asarray(cat(params["bn2"][1], params["bn2a"][1])),
        a_dim=a_dim)


# ------------------------------- pallas wrapper ------------------------------ #

def make_critic_forward(packed):
    a_dim = packed["a_dim"]
    w1, w2 = packed["w1"], packed["w2"]
    s1, s1t, s2, s2t = packed["s1"], packed["s1t"], packed["s2"], packed["s2t"]
    g1, b1, g2, b2 = packed["g1"], packed["b1"], packed["g2"], packed["b2"]
    vmem = pl.BlockSpec(memory_space=pltpu.MemorySpace.VMEM)

    @jax.jit
    def forward(x, u):
        xu = jnp.concatenate([x, u], axis=1)                  # (N, 2, D, H, W)
        xu = jnp.transpose(xu, (0, 2, 3, 4, 1))               # NDHWC
        n, d, h, w, c = xu.shape
        xu = xu.reshape(n, d, h, w * c).astype(jnp.bfloat16)  # lanes = (w, c)

        d1, h1, w1o = d - 2, h - 2, w - 2
        d2, h2, w2o = d - 4, h - 4, w - 4
        c1, c2 = g1.shape[-1], g2.shape[-1]

        operands = (xu, w1, w2, s1, s1t, s2, s2t, g1, b1, g2, b2)
        flops = 2 * 9 * (n * d1 * h1 * (w * c) * (w1o * c1)
                         + n * d2 * h2 * (w1o * c1) * (w2o * c2))
        bytes_accessed = int(sum(int(np.prod(a.shape)) * a.dtype.itemsize
                                 for a in operands) + n * c2 * 4)
        cost = pl.CostEstimate(flops=int(flops),
                               transcendentals=int(c1 + c2 + n * c2),
                               bytes_accessed=bytes_accessed)

        out = pl.pallas_call(
            functools.partial(_critic_fused_kernel, cin=c),
            out_shape=jax.ShapeDtypeStruct((n, c2), jnp.float32),
            in_specs=[vmem] * len(operands),
            out_specs=vmem,
            scratch_shapes=[pltpu.VMEM((n, d1, h1, w1o * c1), jnp.bfloat16)],
            cost_estimate=cost,
        )(*operands)
        return out[:, :a_dim], out[:, a_dim:]

    return forward


# ------------------------- deterministic parameters ------------------------- #

def init_params(key, cin, action_dim):
    def conv_init(k, cout, cin_):
        fan_in = cin_ * 27
        wk, bk = jax.random.split(k)
        bound = 1.0 / jnp.sqrt(fan_in)
        w = jax.random.uniform(wk, (cout, cin_, 3, 3, 3), jnp.float32, -bound, bound)
        b = jax.random.uniform(bk, (cout,), jnp.float32, -bound, bound)
        return w, b

    def bn_init(k, c):
        gk, bk = jax.random.split(k)
        g = 1.0 + 0.1 * jax.random.normal(gk, (c,), jnp.float32)
        beta = 0.1 * jax.random.normal(bk, (c,), jnp.float32)
        return g, beta

    keys = jax.random.split(key, 8)
    return {
        "conv1": conv_init(keys[0], 16, cin),
        "bn1": bn_init(keys[1], 16),
        "conv2": conv_init(keys[2], action_dim, 16),
        "bn2": bn_init(keys[3], action_dim),
        "conv1a": conv_init(keys[4], 16, cin),
        "bn1a": bn_init(keys[5], 16),
        "conv2a": conv_init(keys[6], action_dim, 16),
        "bn2a": bn_init(keys[7], action_dim),
    }


# ------------------------------ pure-JAX reference --------------------------- #

def _ref_conv3d(x, w, b):
    y = lax.conv_general_dilated(
        x, w, window_strides=(1, 1, 1), padding="VALID",
        dimension_numbers=("NCDHW", "OIDHW", "NCDHW"),
        precision=lax.Precision.HIGHEST)
    return y + b.reshape(1, -1, 1, 1, 1)


def _ref_bn_train(y, g, beta):
    mean = jnp.mean(y, axis=(0, 2, 3, 4), keepdims=True)
    var = jnp.mean((y - mean) ** 2, axis=(0, 2, 3, 4), keepdims=True)
    return ((y - mean) * lax.rsqrt(var + BN_EPS) * g.reshape(1, -1, 1, 1, 1)
            + beta.reshape(1, -1, 1, 1, 1))


def ref_forward(x, u, params):
    xu = jnp.concatenate([x, u], axis=1)

    def branch(c1, b1, c2, b2):
        a1 = jnp.maximum(_ref_bn_train(_ref_conv3d(xu, *c1), *b1), 0.0)
        a2 = jnp.maximum(_ref_bn_train(_ref_conv3d(a1, *c2), *b2), 0.0)
        return jnp.tanh(jnp.max(a2, axis=(2, 3, 4)))  # AdaptiveMaxPool3d(1)+tanh+squeeze

    return (branch(params["conv1"], params["bn1"], params["conv2"], params["bn2"]),
            branch(params["conv1a"], params["bn1a"], params["conv2a"], params["bn2a"]))


# ---------------------------------- main ------------------------------------ #

if __name__ == "__main__":
    key = jax.random.PRNGKey(0)
    kx, ku, kp = jax.random.split(key, 3)

    N, D, H, W = 2, 8, 8, 8
    ACTION_DIM = 4
    x = jax.random.normal(kx, (N, 1, D, H, W), jnp.float32)
    u = jax.random.normal(ku, (N, 1, D, H, W), jnp.float32)

    # TODO(synk): the original module declares conv1/conv1a with in_channels=1,
    # inconsistent with torch.cat([x, u], 1); weights are built with
    # in_channels=2 so the forward is runnable.  `max_action` and the undefined
    # Q1 layers (layer_1/2/3) are unused here.
    params = init_params(kp, cin=2, action_dim=ACTION_DIM)
    packed = pack_params(params, width=W)

    critic_forward = make_critic_forward(packed)
    q1, q2 = critic_forward(x, u)
    jax.block_until_ready((q1, q2))

    r1, r2 = ref_forward(x, u, params)
    assert q1.shape == (N, ACTION_DIM) and q2.shape == (N, ACTION_DIM)
    # Kernel runs the matmuls with bf16 operands (f32 accumulation) while the
    # reference is full-f32 HIGHEST precision — hence the loosened tolerance.
    assert jnp.allclose(q1, r1, atol=7.5e-2, rtol=7.5e-2), "branch-1 mismatch vs JAX reference"
    assert jnp.allclose(q2, r2, atol=7.5e-2, rtol=7.5e-2), "branch-2 mismatch vs JAX reference"

    print("KERNEL_OK")
</pallas_src>

<mosaic_0001>
module attributes {stable_mosaic.version = 11 : i64} {
  func.func @_critic_fused_kernel(%arg0: memref<2x8x8x16xbf16, #tpu.memory_space<vmem>>, %arg1: memref<9x16x192xbf16, #tpu.memory_space<vmem>>, %arg2: memref<9x192x32xbf16, #tpu.memory_space<vmem>>, %arg3: memref<192x32xf32, #tpu.memory_space<vmem>>, %arg4: memref<32x192xf32, #tpu.memory_space<vmem>>, %arg5: memref<32x8xf32, #tpu.memory_space<vmem>>, %arg6: memref<8x32xf32, #tpu.memory_space<vmem>>, %arg7: memref<1x32xf32, #tpu.memory_space<vmem>>, %arg8: memref<1x32xf32, #tpu.memory_space<vmem>>, %arg9: memref<1x8xf32, #tpu.memory_space<vmem>>, %arg10: memref<1x8xf32, #tpu.memory_space<vmem>>, %arg11: memref<2x8xf32, #tpu.memory_space<vmem>>, %arg12: memref<2x6x6x192xbf16, #tpu.memory_space<vmem>>) attributes {dimension_semantics = [], scalar_prefetch = 0 : i64, scratch_operands = 1 : i64, tpu.core_type = #tpu.core_type<tc>} {
    %cst = arith.constant 0.000000e+00 : f32
    %0 = vector.broadcast %cst : f32 to vector<12x6x192xf32>
    %c0 = arith.constant 0 : index
    %c0_0 = arith.constant 0 : index
    %c0_1 = arith.constant 0 : index
    %c0_2 = arith.constant 0 : index
    %1 = vector.load %arg0[%c0, %c0_0, %c0_1, %c0_2] : memref<2x8x8x16xbf16, #tpu.memory_space<vmem>>, vector<2x6x6x16xbf16>
    %2 = vector.shape_cast %1 : vector<2x6x6x16xbf16> to vector<12x6x16xbf16>
    %c0_3 = arith.constant 0 : index
    %c0_4 = arith.constant 0 : index
    %c0_5 = arith.constant 0 : index
    %3 = vector.load %arg1[%c0_3, %c0_4, %c0_5] : memref<9x16x192xbf16, #tpu.memory_space<vmem>>, vector<1x16x192xbf16>
    %4 = vector.shape_cast %3 : vector<1x16x192xbf16> to vector<16x192xbf16>
    %5 = vector.shape_cast %4 : vector<16x192xbf16> to vector<1x16x192xbf16>
    %6 = vector.broadcast %5 : vector<1x16x192xbf16> to vector<12x16x192xbf16>
    "tpu.trace_start"() <{level = 10 : i32, message = "bhx,bxk->bhk"}> : () -> ()
    %cst_6 = arith.constant dense<0.000000e+00> : vector<12x6x192xf32>
    %7 = tpu.matmul %2, %6, %cst_6 {dimension_numbers = #tpu.dot_dimension_numbers<[2], [1], [1], [2], [0, 0, 0, 1, 1, 2], [0], [0]>} : vector<12x6x16xbf16>, vector<12x16x192xbf16>, vector<12x6x192xf32> -> vector<12x6x192xf32>
    "tpu.trace_stop"() : () -> ()
    %8 = arith.addf %0, %7 : vector<12x6x192xf32>
    %c0_7 = arith.constant 0 : index
    %c0_8 = arith.constant 0 : index
    %c1 = arith.constant 1 : index
    %c0_9 = arith.constant 0 : index
    %9 = vector.load %arg0[%c0_7, %c0_8, %c1, %c0_9] : memref<2x8x8x16xbf16, #tpu.memory_space<vmem>>, vector<2x6x6x16xbf16>
    %10 = vector.shape_cast %9 : vector<2x6x6x16xbf16> to vector<12x6x16xbf16>
    %c1_10 = arith.constant 1 : index
    %c0_11 = arith.constant 0 : index
    %c0_12 = arith.constant 0 : index
    %11 = vector.load %arg1[%c1_10, %c0_11, %c0_12] : memref<9x16x192xbf16, #tpu.memory_space<vmem>>, vector<1x16x192xbf16>
    %12 = vector.shape_cast %11 : vector<1x16x192xbf16> to vector<16x192xbf16>
    %13 = vector.shape_cast %12 : vector<16x192xbf16> to vector<1x16x192xbf16>
    %14 = vector.broadcast %13 : vector<1x16x192xbf16> to vector<12x16x192xbf16>
    "tpu.trace_start"() <{level = 10 : i32, message = "bhx,bxk->bhk"}> : () -> ()
    %cst_13 = arith.constant dense<0.000000e+00> : vector<12x6x192xf32>
    %15 = tpu.matmul %10, %14, %cst_13 {dimension_numbers = #tpu.dot_dimension_numbers<[2], [1], [1], [2], [0, 0, 0, 1, 1, 2], [0], [0]>} : vector<12x6x16xbf16>, vector<12x16x192xbf16>, vector<12x6x192xf32> -> vector<12x6x192xf32>
    "tpu.trace_stop"() : () -> ()
    %16 = arith.addf %8, %15 : vector<12x6x192xf32>
    %c0_14 = arith.constant 0 : index
    %c0_15 = arith.constant 0 : index
    %c2 = arith.constant 2 : index
    %c0_16 = arith.constant 0 : index
    %17 = vector.load %arg0[%c0_14, %c0_15, %c2, %c0_16] : memref<2x8x8x16xbf16, #tpu.memory_space<vmem>>, vector<2x6x6x16xbf16>
    %18 = vector.shape_cast %17 : vector<2x6x6x16xbf16> to vector<12x6x16xbf16>
    %c2_17 = arith.constant 2 : index
    %c0_18 = arith.constant 0 : index
    %c0_19 = arith.constant 0 : index
    %19 = vector.load %arg1[%c2_17, %c0_18, %c0_19] : memref<9x16x192xbf16, #tpu.memory_space<vmem>>, vector<1x16x192xbf16>
    %20 = vector.shape_cast %19 : vector<1x16x192xbf16> to vector<16x192xbf16>
    %21 = vector.shape_cast %20 : vector<16x192xbf16> to vector<1x16x192xbf16>
    %22 = vector.broadcast %21 : vector<1x16x192xbf16> to vector<12x16x192xbf16>
    "tpu.trace_start"() <{level = 10 : i32, message = "bhx,bxk->bhk"}> : () -> ()
    %cst_20 = arith.constant dense<0.000000e+00> : vector<12x6x192xf32>
    %23 = tpu.matmul %18, %22, %cst_20 {dimension_numbers = #tpu.dot_dimension_numbers<[2], [1], [1], [2], [0, 0, 0, 1, 1, 2], [0], [0]>} : vector<12x6x16xbf16>, vector<12x16x192xbf16>, vector<12x6x192xf32> -> vector<12x6x192xf32>
    "tpu.trace_stop"() : () -> ()
    %24 = arith.addf %16, %23 : vector<12x6x192xf32>
    %c0_21 = arith.constant 0 : index
    %c1_22 = arith.constant 1 : index
    %c0_23 = arith.constant 0 : index
    %c0_24 = arith.constant 0 : index
    %25 = vector.load %arg0[%c0_21, %c1_22, %c0_23, %c0_24] : memref<2x8x8x16xbf16, #tpu.memory_space<vmem>>, vector<2x6x6x16xbf16>
    %26 = vector.shape_cast %25 : vector<2x6x6x16xbf16> to vector<12x6x16xbf16>
    %c3 = arith.constant 3 : index
    %c0_25 = arith.constant 0 : index
    %c0_26 = arith.constant 0 : index
    %27 = vector.load %arg1[%c3, %c0_25, %c0_26] : memref<9x16x192xbf16, #tpu.memory_space<vmem>>, vector<1x16x192xbf16>
    %28 = vector.shape_cast %27 : vector<1x16x192xbf16> to vector<16x192xbf16>
    %29 = vector.shape_cast %28 : vector<16x192xbf16> to vector<1x16x192xbf16>
    %30 = vector.broadcast %29 : vector<1x16x192xbf16> to vector<12x16x192xbf16>
    "tpu.trace_start"() <{level = 10 : i32, message = "bhx,bxk->bhk"}> : () -> ()
    %cst_27 = arith.constant dense<0.000000e+00> : vector<12x6x192xf32>
    %31 = tpu.matmul %26, %30, %cst_27 {dimension_numbers = #tpu.dot_dimension_numbers<[2], [1], [1], [2], [0, 0, 0, 1, 1, 2], [0], [0]>} : vector<12x6x16xbf16>, vector<12x16x192xbf16>, vector<12x6x192xf32> -> vector<12x6x192xf32>
    "tpu.trace_stop"() : () -> ()
    %32 = arith.addf %24, %31 : vector<12x6x192xf32>
    %c0_28 = arith.constant 0 : index
    %c1_29 = arith.constant 1 : index
    %c1_30 = arith.constant 1 : index
    %c0_31 = arith.constant 0 : index
    %33 = vector.load %arg0[%c0_28, %c1_29, %c1_30, %c0_31] : memref<2x8x8x16xbf16, #tpu.memory_space<vmem>>, vector<2x6x6x16xbf16>
    %34 = vector.shape_cast %33 : vector<2x6x6x16xbf16> to vector<12x6x16xbf16>
    %c4 = arith.constant 4 : index
    %c0_32 = arith.constant 0 : index
    %c0_33 = arith.constant 0 : index
    %35 = vector.load %arg1[%c4, %c0_32, %c0_33] : memref<9x16x192xbf16, #tpu.memory_space<vmem>>, vector<1x16x192xbf16>
    %36 = vector.shape_cast %35 : vector<1x16x192xbf16> to vector<16x192xbf16>
    %37 = vector.shape_cast %36 : vector<16x192xbf16> to vector<1x16x192xbf16>
    %38 = vector.broadcast %37 : vector<1x16x192xbf16> to vector<12x16x192xbf16>
    "tpu.trace_start"() <{level = 10 : i32, message = "bhx,bxk->bhk"}> : () -> ()
    %cst_34 = arith.constant dense<0.000000e+00> : vector<12x6x192xf32>
    %39 = tpu.matmul %34, %38, %cst_34 {dimension_numbers = #tpu.dot_dimension_numbers<[2], [1], [1], [2], [0, 0, 0, 1, 1, 2], [0], [0]>} : vector<12x6x16xbf16>, vector<12x16x192xbf16>, vector<12x6x192xf32> -> vector<12x6x192xf32>
    "tpu.trace_stop"() : () -> ()
    %40 = arith.addf %32, %39 : vector<12x6x192xf32>
    %c0_35 = arith.constant 0 : index
    %c1_36 = arith.constant 1 : index
    %c2_37 = arith.constant 2 : index
    %c0_38 = arith.constant 0 : index
    %41 = vector.load %arg0[%c0_35, %c1_36, %c2_37, %c0_38] : memref<2x8x8x16xbf16, #tpu.memory_space<vmem>>, vector<2x6x6x16xbf16>
    %42 = vector.shape_cast %41 : vector<2x6x6x16xbf16> to vector<12x6x16xbf16>
    %c5 = arith.constant 5 : index
    %c0_39 = arith.constant 0 : index
    %c0_40 = arith.constant 0 : index
    %43 = vector.load %arg1[%c5, %c0_39, %c0_40] : memref<9x16x192xbf16, #tpu.memory_space<vmem>>, vector<1x16x192xbf16>
    %44 = vector.shape_cast %43 : vector<1x16x192xbf16> to vector<16x192xbf16>
    %45 = vector.shape_cast %44 : vector<16x192xbf16> to vector<1x16x192xbf16>
    %46 = vector.broadcast %45 : vector<1x16x192xbf16> to vector<12x16x192xbf16>
    "tpu.trace_start"() <{level = 10 : i32, message = "bhx,bxk->bhk"}> : () -> ()
    %cst_41 = arith.constant dense<0.000000e+00> : vector<12x6x192xf32>
    %47 = tpu.matmul %42, %46, %cst_41 {dimension_numbers = #tpu.dot_dimension_numbers<[2], [1], [1], [2], [0, 0, 0, 1, 1, 2], [0], [0]>} : vector<12x6x16xbf16>, vector<12x16x192xbf16>, vector<12x6x192xf32> -> vector<12x6x192xf32>
    "tpu.trace_stop"() : () -> ()
    %48 = arith.addf %40, %47 : vector<12x6x192xf32>
    %c0_42 = arith.constant 0 : index
    %c2_43 = arith.constant 2 : index
    %c0_44 = arith.constant 0 : index
    %c0_45 = arith.constant 0 : index
    %49 = vector.load %arg0[%c0_42, %c2_43, %c0_44, %c0_45] : memref<2x8x8x16xbf16, #tpu.memory_space<vmem>>, vector<2x6x6x16xbf16>
    %50 = vector.shape_cast %49 : vector<2x6x6x16xbf16> to vector<12x6x16xbf16>
    %c6 = arith.constant 6 : index
    %c0_46 = arith.constant 0 : index
    %c0_47 = arith.constant 0 : index
    %51 = vector.load %arg1[%c6, %c0_46, %c0_47] : memref<9x16x192xbf16, #tpu.memory_space<vmem>>, vector<1x16x192xbf16>
    %52 = vector.shape_cast %51 : vector<1x16x192xbf16> to vector<16x192xbf16>
    %53 = vector.shape_cast %52 : vector<16x192xbf16> to vector<1x16x192xbf16>
    %54 = vector.broadcast %53 : vector<1x16x192xbf16> to vector<12x16x192xbf16>
    "tpu.trace_start"() <{level = 10 : i32, message = "bhx,bxk->bhk"}> : () -> ()
    %cst_48 = arith.constant dense<0.000000e+00> : vector<12x6x192xf32>
    %55 = tpu.matmul %50, %54, %cst_48 {dimension_numbers = #tpu.dot_dimension_numbers<[2], [1], [1], [2], [0, 0, 0, 1, 1, 2], [0], [0]>} : vector<12x6x16xbf16>, vector<12x16x192xbf16>, vector<12x6x192xf32> -> vector<12x6x192xf32>
    "tpu.trace_stop"() : () -> ()
    %56 = arith.addf %48, %55 : vector<12x6x192xf32>
    %c0_49 = arith.constant 0 : index
    %c2_50 = arith.constant 2 : index
    %c1_51 = arith.constant 1 : index
    %c0_52 = arith.constant 0 : index
    %57 = vector.load %arg0[%c0_49, %c2_50, %c1_51, %c0_52] : memref<2x8x8x16xbf16, #tpu.memory_space<vmem>>, vector<2x6x6x16xbf16>
    %58 = vector.shape_cast %57 : vector<2x6x6x16xbf16> to vector<12x6x16xbf16>
    %c7 = arith.constant 7 : index
    %c0_53 = arith.constant 0 : index
    %c0_54 = arith.constant 0 : index
    %59 = vector.load %arg1[%c7, %c0_53, %c0_54] : memref<9x16x192xbf16, #tpu.memory_space<vmem>>, vector<1x16x192xbf16>
    %60 = vector.shape_cast %59 : vector<1x16x192xbf16> to vector<16x192xbf16>
    %61 = vector.shape_cast %60 : vector<16x192xbf16> to vector<1x16x192xbf16>
    %62 = vector.broadcast %61 : vector<1x16x192xbf16> to vector<12x16x192xbf16>
    "tpu.trace_start"() <{level = 10 : i32, message = "bhx,bxk->bhk"}> : () -> ()
    %cst_55 = arith.constant dense<0.000000e+00> : vector<12x6x192xf32>
    %63 = tpu.matmul %58, %62, %cst_55 {dimension_numbers = #tpu.dot_dimension_numbers<[2], [1], [1], [2], [0, 0, 0, 1, 1, 2], [0], [0]>} : vector<12x6x16xbf16>, vector<12x16x192xbf16>, vector<12x6x192xf32> -> vector<12x6x192xf32>
    "tpu.trace_stop"() : () -> ()
    %64 = arith.addf %56, %63 : vector<12x6x192xf32>
    %c0_56 = arith.constant 0 : index
    %c2_57 = arith.constant 2 : index
    %c2_58 = arith.constant 2 : index
    %c0_59 = arith.constant 0 : index
    %65 = vector.load %arg0[%c0_56, %c2_57, %c2_58, %c0_59] : memref<2x8x8x16xbf16, #tpu.memory_space<vmem>>, vector<2x6x6x16xbf16>
    %66 = vector.shape_cast %65 : vector<2x6x6x16xbf16> to vector<12x6x16xbf16>
    %c8 = arith.constant 8 : index
    %c0_60 = arith.constant 0 : index
    %c0_61 = arith.constant 0 : index
    %67 = vector.load %arg1[%c8, %c0_60, %c0_61] : memref<9x16x192xbf16, #tpu.memory_space<vmem>>, vector<1x16x192xbf16>
    %68 = vector.shape_cast %67 : vector<1x16x192xbf16> to vector<16x192xbf16>
    %69 = vector.shape_cast %68 : vector<16x192xbf16> to vector<1x16x192xbf16>
    %70 = vector.broadcast %69 : vector<1x16x192xbf16> to vector<12x16x192xbf16>
    "tpu.trace_start"() <{level = 10 : i32, message = "bhx,bxk->bhk"}> : () -> ()
    %cst_62 = arith.constant dense<0.000000e+00> : vector<12x6x192xf32>
    %71 = tpu.matmul %66, %70, %cst_62 {dimension_numbers = #tpu.dot_dimension_numbers<[2], [1], [1], [2], [0, 0, 0, 1, 1, 2], [0], [0]>} : vector<12x6x16xbf16>, vector<12x16x192xbf16>, vector<12x6x192xf32> -> vector<12x6x192xf32>
    "tpu.trace_stop"() : () -> ()
    %72 = arith.addf %64, %71 : vector<12x6x192xf32>
    %cst_63 = arith.constant dense<0.000000e+00> : vector<12x192xf32>
    %73 = vector.multi_reduction <add>, %72, %cst_63 [1] : vector<12x6x192xf32> to vector<12x192xf32>
    %74 = vector.shape_cast %73 : vector<12x192xf32> to vector<12x1x192xf32>
    %cst_64 = arith.constant dense<0.000000e+00> : vector<1x192xf32>
    %75 = vector.multi_reduction <add>, %74, %cst_64 [0] : vector<12x1x192xf32> to vector<1x192xf32>
    %76 = vector.shape_cast %75 : vector<1x192xf32> to vector<1x1x192xf32>
    %77 = vector.shape_cast %76 : vector<1x1x192xf32> to vector<1x192xf32>
    %78 = arith.mulf %72, %72 : vector<12x6x192xf32>
    %cst_65 = arith.constant dense<0.000000e+00> : vector<12x192xf32>
    %79 = vector.multi_reduction <add>, %78, %cst_65 [1] : vector<12x6x192xf32> to vector<12x192xf32>
    %80 = vector.shape_cast %79 : vector<12x192xf32> to vector<12x1x192xf32>
    %cst_66 = arith.constant dense<0.000000e+00> : vector<1x192xf32>
    %81 = vector.multi_reduction <add>, %80, %cst_66 [0] : vector<12x1x192xf32> to vector<1x192xf32>
    %82 = vector.shape_cast %81 : vector<1x192xf32> to vector<1x1x192xf32>
    %83 = vector.shape_cast %82 : vector<1x1x192xf32> to vector<1x192xf32>
    %c0_67 = arith.constant 0 : index
    %c0_68 = arith.constant 0 : index
    %84 = vector.load %arg3[%c0_67, %c0_68] : memref<192x32xf32, #tpu.memory_space<vmem>>, vector<192x32xf32>
    %cst_69 = arith.constant dense<0.000000e+00> : vector<1x32xf32>
    %85 = tpu.matmul %77, %84, %cst_69 {dimension_numbers = #tpu.dot_dimension_numbers<[1], [0], [0], [1], [0, 0, 1, 1], [], []>} : vector<1x192xf32>, vector<192x32xf32>, vector<1x32xf32> -> vector<1x32xf32>
    %cst_70 = arith.constant 0.00231481483 : f32
    %86 = vector.broadcast %cst_70 : f32 to vector<1x32xf32>
    %87 = arith.mulf %85, %86 : vector<1x32xf32>
    %c0_71 = arith.constant 0 : index
    %c0_72 = arith.constant 0 : index
    %88 = vector.load %arg3[%c0_71, %c0_72] : memref<192x32xf32, #tpu.memory_space<vmem>>, vector<192x32xf32>
    %cst_73 = arith.constant dense<0.000000e+00> : vector<1x32xf32>
    %89 = tpu.matmul %83, %88, %cst_73 {dimension_numbers = #tpu.dot_dimension_numbers<[1], [0], [0], [1], [0, 0, 1, 1], [], []>} : vector<1x192xf32>, vector<192x32xf32>, vector<1x32xf32> -> vector<1x32xf32>
    %cst_74 = arith.constant 0.00231481483 : f32
    %90 = vector.broadcast %cst_74 : f32 to vector<1x32xf32>
    %91 = arith.mulf %89, %90 : vector<1x32xf32>
    %92 = arith.mulf %87, %87 : vector<1x32xf32>
    %93 = arith.subf %91, %92 : vector<1x32xf32>
    %cst_75 = arith.constant 0.000000e+00 : f32
    %94 = vector.broadcast %cst_75 : f32 to vector<1x32xf32>
    %95 = arith.maximumf %93, %94 : vector<1x32xf32>
    %c0_76 = arith.constant 0 : index
    %c0_77 = arith.constant 0 : index
    %96 = vector.load %arg7[%c0_76, %c0_77] : memref<1x32xf32, #tpu.memory_space<vmem>>, vector<1x32xf32>
    %cst_78 = arith.constant 9.99999974E-6 : f32
    %97 = vector.broadcast %cst_78 : f32 to vector<1x32xf32>
    %98 = arith.addf %95, %97 : vector<1x32xf32>
    %99 = math.rsqrt %98 : vector<1x32xf32>
    %100 = arith.mulf %96, %99 : vector<1x32xf32>
    %c0_79 = arith.constant 0 : index
    %c0_80 = arith.constant 0 : index
    %101 = vector.load %arg8[%c0_79, %c0_80] : memref<1x32xf32, #tpu.memory_space<vmem>>, vector<1x32xf32>
    %102 = arith.mulf %87, %100 : vector<1x32xf32>
    %103 = arith.subf %101, %102 : vector<1x32xf32>
    %c0_81 = arith.constant 0 : index
    %c0_82 = arith.constant 0 : index
    %104 = vector.load %arg4[%c0_81, %c0_82] : memref<32x192xf32, #tpu.memory_space<vmem>>, vector<32x192xf32>
    %cst_83 = arith.constant dense<0.000000e+00> : vector<1x192xf32>
    %105 = tpu.matmul %100, %104, %cst_83 {dimension_numbers = #tpu.dot_dimension_numbers<[1], [0], [0], [1], [0, 0, 1, 1], [], []>} : vector<1x32xf32>, vector<32x192xf32>, vector<1x192xf32> -> vector<1x192xf32>
    %c0_84 = arith.constant 0 : index
    %c0_85 = arith.constant 0 : index
    %106 = vector.load %arg4[%c0_84, %c0_85] : memref<32x192xf32, #tpu.memory_space<vmem>>, vector<32x192xf32>
    %cst_86 = arith.constant dense<0.000000e+00> : vector<1x192xf32>
    %107 = tpu.matmul %103, %106, %cst_86 {dimension_numbers = #tpu.dot_dimension_numbers<[1], [0], [0], [1], [0, 0, 1, 1], [], []>} : vector<1x32xf32>, vector<32x192xf32>, vector<1x192xf32> -> vector<1x192xf32>
    %108 = vector.shape_cast %105 : vector<1x192xf32> to vector<1x1x192xf32>
    %109 = vector.broadcast %108 : vector<1x1x192xf32> to vector<12x6x192xf32>
    %110 = arith.mulf %72, %109 : vector<12x6x192xf32>
    %111 = vector.shape_cast %107 : vector<1x192xf32> to vector<1x1x192xf32>
    %112 = vector.broadcast %111 : vector<1x1x192xf32> to vector<12x6x192xf32>
    %113 = arith.addf %110, %112 : vector<12x6x192xf32>
    %cst_87 = arith.constant 0.000000e+00 : f32
    %114 = vector.broadcast %cst_87 : f32 to vector<12x6x192xf32>
    %115 = arith.maximumf %113, %114 : vector<12x6x192xf32>
    %116 = vector.shape_cast %115 : vector<12x6x192xf32> to vector<2x6x6x192xf32>
    %117 = arith.truncf %116 : vector<2x6x6x192xf32> to vector<2x6x6x192xbf16>
    %c0_88 = arith.constant 0 : index
    %c0_89 = arith.constant 0 : index
    %c0_90 = arith.constant 0 : index
    %c0_91 = arith.constant 0 : index
    %118 = vector.load %arg12[%c0_88, %c0_89, %c0_90, %c0_91] : memref<2x6x6x192xbf16, #tpu.memory_space<vmem>>, vector<2x6x6x192xbf16>
    tpu.vector_store %arg12[%c0_88, %c0_89, %c0_90, %c0_91], %117 {strides = array<i32>} : memref<2x6x6x192xbf16, #tpu.memory_space<vmem>>, vector<2x6x6x192xbf16>,
    %cst_92 = arith.constant 0.000000e+00 : f32
    %119 = vector.broadcast %cst_92 : f32 to vector<8x4x32xf32>
    %c0_93 = arith.constant 0 : index
    %c0_94 = arith.constant 0 : index
    %c0_95 = arith.constant 0 : index
    %c0_96 = arith.constant 0 : index
    %120 = vector.load %arg12[%c0_93, %c0_94, %c0_95, %c0_96] : memref<2x6x6x192xbf16, #tpu.memory_space<vmem>>, vector<2x4x4x192xbf16>
    %121 = vector.shape_cast %120 : vector<2x4x4x192xbf16> to vector<8x4x192xbf16>
    %c0_97 = arith.constant 0 : index
    %c0_98 = arith.constant 0 : index
    %c0_99 = arith.constant 0 : index
    %122 = vector.load %arg2[%c0_97, %c0_98, %c0_99] : memref<9x192x32xbf16, #tpu.memory_space<vmem>>, vector<1x192x32xbf16>
    %123 = vector.shape_cast %122 : vector<1x192x32xbf16> to vector<192x32xbf16>
    %124 = vector.shape_cast %123 : vector<192x32xbf16> to vector<1x192x32xbf16>
    %125 = vector.broadcast %124 : vector<1x192x32xbf16> to vector<8x192x32xbf16>
    "tpu.trace_start"() <{level = 10 : i32, message = "bhx,bxk->bhk"}> : () -> ()
    %cst_100 = arith.constant dense<0.000000e+00> : vector<8x4x32xf32>
    %126 = tpu.matmul %121, %125, %cst_100 {dimension_numbers = #tpu.dot_dimension_numbers<[2], [1], [1], [2], [0, 0, 0, 1, 1, 2], [0], [0]>} : vector<8x4x192xbf16>, vector<8x192x32xbf16>, vector<8x4x32xf32> -> vector<8x4x32xf32>
    "tpu.trace_stop"() : () -> ()
    %127 = arith.addf %119, %126 : vector<8x4x32xf32>
    %c0_101 = arith.constant 0 : index
    %c0_102 = arith.constant 0 : index
    %c1_103 = arith.constant 1 : index
    %c0_104 = arith.constant 0 : index
    %128 = vector.load %arg12[%c0_101, %c0_102, %c1_103, %c0_104] : memref<2x6x6x192xbf16, #tpu.memory_space<vmem>>, vector<2x4x4x192xbf16>
    %129 = vector.shape_cast %128 : vector<2x4x4x192xbf16> to vector<8x4x192xbf16>
    %c1_105 = arith.constant 1 : index
    %c0_106 = arith.constant 0 : index
    %c0_107 = arith.constant 0 : index
    %130 = vector.load %arg2[%c1_105, %c0_106, %c0_107] : memref<9x192x32xbf16, #tpu.memory_space<vmem>>, vector<1x192x32xbf16>
    %131 = vector.shape_cast %130 : vector<1x192x32xbf16> to vector<192x32xbf16>
    %132 = vector.shape_cast %131 : vector<192x32xbf16> to vector<1x192x32xbf16>
    %133 = vector.broadcast %132 : vector<1x192x32xbf16> to vector<8x192x32xbf16>
    "tpu.trace_start"() <{level = 10 : i32, message = "bhx,bxk->bhk"}> : () -> ()
    %cst_108 = arith.constant dense<0.000000e+00> : vector<8x4x32xf32>
    %134 = tpu.matmul %129, %133, %cst_108 {dimension_numbers = #tpu.dot_dimension_numbers<[2], [1], [1], [2], [0, 0, 0, 1, 1, 2], [0], [0]>} : vector<8x4x192xbf16>, vector<8x192x32xbf16>, vector<8x4x32xf32> -> vector<8x4x32xf32>
    "tpu.trace_stop"() : () -> ()
    %135 = arith.addf %127, %134 : vector<8x4x32xf32>
    %c0_109 = arith.constant 0 : index
    %c0_110 = arith.constant 0 : index
    %c2_111 = arith.constant 2 : index
    %c0_112 = arith.constant 0 : index
    %136 = vector.load %arg12[%c0_109, %c0_110, %c2_111, %c0_112] : memref<2x6x6x192xbf16, #tpu.memory_space<vmem>>, vector<2x4x4x192xbf16>
    %137 = vector.shape_cast %136 : vector<2x4x4x192xbf16> to vector<8x4x192xbf16>
    %c2_113 = arith.constant 2 : index
    %c0_114 = arith.constant 0 : index
    %c0_115 = arith.constant 0 : index
    %138 = vector.load %arg2[%c2_113, %c0_114, %c0_115] : memref<9x192x32xbf16, #tpu.memory_space<vmem>>, vector<1x192x32xbf16>
    %139 = vector.shape_cast %138 : vector<1x192x32xbf16> to vector<192x32xbf16>
    %140 = vector.shape_cast %139 : vector<192x32xbf16> to vector<1x192x32xbf16>
    %141 = vector.broadcast %140 : vector<1x192x32xbf16> to vector<8x192x32xbf16>
    "tpu.trace_start"() <{level = 10 : i32, message = "bhx,bxk->bhk"}> : () -> ()
    %cst_116 = arith.constant dense<0.000000e+00> : vector<8x4x32xf32>
    %142 = tpu.matmul %137, %141, %cst_116 {dimension_numbers = #tpu.dot_dimension_numbers<[2], [1], [1], [2], [0, 0, 0, 1, 1, 2], [0], [0]>} : vector<8x4x192xbf16>, vector<8x192x32xbf16>, vector<8x4x32xf32> -> vector<8x4x32xf32>
    "tpu.trace_stop"() : () -> ()
    %143 = arith.addf %135, %142 : vector<8x4x32xf32>
    %c0_117 = arith.constant 0 : index
    %c1_118 = arith.constant 1 : index
    %c0_119 = arith.constant 0 : index
    %c0_120 = arith.constant 0 : index
    %144 = vector.load %arg12[%c0_117, %c1_118, %c0_119, %c0_120] : memref<2x6x6x192xbf16, #tpu.memory_space<vmem>>, vector<2x4x4x192xbf16>
    %145 = vector.shape_cast %144 : vector<2x4x4x192xbf16> to vector<8x4x192xbf16>
    %c3_121 = arith.constant 3 : index
    %c0_122 = arith.constant 0 : index
    %c0_123 = arith.constant 0 : index
    %146 = vector.load %arg2[%c3_121, %c0_122, %c0_123] : memref<9x192x32xbf16, #tpu.memory_space<vmem>>, vector<1x192x32xbf16>
    %147 = vector.shape_cast %146 : vector<1x192x32xbf16> to vector<192x32xbf16>
    %148 = vector.shape_cast %147 : vector<192x32xbf16> to vector<1x192x32xbf16>
    %149 = vector.broadcast %148 : vector<1x192x32xbf16> to vector<8x192x32xbf16>
    "tpu.trace_start"() <{level = 10 : i32, message = "bhx,bxk->bhk"}> : () -> ()
    %cst_124 = arith.constant dense<0.000000e+00> : vector<8x4x32xf32>
    %150 = tpu.matmul %145, %149, %cst_124 {dimension_numbers = #tpu.dot_dimension_numbers<[2], [1], [1], [2], [0, 0, 0, 1, 1, 2], [0], [0]>} : vector<8x4x192xbf16>, vector<8x192x32xbf16>, vector<8x4x32xf32> -> vector<8x4x32xf32>
    "tpu.trace_stop"() : () -> ()
    %151 = arith.addf %143, %150 : vector<8x4x32xf32>
    %c0_125 = arith.constant 0 : index
    %c1_126 = arith.constant 1 : index
    %c1_127 = arith.constant 1 : index
    %c0_128 = arith.constant 0 : index
    %152 = vector.load %arg12[%c0_125, %c1_126, %c1_127, %c0_128] : memref<2x6x6x192xbf16, #tpu.memory_space<vmem>>, vector<2x4x4x192xbf16>
    %153 = vector.shape_cast %152 : vector<2x4x4x192xbf16> to vector<8x4x192xbf16>
    %c4_129 = arith.constant 4 : index
    %c0_130 = arith.constant 0 : index
    %c0_131 = arith.constant 0 : index
    %154 = vector.load %arg2[%c4_129, %c0_130, %c0_131] : memref<9x192x32xbf16, #tpu.memory_space<vmem>>, vector<1x192x32xbf16>
    %155 = vector.shape_cast %154 : vector<1x192x32xbf16> to vector<192x32xbf16>
    %156 = vector.shape_cast %155 : vector<192x32xbf16> to vector<1x192x32xbf16>
    %157 = vector.broadcast %156 : vector<1x192x32xbf16> to vector<8x192x32xbf16>
    "tpu.trace_start"() <{level = 10 : i32, message = "bhx,bxk->bhk"}> : () -> ()
    %cst_132 = arith.constant dense<0.000000e+00> : vector<8x4x32xf32>
    %158 = tpu.matmul %153, %157, %cst_132 {dimension_numbers = #tpu.dot_dimension_numbers<[2], [1], [1], [2], [0, 0, 0, 1, 1, 2], [0], [0]>} : vector<8x4x192xbf16>, vector<8x192x32xbf16>, vector<8x4x32xf32> -> vector<8x4x32xf32>
    "tpu.trace_stop"() : () -> ()
    %159 = arith.addf %151, %158 : vector<8x4x32xf32>
    %c0_133 = arith.constant 0 : index
    %c1_134 = arith.constant 1 : index
    %c2_135 = arith.constant 2 : index
    %c0_136 = arith.constant 0 : index
    %160 = vector.load %arg12[%c0_133, %c1_134, %c2_135, %c0_136] : memref<2x6x6x192xbf16, #tpu.memory_space<vmem>>, vector<2x4x4x192xbf16>
    %161 = vector.shape_cast %160 : vector<2x4x4x192xbf16> to vector<8x4x192xbf16>
    %c5_137 = arith.constant 5 : index
    %c0_138 = arith.constant 0 : index
    %c0_139 = arith.constant 0 : index
    %162 = vector.load %arg2[%c5_137, %c0_138, %c0_139] : memref<9x192x32xbf16, #tpu.memory_space<vmem>>, vector<1x192x32xbf16>
    %163 = vector.shape_cast %162 : vector<1x192x32xbf16> to vector<192x32xbf16>
    %164 = vector.shape_cast %163 : vector<192x32xbf16> to vector<1x192x32xbf16>
    %165 = vector.broadcast %164 : vector<1x192x32xbf16> to vector<8x192x32xbf16>
    "tpu.trace_start"() <{level = 10 : i32, message = "bhx,bxk->bhk"}> : () -> ()
    %cst_140 = arith.constant dense<0.000000e+00> : vector<8x4x32xf32>
    %166 = tpu.matmul %161, %165, %cst_140 {dimension_numbers = #tpu.dot_dimension_numbers<[2], [1], [1], [2], [0, 0, 0, 1, 1, 2], [0], [0]>} : vector<8x4x192xbf16>, vector<8x192x32xbf16>, vector<8x4x32xf32> -> vector<8x4x32xf32>
    "tpu.trace_stop"() : () -> ()
    %167 = arith.addf %159, %166 : vector<8x4x32xf32>
    %c0_141 = arith.constant 0 : index
    %c2_142 = arith.constant 2 : index
    %c0_143 = arith.constant 0 : index
    %c0_144 = arith.constant 0 : index
    %168 = vector.load %arg12[%c0_141, %c2_142, %c0_143, %c0_144] : memref<2x6x6x192xbf16, #tpu.memory_space<vmem>>, vector<2x4x4x192xbf16>
    %169 = vector.shape_cast %168 : vector<2x4x4x192xbf16> to vector<8x4x192xbf16>
    %c6_145 = arith.constant 6 : index
    %c0_146 = arith.constant 0 : index
    %c0_147 = arith.constant 0 : index
    %170 = vector.load %arg2[%c6_145, %c0_146, %c0_147] : memref<9x192x32xbf16, #tpu.memory_space<vmem>>, vector<1x192x32xbf16>
    %171 = vector.shape_cast %170 : vector<1x192x32xbf16> to vector<192x32xbf16>
    %172 = vector.shape_cast %171 : vector<192x32xbf16> to vector<1x192x32xbf16>
    %173 = vector.broadcast %172 : vector<1x192x32xbf16> to vector<8x192x32xbf16>
    "tpu.trace_start"() <{level = 10 : i32, message = "bhx,bxk->bhk"}> : () -> ()
    %cst_148 = arith.constant dense<0.000000e+00> : vector<8x4x32xf32>
    %174 = tpu.matmul %169, %173, %cst_148 {dimension_numbers = #tpu.dot_dimension_numbers<[2], [1], [1], [2], [0, 0, 0, 1, 1, 2], [0], [0]>} : vector<8x4x192xbf16>, vector<8x192x32xbf16>, vector<8x4x32xf32> -> vector<8x4x32xf32>
    "tpu.trace_stop"() : () -> ()
    %175 = arith.addf %167, %174 : vector<8x4x32xf32>
    %c0_149 = arith.constant 0 : index
    %c2_150 = arith.constant 2 : index
    %c1_151 = arith.constant 1 : index
    %c0_152 = arith.constant 0 : index
    %176 = vector.load %arg12[%c0_149, %c2_150, %c1_151, %c0_152] : memref<2x6x6x192xbf16, #tpu.memory_space<vmem>>, vector<2x4x4x192xbf16>
    %177 = vector.shape_cast %176 : vector<2x4x4x192xbf16> to vector<8x4x192xbf16>
    %c7_153 = arith.constant 7 : index
    %c0_154 = arith.constant 0 : index
    %c0_155 = arith.constant 0 : index
    %178 = vector.load %arg2[%c7_153, %c0_154, %c0_155] : memref<9x192x32xbf16, #tpu.memory_space<vmem>>, vector<1x192x32xbf16>
    %179 = vector.shape_cast %178 : vector<1x192x32xbf16> to vector<192x32xbf16>
    %180 = vector.shape_cast %179 : vector<192x32xbf16> to vector<1x192x32xbf16>
    %181 = vector.broadcast %180 : vector<1x192x32xbf16> to vector<8x192x32xbf16>
    "tpu.trace_start"() <{level = 10 : i32, message = "bhx,bxk->bhk"}> : () -> ()
    %cst_156 = arith.constant dense<0.000000e+00> : vector<8x4x32xf32>
    %182 = tpu.matmul %177, %181, %cst_156 {dimension_numbers = #tpu.dot_dimension_numbers<[2], [1], [1], [2], [0, 0, 0, 1, 1, 2], [0], [0]>} : vector<8x4x192xbf16>, vector<8x192x32xbf16>, vector<8x4x32xf32> -> vector<8x4x32xf32>
    "tpu.trace_stop"() : () -> ()
    %183 = arith.addf %175, %182 : vector<8x4x32xf32>
    %c0_157 = arith.constant 0 : index
    %c2_158 = arith.constant 2 : index
    %c2_159 = arith.constant 2 : index
    %c0_160 = arith.constant 0 : index
    %184 = vector.load %arg12[%c0_157, %c2_158, %c2_159, %c0_160] : memref<2x6x6x192xbf16, #tpu.memory_space<vmem>>, vector<2x4x4x192xbf16>
    %185 = vector.shape_cast %184 : vector<2x4x4x192xbf16> to vector<8x4x192xbf16>
    %c8_161 = arith.constant 8 : index
    %c0_162 = arith.constant 0 : index
    %c0_163 = arith.constant 0 : index
    %186 = vector.load %arg2[%c8_161, %c0_162, %c0_163] : memref<9x192x32xbf16, #tpu.memory_space<vmem>>, vector<1x192x32xbf16>
    %187 = vector.shape_cast %186 : vector<1x192x32xbf16> to vector<192x32xbf16>
    %188 = vector.shape_cast %187 : vector<192x32xbf16> to vector<1x192x32xbf16>
    %189 = vector.broadcast %188 : vector<1x192x32xbf16> to vector<8x192x32xbf16>
    "tpu.trace_start"() <{level = 10 : i32, message = "bhx,bxk->bhk"}> : () -> ()
    %cst_164 = arith.constant dense<0.000000e+00> : vector<8x4x32xf32>
    %190 = tpu.matmul %185, %189, %cst_164 {dimension_numbers = #tpu.dot_dimension_numbers<[2], [1], [1], [2], [0, 0, 0, 1, 1, 2], [0], [0]>} : vector<8x4x192xbf16>, vector<8x192x32xbf16>, vector<8x4x32xf32> -> vector<8x4x32xf32>
    "tpu.trace_stop"() : () -> ()
    %191 = arith.addf %183, %190 : vector<8x4x32xf32>
    %cst_165 = arith.constant dense<0.000000e+00> : vector<8x32xf32>
    %192 = vector.multi_reduction <add>, %191, %cst_165 [1] : vector<8x4x32xf32> to vector<8x32xf32>
    %193 = vector.shape_cast %192 : vector<8x32xf32> to vector<8x1x32xf32>
    %cst_166 = arith.constant dense<0.000000e+00> : vector<1x32xf32>
    %194 = vector.multi_reduction <add>, %193, %cst_166 [0] : vector<8x1x32xf32> to vector<1x32xf32>
    %195 = vector.shape_cast %194 : vector<1x32xf32> to vector<1x1x32xf32>
    %196 = vector.shape_cast %195 : vector<1x1x32xf32> to vector<1x32xf32>
    %197 = arith.mulf %191, %191 : vector<8x4x32xf32>
    %cst_167 = arith.constant dense<0.000000e+00> : vector<8x32xf32>
    %198 = vector.multi_reduction <add>, %197, %cst_167 [1] : vector<8x4x32xf32> to vector<8x32xf32>
    %199 = vector.shape_cast %198 : vector<8x32xf32> to vector<8x1x32xf32>
    %cst_168 = arith.constant dense<0.000000e+00> : vector<1x32xf32>
    %200 = vector.multi_reduction <add>, %199, %cst_168 [0] : vector<8x1x32xf32> to vector<1x32xf32>
    %201 = vector.shape_cast %200 : vector<1x32xf32> to vector<1x1x32xf32>
    %202 = vector.shape_cast %201 : vector<1x1x32xf32> to vector<1x32xf32>
    %c0_169 = arith.constant 0 : index
    %c0_170 = arith.constant 0 : index
    %203 = vector.load %arg5[%c0_169, %c0_170] : memref<32x8xf32, #tpu.memory_space<vmem>>, vector<32x8xf32>
    %cst_171 = arith.constant dense<0.000000e+00> : vector<1x8xf32>
    %204 = tpu.matmul %196, %203, %cst_171 {dimension_numbers = #tpu.dot_dimension_numbers<[1], [0], [0], [1], [0, 0, 1, 1], [], []>} : vector<1x32xf32>, vector<32x8xf32>, vector<1x8xf32> -> vector<1x8xf32>
    %cst_172 = arith.constant 7.812500e-03 : f32
    %205 = vector.broadcast %cst_172 : f32 to vector<1x8xf32>
    %206 = arith.mulf %204, %205 : vector<1x8xf32>
    %c0_173 = arith.constant 0 : index
    %c0_174 = arith.constant 0 : index
    %207 = vector.load %arg5[%c0_173, %c0_174] : memref<32x8xf32, #tpu.memory_space<vmem>>, vector<32x8xf32>
    %cst_175 = arith.constant dense<0.000000e+00> : vector<1x8xf32>
    %208 = tpu.matmul %202, %207, %cst_175 {dimension_numbers = #tpu.dot_dimension_numbers<[1], [0], [0], [1], [0, 0, 1, 1], [], []>} : vector<1x32xf32>, vector<32x8xf32>, vector<1x8xf32> -> vector<1x8xf32>
    %cst_176 = arith.constant 7.812500e-03 : f32
    %209 = vector.broadcast %cst_176 : f32 to vector<1x8xf32>
    %210 = arith.mulf %208, %209 : vector<1x8xf32>
    %211 = arith.mulf %206, %206 : vector<1x8xf32>
    %212 = arith.subf %210, %211 : vector<1x8xf32>
    %cst_177 = arith.constant 0.000000e+00 : f32
    %213 = vector.broadcast %cst_177 : f32 to vector<1x8xf32>
    %214 = arith.maximumf %212, %213 : vector<1x8xf32>
    %c0_178 = arith.constant 0 : index
    %c0_179 = arith.constant 0 : index
    %215 = vector.load %arg9[%c0_178, %c0_179] : memref<1x8xf32, #tpu.memory_space<vmem>>, vector<1x8xf32>
    %cst_180 = arith.constant 9.99999974E-6 : f32
    %216 = vector.broadcast %cst_180 : f32 to vector<1x8xf32>
    %217 = arith.addf %214, %216 : vector<1x8xf32>
    %218 = math.rsqrt %217 : vector<1x8xf32>
    %219 = arith.mulf %215, %218 : vector<1x8xf32>
    %c0_181 = arith.constant 0 : index
    %c0_182 = arith.constant 0 : index
    %220 = vector.load %arg10[%c0_181, %c0_182] : memref<1x8xf32, #tpu.memory_space<vmem>>, vector<1x8xf32>
    %221 = arith.mulf %206, %219 : vector<1x8xf32>
    %222 = arith.subf %220, %221 : vector<1x8xf32>
    %c0_183 = arith.constant 0 : index
    %c0_184 = arith.constant 0 : index
    %223 = vector.load %arg6[%c0_183, %c0_184] : memref<8x32xf32, #tpu.memory_space<vmem>>, vector<8x32xf32>
    %cst_185 = arith.constant dense<0.000000e+00> : vector<1x32xf32>
    %224 = tpu.matmul %219, %223, %cst_185 {dimension_numbers = #tpu.dot_dimension_numbers<[1], [0], [0], [1], [0, 0, 1, 1], [], []>} : vector<1x8xf32>, vector<8x32xf32>, vector<1x32xf32> -> vector<1x32xf32>
    %c0_186 = arith.constant 0 : index
    %c0_187 = arith.constant 0 : index
    %225 = vector.load %arg6[%c0_186, %c0_187] : memref<8x32xf32, #tpu.memory_space<vmem>>, vector<8x32xf32>
    %cst_188 = arith.constant dense<0.000000e+00> : vector<1x32xf32>
    %226 = tpu.matmul %222, %225, %cst_188 {dimension_numbers = #tpu.dot_dimension_numbers<[1], [0], [0], [1], [0, 0, 1, 1], [], []>} : vector<1x8xf32>, vector<8x32xf32>, vector<1x32xf32> -> vector<1x32xf32>
    %227 = vector.shape_cast %224 : vector<1x32xf32> to vector<1x1x32xf32>
    %228 = vector.broadcast %227 : vector<1x1x32xf32> to vector<8x4x32xf32>
    %229 = arith.mulf %191, %228 : vector<8x4x32xf32>
    %230 = vector.shape_cast %226 : vector<1x32xf32> to vector<1x1x32xf32>
    %231 = vector.broadcast %230 : vector<1x1x32xf32> to vector<8x4x32xf32>
    %232 = arith.addf %229, %231 : vector<8x4x32xf32>
    %cst_189 = arith.constant 0.000000e+00 : f32
    %233 = vector.broadcast %cst_189 : f32 to vector<8x4x32xf32>
    %234 = arith.maximumf %232, %233 : vector<8x4x32xf32>
    %235 = vector.shape_cast %234 : vector<8x4x32xf32> to vector<2x4x4x32xf32>
    %cst_190 = arith.constant dense<0xFF800000> : vector<2x4x32xf32>
    %236 = vector.multi_reduction <maximumf>, %235, %cst_190 [1] : vector<2x4x4x32xf32> to vector<2x4x32xf32>
    %cst_191 = arith.constant dense<0xFF800000> : vector<2x32xf32>
    %237 = vector.multi_reduction <maximumf>, %236, %cst_191 [1] : vector<2x4x32xf32> to vector<2x32xf32>
    %238 = vector.extract_strided_slice %237 {offsets = [0, 0], sizes = [2, 8], strides = [1, 1]} : vector<2x32xf32> to vector<2x8xf32>
    %239 = vector.extract_strided_slice %237 {offsets = [0, 8], sizes = [2, 8], strides = [1, 1]} : vector<2x32xf32> to vector<2x8xf32>
    %240 = arith.maximumf %238, %239 : vector<2x8xf32>
    %241 = vector.extract_strided_slice %237 {offsets = [0, 16], sizes = [2, 8], strides = [1, 1]} : vector<2x32xf32> to vector<2x8xf32>
    %242 = arith.maximumf %240, %241 : vector<2x8xf32>
    %243 = vector.extract_strided_slice %237 {offsets = [0, 24], sizes = [2, 8], strides = [1, 1]} : vector<2x32xf32> to vector<2x8xf32>
    %244 = arith.maximumf %242, %243 : vector<2x8xf32>
    %245 = math.tanh %244 : vector<2x8xf32>
    %c0_192 = arith.constant 0 : index
    %c0_193 = arith.constant 0 : index
    %246 = vector.load %arg11[%c0_192, %c0_193] : memref<2x8xf32, #tpu.memory_space<vmem>>, vector<2x8xf32>
    tpu.vector_store %arg11[%c0_192, %c0_193], %245 {strides = array<i32>} : memref<2x8xf32, #tpu.memory_space<vmem>>, vector<2x8xf32>,
    return
  }
}

</mosaic_0001>

<llo_original>
// kernel: forward.1
$region0: #{forward.1}
  #allocation0 [shape = 'u32[]', space=smem, size = 0x4, offset = 0x4, fixed_abs, tag = 'smem constant byte address 0x4 - core index']
  #allocation1 [shape = 'u32[72,128]{1,0:T(1,128)}', space=vmem, size = 0x9000, scoped, tag = 'internal scratch']
  #allocation2 [shape = 'bf16[2,6,6,192]{3,2,1,0:T(8,128)(2,1)}', space=vmem, size = 0xc000, scoped, tag = 'scratch operand']
  %s0 = inlined_call_operand.vmem [shape: bf16[2,8,8,16], index: 0, kind: input, shape index: {}]
  %s1 = inlined_call_operand.hbm [shape: bf16[9,16,192], index: 1, kind: input, shape index: {}]
  %s2 = inlined_call_operand.vmem [shape: bf16[9,192,32], index: 2, kind: input, shape index: {}]
  %s3 = inlined_call_operand.vmem [shape: f32[192,32], index: 3, kind: input, shape index: {}]
  %s4 = inlined_call_operand.hbm [shape: f32[32,192], index: 4, kind: input, shape index: {}]
  %s5 = inlined_call_operand.vmem [shape: f32[32,8], index: 5, kind: input, shape index: {}]
  %s6 = inlined_call_operand.hbm [shape: f32[8,32], index: 6, kind: input, shape index: {}]
  %s7 = inlined_call_operand.hbm [shape: f32[1,32], index: 7, kind: input, shape index: {}]
  %s8 = inlined_call_operand.vmem [shape: f32[1,32], index: 8, kind: input, shape index: {}]
  %s9 = inlined_call_operand.vmem [shape: f32[1,8], index: 9, kind: input, shape index: {}]
  %s10 = inlined_call_operand.vmem [shape: f32[1,8], index: 10, kind: input, shape index: {}]
  %s11 = inlined_call_operand.vmem [shape: f32[2,8], index: 11, kind: output, shape index: {}]
  %s12 = sld [smem:[#allocation0]]
  $region70: #{forward.1} parent=0
    _
  %s14 = ssub.s32 1, %s12
  %s15 = scalar_select 0, %s14, %s12
  $region1: #{forward.1} parent=0
    #allocation3 [shape = 'u8[73728]{0}', space=vmem, size = 0x12000, scoped, tag = 'input window, operand 1, single buffered']
    #allocation4 [shape = 's32[1]{0}', space=sflag, size = 0x4, scoped, tag = 'scoped memory for forward.1']
    #allocation5 [shape = 'u8[32768]{0}', space=vmem, size = 0x8000, scoped, tag = 'input window, operand 4, single buffered']
    #allocation6 [shape = 's32[1]{0}', space=sflag, size = 0x4, scoped, tag = 'scoped memory for forward.1']
    #allocation7 [shape = 'u8[4096]{0}', space=vmem, size = 0x1000, scoped, tag = 'input window, operand 6, single buffered']
    #allocation8 [shape = 'u8[512]{0}', space=vmem, size = 0x400, scoped, tag = 'input window, operand 7, single buffered']
    #allocation9 [shape = 's32[1]{0}', space=sflag, size = 0x4, scoped, tag = 'scoped memory for forward.1']
    %16 = vsyncpa [#allocation4], 0
    %17 = vsyncpa [#allocation6], 0
    %18 = vsyncpa [#allocation9], 0
    // Predicated region
    $region2: #{forward.1} parent=1 // pred_check
      _
    $region3: #{forward.1} parent=1 // pred_check_branch
      %20 = sbr.rel (0) target = $region5
    $region4: #{forward.1} parent=1 // pred_region
      _
    $region5: #{forward.1} parent=1 // pred_fallthru
      _
    // Predicated region
    $region6: #{forward.1} parent=1 // pred_check
      _
    $region7: #{forward.1} parent=1 // pred_check_branch
      %22 = sbr.rel (0) target = $region9
    $region8: #{forward.1} parent=1 // pred_region
      %24 = vsyncadd [#allocation4], 0
      %s25 = sshll.u32 %s1, 4
      %s26 = int_to_ptr.hbm [resolvable:$true] %s25
      %s27 = sshll.u32 [#allocation3], 4
      %s28 = int_to_ptr.vmem [resolvable:$true] %s27
      %33 = dma.hbm_to_vmem [thread:$0]  %s26, 2304, %s28, [#allocation4], 128, 128, 8
    $region9: #{forward.1} parent=1 // pred_fallthru
      _
    // Predicated region
    $region10: #{forward.1} parent=1 // pred_check
      _
    $region11: #{forward.1} parent=1 // pred_check_branch
      %35 = sbr.rel (0) target = $region13
    $region12: #{forward.1} parent=1 // pred_region
      _
    $region13: #{forward.1} parent=1 // pred_fallthru
      _
    // Predicated region
    $region14: #{forward.1} parent=1 // pred_check
      _
    $region15: #{forward.1} parent=1 // pred_check_branch
      %37 = sbr.rel (0) target = $region17
    $region16: #{forward.1} parent=1 // pred_region
      _
    $region17: #{forward.1} parent=1 // pred_fallthru
      _
    // Predicated region
    $region18: #{forward.1} parent=1 // pred_check
      _
    $region19: #{forward.1} parent=1 // pred_check_branch
      %39 = sbr.rel (0) target = $region21
    $region20: #{forward.1} parent=1 // pred_region
      %41 = vsyncadd [#allocation6], 0
      %s42 = sshll.u32 %s4, 4
      %s43 = int_to_ptr.hbm [resolvable:$true] %s42
      %s44 = sshll.u32 [#allocation5], 4
      %s45 = int_to_ptr.vmem [resolvable:$true] %s44
      %50 = dma.hbm_to_vmem [thread:$0]  %s43, 1024, %s45, [#allocation6], 256, 256, 16
    $region21: #{forward.1} parent=1 // pred_fallthru
      _
    // Predicated region
    $region22: #{forward.1} parent=1 // pred_check
      _
    $region23: #{forward.1} parent=1 // pred_check_branch
      %52 = sbr.rel (0) target = $region25
    $region24: #{forward.1} parent=1 // pred_region
      _
    $region25: #{forward.1} parent=1 // pred_fallthru
      _
    // Predicated region
    $region26: #{forward.1} parent=1 // pred_check
      _
    $region27: #{forward.1} parent=1 // pred_check_branch
      %54 = sbr.rel (0) target = $region29
    $region28: #{forward.1} parent=1 // pred_region
      %56 = vsyncadd [#allocation6], 0
      %s58 = sshll.u32 %s6, 4
      %s59 = int_to_ptr.hbm [resolvable:$true] %s58
      %s60 = sshll.u32 [#allocation7], 4
      %s61 = int_to_ptr.vmem [resolvable:$true] %s60
      %63 = dma.hbm_to_vmem [thread:$0]  %s59, 128, %s61, [#allocation6]
    $region29: #{forward.1} parent=1 // pred_fallthru
      _
    // Predicated region
    $region30: #{forward.1} parent=1 // pred_check
      _
    $region31: #{forward.1} parent=1 // pred_check_branch
      %65 = sbr.rel (0) target = $region33
    $region32: #{forward.1} parent=1 // pred_region
      %67 = vsyncadd [#allocation9], 0
      %s69 = sshll.u32 %s7, 4
      %s70 = int_to_ptr.hbm [resolvable:$true] %s69
      %s71 = sshll.u32 [#allocation8], 4
      %s72 = int_to_ptr.vmem [resolvable:$true] %s71
      %74 = dma.hbm_to_vmem [thread:$0]  %s70, 16, %s72, [#allocation9]
    $region33: #{forward.1} parent=1 // pred_fallthru
      _
    // Predicated region
    $region34: #{forward.1} parent=1 // pred_check
      _
    $region35: #{forward.1} parent=1 // pred_check_branch
      %76 = sbr.rel (0) target = $region37
    $region36: #{forward.1} parent=1 // pred_region
      _
    $region37: #{forward.1} parent=1 // pred_fallthru
      _
    // Predicated region
    $region38: #{forward.1} parent=1 // pred_check
      _
    $region39: #{forward.1} parent=1 // pred_check_branch
      %78 = sbr.rel (0) target = $region41
    $region40: #{forward.1} parent=1 // pred_region
      _
    $region41: #{forward.1} parent=1 // pred_fallthru
      _
    // Predicated region
    $region42: #{forward.1} parent=1 // pred_check
      _
    $region43: #{forward.1} parent=1 // pred_check_branch
      %80 = sbr.rel (0) target = $region45
    $region44: #{forward.1} parent=1 // pred_region
      _
    $region45: #{forward.1} parent=1 // pred_fallthru
      _
    // Predicated region
    $region46: #{forward.1} parent=1 // pred_check
      _
    $region47: #{forward.1} parent=1 // pred_check_branch
      %82 = sbr.rel (0) target = $region49
    $region48: #{forward.1} parent=1 // pred_region
      %84 = dma.done [#allocation4], 2304
    $region49: #{forward.1} parent=1 // pred_fallthru
      _
    // Predicated region
    $region50: #{forward.1} parent=1 // pred_check
      _
    $region51: #{forward.1} parent=1 // pred_check_branch
      %86 = sbr.rel (0) target = $region53
    $region52: #{forward.1} parent=1 // pred_region
      %88 = dma.done [#allocation6], 1024
    $region53: #{forward.1} parent=1 // pred_fallthru
      _
    // Predicated region
    $region54: #{forward.1} parent=1 // pred_check
      _
    $region55: #{forward.1} parent=1 // pred_check_branch
      %90 = sbr.rel (0) target = $region57
    $region56: #{forward.1} parent=1 // pred_region
      %92 = dma.done [#allocation6], 128
    $region57: #{forward.1} parent=1 // pred_fallthru
      _
    // Predicated region
    $region58: #{forward.1} parent=1 // pred_check
      _
    $region59: #{forward.1} parent=1 // pred_check_branch
      %94 = sbr.rel (0) target = $region61
    $region60: #{forward.1} parent=1 // pred_region
      %96 = dma.done [#allocation9], 16
    $region61: #{forward.1} parent=1 // pred_fallthru
      _
    %v98 = vld [vmem:[%s0] sm:$0x7]
    %v99 = vld [vmem:[%s0 + $0x4] sm:$0x7]
    %v100 = vld [vmem:[%s0 + $0x8] sm:$0x7]
    %v101 = vld [vmem:[%s0 + $0xc] sm:$0x7]
    %v102 = vld [vmem:[%s0 + $0x10] sm:$0x7]
    %v103 = vld [vmem:[%s0 + $0x14] sm:$0x7]
    %v104 = vld [vmem:[%s0 + $0x20] sm:$0x7]
    %v105 = vld [vmem:[%s0 + $0x24] sm:$0x7]
    %v106 = vld [vmem:[%s0 + $0x28] sm:$0x7]
    %v107 = vld [vmem:[%s0 + $0x2c] sm:$0x7]
    %v108 = vld [vmem:[%s0 + $0x30] sm:$0x7]
    %v109 = vld [vmem:[%s0 + $0x34] sm:$0x7]
    %v110 = vld [vmem:[#allocation3] sm:$0xff]
    %v111 = vld [vmem:[#allocation3 + $0x8] sm:$0xff]
    %v112 = vld [vmem:[%s0] sm:$0xf]
    %v113 = vld [vmem:[%s0 + $0x4] sm:$0xf]
    %v114 = vld [vmem:[%s0 + $0x8] sm:$0xf]
    %v115 = vld [vmem:[%s0 + $0xc] sm:$0xf]
    %v116 = vld [vmem:[%s0 + $0x10] sm:$0xf]
    %v117 = vld [vmem:[%s0 + $0x14] sm:$0xf]
    %v118 = vld [vmem:[%s0 + $0x20] sm:$0xf]
    %v119 = vld [vmem:[%s0 + $0x24] sm:$0xf]
    %v120 = vld [vmem:[%s0 + $0x28] sm:$0xf]
    %v121 = vld [vmem:[%s0 + $0x2c] sm:$0xf]
    %v122 = vld [vmem:[%s0 + $0x30] sm:$0xf]
    %v123 = vld [vmem:[%s0 + $0x34] sm:$0xf]
    %s124 = scalar_lea.vmem [#allocation3], 16
    %v125 = vld [vmem:[%s124] sm:$0xff]
    %v126 = vld [vmem:[%s124 + $0x8] sm:$0xff]
    %v128 = vunpack.c.l.b16 %v112
    %v129 = vpack.c.b16 %v128, %v128
    %v131 = vshrl.u32 %v129, 16
    %v133 = vshll.u32 %v129, 16
    %v135 = vrot.slane %v133, 1
    %v136 = vor.u32 %v131, %v135
    %v139 = vunpack.c.l.b16 %v125
    %v140 = vunpack.c.h.b16 %v125
    %v141 = vunpack.c.l.b16 %v126
    %v142 = vunpack.c.h.b16 %v126
    %v143 = vpack.c.b16 %v141, %v139
    %v144 = vpack.c.b16 %v142, %v140
    %vm147 = vcmask 130048
    %v149 = vsel %vm147, %v136, 0
    %151 = vmatpush.bf16.msra.mxu0 0
    %152 = vmatpush.bf16.msra.mxu0 0
    %153 = vmatpush.bf16.msra.mxu0 0
    %154 = vmatpush.bf16.msra.mxu0 0
    %155 = vmatpush.bf16.msra.mxu0 0
    %156 = vmatpush.bf16.msra.mxu0 0
    %157 = vmatpush.bf16.msra.mxu0 0
    %158 = vmatpush.bf16.msra.mxu0 %v143
    %159 = vmatmul.bf16.gmra.mxu0 %v149
    %v160 = vpop.f32.mrf.mxu0
    %v161 = vadd.f32 0.0, %v160
    %v162 = vpop.f32.mrf.mxu0
    %163 = vdwg.mxu0
    %164 = vmatpush.bf16.msra.mxu0 0
    %165 = vmatpush.bf16.msra.mxu0 0
    %166 = vmatpush.bf16.msra.mxu0 0
    %167 = vmatpush.bf16.msra.mxu0 0
    %168 = vmatpush.bf16.msra.mxu0 0
    %169 = vmatpush.bf16.msra.mxu0 0
    %170 = vmatpush.bf16.msra.mxu0 0
    %171 = vmatpush.bf16.msra.mxu0 %v144
    %172 = vmatmul.bf16.gmra.mxu0 %v149
    %v173 = vpop.f32.mrf.mxu0
    %v174 = vadd.f32 0.0, %v173
    %v175 = vpop.f32.mrf.mxu0
    %176 = vdwg.mxu0
    %v178 = vunpack.c.l.b16 %v113
    %v179 = vpack.c.b16 %v178, %v178
    %v181 = vshrl.u32 %v179, 16
    %v183 = vshll.u32 %v179, 16
    %v185 = vrot.slane %v183, 1
    %v186 = vor.u32 %v181, %v185
    %v188 = vsel %vm147, %v186, 0
    %190 = vmatpush.bf16.msra.mxu0 0
    %191 = vmatpush.bf16.msra.mxu0 0
    %192 = vmatpush.bf16.msra.mxu0 0
    %193 = vmatpush.bf16.msra.mxu0 0
    %194 = vmatpush.bf16.msra.mxu0 0
    %195 = vmatpush.bf16.msra.mxu0 0
    %196 = vmatpush.bf16.msra.mxu0 0
    %197 = vmatpush.bf16.msra.mxu0 %v143
    %198 = vmatmul.bf16.gmra.mxu0 %v188
    %v199 = vpop.f32.mrf.mxu0
    %v200 = vadd.f32 0.0, %v199
    %v201 = vpop.f32.mrf.mxu0
    %202 = vdwg.mxu0
    %203 = vmatpush.bf16.msra.mxu0 0
    %204 = vmatpush.bf16.msra.mxu0 0
    %205 = vmatpush.bf16.msra.mxu0 0
    %206 = vmatpush.bf16.msra.mxu0 0
    %207 = vmatpush.bf16.msra.mxu0 0
    %208 = vmatpush.bf16.msra.mxu0 0
    %209 = vmatpush.bf16.msra.mxu0 0
    %210 = vmatpush.bf16.msra.mxu0 %v144
    %211 = vmatmul.bf16.gmra.mxu0 %v188
    %v212 = vpop.f32.mrf.mxu0
    %v213 = vadd.f32 0.0, %v212
    %v214 = vpop.f32.mrf.mxu0
    %215 = vdwg.mxu0
    %v217 = vunpack.c.l.b16 %v114
    %v218 = vpack.c.b16 %v217, %v217
    %v220 = vshrl.u32 %v218, 16
    %v222 = vshll.u32 %v218, 16
    %v224 = vrot.slane %v222, 1
    %v225 = vor.u32 %v220, %v224
    %v227 = vsel %vm147, %v225, 0
    %229 = vmatpush.bf16.msra.mxu0 0
    %230 = vmatpush.bf16.msra.mxu0 0
    %231 = vmatpush.bf16.msra.mxu0 0
    %232 = vmatpush.bf16.msra.mxu0 0
    %233 = vmatpush.bf16.msra.mxu0 0
    %234 = vmatpush.bf16.msra.mxu0 0
    %235 = vmatpush.bf16.msra.mxu0 0
    %236 = vmatpush.bf16.msra.mxu0 %v143
    %237 = vmatmul.bf16.gmra.mxu0 %v227
    %v238 = vpop.f32.mrf.mxu0
    %v239 = vadd.f32 0.0, %v238
    %v240 = vpop.f32.mrf.mxu0
    %241 = vdwg.mxu0
    %242 = vmatpush.bf16.msra.mxu0 0
    %243 = vmatpush.bf16.msra.mxu0 0
    %244 = vmatpush.bf16.msra.mxu0 0
    %245 = vmatpush.bf16.msra.mxu0 0
    %246 = vmatpush.bf16.msra.mxu0 0
    %247 = vmatpush.bf16.msra.mxu0 0
    %248 = vmatpush.bf16.msra.mxu0 0
    %249 = vmatpush.bf16.msra.mxu0 %v144
    %250 = vmatmul.bf16.gmra.mxu0 %v227
    %v251 = vpop.f32.mrf.mxu0
    %v252 = vadd.f32 0.0, %v251
    %v253 = vpop.f32.mrf.mxu0
    %254 = vdwg.mxu0
    %v256 = vunpack.c.l.b16 %v115
    %v257 = vpack.c.b16 %v256, %v256
    %v259 = vshrl.u32 %v257, 16
    %v261 = vshll.u32 %v257, 16
    %v263 = vrot.slane %v261, 1
    %v264 = vor.u32 %v259, %v263
    %v266 = vsel %vm147, %v264, 0
    %268 = vmatpush.bf16.msra.mxu0 0
    %269 = vmatpush.bf16.msra.mxu0 0
    %270 = vmatpush.bf16.msra.mxu0 0
    %271 = vmatpush.bf16.msra.mxu0 0
    %272 = vmatpush.bf16.msra.mxu0 0
    %273 = vmatpush.bf16.msra.mxu0 0
    %274 = vmatpush.bf16.msra.mxu0 0
    %275 = vmatpush.bf16.msra.mxu0 %v143
    %276 = vmatmul.bf16.gmra.mxu0 %v266
    %v277 = vpop.f32.mrf.mxu0
    %v278 = vadd.f32 0.0, %v277
    %v279 = vpop.f32.mrf.mxu0
    %280 = vdwg.mxu0
    %281 = vmatpush.bf16.msra.mxu0 0
    %282 = vmatpush.bf16.msra.mxu0 0
    %283 = vmatpush.bf16.msra.mxu0 0
    %284 = vmatpush.bf16.msra.mxu0 0
    %285 = vmatpush.bf16.msra.mxu0 0
    %286 = vmatpush.bf16.msra.mxu0 0
    %287 = vmatpush.bf16.msra.mxu0 0
    %288 = vmatpush.bf16.msra.mxu0 %v144
    %289 = vmatmul.bf16.gmra.mxu0 %v266
    %v290 = vpop.f32.mrf.mxu0
    %v291 = vadd.f32 0.0, %v290
    %v292 = vpop.f32.mrf.mxu0
    %293 = vdwg.mxu0
    %v295 = vunpack.c.l.b16 %v116
    %v296 = vpack.c.b16 %v295, %v295
    %v298 = vshrl.u32 %v296, 16
    %v300 = vshll.u32 %v296, 16
    %v302 = vrot.slane %v300, 1
    %v303 = vor.u32 %v298, %v302
    %v305 = vsel %vm147, %v303, 0
    %307 = vmatpush.bf16.msra.mxu0 0
    %308 = vmatpush.bf16.msra.mxu0 0
    %309 = vmatpush.bf16.msra.mxu0 0
    %310 = vmatpush.bf16.msra.mxu0 0
    %311 = vmatpush.bf16.msra.mxu0 0
    %312 = vmatpush.bf16.msra.mxu0 0
    %313 = vmatpush.bf16.msra.mxu0 0
    %314 = vmatpush.bf16.msra.mxu0 %v143
    %315 = vmatmul.bf16.gmra.mxu0 %v305
    %v316 = vpop.f32.mrf.mxu0
    %v317 = vadd.f32 0.0, %v316
    %v318 = vpop.f32.mrf.mxu0
    %319 = vdwg.mxu0
    %320 = vmatpush.bf16.msra.mxu0 0
    %321 = vmatpush.bf16.msra.mxu0 0
    %322 = vmatpush.bf16.msra.mxu0 0
    %323 = vmatpush.bf16.msra.mxu0 0
    %324 = vmatpush.bf16.msra.mxu0 0
    %325 = vmatpush.bf16.msra.mxu0 0
    %326 = vmatpush.bf16.msra.mxu0 0
    %327 = vmatpush.bf16.msra.mxu0 %v144
    %328 = vmatmul.bf16.gmra.mxu0 %v305
    %v329 = vpop.f32.mrf.mxu0
    %v330 = vadd.f32 0.0, %v329
    %v331 = vpop.f32.mrf.mxu0
    %332 = vdwg.mxu0
    %v334 = vunpack.c.l.b16 %v117
    %v335 = vpack.c.b16 %v334, %v334
    %v337 = vshrl.u32 %v335, 16
    %v339 = vshll.u32 %v335, 16
    %v341 = vrot.slane %v339, 1
    %v342 = vor.u32 %v337, %v341
    %v344 = vsel %vm147, %v342, 0
    %346 = vmatpush.bf16.msra.mxu0 0
    %347 = vmatpush.bf16.msra.mxu0 0
    %348 = vmatpush.bf16.msra.mxu0 0
    %349 = vmatpush.bf16.msra.mxu0 0
    %350 = vmatpush.bf16.msra.mxu0 0
    %351 = vmatpush.bf16.msra.mxu0 0
    %352 = vmatpush.bf16.msra.mxu0 0
    %353 = vmatpush.bf16.msra.mxu0 %v143
    %354 = vmatmul.bf16.gmra.mxu0 %v344
    %v355 = vpop.f32.mrf.mxu0
    %v356 = vadd.f32 0.0, %v355
    %v357 = vpop.f32.mrf.mxu0
    %358 = vdwg.mxu0
    %359 = vmatpush.bf16.msra.mxu0 0
    %360 = vmatpush.bf16.msra.mxu0 0
    %361 = vmatpush.bf16.msra.mxu0 0
    %362 = vmatpush.bf16.msra.mxu0 0
    %363 = vmatpush.bf16.msra.mxu0 0
    %364 = vmatpush.bf16.msra.mxu0 0
    %365 = vmatpush.bf16.msra.mxu0 0
    %366 = vmatpush.bf16.msra.mxu0 %v144
    %367 = vmatmul.bf16.gmra.mxu0 %v344
    %v368 = vpop.f32.mrf.mxu0
    %v369 = vadd.f32 0.0, %v368
    %v370 = vpop.f32.mrf.mxu0
    %371 = vdwg.mxu0
    %v373 = vunpack.c.l.b16 %v118
    %v374 = vpack.c.b16 %v373, %v373
    %v376 = vshrl.u32 %v374, 16
    %v378 = vshll.u32 %v374, 16
    %v380 = vrot.slane %v378, 1
    %v381 = vor.u32 %v376, %v380
    %v383 = vsel %vm147, %v381, 0
    %385 = vmatpush.bf16.msra.mxu0 0
    %386 = vmatpush.bf16.msra.mxu0 0
    %387 = vmatpush.bf16.msra.mxu0 0
    %388 = vmatpush.bf16.msra.mxu0 0
    %389 = vmatpush.bf16.msra.mxu0 0
    %390 = vmatpush.bf16.msra.mxu0 0
    %391 = vmatpush.bf16.msra.mxu0 0
    %392 = vmatpush.bf16.msra.mxu0 %v143
    %393 = vmatmul.bf16.gmra.mxu0 %v383
    %v394 = vpop.f32.mrf.mxu0
    %v395 = vadd.f32 0.0, %v394
    %v396 = vpop.f32.mrf.mxu0
    %397 = vdwg.mxu0
    %398 = vmatpush.bf16.msra.mxu0 0
    %399 = vmatpush.bf16.msra.mxu0 0
    %400 = vmatpush.bf16.msra.mxu0 0
    %401 = vmatpush.bf16.msra.mxu0 0
    %402 = vmatpush.bf16.msra.mxu0 0
    %403 = vmatpush.bf16.msra.mxu0 0
    %404 = vmatpush.bf16.msra.mxu0 0
    %405 = vmatpush.bf16.msra.mxu0 %v144
    %406 = vmatmul.bf16.gmra.mxu0 %v383
    %v407 = vpop.f32.mrf.mxu0
    %v408 = vadd.f32 0.0, %v407
    %v409 = vpop.f32.mrf.mxu0
    %410 = vdwg.mxu0
    %v412 = vunpack.c.l.b16 %v119
    %v413 = vpack.c.b16 %v412, %v412
    %v415 = vshrl.u32 %v413, 16
    %v417 = vshll.u32 %v413, 16
    %v419 = vrot.slane %v417, 1
    %v420 = vor.u32 %v415, %v419
    %v422 = vsel %vm147, %v420, 0
    %424 = vmatpush.bf16.msra.mxu0 0
    %425 = vmatpush.bf16.msra.mxu0 0
    %426 = vmatpush.bf16.msra.mxu0 0
    %427 = vmatpush.bf16.msra.mxu0 0
    %428 = vmatpush.bf16.msra.mxu0 0
    %429 = vmatpush.bf16.msra.mxu0 0
    %430 = vmatpush.bf16.msra.mxu0 0
    %431 = vmatpush.bf16.msra.mxu0 %v143
    %432 = vmatmul.bf16.gmra.mxu0 %v422
    %v433 = vpop.f32.mrf.mxu0
    %v434 = vadd.f32 0.0, %v433
    %v435 = vpop.f32.mrf.mxu0
    %436 = vdwg.mxu0
    %437 = vmatpush.bf16.msra.mxu0 0
    %438 = vmatpush.bf16.msra.mxu0 0
    %439 = vmatpush.bf16.msra.mxu0 0
    %440 = vmatpush.bf16.msra.mxu0 0
    %441 = vmatpush.bf16.msra.mxu0 0
    %442 = vmatpush.bf16.msra.mxu0 0
    %443 = vmatpush.bf16.msra.mxu0 0
    %444 = vmatpush.bf16.msra.mxu0 %v144
    %445 = vmatmul.bf16.gmra.mxu0 %v422
    %v446 = vpop.f32.mrf.mxu0
    %v447 = vadd.f32 0.0, %v446
    %v448 = vpop.f32.mrf.mxu0
    %449 = vdwg.mxu0
    %v451 = vunpack.c.l.b16 %v120
    %v452 = vpack.c.b16 %v451, %v451
    %v454 = vshrl.u32 %v452, 16
    %v456 = vshll.u32 %v452, 16
    %v458 = vrot.slane %v456, 1
    %v459 = vor.u32 %v454, %v458
    %v461 = vsel %vm147, %v459, 0
    %463 = vmatpush.bf16.msra.mxu0 0
    %464 = vmatpush.bf16.msra.mxu0 0
    %465 = vmatpush.bf16.msra.mxu0 0
    %466 = vmatpush.bf16.msra.mxu0 0
    %467 = vmatpush.bf16.msra.mxu0 0
    %468 = vmatpush.bf16.msra.mxu0 0
    %469 = vmatpush.bf16.msra.mxu0 0
    %470 = vmatpush.bf16.msra.mxu0 %v143
    %471 = vmatmul.bf16.gmra.mxu0 %v461
    %v472 = vpop.f32.mrf.mxu0
    %v473 = vadd.f32 0.0, %v472
    %v474 = vpop.f32.mrf.mxu0
    %475 = vdwg.mxu0
    %476 = vmatpush.bf16.msra.mxu0 0
    %477 = vmatpush.bf16.msra.mxu0 0
    %478 = vmatpush.bf16.msra.mxu0 0
    %479 = vmatpush.bf16.msra.mxu0 0
    %480 = vmatpush.bf16.msra.mxu0 0
    %481 = vmatpush.bf16.msra.mxu0 0
    %482 = vmatpush.bf16.msra.mxu0 0
    %483 = vmatpush.bf16.msra.mxu0 %v144
    %484 = vmatmul.bf16.gmra.mxu0 %v461
    %v485 = vpop.f32.mrf.mxu0
    %v486 = vadd.f32 0.0, %v485
    %v487 = vpop.f32.mrf.mxu0
    %488 = vdwg.mxu0
    %v490 = vunpack.c.l.b16 %v121
    %v491 = vpack.c.b16 %v490, %v490
    %v493 = vshrl.u32 %v491, 16
    %v495 = vshll.u32 %v491, 16
    %v497 = vrot.slane %v495, 1
    %v498 = vor.u32 %v493, %v497
    %v500 = vsel %vm147, %v498, 0
    %502 = vmatpush.bf16.msra.mxu0 0
    %503 = vmatpush.bf16.msra.mxu0 0
    %504 = vmatpush.bf16.msra.mxu0 0
    %505 = vmatpush.bf16.msra.mxu0 0
    %506 = vmatpush.bf16.msra.mxu0 0
    %507 = vmatpush.bf16.msra.mxu0 0
    %508 = vmatpush.bf16.msra.mxu0 0
    %509 = vmatpush.bf16.msra.mxu0 %v143
    %510 = vmatmul.bf16.gmra.mxu0 %v500
    %v511 = vpop.f32.mrf.mxu0
    %v512 = vadd.f32 0.0, %v511
    %v513 = vpop.f32.mrf.mxu0
    %514 = vdwg.mxu0
    %515 = vmatpush.bf16.msra.mxu0 0
    %516 = vmatpush.bf16.msra.mxu0 0
    %517 = vmatpush.bf16.msra.mxu0 0
    %518 = vmatpush.bf16.msra.mxu0 0
    %519 = vmatpush.bf16.msra.mxu0 0
    %520 = vmatpush.bf16.msra.mxu0 0
    %521 = vmatpush.bf16.msra.mxu0 0
    %522 = vmatpush.bf16.msra.mxu0 %v144
    %523 = vmatmul.bf16.gmra.mxu0 %v500
    %v524 = vpop.f32.mrf.mxu0
    %v525 = vadd.f32 0.0, %v524
    %v526 = vpop.f32.mrf.mxu0
    %527 = vdwg.mxu0
    %v529 = vunpack.c.l.b16 %v122
    %v530 = vpack.c.b16 %v529, %v529
    %v532 = vshrl.u32 %v530, 16
    %v534 = vshll.u32 %v530, 16
    %v536 = vrot.slane %v534, 1
    %v537 = vor.u32 %v532, %v536
    %v539 = vsel %vm147, %v537, 0
    %541 = vmatpush.bf16.msra.mxu0 0
    %542 = vmatpush.bf16.msra.mxu0 0
    %543 = vmatpush.bf16.msra.mxu0 0
    %544 = vmatpush.bf16.msra.mxu0 0
    %545 = vmatpush.bf16.msra.mxu0 0
    %546 = vmatpush.bf16.msra.mxu0 0
    %547 = vmatpush.bf16.msra.mxu0 0
    %548 = vmatpush.bf16.msra.mxu0 %v143
    %549 = vmatmul.bf16.gmra.mxu0 %v539
    %v550 = vpop.f32.mrf.mxu0
    %v551 = vadd.f32 0.0, %v550
    %v552 = vpop.f32.mrf.mxu0
    %553 = vdwg.mxu0
    %554 = vmatpush.bf16.msra.mxu0 0
    %555 = vmatpush.bf16.msra.mxu0 0
    %556 = vmatpush.bf16.msra.mxu0 0
    %557 = vmatpush.bf16.msra.mxu0 0
    %558 = vmatpush.bf16.msra.mxu0 0
    %559 = vmatpush.bf16.msra.mxu0 0
    %560 = vmatpush.bf16.msra.mxu0 0
    %561 = vmatpush.bf16.msra.mxu0 %v144
    %562 = vmatmul.bf16.gmra.mxu0 %v539
    %v563 = vpop.f32.mrf.mxu0
    %v564 = vadd.f32 0.0, %v563
    %v565 = vpop.f32.mrf.mxu0
    %566 = vdwg.mxu0
    %v568 = vunpack.c.l.b16 %v123
    %v569 = vpack.c.b16 %v568, %v568
    %v571 = vshrl.u32 %v569, 16
    %v573 = vshll.u32 %v569, 16
    %v575 = vrot.slane %v573, 1
    %v576 = vor.u32 %v571, %v575
    %v578 = vsel %vm147, %v576, 0
    %580 = vmatpush.bf16.msra.mxu0 0
    %581 = vmatpush.bf16.msra.mxu0 0
    %582 = vmatpush.bf16.msra.mxu0 0
    %583 = vmatpush.bf16.msra.mxu0 0
    %584 = vmatpush.bf16.msra.mxu0 0
    %585 = vmatpush.bf16.msra.mxu0 0
    %586 = vmatpush.bf16.msra.mxu0 0
    %587 = vmatpush.bf16.msra.mxu0 %v143
    %588 = vmatmul.bf16.gmra.mxu0 %v578
    %v589 = vpop.f32.mrf.mxu0
    %v590 = vadd.f32 0.0, %v589
    %v591 = vpop.f32.mrf.mxu0
    %592 = vdwg.mxu0
    %593 = vmatpush.bf16.msra.mxu0 0
    %594 = vmatpush.bf16.msra.mxu0 0
    %595 = vmatpush.bf16.msra.mxu0 0
    %596 = vmatpush.bf16.msra.mxu0 0
    %597 = vmatpush.bf16.msra.mxu0 0
    %598 = vmatpush.bf16.msra.mxu0 0
    %599 = vmatpush.bf16.msra.mxu0 0
    %600 = vmatpush.bf16.msra.mxu0 %v144
    %601 = vmatmul.bf16.gmra.mxu0 %v578
    %v602 = vpop.f32.mrf.mxu0
    %v603 = vadd.f32 0.0, %v602
    %v604 = vpop.f32.mrf.mxu0
    %605 = vdwg.mxu0
    %v608 = vunpack.c.l.b16 %v110
    %v609 = vunpack.c.h.b16 %v110
    %v610 = vunpack.c.l.b16 %v111
    %v611 = vunpack.c.h.b16 %v111
    %v612 = vpack.c.b16 %v610, %v608
    %v613 = vpack.c.b16 %v611, %v609
    %v617 = vsel %vm147, %v98, 0
    %619 = vmatpush.bf16.msra.mxu0 0
    %620 = vmatpush.bf16.msra.mxu0 0
    %621 = vmatpush.bf16.msra.mxu0 0
    %622 = vmatpush.bf16.msra.mxu0 0
    %623 = vmatpush.bf16.msra.mxu0 0
    %624 = vmatpush.bf16.msra.mxu0 0
    %625 = vmatpush.bf16.msra.mxu0 0
    %626 = vmatpush.bf16.msra.mxu0 %v612
    %627 = vmatmul.bf16.gmra.mxu0 %v617
    %v628 = vpop.f32.mrf.mxu0
    %v629 = vadd.f32 %v161, %v628
    %v630 = vpop.f32.mrf.mxu0
    %631 = vdwg.mxu0
    %632 = vmatpush.bf16.msra.mxu0 0
    %633 = vmatpush.bf16.msra.mxu0 0
    %634 = vmatpush.bf16.msra.mxu0 0
    %635 = vmatpush.bf16.msra.mxu0 0
    %636 = vmatpush.bf16.msra.mxu0 0
    %637 = vmatpush.bf16.msra.mxu0 0
    %638 = vmatpush.bf16.msra.mxu0 0
    %639 = vmatpush.bf16.msra.mxu0 %v613
    %640 = vmatmul.bf16.gmra.mxu0 %v617
    %v641 = vpop.f32.mrf.mxu0
    %v642 = vadd.f32 %v174, %v641
    %v643 = vpop.f32.mrf.mxu0
    %644 = vdwg.mxu0
    %v646 = vsel %vm147, %v99, 0
    %648 = vmatpush.bf16.msra.mxu0 0
    %649 = vmatpush.bf16.msra.mxu0 0
    %650 = vmatpush.bf16.msra.mxu0 0
    %651 = vmatpush.bf16.msra.mxu0 0
    %652 = vmatpush.bf16.msra.mxu0 0
    %653 = vmatpush.bf16.msra.mxu0 0
    %654 = vmatpush.bf16.msra.mxu0 0
    %655 = vmatpush.bf16.msra.mxu0 %v612
    %656 = vmatmul.bf16.gmra.mxu0 %v646
    %v657 = vpop.f32.mrf.mxu0
    %v658 = vadd.f32 %v200, %v657
    %v659 = vpop.f32.mrf.mxu0
    %660 = vdwg.mxu0
    %661 = vmatpush.bf16.msra.mxu0 0
    %662 = vmatpush.bf16.msra.mxu0 0
    %663 = vmatpush.bf16.msra.mxu0 0
    %664 = vmatpush.bf16.msra.mxu0 0
    %665 = vmatpush.bf16.msra.mxu0 0
    %666 = vmatpush.bf16.msra.mxu0 0
    %667 = vmatpush.bf16.msra.mxu0 0
    %668 = vmatpush.bf16.msra.mxu0 %v613
    %669 = vmatmul.bf16.gmra.mxu0 %v646
    %v670 = vpop.f32.mrf.mxu0
    %v671 = vadd.f32 %v213, %v670
    %v672 = vpop.f32.mrf.mxu0
    %673 = vdwg.mxu0
    %v675 = vsel %vm147, %v100, 0
    %677 = vmatpush.bf16.msra.mxu0 0
    %678 = vmatpush.bf16.msra.mxu0 0
    %679 = vmatpush.bf16.msra.mxu0 0
    %680 = vmatpush.bf16.msra.mxu0 0
    %681 = vmatpush.bf16.msra.mxu0 0
    %682 = vmatpush.bf16.msra.mxu0 0
    %683 = vmatpush.bf16.msra.mxu0 0
    %684 = vmatpush.bf16.msra.mxu0 %v612
    %685 = vmatmul.bf16.gmra.mxu0 %v675
    %v686 = vpop.f32.mrf.mxu0
    %v687 = vadd.f32 %v239, %v686
    %v688 = vpop.f32.mrf.mxu0
    %689 = vdwg.mxu0
    %690 = vmatpush.bf16.msra.mxu0 0
    %691 = vmatpush.bf16.msra.mxu0 0
    %692 = vmatpush.bf16.msra.mxu0 0
    %693 = vmatpush.bf16.msra.mxu0 0
    %694 = vmatpush.bf16.msra.mxu0 0
    %695 = vmatpush.bf16.msra.mxu0 0
    %696 = vmatpush.bf16.msra.mxu0 0
    %697 = vmatpush.bf16.msra.mxu0 %v613
    %698 = vmatmul.bf16.gmra.mxu0 %v675
    %v699 = vpop.f32.mrf.mxu0
    %v700 = vadd.f32 %v252, %v699
    %v701 = vpop.f32.mrf.mxu0
    %702 = vdwg.mxu0
    %v704 = vsel %vm147, %v101, 0
    %706 = vmatpush.bf16.msra.mxu0 0
    %707 = vmatpush.bf16.msra.mxu0 0
    %708 = vmatpush.bf16.msra.mxu0 0
    %709 = vmatpush.bf16.msra.mxu0 0
    %710 = vmatpush.bf16.msra.mxu0 0
    %711 = vmatpush.bf16.msra.mxu0 0
    %712 = vmatpush.bf16.msra.mxu0 0
    %713 = vmatpush.bf16.msra.mxu0 %v612
    %714 = vmatmul.bf16.gmra.mxu0 %v704
    %v715 = vpop.f32.mrf.mxu0
    %v716 = vadd.f32 %v278, %v715
    %v717 = vpop.f32.mrf.mxu0
    %718 = vdwg.mxu0
    %719 = vmatpush.bf16.msra.mxu0 0
    %720 = vmatpush.bf16.msra.mxu0 0
    %721 = vmatpush.bf16.msra.mxu0 0
    %722 = vmatpush.bf16.msra.mxu0 0
    %723 = vmatpush.bf16.msra.mxu0 0
    %724 = vmatpush.bf16.msra.mxu0 0
    %725 = vmatpush.bf16.msra.mxu0 0
    %726 = vmatpush.bf16.msra.mxu0 %v613
    %727 = vmatmul.bf16.gmra.mxu0 %v704
    %v728 = vpop.f32.mrf.mxu0
    %v729 = vadd.f32 %v291, %v728
    %v730 = vpop.f32.mrf.mxu0
    %731 = vdwg.mxu0
    %v733 = vsel %vm147, %v102, 0
    %735 = vmatpush.bf16.msra.mxu0 0
    %736 = vmatpush.bf16.msra.mxu0 0
    %737 = vmatpush.bf16.msra.mxu0 0
    %738 = vmatpush.bf16.msra.mxu0 0
    %739 = vmatpush.bf16.msra.mxu0 0
    %740 = vmatpush.bf16.msra.mxu0 0
    %741 = vmatpush.bf16.msra.mxu0 0
    %742 = vmatpush.bf16.msra.mxu0 %v612
    %743 = vmatmul.bf16.gmra.mxu0 %v733
    %v744 = vpop.f32.mrf.mxu0
    %v745 = vadd.f32 %v317, %v744
    %v746 = vpop.f32.mrf.mxu0
    %747 = vdwg.mxu0
    %748 = vmatpush.bf16.msra.mxu0 0
    %749 = vmatpush.bf16.msra.mxu0 0
    %750 = vmatpush.bf16.msra.mxu0 0
    %751 = vmatpush.bf16.msra.mxu0 0
    %752 = vmatpush.bf16.msra.mxu0 0
    %753 = vmatpush.bf16.msra.mxu0 0
    %754 = vmatpush.bf16.msra.mxu0 0
    %755 = vmatpush.bf16.msra.mxu0 %v613
    %756 = vmatmul.bf16.gmra.mxu0 %v733
    %v757 = vpop.f32.mrf.mxu0
    %v758 = vadd.f32 %v330, %v757
    %v759 = vpop.f32.mrf.mxu0
    %760 = vdwg.mxu0
    %v762 = vsel %vm147, %v103, 0
    %764 = vmatpush.bf16.msra.mxu0 0
    %765 = vmatpush.bf16.msra.mxu0 0
    %766 = vmatpush.bf16.msra.mxu0 0
    %767 = vmatpush.bf16.msra.mxu0 0
    %768 = vmatpush.bf16.msra.mxu0 0
    %769 = vmatpush.bf16.msra.mxu0 0
    %770 = vmatpush.bf16.msra.mxu0 0
    %771 = vmatpush.bf16.msra.mxu0 %v612
    %772 = vmatmul.bf16.gmra.mxu0 %v762
    %v773 = vpop.f32.mrf.mxu0
    %v774 = vadd.f32 %v356, %v773
    %v775 = vpop.f32.mrf.mxu0
    %776 = vdwg.mxu0
    %777 = vmatpush.bf16.msra.mxu0 0
    %778 = vmatpush.bf16.msra.mxu0 0
    %779 = vmatpush.bf16.msra.mxu0 0
    %780 = vmatpush.bf16.msra.mxu0 0
    %781 = vmatpush.bf16.msra.mxu0 0
    %782 = vmatpush.bf16.msra.mxu0 0
    %783 = vmatpush.bf16.msra.mxu0 0
    %784 = vmatpush.bf16.msra.mxu0 %v613
    %785 = vmatmul.bf16.gmra.mxu0 %v762
    %v786 = vpop.f32.mrf.mxu0
    %v787 = vadd.f32 %v369, %v786
    %v788 = vpop.f32.mrf.mxu0
    %789 = vdwg.mxu0
    %v791 = vsel %vm147, %v104, 0
    %793 = vmatpush.bf16.msra.mxu0 0
    %794 = vmatpush.bf16.msra.mxu0 0
    %795 = vmatpush.bf16.msra.mxu0 0
    %796 = vmatpush.bf16.msra.mxu0 0
    %797 = vmatpush.bf16.msra.mxu0 0
    %798 = vmatpush.bf16.msra.mxu0 0
    %799 = vmatpush.bf16.msra.mxu0 0
    %800 = vmatpush.bf16.msra.mxu0 %v612
    %801 = vmatmul.bf16.gmra.mxu0 %v791
    %v802 = vpop.f32.mrf.mxu0
    %v803 = vadd.f32 %v395, %v802
    %v804 = vpop.f32.mrf.mxu0
    %805 = vdwg.mxu0
    %806 = vmatpush.bf16.msra.mxu0 0
    %807 = vmatpush.bf16.msra.mxu0 0
    %808 = vmatpush.bf16.msra.mxu0 0
    %809 = vmatpush.bf16.msra.mxu0 0
    %810 = vmatpush.bf16.msra.mxu0 0
    %811 = vmatpush.bf16.msra.mxu0 0
    %812 = vmatpush.bf16.msra.mxu0 0
    %813 = vmatpush.bf16.msra.mxu0 %v613
    %814 = vmatmul.bf16.gmra.mxu0 %v791
    %v815 = vpop.f32.mrf.mxu0
    %v816 = vadd.f32 %v408, %v815
    %v817 = vpop.f32.mrf.mxu0
    %818 = vdwg.mxu0
    %v820 = vsel %vm147, %v105, 0
    %822 = vmatpush.bf16.msra.mxu0 0
    %823 = vmatpush.bf16.msra.mxu0 0
    %824 = vmatpush.bf16.msra.mxu0 0
    %825 = vmatpush.bf16.msra.mxu0 0
    %826 = vmatpush.bf16.msra.mxu0 0
    %827 = vmatpush.bf16.msra.mxu0 0
    %828 = vmatpush.bf16.msra.mxu0 0
    %829 = vmatpush.bf16.msra.mxu0 %v612
    %830 = vmatmul.bf16.gmra.mxu0 %v820
    %v831 = vpop.f32.mrf.mxu0
    %v832 = vadd.f32 %v434, %v831
    %v833 = vpop.f32.mrf.mxu0
    %834 = vdwg.mxu0
    %835 = vmatpush.bf16.msra.mxu0 0
    %836 = vmatpush.bf16.msra.mxu0 0
    %837 = vmatpush.bf16.msra.mxu0 0
    %838 = vmatpush.bf16.msra.mxu0 0
    %839 = vmatpush.bf16.msra.mxu0 0
    %840 = vmatpush.bf16.msra.mxu0 0
    %841 = vmatpush.bf16.msra.mxu0 0
    %842 = vmatpush.bf16.msra.mxu0 %v613
    %843 = vmatmul.bf16.gmra.mxu0 %v820
    %v844 = vpop.f32.mrf.mxu0
    %v845 = vadd.f32 %v447, %v844
    %v846 = vpop.f32.mrf.mxu0
    %847 = vdwg.mxu0
    %v849 = vsel %vm147, %v106, 0
    %851 = vmatpush.bf16.msra.mxu0 0
    %852 = vmatpush.bf16.msra.mxu0 0
    %853 = vmatpush.bf16.msra.mxu0 0
    %854 = vmatpush.bf16.msra.mxu0 0
    %855 = vmatpush.bf16.msra.mxu0 0
    %856 = vmatpush.bf16.msra.mxu0 0
    %857 = vmatpush.bf16.msra.mxu0 0
    %858 = vmatpush.bf16.msra.mxu0 %v612
    %859 = vmatmul.bf16.gmra.mxu0 %v849
    %v860 = vpop.f32.mrf.mxu0
    %v861 = vadd.f32 %v473, %v860
    %v862 = vpop.f32.mrf.mxu0
    %863 = vdwg.mxu0
    %864 = vmatpush.bf16.msra.mxu0 0
    %865 = vmatpush.bf16.msra.mxu0 0
    %866 = vmatpush.bf16.msra.mxu0 0
    %867 = vmatpush.bf16.msra.mxu0 0
    %868 = vmatpush.bf16.msra.mxu0 0
    %869 = vmatpush.bf16.msra.mxu0 0
    %870 = vmatpush.bf16.msra.mxu0 0
    %871 = vmatpush.bf16.msra.mxu0 %v613
    %872 = vmatmul.bf16.gmra.mxu0 %v849
    %v873 = vpop.f32.mrf.mxu0
    %v874 = vadd.f32 %v486, %v873
    %v875 = vpop.f32.mrf.mxu0
    %876 = vdwg.mxu0
    %v878 = vsel %vm147, %v107, 0
    %880 = vmatpush.bf16.msra.mxu0 0
    %881 = vmatpush.bf16.msra.mxu0 0
    %882 = vmatpush.bf16.msra.mxu0 0
    %883 = vmatpush.bf16.msra.mxu0 0
    %884 = vmatpush.bf16.msra.mxu0 0
    %885 = vmatpush.bf16.msra.mxu0 0
    %886 = vmatpush.bf16.msra.mxu0 0
    %887 = vmatpush.bf16.msra.mxu0 %v612
    %888 = vmatmul.bf16.gmra.mxu0 %v878
    %v889 = vpop.f32.mrf.mxu0
    %v890 = vadd.f32 %v512, %v889
    %v891 = vpop.f32.mrf.mxu0
    %892 = vdwg.mxu0
    %893 = vmatpush.bf16.msra.mxu0 0
    %894 = vmatpush.bf16.msra.mxu0 0
    %895 = vmatpush.bf16.msra.mxu0 0
    %896 = vmatpush.bf16.msra.mxu0 0
    %897 = vmatpush.bf16.msra.mxu0 0
    %898 = vmatpush.bf16.msra.mxu0 0
    %899 = vmatpush.bf16.msra.mxu0 0
    %900 = vmatpush.bf16.msra.mxu0 %v613
    %901 = vmatmul.bf16.gmra.mxu0 %v878
    %v902 = vpop.f32.mrf.mxu0
    %v903 = vadd.f32 %v525, %v902
    %v904 = vpop.f32.mrf.mxu0
    %905 = vdwg.mxu0
    %v907 = vsel %vm147, %v108, 0
    %909 = vmatpush.bf16.msra.mxu0 0
    %910 = vmatpush.bf16.msra.mxu0 0
    %911 = vmatpush.bf16.msra.mxu0 0
    %912 = vmatpush.bf16.msra.mxu0 0
    %913 = vmatpush.bf16.msra.mxu0 0
    %914 = vmatpush.bf16.msra.mxu0 0
    %915 = vmatpush.bf16.msra.mxu0 0
    %916 = vmatpush.bf16.msra.mxu0 %v612
    %917 = vmatmul.bf16.gmra.mxu0 %v907
    %v918 = vpop.f32.mrf.mxu0
    %v919 = vadd.f32 %v551, %v918
    %v920 = vpop.f32.mrf.mxu0
    %921 = vdwg.mxu0
    %922 = vmatpush.bf16.msra.mxu0 0
    %923 = vmatpush.bf16.msra.mxu0 0
    %924 = vmatpush.bf16.msra.mxu0 0
    %925 = vmatpush.bf16.msra.mxu0 0
    %926 = vmatpush.bf16.msra.mxu0 0
    %927 = vmatpush.bf16.msra.mxu0 0
    %928 = vmatpush.bf16.msra.mxu0 0
    %929 = vmatpush.bf16.msra.mxu0 %v613
    %930 = vmatmul.bf16.gmra.mxu0 %v907
    %v931 = vpop.f32.mrf.mxu0
    %v932 = vadd.f32 %v564, %v931
    %v933 = vpop.f32.mrf.mxu0
    %934 = vdwg.mxu0
    %v936 = vsel %vm147, %v109, 0
    %938 = vmatpush.bf16.msra.mxu0 0
    %939 = vmatpush.bf16.msra.mxu0 0
    %940 = vmatpush.bf16.msra.mxu0 0
    %941 = vmatpush.bf16.msra.mxu0 0
    %942 = vmatpush.bf16.msra.mxu0 0
    %943 = vmatpush.bf16.msra.mxu0 0
    %944 = vmatpush.bf16.msra.mxu0 0
    %945 = vmatpush.bf16.msra.mxu0 %v612
    %946 = vmatmul.bf16.gmra.mxu0 %v936
    %v947 = vpop.f32.mrf.mxu0
    %v948 = vadd.f32 %v590, %v947
    %v949 = vpop.f32.mrf.mxu0
    %950 = vdwg.mxu0
    %951 = vmatpush.bf16.msra.mxu0 0
    %952 = vmatpush.bf16.msra.mxu0 0
    %953 = vmatpush.bf16.msra.mxu0 0
    %954 = vmatpush.bf16.msra.mxu0 0
    %955 = vmatpush.bf16.msra.mxu0 0
    %956 = vmatpush.bf16.msra.mxu0 0
    %957 = vmatpush.bf16.msra.mxu0 0
    %958 = vmatpush.bf16.msra.mxu0 %v613
    %959 = vmatmul.bf16.gmra.mxu0 %v936
    %v960 = vpop.f32.mrf.mxu0
    %v961 = vadd.f32 %v603, %v960
    %v962 = vpop.f32.mrf.mxu0
    %963 = vdwg.mxu0
    %v964 = vld [vmem:[%s0] sm:$0xe]
    %v965 = vld [vmem:[%s0 + $0x4] sm:$0xe]
    %v966 = vld [vmem:[%s0 + $0x8] sm:$0xe]
    %v967 = vld [vmem:[%s0 + $0xc] sm:$0xe]
    %v968 = vld [vmem:[%s0 + $0x10] sm:$0xe]
    %v969 = vld [vmem:[%s0 + $0x14] sm:$0xe]
    %v970 = vld [vmem:[%s0 + $0x20] sm:$0xe]
    %v971 = vld [vmem:[%s0 + $0x24] sm:$0xe]
    %v972 = vld [vmem:[%s0 + $0x28] sm:$0xe]
    %v973 = vld [vmem:[%s0 + $0x2c] sm:$0xe]
    %v974 = vld [vmem:[%s0 + $0x30] sm:$0xe]
    %v975 = vld [vmem:[%s0 + $0x34] sm:$0xe]
    %s976 = scalar_lea.vmem [#allocation3], 32
    %v977 = vld [vmem:[%s976] sm:$0xff]
    %v978 = vld [vmem:[%s976 + $0x8] sm:$0xff]
    %v980 = vunpack.c.l.b16 %v964
    %v981 = vpack.c.b16 %v980, %v980
    %v982 = vrot.slane %v981, 1
    %v985 = vunpack.c.l.b16 %v977
    %v986 = vunpack.c.h.b16 %v977
    %v987 = vunpack.c.l.b16 %v978
    %v988 = vunpack.c.h.b16 %v978
    %v989 = vpack.c.b16 %v987, %v985
    %v990 = vpack.c.b16 %v988, %v986
    %v994 = vsel %vm147, %v982, 0
    %996 = vmatpush.bf16.msra.mxu0 0
    %997 = vmatpush.bf16.msra.mxu0 0
    %998 = vmatpush.bf16.msra.mxu0 0
    %999 = vmatpush.bf16.msra.mxu0 0
    %1000 = vmatpush.bf16.msra.mxu0 0
    %1001 = vmatpush.bf16.msra.mxu0 0
    %1002 = vmatpush.bf16.msra.mxu0 0
    %1003 = vmatpush.bf16.msra.mxu0 %v989
    %1004 = vmatmul.bf16.gmra.mxu0 %v994
    %v1005 = vpop.f32.mrf.mxu0
    %v1006 = vadd.f32 0.0, %v1005
    %v1007 = vpop.f32.mrf.mxu0
    %1008 = vdwg.mxu0
    %1009 = vmatpush.bf16.msra.mxu0 0
    %1010 = vmatpush.bf16.msra.mxu0 0
    %1011 = vmatpush.bf16.msra.mxu0 0
    %1012 = vmatpush.bf16.msra.mxu0 0
    %1013 = vmatpush.bf16.msra.mxu0 0
    %1014 = vmatpush.bf16.msra.mxu0 0
    %1015 = vmatpush.bf16.msra.mxu0 0
    %1016 = vmatpush.bf16.msra.mxu0 %v990
    %1017 = vmatmul.bf16.gmra.mxu0 %v994
    %v1018 = vpop.f32.mrf.mxu0
    %v1019 = vadd.f32 0.0, %v1018
    %v1020 = vpop.f32.mrf.mxu0
    %1021 = vdwg.mxu0
    %v1023 = vunpack.c.l.b16 %v965
    %v1024 = vpack.c.b16 %v1023, %v1023
    %v1025 = vrot.slane %v1024, 1
    %v1027 = vsel %vm147, %v1025, 0
    %1029 = vmatpush.bf16.msra.mxu0 0
    %1030 = vmatpush.bf16.msra.mxu0 0
    %1031 = vmatpush.bf16.msra.mxu0 0
    %1032 = vmatpush.bf16.msra.mxu0 0
    %1033 = vmatpush.bf16.msra.mxu0 0
    %1034 = vmatpush.bf16.msra.mxu0 0
    %1035 = vmatpush.bf16.msra.mxu0 0
    %1036 = vmatpush.bf16.msra.mxu0 %v989
    %1037 = vmatmul.bf16.gmra.mxu0 %v1027
    %v1038 = vpop.f32.mrf.mxu0
    %v1039 = vadd.f32 0.0, %v1038
    %v1040 = vpop.f32.mrf.mxu0
    %1041 = vdwg.mxu0
    %1042 = vmatpush.bf16.msra.mxu0 0
    %1043 = vmatpush.bf16.msra.mxu0 0
    %1044 = vmatpush.bf16.msra.mxu0 0
    %1045 = vmatpush.bf16.msra.mxu0 0
    %1046 = vmatpush.bf16.msra.mxu0 0
    %1047 = vmatpush.bf16.msra.mxu0 0
    %1048 = vmatpush.bf16.msra.mxu0 0
    %1049 = vmatpush.bf16.msra.mxu0 %v990
    %1050 = vmatmul.bf16.gmra.mxu0 %v1027
    %v1051 = vpop.f32.mrf.mxu0
    %v1052 = vadd.f32 0.0, %v1051
    %v1053 = vpop.f32.mrf.mxu0
    %1054 = vdwg.mxu0
    %v1056 = vunpack.c.l.b16 %v966
    %v1057 = vpack.c.b16 %v1056, %v1056
    %v1058 = vrot.slane %v1057, 1
    %v1060 = vsel %vm147, %v1058, 0
    %1062 = vmatpush.bf16.msra.mxu0 0
    %1063 = vmatpush.bf16.msra.mxu0 0
    %1064 = vmatpush.bf16.msra.mxu0 0
    %1065 = vmatpush.bf16.msra.mxu0 0
    %1066 = vmatpush.bf16.msra.mxu0 0
    %1067 = vmatpush.bf16.msra.mxu0 0
    %1068 = vmatpush.bf16.msra.mxu0 0
    %1069 = vmatpush.bf16.msra.mxu0 %v989
    %1070 = vmatmul.bf16.gmra.mxu0 %v1060
    %v1071 = vpop.f32.mrf.mxu0
    %v1072 = vadd.f32 0.0, %v1071
    %v1073 = vpop.f32.mrf.mxu0
    %1074 = vdwg.mxu0
    %1075 = vmatpush.bf16.msra.mxu0 0
    %1076 = vmatpush.bf16.msra.mxu0 0
    %1077 = vmatpush.bf16.msra.mxu0 0
    %1078 = vmatpush.bf16.msra.mxu0 0
    %1079 = vmatpush.bf16.msra.mxu0 0
    %1080 = vmatpush.bf16.msra.mxu0 0
    %1081 = vmatpush.bf16.msra.mxu0 0
    %1082 = vmatpush.bf16.msra.mxu0 %v990
    %1083 = vmatmul.bf16.gmra.mxu0 %v1060
    %v1084 = vpop.f32.mrf.mxu0
    %v1085 = vadd.f32 0.0, %v1084
    %v1086 = vpop.f32.mrf.mxu0
    %1087 = vdwg.mxu0
    %v1089 = vunpack.c.l.b16 %v967
    %v1090 = vpack.c.b16 %v1089, %v1089
    %v1091 = vrot.slane %v1090, 1
    %v1093 = vsel %vm147, %v1091, 0
    %1095 = vmatpush.bf16.msra.mxu0 0
    %1096 = vmatpush.bf16.msra.mxu0 0
    %1097 = vmatpush.bf16.msra.mxu0 0
    %1098 = vmatpush.bf16.msra.mxu0 0
    %1099 = vmatpush.bf16.msra.mxu0 0
    %1100 = vmatpush.bf16.msra.mxu0 0
    %1101 = vmatpush.bf16.msra.mxu0 0
    %1102 = vmatpush.bf16.msra.mxu0 %v989
    %1103 = vmatmul.bf16.gmra.mxu0 %v1093
    %v1104 = vpop.f32.mrf.mxu0
    %v1105 = vadd.f32 0.0, %v1104
    %v1106 = vpop.f32.mrf.mxu0
    %1107 = vdwg.mxu0
    %1108 = vmatpush.bf16.msra.mxu0 0
    %1109 = vmatpush.bf16.msra.mxu0 0
    %1110 = vmatpush.bf16.msra.mxu0 0
    %1111 = vmatpush.bf16.msra.mxu0 0
    %1112 = vmatpush.bf16.msra.mxu0 0
    %1113 = vmatpush.bf16.msra.mxu0 0
    %1114 = vmatpush.bf16.msra.mxu0 0
    %1115 = vmatpush.bf16.msra.mxu0 %v990
    %1116 = vmatmul.bf16.gmra.mxu0 %v1093
    %v1117 = vpop.f32.mrf.mxu0
    %v1118 = vadd.f32 0.0, %v1117
    %v1119 = vpop.f32.mrf.mxu0
    %1120 = vdwg.mxu0
    %v1122 = vunpack.c.l.b16 %v968
    %v1123 = vpack.c.b16 %v1122, %v1122
    %v1124 = vrot.slane %v1123, 1
    %v1126 = vsel %vm147, %v1124, 0
    %1128 = vmatpush.bf16.msra.mxu0 0
    %1129 = vmatpush.bf16.msra.mxu0 0
    %1130 = vmatpush.bf16.msra.mxu0 0
    %1131 = vmatpush.bf16.msra.mxu0 0
    %1132 = vmatpush.bf16.msra.mxu0 0
    %1133 = vmatpush.bf16.msra.mxu0 0
    %1134 = vmatpush.bf16.msra.mxu0 0
    %1135 = vmatpush.bf16.msra.mxu0 %v989
    %1136 = vmatmul.bf16.gmra.mxu0 %v1126
    %v1137 = vpop.f32.mrf.mxu0
    %v1138 = vadd.f32 0.0, %v1137
    %v1139 = vpop.f32.mrf.mxu0
    %1140 = vdwg.mxu0
    %1141 = vmatpush.bf16.msra.mxu0 0
    %1142 = vmatpush.bf16.msra.mxu0 0
    %1143 = vmatpush.bf16.msra.mxu0 0
    %1144 = vmatpush.bf16.msra.mxu0 0
    %1145 = vmatpush.bf16.msra.mxu0 0
    %1146 = vmatpush.bf16.msra.mxu0 0
    %1147 = vmatpush.bf16.msra.mxu0 0
    %1148 = vmatpush.bf16.msra.mxu0 %v990
    %1149 = vmatmul.bf16.gmra.mxu0 %v1126
    %v1150 = vpop.f32.mrf.mxu0
    %v1151 = vadd.f32 0.0, %v1150
    %v1152 = vpop.f32.mrf.mxu0
    %1153 = vdwg.mxu0
    %v1155 = vunpack.c.l.b16 %v969
    %v1156 = vpack.c.b16 %v1155, %v1155
    %v1157 = vrot.slane %v1156, 1
    %v1159 = vsel %vm147, %v1157, 0
    %1161 = vmatpush.bf16.msra.mxu0 0
    %1162 = vmatpush.bf16.msra.mxu0 0
    %1163 = vmatpush.bf16.msra.mxu0 0
    %1164 = vmatpush.bf16.msra.mxu0 0
    %1165 = vmatpush.bf16.msra.mxu0 0
    %1166 = vmatpush.bf16.msra.mxu0 0
    %1167 = vmatpush.bf16.msra.mxu0 0
    %1168 = vmatpush.bf16.msra.mxu0 %v989
    %1169 = vmatmul.bf16.gmra.mxu0 %v1159
    %v1170 = vpop.f32.mrf.mxu0
    %v1171 = vadd.f32 0.0, %v1170
    %v1172 = vpop.f32.mrf.mxu0
    %1173 = vdwg.mxu0
    %1174 = vmatpush.bf16.msra.mxu0 0
    %1175 = vmatpush.bf16.msra.mxu0 0
    %1176 = vmatpush.bf16.msra.mxu0 0
    %1177 = vmatpush.bf16.msra.mxu0 0
    %1178 = vmatpush.bf16.msra.mxu0 0
    %1179 = vmatpush.bf16.msra.mxu0 0
    %1180 = vmatpush.bf16.msra.mxu0 0
    %1181 = vmatpush.bf16.msra.mxu0 %v990
    %1182 = vmatmul.bf16.gmra.mxu0 %v1159
    %v1183 = vpop.f32.mrf.mxu0
    %v1184 = vadd.f32 0.0, %v1183
    %v1185 = vpop.f32.mrf.mxu0
    %1186 = vdwg.mxu0
    %v1188 = vunpack.c.l.b16 %v970
    %v1189 = vpack.c.b16 %v1188, %v1188
    %v1190 = vrot.slane %v1189, 1
    %v1192 = vsel %vm147, %v1190, 0
    %1194 = vmatpush.bf16.msra.mxu0 0
    %1195 = vmatpush.bf16.msra.mxu0 0
    %1196 = vmatpush.bf16.msra.mxu0 0
    %1197 = vmatpush.bf16.msra.mxu0 0
    %1198 = vmatpush.bf16.msra.mxu0 0
    %1199 = vmatpush.bf16.msra.mxu0 0
    %1200 = vmatpush.bf16.msra.mxu0 0
    %1201 = vmatpush.bf16.msra.mxu0 %v989
    %1202 = vmatmul.bf16.gmra.mxu0 %v1192
    %v1203 = vpop.f32.mrf.mxu0
    %v1204 = vadd.f32 0.0, %v1203
    %v1205 = vpop.f32.mrf.mxu0
    %1206 = vdwg.mxu0
    %1207 = vmatpush.bf16.msra.mxu0 0
    %1208 = vmatpush.bf16.msra.mxu0 0
    %1209 = vmatpush.bf16.msra.mxu0 0
    %1210 = vmatpush.bf16.msra.mxu0 0
    %1211 = vmatpush.bf16.msra.mxu0 0
    %1212 = vmatpush.bf16.msra.mxu0 0
    %1213 = vmatpush.bf16.msra.mxu0 0
    %1214 = vmatpush.bf16.msra.mxu0 %v990
    %1215 = vmatmul.bf16.gmra.mxu0 %v1192
    %v1216 = vpop.f32.mrf.mxu0
    %v1217 = vadd.f32 0.0, %v1216
    %v1218 = vpop.f32.mrf.mxu0
    %1219 = vdwg.mxu0
    %v1221 = vunpack.c.l.b16 %v971
    %v1222 = vpack.c.b16 %v1221, %v1221
    %v1223 = vrot.slane %v1222, 1
    %v1225 = vsel %vm147, %v1223, 0
    %1227 = vmatpush.bf16.msra.mxu0 0
    %1228 = vmatpush.bf16.msra.mxu0 0
    %1229 = vmatpush.bf16.msra.mxu0 0
    %1230 = vmatpush.bf16.msra.mxu0 0
    %1231 = vmatpush.bf16.msra.mxu0 0
    %1232 = vmatpush.bf16.msra.mxu0 0
    %1233 = vmatpush.bf16.msra.mxu0 0
    %1234 = vmatpush.bf16.msra.mxu0 %v989
    %1235 = vmatmul.bf16.gmra.mxu0 %v1225
    %v1236 = vpop.f32.mrf.mxu0
    %v1237 = vadd.f32 0.0, %v1236
    %v1238 = vpop.f32.mrf.mxu0
    %1239 = vdwg.mxu0
    %1240 = vmatpush.bf16.msra.mxu0 0
    %1241 = vmatpush.bf16.msra.mxu0 0
    %1242 = vmatpush.bf16.msra.mxu0 0
    %1243 = vmatpush.bf16.msra.mxu0 0
    %1244 = vmatpush.bf16.msra.mxu0 0
    %1245 = vmatpush.bf16.msra.mxu0 0
    %1246 = vmatpush.bf16.msra.mxu0 0
    %1247 = vmatpush.bf16.msra.mxu0 %v990
    %1248 = vmatmul.bf16.gmra.mxu0 %v1225
    %v1249 = vpop.f32.mrf.mxu0
    %v1250 = vadd.f32 0.0, %v1249
    %v1251 = vpop.f32.mrf.mxu0
    %1252 = vdwg.mxu0
    %v1254 = vunpack.c.l.b16 %v972
    %v1255 = vpack.c.b16 %v1254, %v1254
    %v1256 = vrot.slane %v1255, 1
    %v1258 = vsel %vm147, %v1256, 0
    %1260 = vmatpush.bf16.msra.mxu0 0
    %1261 = vmatpush.bf16.msra.mxu0 0
    %1262 = vmatpush.bf16.msra.mxu0 0
    %1263 = vmatpush.bf16.msra.mxu0 0
    %1264 = vmatpush.bf16.msra.mxu0 0
    %1265 = vmatpush.bf16.msra.mxu0 0
    %1266 = vmatpush.bf16.msra.mxu0 0
    %1267 = vmatpush.bf16.msra.mxu0 %v989
    %1268 = vmatmul.bf16.gmra.mxu0 %v1258
    %v1269 = vpop.f32.mrf.mxu0
    %v1270 = vadd.f32 0.0, %v1269
    %v1271 = vpop.f32.mrf.mxu0
    %1272 = vdwg.mxu0
    %1273 = vmatpush.bf16.msra.mxu0 0
    %1274 = vmatpush.bf16.msra.mxu0 0
    %1275 = vmatpush.bf16.msra.mxu0 0
    %1276 = vmatpush.bf16.msra.mxu0 0
    %1277 = vmatpush.bf16.msra.mxu0 0
    %1278 = vmatpush.bf16.msra.mxu0 0
    %1279 = vmatpush.bf16.msra.mxu0 0
    %1280 = vmatpush.bf16.msra.mxu0 %v990
    %1281 = vmatmul.bf16.gmra.mxu0 %v1258
    %v1282 = vpop.f32.mrf.mxu0
    %v1283 = vadd.f32 0.0, %v1282
    %v1284 = vpop.f32.mrf.mxu0
    %1285 = vdwg.mxu0
    %v1287 = vunpack.c.l.b16 %v973
    %v1288 = vpack.c.b16 %v1287, %v1287
    %v1289 = vrot.slane %v1288, 1
    %v1291 = vsel %vm147, %v1289, 0
    %1293 = vmatpush.bf16.msra.mxu0 0
    %1294 = vmatpush.bf16.msra.mxu0 0
    %1295 = vmatpush.bf16.msra.mxu0 0
    %1296 = vmatpush.bf16.msra.mxu0 0
    %1297 = vmatpush.bf16.msra.mxu0 0
    %1298 = vmatpush.bf16.msra.mxu0 0
    %1299 = vmatpush.bf16.msra.mxu0 0
    %1300 = vmatpush.bf16.msra.mxu0 %v989
    %1301 = vmatmul.bf16.gmra.mxu0 %v1291
    %v1302 = vpop.f32.mrf.mxu0
    %v1303 = vadd.f32 0.0, %v1302
    %v1304 = vpop.f32.mrf.mxu0
    %1305 = vdwg.mxu0
    %1306 = vmatpush.bf16.msra.mxu0 0
    %1307 = vmatpush.bf16.msra.mxu0 0
    %1308 = vmatpush.bf16.msra.mxu0 0
    %1309 = vmatpush.bf16.msra.mxu0 0
    %1310 = vmatpush.bf16.msra.mxu0 0
    %1311 = vmatpush.bf16.msra.mxu0 0
    %1312 = vmatpush.bf16.msra.mxu0 0
    %1313 = vmatpush.bf16.msra.mxu0 %v990
    %1314 = vmatmul.bf16.gmra.mxu0 %v1291
    %v1315 = vpop.f32.mrf.mxu0
    %v1316 = vadd.f32 0.0, %v1315
    %v1317 = vpop.f32.mrf.mxu0
    %1318 = vdwg.mxu0
    %v1320 = vunpack.c.l.b16 %v974
    %v1321 = vpack.c.b16 %v1320, %v1320
    %v1322 = vrot.slane %v1321, 1
    %v1324 = vsel %vm147, %v1322, 0
    %1326 = vmatpush.bf16.msra.mxu0 0
    %1327 = vmatpush.bf16.msra.mxu0 0
    %1328 = vmatpush.bf16.msra.mxu0 0
    %1329 = vmatpush.bf16.msra.mxu0 0
    %1330 = vmatpush.bf16.msra.mxu0 0
    %1331 = vmatpush.bf16.msra.mxu0 0
    %1332 = vmatpush.bf16.msra.mxu0 0
    %1333 = vmatpush.bf16.msra.mxu0 %v989
    %1334 = vmatmul.bf16.gmra.mxu0 %v1324
    %v1335 = vpop.f32.mrf.mxu0
    %v1336 = vadd.f32 0.0, %v1335
    %v1337 = vpop.f32.mrf.mxu0
    %1338 = vdwg.mxu0
    %1339 = vmatpush.bf16.msra.mxu0 0
    %1340 = vmatpush.bf16.msra.mxu0 0
    %1341 = vmatpush.bf16.msra.mxu0 0
    %1342 = vmatpush.bf16.msra.mxu0 0
    %1343 = vmatpush.bf16.msra.mxu0 0
    %1344 = vmatpush.bf16.msra.mxu0 0
    %1345 = vmatpush.bf16.msra.mxu0 0
    %1346 = vmatpush.bf16.msra.mxu0 %v990
    %1347 = vmatmul.bf16.gmra.mxu0 %v1324
    %v1348 = vpop.f32.mrf.mxu0
    %v1349 = vadd.f32 0.0, %v1348
    %v1350 = vpop.f32.mrf.mxu0
    %1351 = vdwg.mxu0
    %v1353 = vunpack.c.l.b16 %v975
    %v1354 = vpack.c.b16 %v1353, %v1353
    %v1355 = vrot.slane %v1354, 1
    %v1357 = vsel %vm147, %v1355, 0
    %1359 = vmatpush.bf16.msra.mxu0 0
    %1360 = vmatpush.bf16.msra.mxu0 0
    %1361 = vmatpush.bf16.msra.mxu0 0
    %1362 = vmatpush.bf16.msra.mxu0 0
    %1363 = vmatpush.bf16.msra.mxu0 0
    %1364 = vmatpush.bf16.msra.mxu0 0
    %1365 = vmatpush.bf16.msra.mxu0 0
    %1366 = vmatpush.bf16.msra.mxu0 %v989
    %1367 = vmatmul.bf16.gmra.mxu0 %v1357
    %v1368 = vpop.f32.mrf.mxu0
    %v1369 = vadd.f32 0.0, %v1368
    %v1370 = vpop.f32.mrf.mxu0
    %1371 = vdwg.mxu0
    %1372 = vmatpush.bf16.msra.mxu0 0
    %1373 = vmatpush.bf16.msra.mxu0 0
    %1374 = vmatpush.bf16.msra.mxu0 0
    %1375 = vmatpush.bf16.msra.mxu0 0
    %1376 = vmatpush.bf16.msra.mxu0 0
    %1377 = vmatpush.bf16.msra.mxu0 0
    %1378 = vmatpush.bf16.msra.mxu0 0
    %1379 = vmatpush.bf16.msra.mxu0 %v990
    %1380 = vmatmul.bf16.gmra.mxu0 %v1357
    %v1381 = vpop.f32.mrf.mxu0
    %v1382 = vadd.f32 0.0, %v1381
    %v1383 = vpop.f32.mrf.mxu0
    %1384 = vdwg.mxu0
    %v1385 = vadd.f32 %v629, %v1006
    %v1386 = vadd.f32 %v642, %v1019
    %v1387 = vadd.f32 %v658, %v1039
    %v1388 = vadd.f32 %v671, %v1052
    %v1389 = vadd.f32 %v687, %v1072
    %v1390 = vadd.f32 %v700, %v1085
    %v1391 = vadd.f32 %v716, %v1105
    %v1392 = vadd.f32 %v729, %v1118
    %v1393 = vadd.f32 %v745, %v1138
    %v1394 = vadd.f32 %v758, %v1151
    %v1395 = vadd.f32 %v774, %v1171
    %v1396 = vadd.f32 %v787, %v1184
    %v1397 = vadd.f32 %v803, %v1204
    %v1398 = vadd.f32 %v816, %v1217
    %v1399 = vadd.f32 %v832, %v1237
    %v1400 = vadd.f32 %v845, %v1250
    %v1401 = vadd.f32 %v861, %v1270
    %v1402 = vadd.f32 %v874, %v1283
    %v1403 = vadd.f32 %v890, %v1303
    %v1404 = vadd.f32 %v903, %v1316
    %v1405 = vadd.f32 %v919, %v1336
    %v1406 = vadd.f32 %v932, %v1349
    %v1407 = vadd.f32 %v948, %v1369
    %v1408 = vadd.f32 %v961, %v1382
    %s1409 = scalar_lea.vmem %s0, 4
    %v1410 = vld [vmem:[%s1409] sm:$0x7]
    %v1411 = vld [vmem:[%s1409 + $0x4] sm:$0x7]
    %v1412 = vld [vmem:[%s1409 + $0x8] sm:$0x7]
    %v1413 = vld [vmem:[%s1409 + $0xc] sm:$0x7]
    %v1414 = vld [vmem:[%s1409 + $0x10] sm:$0x7]
    %v1415 = vld [vmem:[%s1409 + $0x14] sm:$0x7]
    %v1416 = vld [vmem:[%s1409 + $0x20] sm:$0x7]
    %v1417 = vld [vmem:[%s1409 + $0x24] sm:$0x7]
    %v1418 = vld [vmem:[%s1409 + $0x28] sm:$0x7]
    %v1419 = vld [vmem:[%s1409 + $0x2c] sm:$0x7]
    %v1420 = vld [vmem:[%s1409 + $0x30] sm:$0x7]
    %v1421 = vld [vmem:[%s1409 + $0x34] sm:$0x7]
    %s1422 = scalar_lea.vmem [#allocation3], 48
    %v1423 = vld [vmem:[%s1422] sm:$0xff]
    %v1424 = vld [vmem:[%s1422 + $0x8] sm:$0xff]
    %v1427 = vunpack.c.l.b16 %v1423
    %v1428 = vunpack.c.h.b16 %v1423
    %v1429 = vunpack.c.l.b16 %v1424
    %v1430 = vunpack.c.h.b16 %v1424
    %v1431 = vpack.c.b16 %v1429, %v1427
    %v1432 = vpack.c.b16 %v1430, %v1428
    %v1436 = vsel %vm147, %v1410, 0
    %1438 = vmatpush.bf16.msra.mxu0 0
    %1439 = vmatpush.bf16.msra.mxu0 0
    %1440 = vmatpush.bf16.msra.mxu0 0
    %1441 = vmatpush.bf16.msra.mxu0 0
    %1442 = vmatpush.bf16.msra.mxu0 0
    %1443 = vmatpush.bf16.msra.mxu0 0
    %1444 = vmatpush.bf16.msra.mxu0 0
    %1445 = vmatpush.bf16.msra.mxu0 %v1431
    %1446 = vmatmul.bf16.gmra.mxu0 %v1436
    %v1447 = vpop.f32.mrf.mxu0
    %v1448 = vadd.f32 0.0, %v1447
    %v1449 = vpop.f32.mrf.mxu0
    %1450 = vdwg.mxu0
    %1451 = vmatpush.bf16.msra.mxu0 0
    %1452 = vmatpush.bf16.msra.mxu0 0
    %1453 = vmatpush.bf16.msra.mxu0 0
    %1454 = vmatpush.bf16.msra.mxu0 0
    %1455 = vmatpush.bf16.msra.mxu0 0
    %1456 = vmatpush.bf16.msra.mxu0 0
    %1457 = vmatpush.bf16.msra.mxu0 0
    %1458 = vmatpush.bf16.msra.mxu0 %v1432
    %1459 = vmatmul.bf16.gmra.mxu0 %v1436
    %v1460 = vpop.f32.mrf.mxu0
    %v1461 = vadd.f32 0.0, %v1460
    %v1462 = vpop.f32.mrf.mxu0
    %1463 = vdwg.mxu0
    %v1465 = vsel %vm147, %v1411, 0
    %1467 = vmatpush.bf16.msra.mxu0 0
    %1468 = vmatpush.bf16.msra.mxu0 0
    %1469 = vmatpush.bf16.msra.mxu0 0
    %1470 = vmatpush.bf16.msra.mxu0 0
    %1471 = vmatpush.bf16.msra.mxu0 0
    %1472 = vmatpush.bf16.msra.mxu0 0
    %1473 = vmatpush.bf16.msra.mxu0 0
    %1474 = vmatpush.bf16.msra.mxu0 %v1431
    %1475 = vmatmul.bf16.gmra.mxu0 %v1465
    %v1476 = vpop.f32.mrf.mxu0
    %v1477 = vadd.f32 0.0, %v1476
    %v1478 = vpop.f32.mrf.mxu0
    %1479 = vdwg.mxu0
    %1480 = vmatpush.bf16.msra.mxu0 0
    %1481 = vmatpush.bf16.msra.mxu0 0
    %1482 = vmatpush.bf16.msra.mxu0 0
    %1483 = vmatpush.bf16.msra.mxu0 0
    %1484 = vmatpush.bf16.msra.mxu0 0
    %1485 = vmatpush.bf16.msra.mxu0 0
    %1486 = vmatpush.bf16.msra.mxu0 0
    %1487 = vmatpush.bf16.msra.mxu0 %v1432
    %1488 = vmatmul.bf16.gmra.mxu0 %v1465
    %v1489 = vpop.f32.mrf.mxu0
    %v1490 = vadd.f32 0.0, %v1489
    %v1491 = vpop.f32.mrf.mxu0
    %1492 = vdwg.mxu0
    %v1494 = vsel %vm147, %v1412, 0
    %1496 = vmatpush.bf16.msra.mxu0 0
    %1497 = vmatpush.bf16.msra.mxu0 0
    %1498 = vmatpush.bf16.msra.mxu0 0
    %1499 = vmatpush.bf16.msra.mxu0 0
    %1500 = vmatpush.bf16.msra.mxu0 0
    %1501 = vmatpush.bf16.msra.mxu0 0
    %1502 = vmatpush.bf16.msra.mxu0 0
    %1503 = vmatpush.bf16.msra.mxu0 %v1431
    %1504 = vmatmul.bf16.gmra.mxu0 %v1494
    %v1505 = vpop.f32.mrf.mxu0
    %v1506 = vadd.f32 0.0, %v1505
    %v1507 = vpop.f32.mrf.mxu0
    %1508 = vdwg.mxu0
    %1509 = vmatpush.bf16.msra.mxu0 0
    %1510 = vmatpush.bf16.msra.mxu0 0
    %1511 = vmatpush.bf16.msra.mxu0 0
    %1512 = vmatpush.bf16.msra.mxu0 0
    %1513 = vmatpush.bf16.msra.mxu0 0
    %1514 = vmatpush.bf16.msra.mxu0 0
    %1515 = vmatpush.bf16.msra.mxu0 0
    %1516 = vmatpush.bf16.msra.mxu0 %v1432
    %1517 = vmatmul.bf16.gmra.mxu0 %v1494
    %v1518 = vpop.f32.mrf.mxu0
    %v1519 = vadd.f32 0.0, %v1518
    %v1520 = vpop.f32.mrf.mxu0
    %1521 = vdwg.mxu0
    %v1523 = vsel %vm147, %v1413, 0
    %1525 = vmatpush.bf16.msra.mxu0 0
    %1526 = vmatpush.bf16.msra.mxu0 0
    %1527 = vmatpush.bf16.msra.mxu0 0
    %1528 = vmatpush.bf16.msra.mxu0 0
    %1529 = vmatpush.bf16.msra.mxu0 0
    %1530 = vmatpush.bf16.msra.mxu0 0
    %1531 = vmatpush.bf16.msra.mxu0 0
    %1532 = vmatpush.bf16.msra.mxu0 %v1431
    %1533 = vmatmul.bf16.gmra.mxu0 %v1523
    %v1534 = vpop.f32.mrf.mxu0
    %v1535 = vadd.f32 0.0, %v1534
    %v1536 = vpop.f32.mrf.mxu0
    %1537 = vdwg.mxu0
    %1538 = vmatpush.bf16.msra.mxu0 0
    %1539 = vmatpush.bf16.msra.mxu0 0
    %1540 = vmatpush.bf16.msra.mxu0 0
    %1541 = vmatpush.bf16.msra.mxu0 0
    %1542 = vmatpush.bf16.msra.mxu0 0
    %1543 = vmatpush.bf16.msra.mxu0 0
    %1544 = vmatpush.bf16.msra.mxu0 0
    %1545 = vmatpush.bf16.msra.mxu0 %v1432
    %1546 = vmatmul.bf16.gmra.mxu0 %v1523
    %v1547 = vpop.f32.mrf.mxu0
    %v1548 = vadd.f32 0.0, %v1547
    %v1549 = vpop.f32.mrf.mxu0
    %1550 = vdwg.mxu0
    %v1552 = vsel %vm147, %v1414, 0
    %1554 = vmatpush.bf16.msra.mxu0 0
    %1555 = vmatpush.bf16.msra.mxu0 0
    %1556 = vmatpush.bf16.msra.mxu0 0
    %1557 = vmatpush.bf16.msra.mxu0 0
    %1558 = vmatpush.bf16.msra.mxu0 0
    %1559 = vmatpush.bf16.msra.mxu0 0
    %1560 = vmatpush.bf16.msra.mxu0 0
    %1561 = vmatpush.bf16.msra.mxu0 %v1431
    %1562 = vmatmul.bf16.gmra.mxu0 %v1552
    %v1563 = vpop.f32.mrf.mxu0
    %v1564 = vadd.f32 0.0, %v1563
    %v1565 = vpop.f32.mrf.mxu0
    %1566 = vdwg.mxu0
    %1567 = vmatpush.bf16.msra.mxu0 0
    %1568 = vmatpush.bf16.msra.mxu0 0
    %1569 = vmatpush.bf16.msra.mxu0 0
    %1570 = vmatpush.bf16.msra.mxu0 0
    %1571 = vmatpush.bf16.msra.mxu0 0
    %1572 = vmatpush.bf16.msra.mxu0 0
    %1573 = vmatpush.bf16.msra.mxu0 0
    %1574 = vmatpush.bf16.msra.mxu0 %v1432
    %1575 = vmatmul.bf16.gmra.mxu0 %v1552
    %v1576 = vpop.f32.mrf.mxu0
    %v1577 = vadd.f32 0.0, %v1576
    %v1578 = vpop.f32.mrf.mxu0
    %1579 = vdwg.mxu0
    %v1581 = vsel %vm147, %v1415, 0
    %1583 = vmatpush.bf16.msra.mxu0 0
    %1584 = vmatpush.bf16.msra.mxu0 0
    %1585 = vmatpush.bf16.msra.mxu0 0
    %1586 = vmatpush.bf16.msra.mxu0 0
    %1587 = vmatpush.bf16.msra.mxu0 0
    %1588 = vmatpush.bf16.msra.mxu0 0
    %1589 = vmatpush.bf16.msra.mxu0 0
    %1590 = vmatpush.bf16.msra.mxu0 %v1431
    %1591 = vmatmul.bf16.gmra.mxu0 %v1581
    %v1592 = vpop.f32.mrf.mxu0
    %v1593 = vadd.f32 0.0, %v1592
    %v1594 = vpop.f32.mrf.mxu0
    %1595 = vdwg.mxu0
    %1596 = vmatpush.bf16.msra.mxu0 0
    %1597 = vmatpush.bf16.msra.mxu0 0
    %1598 = vmatpush.bf16.msra.mxu0 0
    %1599 = vmatpush.bf16.msra.mxu0 0
    %1600 = vmatpush.bf16.msra.mxu0 0
    %1601 = vmatpush.bf16.msra.mxu0 0
    %1602 = vmatpush.bf16.msra.mxu0 0
    %1603 = vmatpush.bf16.msra.mxu0 %v1432
    %1604 = vmatmul.bf16.gmra.mxu0 %v1581
    %v1605 = vpop.f32.mrf.mxu0
    %v1606 = vadd.f32 0.0, %v1605
    %v1607 = vpop.f32.mrf.mxu0
    %1608 = vdwg.mxu0
    %v1610 = vsel %vm147, %v1416, 0
    %1612 = vmatpush.bf16.msra.mxu0 0
    %1613 = vmatpush.bf16.msra.mxu0 0
    %1614 = vmatpush.bf16.msra.mxu0 0
    %1615 = vmatpush.bf16.msra.mxu0 0
    %1616 = vmatpush.bf16.msra.mxu0 0
    %1617 = vmatpush.bf16.msra.mxu0 0
    %1618 = vmatpush.bf16.msra.mxu0 0
    %1619 = vmatpush.bf16.msra.mxu0 %v1431
    %1620 = vmatmul.bf16.gmra.mxu0 %v1610
    %v1621 = vpop.f32.mrf.mxu0
    %v1622 = vadd.f32 0.0, %v1621
    %v1623 = vpop.f32.mrf.mxu0
    %1624 = vdwg.mxu0
    %1625 = vmatpush.bf16.msra.mxu0 0
    %1626 = vmatpush.bf16.msra.mxu0 0
    %1627 = vmatpush.bf16.msra.mxu0 0
    %1628 = vmatpush.bf16.msra.mxu0 0
    %1629 = vmatpush.bf16.msra.mxu0 0
    %1630 = vmatpush.bf16.msra.mxu0 0
    %1631 = vmatpush.bf16.msra.mxu0 0
    %1632 = vmatpush.bf16.msra.mxu0 %v1432
    %1633 = vmatmul.bf16.gmra.mxu0 %v1610
    %v1634 = vpop.f32.mrf.mxu0
    %v1635 = vadd.f32 0.0, %v1634
    %v1636 = vpop.f32.mrf.mxu0
    %1637 = vdwg.mxu0
    %v1639 = vsel %vm147, %v1417, 0
    %1641 = vmatpush.bf16.msra.mxu0 0
    %1642 = vmatpush.bf16.msra.mxu0 0
    %1643 = vmatpush.bf16.msra.mxu0 0
    %1644 = vmatpush.bf16.msra.mxu0 0
    %1645 = vmatpush.bf16.msra.mxu0 0
    %1646 = vmatpush.bf16.msra.mxu0 0
    %1647 = vmatpush.bf16.msra.mxu0 0
    %1648 = vmatpush.bf16.msra.mxu0 %v1431
    %1649 = vmatmul.bf16.gmra.mxu0 %v1639
    %v1650 = vpop.f32.mrf.mxu0
    %v1651 = vadd.f32 0.0, %v1650
    %v1652 = vpop.f32.mrf.mxu0
    %1653 = vdwg.mxu0
    %1654 = vmatpush.bf16.msra.mxu0 0
    %1655 = vmatpush.bf16.msra.mxu0 0
    %1656 = vmatpush.bf16.msra.mxu0 0
    %1657 = vmatpush.bf16.msra.mxu0 0
    %1658 = vmatpush.bf16.msra.mxu0 0
    %1659 = vmatpush.bf16.msra.mxu0 0
    %1660 = vmatpush.bf16.msra.mxu0 0
    %1661 = vmatpush.bf16.msra.mxu0 %v1432
    %1662 = vmatmul.bf16.gmra.mxu0 %v1639
    %v1663 = vpop.f32.mrf.mxu0
    %v1664 = vadd.f32 0.0, %v1663
    %v1665 = vpop.f32.mrf.mxu0
    %1666 = vdwg.mxu0
    %v1668 = vsel %vm147, %v1418, 0
    %1670 = vmatpush.bf16.msra.mxu0 0
    %1671 = vmatpush.bf16.msra.mxu0 0
    %1672 = vmatpush.bf16.msra.mxu0 0
    %1673 = vmatpush.bf16.msra.mxu0 0
    %1674 = vmatpush.bf16.msra.mxu0 0
    %1675 = vmatpush.bf16.msra.mxu0 0
    %1676 = vmatpush.bf16.msra.mxu0 0
    %1677 = vmatpush.bf16.msra.mxu0 %v1431
    %1678 = vmatmul.bf16.gmra.mxu0 %v1668
    %v1679 = vpop.f32.mrf.mxu0
    %v1680 = vadd.f32 0.0, %v1679
    %v1681 = vpop.f32.mrf.mxu0
    %1682 = vdwg.mxu0
    %1683 = vmatpush.bf16.msra.mxu0 0
    %1684 = vmatpush.bf16.msra.mxu0 0
    %1685 = vmatpush.bf16.msra.mxu0 0
    %1686 = vmatpush.bf16.msra.mxu0 0
    %1687 = vmatpush.bf16.msra.mxu0 0
    %1688 = vmatpush.bf16.msra.mxu0 0
    %1689 = vmatpush.bf16.msra.mxu0 0
    %1690 = vmatpush.bf16.msra.mxu0 %v1432
    %1691 = vmatmul.bf16.gmra.mxu0 %v1668
    %v1692 = vpop.f32.mrf.mxu0
    %v1693 = vadd.f32 0.0, %v1692
    %v1694 = vpop.f32.mrf.mxu0
    %1695 = vdwg.mxu0
    %v1697 = vsel %vm147, %v1419, 0
    %1699 = vmatpush.bf16.msra.mxu0 0
    %1700 = vmatpush.bf16.msra.mxu0 0
    %1701 = vmatpush.bf16.msra.mxu0 0
    %1702 = vmatpush.bf16.msra.mxu0 0
    %1703 = vmatpush.bf16.msra.mxu0 0
    %1704 = vmatpush.bf16.msra.mxu0 0
    %1705 = vmatpush.bf16.msra.mxu0 0
    %1706 = vmatpush.bf16.msra.mxu0 %v1431
    %1707 = vmatmul.bf16.gmra.mxu0 %v1697
    %v1708 = vpop.f32.mrf.mxu0
    %v1709 = vadd.f32 0.0, %v1708
    %v1710 = vpop.f32.mrf.mxu0
    %1711 = vdwg.mxu0
    %1712 = vmatpush.bf16.msra.mxu0 0
    %1713 = vmatpush.bf16.msra.mxu0 0
    %1714 = vmatpush.bf16.msra.mxu0 0
    %1715 = vmatpush.bf16.msra.mxu0 0
    %1716 = vmatpush.bf16.msra.mxu0 0
    %1717 = vmatpush.bf16.msra.mxu0 0
    %1718 = vmatpush.bf16.msra.mxu0 0
    %1719 = vmatpush.bf16.msra.mxu0 %v1432
    %1720 = vmatmul.bf16.gmra.mxu0 %v1697
    %v1721 = vpop.f32.mrf.mxu0
    %v1722 = vadd.f32 0.0, %v1721
    %v1723 = vpop.f32.mrf.mxu0
    %1724 = vdwg.mxu0
    %v1726 = vsel %vm147, %v1420, 0
    %1728 = vmatpush.bf16.msra.mxu0 0
    %1729 = vmatpush.bf16.msra.mxu0 0
    %1730 = vmatpush.bf16.msra.mxu0 0
    %1731 = vmatpush.bf16.msra.mxu0 0
    %1732 = vmatpush.bf16.msra.mxu0 0
    %1733 = vmatpush.bf16.msra.mxu0 0
    %1734 = vmatpush.bf16.msra.mxu0 0
    %1735 = vmatpush.bf16.msra.mxu0 %v1431
    %1736 = vmatmul.bf16.gmra.mxu0 %v1726
    %v1737 = vpop.f32.mrf.mxu0
    %v1738 = vadd.f32 0.0, %v1737
    %v1739 = vpop.f32.mrf.mxu0
    %1740 = vdwg.mxu0
    %1741 = vmatpush.bf16.msra.mxu0 0
    %1742 = vmatpush.bf16.msra.mxu0 0
    %1743 = vmatpush.bf16.msra.mxu0 0
    %1744 = vmatpush.bf16.msra.mxu0 0
    %1745 = vmatpush.bf16.msra.mxu0 0
    %1746 = vmatpush.bf16.msra.mxu0 0
    %1747 = vmatpush.bf16.msra.mxu0 0
    %1748 = vmatpush.bf16.msra.mxu0 %v1432
    %1749 = vmatmul.bf16.gmra.mxu0 %v1726
    %v1750 = vpop.f32.mrf.mxu0
    %v1751 = vadd.f32 0.0, %v1750
    %v1752 = vpop.f32.mrf.mxu0
    %1753 = vdwg.mxu0
    %v1755 = vsel %vm147, %v1421, 0
    %1757 = vmatpush.bf16.msra.mxu0 0
    %1758 = vmatpush.bf16.msra.mxu0 0
    %1759 = vmatpush.bf16.msra.mxu0 0
    %1760 = vmatpush.bf16.msra.mxu0 0
    %1761 = vmatpush.bf16.msra.mxu0 0
    %1762 = vmatpush.bf16.msra.mxu0 0
    %1763 = vmatpush.bf16.msra.mxu0 0
    %1764 = vmatpush.bf16.msra.mxu0 %v1431
    %1765 = vmatmul.bf16.gmra.mxu0 %v1755
    %v1766 = vpop.f32.mrf.mxu0
    %v1767 = vadd.f32 0.0, %v1766
    %v1768 = vpop.f32.mrf.mxu0
    %1769 = vdwg.mxu0
    %1770 = vmatpush.bf16.msra.mxu0 0
    %1771 = vmatpush.bf16.msra.mxu0 0
    %1772 = vmatpush.bf16.msra.mxu0 0
    %1773 = vmatpush.bf16.msra.mxu0 0
    %1774 = vmatpush.bf16.msra.mxu0 0
    %1775 = vmatpush.bf16.msra.mxu0 0
    %1776 = vmatpush.bf16.msra.mxu0 0
    %1777 = vmatpush.bf16.msra.mxu0 %v1432
    %1778 = vmatmul.bf16.gmra.mxu0 %v1755
    %v1779 = vpop.f32.mrf.mxu0
    %v1780 = vadd.f32 0.0, %v1779
    %v1781 = vpop.f32.mrf.mxu0
    %1782 = vdwg.mxu0
    %v1783 = vadd.f32 %v1385, %v1448
    %v1784 = vadd.f32 %v1386, %v1461
    %v1785 = vadd.f32 %v1387, %v1477
    %v1786 = vadd.f32 %v1388, %v1490
    %v1787 = vadd.f32 %v1389, %v1506
    %v1788 = vadd.f32 %v1390, %v1519
    %v1789 = vadd.f32 %v1391, %v1535
    %v1790 = vadd.f32 %v1392, %v1548
    %v1791 = vadd.f32 %v1393, %v1564
    %v1792 = vadd.f32 %v1394, %v1577
    %v1793 = vadd.f32 %v1395, %v1593
    %v1794 = vadd.f32 %v1396, %v1606
    %v1795 = vadd.f32 %v1397, %v1622
    %v1796 = vadd.f32 %v1398, %v1635
    %v1797 = vadd.f32 %v1399, %v1651
    %v1798 = vadd.f32 %v1400, %v1664
    %v1799 = vadd.f32 %v1401, %v1680
    %v1800 = vadd.f32 %v1402, %v1693
    %v1801 = vadd.f32 %v1403, %v1709
    %v1802 = vadd.f32 %v1404, %v1722
    %v1803 = vadd.f32 %v1405, %v1738
    %v1804 = vadd.f32 %v1406, %v1751
    %v1805 = vadd.f32 %v1407, %v1767
    %v1806 = vadd.f32 %v1408, %v1780
    %v1807 = vld [vmem:[%s1409] sm:$0xf]
    %v1808 = vld [vmem:[%s1409 + $0x4] sm:$0xf]
    %v1809 = vld [vmem:[%s1409 + $0x8] sm:$0xf]
    %v1810 = vld [vmem:[%s1409 + $0xc] sm:$0xf]
    %v1811 = vld [vmem:[%s1409 + $0x10] sm:$0xf]
    %v1812 = vld [vmem:[%s1409 + $0x14] sm:$0xf]
    %v1813 = vld [vmem:[%s1409 + $0x20] sm:$0xf]
    %v1814 = vld [vmem:[%s1409 + $0x24] sm:$0xf]
    %v1815 = vld [vmem:[%s1409 + $0x28] sm:$0xf]
    %v1816 = vld [vmem:[%s1409 + $0x2c] sm:$0xf]
    %v1817 = vld [vmem:[%s1409 + $0x30] sm:$0xf]
    %v1818 = vld [vmem:[%s1409 + $0x34] sm:$0xf]
    %s1819 = scalar_lea.vmem [#allocation3], 64
    %v1820 = vld [vmem:[%s1819] sm:$0xff]
    %v1821 = vld [vmem:[%s1819 + $0x8] sm:$0xff]
    %v1823 = vunpack.c.l.b16 %v1807
    %v1824 = vpack.c.b16 %v1823, %v1823
    %v1826 = vshrl.u32 %v1824, 16
    %v1828 = vshll.u32 %v1824, 16
    %v1830 = vrot.slane %v1828, 1
    %v1831 = vor.u32 %v1826, %v1830
    %v1834 = vunpack.c.l.b16 %v1820
    %v1835 = vunpack.c.h.b16 %v1820
    %v1836 = vunpack.c.l.b16 %v1821
    %v1837 = vunpack.c.h.b16 %v1821
    %v1838 = vpack.c.b16 %v1836, %v1834
    %v1839 = vpack.c.b16 %v1837, %v1835
    %v1843 = vsel %vm147, %v1831, 0
    %1845 = vmatpush.bf16.msra.mxu0 0
    %1846 = vmatpush.bf16.msra.mxu0 0
    %1847 = vmatpush.bf16.msra.mxu0 0
    %1848 = vmatpush.bf16.msra.mxu0 0
    %1849 = vmatpush.bf16.msra.mxu0 0
    %1850 = vmatpush.bf16.msra.mxu0 0
    %1851 = vmatpush.bf16.msra.mxu0 0
    %1852 = vmatpush.bf16.msra.mxu0 %v1838
    %1853 = vmatmul.bf16.gmra.mxu0 %v1843
    %v1854 = vpop.f32.mrf.mxu0
    %v1855 = vadd.f32 0.0, %v1854
    %v1856 = vpop.f32.mrf.mxu0
    %1857 = vdwg.mxu0
    %1858 = vmatpush.bf16.msra.mxu0 0
    %1859 = vmatpush.bf16.msra.mxu0 0
    %1860 = vmatpush.bf16.msra.mxu0 0
    %1861 = vmatpush.bf16.msra.mxu0 0
    %1862 = vmatpush.bf16.msra.mxu0 0
    %1863 = vmatpush.bf16.msra.mxu0 0
    %1864 = vmatpush.bf16.msra.mxu0 0
    %1865 = vmatpush.bf16.msra.mxu0 %v1839
    %1866 = vmatmul.bf16.gmra.mxu0 %v1843
    %v1867 = vpop.f32.mrf.mxu0
    %v1868 = vadd.f32 0.0, %v1867
    %v1869 = vpop.f32.mrf.mxu0
    %1870 = vdwg.mxu0
    %v1872 = vunpack.c.l.b16 %v1808
    %v1873 = vpack.c.b16 %v1872, %v1872
    %v1875 = vshrl.u32 %v1873, 16
    %v1877 = vshll.u32 %v1873, 16
    %v1879 = vrot.slane %v1877, 1
    %v1880 = vor.u32 %v1875, %v1879
    %v1882 = vsel %vm147, %v1880, 0
    %1884 = vmatpush.bf16.msra.mxu0 0
    %1885 = vmatpush.bf16.msra.mxu0 0
    %1886 = vmatpush.bf16.msra.mxu0 0
    %1887 = vmatpush.bf16.msra.mxu0 0
    %1888 = vmatpush.bf16.msra.mxu0 0
    %1889 = vmatpush.bf16.msra.mxu0 0
    %1890 = vmatpush.bf16.msra.mxu0 0
    %1891 = vmatpush.bf16.msra.mxu0 %v1838
    %1892 = vmatmul.bf16.gmra.mxu0 %v1882
    %v1893 = vpop.f32.mrf.mxu0
    %v1894 = vadd.f32 0.0, %v1893
    %v1895 = vpop.f32.mrf.mxu0
    %1896 = vdwg.mxu0
    %1897 = vmatpush.bf16.msra.mxu0 0
    %1898 = vmatpush.bf16.msra.mxu0 0
    %1899 = vmatpush.bf16.msra.mxu0 0
    %1900 = vmatpush.bf16.msra.mxu0 0
    %1901 = vmatpush.bf16.msra.mxu0 0
    %1902 = vmatpush.bf16.msra.mxu0 0
    %1903 = vmatpush.bf16.msra.mxu0 0
    %1904 = vmatpush.bf16.msra.mxu0 %v1839
    %1905 = vmatmul.bf16.gmra.mxu0 %v1882
    %v1906 = vpop.f32.mrf.mxu0
    %v1907 = vadd.f32 0.0, %v1906
    %v1908 = vpop.f32.mrf.mxu0
    %1909 = vdwg.mxu0
    %v1911 = vunpack.c.l.b16 %v1809
    %v1912 = vpack.c.b16 %v1911, %v1911
    %v1914 = vshrl.u32 %v1912, 16
    %v1916 = vshll.u32 %v1912, 16
    %v1918 = vrot.slane %v1916, 1
    %v1919 = vor.u32 %v1914, %v1918
    %v1921 = vsel %vm147, %v1919, 0
    %1923 = vmatpush.bf16.msra.mxu0 0
    %1924 = vmatpush.bf16.msra.mxu0 0
    %1925 = vmatpush.bf16.msra.mxu0 0
    %1926 = vmatpush.bf16.msra.mxu0 0
    %1927 = vmatpush.bf16.msra.mxu0 0
    %1928 = vmatpush.bf16.msra.mxu0 0
    %1929 = vmatpush.bf16.msra.mxu0 0
    %1930 = vmatpush.bf16.msra.mxu0 %v1838
    %1931 = vmatmul.bf16.gmra.mxu0 %v1921
    %v1932 = vpop.f32.mrf.mxu0
    %v1933 = vadd.f32 0.0, %v1932
    %v1934 = vpop.f32.mrf.mxu0
    %1935 = vdwg.mxu0
    %1936 = vmatpush.bf16.msra.mxu0 0
    %1937 = vmatpush.bf16.msra.mxu0 0
    %1938 = vmatpush.bf16.msra.mxu0 0
    %1939 = vmatpush.bf16.msra.mxu0 0
    %1940 = vmatpush.bf16.msra.mxu0 0
    %1941 = vmatpush.bf16.msra.mxu0 0
    %1942 = vmatpush.bf16.msra.mxu0 0
    %1943 = vmatpush.bf16.msra.mxu0 %v1839
    %1944 = vmatmul.bf16.gmra.mxu0 %v1921
    %v1945 = vpop.f32.mrf.mxu0
    %v1946 = vadd.f32 0.0, %v1945
    %v1947 = vpop.f32.mrf.mxu0
    %1948 = vdwg.mxu0
    %v1950 = vunpack.c.l.b16 %v1810
    %v1951 = vpack.c.b16 %v1950, %v1950
    %v1953 = vshrl.u32 %v1951, 16
    %v1955 = vshll.u32 %v1951, 16
    %v1957 = vrot.slane %v1955, 1
    %v1958 = vor.u32 %v1953, %v1957
    %v1960 = vsel %vm147, %v1958, 0
    %1962 = vmatpush.bf16.msra.mxu0 0
    %1963 = vmatpush.bf16.msra.mxu0 0
    %1964 = vmatpush.bf16.msra.mxu0 0
    %1965 = vmatpush.bf16.msra.mxu0 0
    %1966 = vmatpush.bf16.msra.mxu0 0
    %1967 = vmatpush.bf16.msra.mxu0 0
    %1968 = vmatpush.bf16.msra.mxu0 0
    %1969 = vmatpush.bf16.msra.mxu0 %v1838
    %1970 = vmatmul.bf16.gmra.mxu0 %v1960
    %v1971 = vpop.f32.mrf.mxu0
    %v1972 = vadd.f32 0.0, %v1971
    %v1973 = vpop.f32.mrf.mxu0
    %1974 = vdwg.mxu0
    %1975 = vmatpush.bf16.msra.mxu0 0
    %1976 = vmatpush.bf16.msra.mxu0 0
    %1977 = vmatpush.bf16.msra.mxu0 0
    %1978 = vmatpush.bf16.msra.mxu0 0
    %1979 = vmatpush.bf16.msra.mxu0 0
    %1980 = vmatpush.bf16.msra.mxu0 0
    %1981 = vmatpush.bf16.msra.mxu0 0
    %1982 = vmatpush.bf16.msra.mxu0 %v1839
    %1983 = vmatmul.bf16.gmra.mxu0 %v1960
    %v1984 = vpop.f32.mrf.mxu0
    %v1985 = vadd.f32 0.0, %v1984
    %v1986 = vpop.f32.mrf.mxu0
    %1987 = vdwg.mxu0
    %v1989 = vunpack.c.l.b16 %v1811
    %v1990 = vpack.c.b16 %v1989, %v1989
    %v1992 = vshrl.u32 %v1990, 16
    %v1994 = vshll.u32 %v1990, 16
    %v1996 = vrot.slane %v1994, 1
    %v1997 = vor.u32 %v1992, %v1996
    %v1999 = vsel %vm147, %v1997, 0
    %2001 = vmatpush.bf16.msra.mxu0 0
    %2002 = vmatpush.bf16.msra.mxu0 0
    %2003 = vmatpush.bf16.msra.mxu0 0
    %2004 = vmatpush.bf16.msra.mxu0 0
    %2005 = vmatpush.bf16.msra.mxu0 0
    %2006 = vmatpush.bf16.msra.mxu0 0
    %2007 = vmatpush.bf16.msra.mxu0 0
    %2008 = vmatpush.bf16.msra.mxu0 %v1838
    %2009 = vmatmul.bf16.gmra.mxu0 %v1999
    %v2010 = vpop.f32.mrf.mxu0
    %v2011 = vadd.f32 0.0, %v2010
    %v2012 = vpop.f32.mrf.mxu0
    %2013 = vdwg.mxu0
    %2014 = vmatpush.bf16.msra.mxu0 0
    %2015 = vmatpush.bf16.msra.mxu0 0
    %2016 = vmatpush.bf16.msra.mxu0 0
    %2017 = vmatpush.bf16.msra.mxu0 0
    %2018 = vmatpush.bf16.msra.mxu0 0
    %2019 = vmatpush.bf16.msra.mxu0 0
    %2020 = vmatpush.bf16.msra.mxu0 0
    %2021 = vmatpush.bf16.msra.mxu0 %v1839
    %2022 = vmatmul.bf16.gmra.mxu0 %v1999
    %v2023 = vpop.f32.mrf.mxu0
    %v2024 = vadd.f32 0.0, %v2023
    %v2025 = vpop.f32.mrf.mxu0
    %2026 = vdwg.mxu0
    %v2028 = vunpack.c.l.b16 %v1812
    %v2029 = vpack.c.b16 %v2028, %v2028
    %v2031 = vshrl.u32 %v2029, 16
    %v2033 = vshll.u32 %v2029, 16
    %v2035 = vrot.slane %v2033, 1
    %v2036 = vor.u32 %v2031, %v2035
    %v2038 = vsel %vm147, %v2036, 0
    %2040 = vmatpush.bf16.msra.mxu0 0
    %2041 = vmatpush.bf16.msra.mxu0 0
    %2042 = vmatpush.bf16.msra.mxu0 0
    %2043 = vmatpush.bf16.msra.mxu0 0
    %2044 = vmatpush.bf16.msra.mxu0 0
    %2045 = vmatpush.bf16.msra.mxu0 0
    %2046 = vmatpush.bf16.msra.mxu0 0
    %2047 = vmatpush.bf16.msra.mxu0 %v1838
    %2048 = vmatmul.bf16.gmra.mxu0 %v2038
    %v2049 = vpop.f32.mrf.mxu0
    %v2050 = vadd.f32 0.0, %v2049
    %v2051 = vpop.f32.mrf.mxu0
    %2052 = vdwg.mxu0
    %2053 = vmatpush.bf16.msra.mxu0 0
    %2054 = vmatpush.bf16.msra.mxu0 0
    %2055 = vmatpush.bf16.msra.mxu0 0
    %2056 = vmatpush.bf16.msra.mxu0 0
    %2057 = vmatpush.bf16.msra.mxu0 0
    %2058 = vmatpush.bf16.msra.mxu0 0
    %2059 = vmatpush.bf16.msra.mxu0 0
    %2060 = vmatpush.bf16.msra.mxu0 %v1839
    %2061 = vmatmul.bf16.gmra.mxu0 %v2038
    %v2062 = vpop.f32.mrf.mxu0
    %v2063 = vadd.f32 0.0, %v2062
    %v2064 = vpop.f32.mrf.mxu0
    %2065 = vdwg.mxu0
    %v2067 = vunpack.c.l.b16 %v1813
    %v2068 = vpack.c.b16 %v2067, %v2067
    %v2070 = vshrl.u32 %v2068, 16
    %v2072 = vshll.u32 %v2068, 16
    %v2074 = vrot.slane %v2072, 1
    %v2075 = vor.u32 %v2070, %v2074
    %v2077 = vsel %vm147, %v2075, 0
    %2079 = vmatpush.bf16.msra.mxu0 0
    %2080 = vmatpush.bf16.msra.mxu0 0
    %2081 = vmatpush.bf16.msra.mxu0 0
    %2082 = vmatpush.bf16.msra.mxu0 0
    %2083 = vmatpush.bf16.msra.mxu0 0
    %2084 = vmatpush.bf16.msra.mxu0 0
    %2085 = vmatpush.bf16.msra.mxu0 0
    %2086 = vmatpush.bf16.msra.mxu0 %v1838
    %2087 = vmatmul.bf16.gmra.mxu0 %v2077
    %v2088 = vpop.f32.mrf.mxu0
    %v2089 = vadd.f32 0.0, %v2088
    %v2090 = vpop.f32.mrf.mxu0
    %2091 = vdwg.mxu0
    %2092 = vmatpush.bf16.msra.mxu0 0
    %2093 = vmatpush.bf16.msra.mxu0 0
    %2094 = vmatpush.bf16.msra.mxu0 0
    %2095 = vmatpush.bf16.msra.mxu0 0
    %2096 = vmatpush.bf16.msra.mxu0 0
    %2097 = vmatpush.bf16.msra.mxu0 0
    %2098 = vmatpush.bf16.msra.mxu0 0
    %2099 = vmatpush.bf16.msra.mxu0 %v1839
    %2100 = vmatmul.bf16.gmra.mxu0 %v2077
    %v2101 = vpop.f32.mrf.mxu0
    %v2102 = vadd.f32 0.0, %v2101
    %v2103 = vpop.f32.mrf.mxu0
    %2104 = vdwg.mxu0
    %v2106 = vunpack.c.l.b16 %v1814
    %v2107 = vpack.c.b16 %v2106, %v2106
    %v2109 = vshrl.u32 %v2107, 16
    %v2111 = vshll.u32 %v2107, 16
    %v2113 = vrot.slane %v2111, 1
    %v2114 = vor.u32 %v2109, %v2113
    %v2116 = vsel %vm147, %v2114, 0
    %2118 = vmatpush.bf16.msra.mxu0 0
    %2119 = vmatpush.bf16.msra.mxu0 0
    %2120 = vmatpush.bf16.msra.mxu0 0
    %2121 = vmatpush.bf16.msra.mxu0 0
    %2122 = vmatpush.bf16.msra.mxu0 0
    %2123 = vmatpush.bf16.msra.mxu0 0
    %2124 = vmatpush.bf16.msra.mxu0 0
    %2125 = vmatpush.bf16.msra.mxu0 %v1838
    %2126 = vmatmul.bf16.gmra.mxu0 %v2116
    %v2127 = vpop.f32.mrf.mxu0
    %v2128 = vadd.f32 0.0, %v2127
    %v2129 = vpop.f32.mrf.mxu0
    %2130 = vdwg.mxu0
    %2131 = vmatpush.bf16.msra.mxu0 0
    %2132 = vmatpush.bf16.msra.mxu0 0
    %2133 = vmatpush.bf16.msra.mxu0 0
    %2134 = vmatpush.bf16.msra.mxu0 0
    %2135 = vmatpush.bf16.msra.mxu0 0
    %2136 = vmatpush.bf16.msra.mxu0 0
    %2137 = vmatpush.bf16.msra.mxu0 0
    %2138 = vmatpush.bf16.msra.mxu0 %v1839
    %2139 = vmatmul.bf16.gmra.mxu0 %v2116
    %v2140 = vpop.f32.mrf.mxu0
    %v2141 = vadd.f32 0.0, %v2140
    %v2142 = vpop.f32.mrf.mxu0
    %2143 = vdwg.mxu0
    %v2145 = vunpack.c.l.b16 %v1815
    %v2146 = vpack.c.b16 %v2145, %v2145
    %v2148 = vshrl.u32 %v2146, 16
    %v2150 = vshll.u32 %v2146, 16
    %v2152 = vrot.slane %v2150, 1
    %v2153 = vor.u32 %v2148, %v2152
    %v2155 = vsel %vm147, %v2153, 0
    %2157 = vmatpush.bf16.msra.mxu0 0
    %2158 = vmatpush.bf16.msra.mxu0 0
    %2159 = vmatpush.bf16.msra.mxu0 0
    %2160 = vmatpush.bf16.msra.mxu0 0
    %2161 = vmatpush.bf16.msra.mxu0 0
    %2162 = vmatpush.bf16.msra.mxu0 0
    %2163 = vmatpush.bf16.msra.mxu0 0
    %2164 = vmatpush.bf16.msra.mxu0 %v1838
    %2165 = vmatmul.bf16.gmra.mxu0 %v2155
    %v2166 = vpop.f32.mrf.mxu0
    %v2167 = vadd.f32 0.0, %v2166
    %v2168 = vpop.f32.mrf.mxu0
    %2169 = vdwg.mxu0
    %2170 = vmatpush.bf16.msra.mxu0 0
    %2171 = vmatpush.bf16.msra.mxu0 0
    %2172 = vmatpush.bf16.msra.mxu0 0
    %2173 = vmatpush.bf16.msra.mxu0 0
    %2174 = vmatpush.bf16.msra.mxu0 0
    %2175 = vmatpush.bf16.msra.mxu0 0
    %2176 = vmatpush.bf16.msra.mxu0 0
    %2177 = vmatpush.bf16.msra.mxu0 %v1839
    %2178 = vmatmul.bf16.gmra.mxu0 %v2155
    %v2179 = vpop.f32.mrf.mxu0
    %v2180 = vadd.f32 0.0, %v2179
    %v2181 = vpop.f32.mrf.mxu0
    %2182 = vdwg.mxu0
    %v2184 = vunpack.c.l.b16 %v1816
    %v2185 = vpack.c.b16 %v2184, %v2184
    %v2187 = vshrl.u32 %v2185, 16
    %v2189 = vshll.u32 %v2185, 16
    %v2191 = vrot.slane %v2189, 1
    %v2192 = vor.u32 %v2187, %v2191
    %v2194 = vsel %vm147, %v2192, 0
    %2196 = vmatpush.bf16.msra.mxu0 0
    %2197 = vmatpush.bf16.msra.mxu0 0
    %2198 = vmatpush.bf16.msra.mxu0 0
    %2199 = vmatpush.bf16.msra.mxu0 0
    %2200 = vmatpush.bf16.msra.mxu0 0
    %2201 = vmatpush.bf16.msra.mxu0 0
    %2202 = vmatpush.bf16.msra.mxu0 0
    %2203 = vmatpush.bf16.msra.mxu0 %v1838
    %2204 = vmatmul.bf16.gmra.mxu0 %v2194
    %v2205 = vpop.f32.mrf.mxu0
    %v2206 = vadd.f32 0.0, %v2205
    %v2207 = vpop.f32.mrf.mxu0
    %2208 = vdwg.mxu0
    %2209 = vmatpush.bf16.msra.mxu0 0
    %2210 = vmatpush.bf16.msra.mxu0 0
    %2211 = vmatpush.bf16.msra.mxu0 0
    %2212 = vmatpush.bf16.msra.mxu0 0
    %2213 = vmatpush.bf16.msra.mxu0 0
    %2214 = vmatpush.bf16.msra.mxu0 0
    %2215 = vmatpush.bf16.msra.mxu0 0
    %2216 = vmatpush.bf16.msra.mxu0 %v1839
    %2217 = vmatmul.bf16.gmra.mxu0 %v2194
    %v2218 = vpop.f32.mrf.mxu0
    %v2219 = vadd.f32 0.0, %v2218
    %v2220 = vpop.f32.mrf.mxu0
    %2221 = vdwg.mxu0
    %v2223 = vunpack.c.l.b16 %v1817
    %v2224 = vpack.c.b16 %v2223, %v2223
    %v2226 = vshrl.u32 %v2224, 16
    %v2228 = vshll.u32 %v2224, 16
    %v2230 = vrot.slane %v2228, 1
    %v2231 = vor.u32 %v2226, %v2230
    %v2233 = vsel %vm147, %v2231, 0
    %2235 = vmatpush.bf16.msra.mxu0 0
    %2236 = vmatpush.bf16.msra.mxu0 0
    %2237 = vmatpush.bf16.msra.mxu0 0
    %2238 = vmatpush.bf16.msra.mxu0 0
    %2239 = vmatpush.bf16.msra.mxu0 0
    %2240 = vmatpush.bf16.msra.mxu0 0
    %2241 = vmatpush.bf16.msra.mxu0 0
    %2242 = vmatpush.bf16.msra.mxu0 %v1838
    %2243 = vmatmul.bf16.gmra.mxu0 %v2233
    %v2244 = vpop.f32.mrf.mxu0
    %v2245 = vadd.f32 0.0, %v2244
    %v2246 = vpop.f32.mrf.mxu0
    %2247 = vdwg.mxu0
    %2248 = vmatpush.bf16.msra.mxu0 0
    %2249 = vmatpush.bf16.msra.mxu0 0
    %2250 = vmatpush.bf16.msra.mxu0 0
    %2251 = vmatpush.bf16.msra.mxu0 0
    %2252 = vmatpush.bf16.msra.mxu0 0
    %2253 = vmatpush.bf16.msra.mxu0 0
    %2254 = vmatpush.bf16.msra.mxu0 0
    %2255 = vmatpush.bf16.msra.mxu0 %v1839
    %2256 = vmatmul.bf16.gmra.mxu0 %v2233
    %v2257 = vpop.f32.mrf.mxu0
    %v2258 = vadd.f32 0.0, %v2257
    %v2259 = vpop.f32.mrf.mxu0
    %2260 = vdwg.mxu0
    %v2262 = vunpack.c.l.b16 %v1818
    %v2263 = vpack.c.b16 %v2262, %v2262
    %v2265 = vshrl.u32 %v2263, 16
    %v2267 = vshll.u32 %v2263, 16
    %v2269 = vrot.slane %v2267, 1
    %v2270 = vor.u32 %v2265, %v2269
    %v2272 = vsel %vm147, %v2270, 0
    %2274 = vmatpush.bf16.msra.mxu0 0
    %2275 = vmatpush.bf16.msra.mxu0 0
    %2276 = vmatpush.bf16.msra.mxu0 0
    %2277 = vmatpush.bf16.msra.mxu0 0
    %2278 = vmatpush.bf16.msra.mxu0 0
    %2279 = vmatpush.bf16.msra.mxu0 0
    %2280 = vmatpush.bf16.msra.mxu0 0
    %2281 = vmatpush.bf16.msra.mxu0 %v1838
    %2282 = vmatmul.bf16.gmra.mxu0 %v2272
    %v2283 = vpop.f32.mrf.mxu0
    %v2284 = vadd.f32 0.0, %v2283
    %v2285 = vpop.f32.mrf.mxu0
    %2286 = vdwg.mxu0
    %2287 = vmatpush.bf16.msra.mxu0 0
    %2288 = vmatpush.bf16.msra.mxu0 0
    %2289 = vmatpush.bf16.msra.mxu0 0
    %2290 = vmatpush.bf16.msra.mxu0 0
    %2291 = vmatpush.bf16.msra.mxu0 0
    %2292 = vmatpush.bf16.msra.mxu0 0
    %2293 = vmatpush.bf16.msra.mxu0 0
    %2294 = vmatpush.bf16.msra.mxu0 %v1839
    %2295 = vmatmul.bf16.gmra.mxu0 %v2272
    %v2296 = vpop.f32.mrf.mxu0
    %v2297 = vadd.f32 0.0, %v2296
    %v2298 = vpop.f32.mrf.mxu0
    %2299 = vdwg.mxu0
    %v2300 = vadd.f32 %v1783, %v1855
    %v2301 = vadd.f32 %v1784, %v1868
    %v2302 = vadd.f32 %v1785, %v1894
    %v2303 = vadd.f32 %v1786, %v1907
    %v2304 = vadd.f32 %v1787, %v1933
    %v2305 = vadd.f32 %v1788, %v1946
    %v2306 = vadd.f32 %v1789, %v1972
    %v2307 = vadd.f32 %v1790, %v1985
    %v2308 = vadd.f32 %v1791, %v2011
    %v2309 = vadd.f32 %v1792, %v2024
    %v2310 = vadd.f32 %v1793, %v2050
    %v2311 = vadd.f32 %v1794, %v2063
    %v2312 = vadd.f32 %v1795, %v2089
    %v2313 = vadd.f32 %v1796, %v2102
    %v2314 = vadd.f32 %v1797, %v2128
    %v2315 = vadd.f32 %v1798, %v2141
    %v2316 = vadd.f32 %v1799, %v2167
    %v2317 = vadd.f32 %v1800, %v2180
    %v2318 = vadd.f32 %v1801, %v2206
    %v2319 = vadd.f32 %v1802, %v2219
    %v2320 = vadd.f32 %v1803, %v2245
    %v2321 = vadd.f32 %v1804, %v2258
    %v2322 = vadd.f32 %v1805, %v2284
    %v2323 = vadd.f32 %v1806, %v2297
    %v2324 = vld [vmem:[%s1409] sm:$0xe]
    %v2325 = vld [vmem:[%s1409 + $0x4] sm:$0xe]
    %v2326 = vld [vmem:[%s1409 + $0x8] sm:$0xe]
    %v2327 = vld [vmem:[%s1409 + $0xc] sm:$0xe]
    %v2328 = vld [vmem:[%s1409 + $0x10] sm:$0xe]
    %v2329 = vld [vmem:[%s1409 + $0x14] sm:$0xe]
    %v2330 = vld [vmem:[%s1409 + $0x20] sm:$0xe]
    %v2331 = vld [vmem:[%s1409 + $0x24] sm:$0xe]
    %v2332 = vld [vmem:[%s1409 + $0x28] sm:$0xe]
    %v2333 = vld [vmem:[%s1409 + $0x2c] sm:$0xe]
    %v2334 = vld [vmem:[%s1409 + $0x30] sm:$0xe]
    %v2335 = vld [vmem:[%s1409 + $0x34] sm:$0xe]
    %s2336 = scalar_lea.vmem [#allocation3], 80
    %v2337 = vld [vmem:[%s2336] sm:$0xff]
    %v2338 = vld [vmem:[%s2336 + $0x8] sm:$0xff]
    %v2340 = vunpack.c.l.b16 %v2324
    %v2341 = vpack.c.b16 %v2340, %v2340
    %v2342 = vrot.slane %v2341, 1
    %v2345 = vunpack.c.l.b16 %v2337
    %v2346 = vunpack.c.h.b16 %v2337
    %v2347 = vunpack.c.l.b16 %v2338
    %v2348 = vunpack.c.h.b16 %v2338
    %v2349 = vpack.c.b16 %v2347, %v2345
    %v2350 = vpack.c.b16 %v2348, %v2346
    %v2354 = vsel %vm147, %v2342, 0
    %2356 = vmatpush.bf16.msra.mxu0 0
    %2357 = vmatpush.bf16.msra.mxu0 0
    %2358 = vmatpush.bf16.msra.mxu0 0
    %2359 = vmatpush.bf16.msra.mxu0 0
    %2360 = vmatpush.bf16.msra.mxu0 0
    %2361 = vmatpush.bf16.msra.mxu0 0
    %2362 = vmatpush.bf16.msra.mxu0 0
    %2363 = vmatpush.bf16.msra.mxu0 %v2349
    %2364 = vmatmul.bf16.gmra.mxu0 %v2354
    %v2365 = vpop.f32.mrf.mxu0
    %v2366 = vadd.f32 0.0, %v2365
    %v2367 = vpop.f32.mrf.mxu0
    %2368 = vdwg.mxu0
    %2369 = vmatpush.bf16.msra.mxu0 0
    %2370 = vmatpush.bf16.msra.mxu0 0
    %2371 = vmatpush.bf16.msra.mxu0 0
    %2372 = vmatpush.bf16.msra.mxu0 0
    %2373 = vmatpush.bf16.msra.mxu0 0
    %2374 = vmatpush.bf16.msra.mxu0 0
    %2375 = vmatpush.bf16.msra.mxu0 0
    %2376 = vmatpush.bf16.msra.mxu0 %v2350
    %2377 = vmatmul.bf16.gmra.mxu0 %v2354
    %v2378 = vpop.f32.mrf.mxu0
    %v2379 = vadd.f32 0.0, %v2378
    %v2380 = vpop.f32.mrf.mxu0
    %2381 = vdwg.mxu0
    %v2383 = vunpack.c.l.b16 %v2325
    %v2384 = vpack.c.b16 %v2383, %v2383
    %v2385 = vrot.slane %v2384, 1
    %v2387 = vsel %vm147, %v2385, 0
    %2389 = vmatpush.bf16.msra.mxu0 0
    %2390 = vmatpush.bf16.msra.mxu0 0
    %2391 = vmatpush.bf16.msra.mxu0 0
    %2392 = vmatpush.bf16.msra.mxu0 0
    %2393 = vmatpush.bf16.msra.mxu0 0
    %2394 = vmatpush.bf16.msra.mxu0 0
    %2395 = vmatpush.bf16.msra.mxu0 0
    %2396 = vmatpush.bf16.msra.mxu0 %v2349
    %2397 = vmatmul.bf16.gmra.mxu0 %v2387
    %v2398 = vpop.f32.mrf.mxu0
    %v2399 = vadd.f32 0.0, %v2398
    %v2400 = vpop.f32.mrf.mxu0
    %2401 = vdwg.mxu0
    %2402 = vmatpush.bf16.msra.mxu0 0
    %2403 = vmatpush.bf16.msra.mxu0 0
    %2404 = vmatpush.bf16.msra.mxu0 0
    %2405 = vmatpush.bf16.msra.mxu0 0
    %2406 = vmatpush.bf16.msra.mxu0 0
    %2407 = vmatpush.bf16.msra.mxu0 0
    %2408 = vmatpush.bf16.msra.mxu0 0
    %2409 = vmatpush.bf16.msra.mxu0 %v2350
    %2410 = vmatmul.bf16.gmra.mxu0 %v2387
    %v2411 = vpop.f32.mrf.mxu0
    %v2412 = vadd.f32 0.0, %v2411
    %v2413 = vpop.f32.mrf.mxu0
    %2414 = vdwg.mxu0
    %v2416 = vunpack.c.l.b16 %v2326
    %v2417 = vpack.c.b16 %v2416, %v2416
    %v2418 = vrot.slane %v2417, 1
    %v2420 = vsel %vm147, %v2418, 0
    %2422 = vmatpush.bf16.msra.mxu0 0
    %2423 = vmatpush.bf16.msra.mxu0 0
    %2424 = vmatpush.bf16.msra.mxu0 0
    %2425 = vmatpush.bf16.msra.mxu0 0
    %2426 = vmatpush.bf16.msra.mxu0 0
    %2427 = vmatpush.bf16.msra.mxu0 0
    %2428 = vmatpush.bf16.msra.mxu0 0
    %2429 = vmatpush.bf16.msra.mxu0 %v2349
    %2430 = vmatmul.bf16.gmra.mxu0 %v2420
    %v2431 = vpop.f32.mrf.mxu0
    %v2432 = vadd.f32 0.0, %v2431
    %v2433 = vpop.f32.mrf.mxu0
    %2434 = vdwg.mxu0
    %2435 = vmatpush.bf16.msra.mxu0 0
    %2436 = vmatpush.bf16.msra.mxu0 0
    %2437 = vmatpush.bf16.msra.mxu0 0
    %2438 = vmatpush.bf16.msra.mxu0 0
    %2439 = vmatpush.bf16.msra.mxu0 0
    %2440 = vmatpush.bf16.msra.mxu0 0
    %2441 = vmatpush.bf16.msra.mxu0 0
    %2442 = vmatpush.bf16.msra.mxu0 %v2350
    %2443 = vmatmul.bf16.gmra.mxu0 %v2420
    %v2444 = vpop.f32.mrf.mxu0
    %v2445 = vadd.f32 0.0, %v2444
    %v2446 = vpop.f32.mrf.mxu0
    %2447 = vdwg.mxu0
    %v2449 = vunpack.c.l.b16 %v2327
    %v2450 = vpack.c.b16 %v2449, %v2449
    %v2451 = vrot.slane %v2450, 1
    %v2453 = vsel %vm147, %v2451, 0
    %2455 = vmatpush.bf16.msra.mxu0 0
    %2456 = vmatpush.bf16.msra.mxu0 0
    %2457 = vmatpush.bf16.msra.mxu0 0
    %2458 = vmatpush.bf16.msra.mxu0 0
    %2459 = vmatpush.bf16.msra.mxu0 0
    %2460 = vmatpush.bf16.msra.mxu0 0
    %2461 = vmatpush.bf16.msra.mxu0 0
    %2462 = vmatpush.bf16.msra.mxu0 %v2349
    %2463 = vmatmul.bf16.gmra.mxu0 %v2453
    %v2464 = vpop.f32.mrf.mxu0
    %v2465 = vadd.f32 0.0, %v2464
    %v2466 = vpop.f32.mrf.mxu0
    %2467 = vdwg.mxu0
    %2468 = vmatpush.bf16.msra.mxu0 0
    %2469 = vmatpush.bf16.msra.mxu0 0
    %2470 = vmatpush.bf16.msra.mxu0 0
    %2471 = vmatpush.bf16.msra.mxu0 0
    %2472 = vmatpush.bf16.msra.mxu0 0
    %2473 = vmatpush.bf16.msra.mxu0 0
    %2474 = vmatpush.bf16.msra.mxu0 0
    %2475 = vmatpush.bf16.msra.mxu0 %v2350
    %2476 = vmatmul.bf16.gmra.mxu0 %v2453
    %v2477 = vpop.f32.mrf.mxu0
    %v2478 = vadd.f32 0.0, %v2477
    %v2479 = vpop.f32.mrf.mxu0
    %2480 = vdwg.mxu0
    %v2482 = vunpack.c.l.b16 %v2328
    %v2483 = vpack.c.b16 %v2482, %v2482
    %v2484 = vrot.slane %v2483, 1
    %v2486 = vsel %vm147, %v2484, 0
    %2488 = vmatpush.bf16.msra.mxu0 0
    %2489 = vmatpush.bf16.msra.mxu0 0
    %2490 = vmatpush.bf16.msra.mxu0 0
    %2491 = vmatpush.bf16.msra.mxu0 0
    %2492 = vmatpush.bf16.msra.mxu0 0
    %2493 = vmatpush.bf16.msra.mxu0 0
    %2494 = vmatpush.bf16.msra.mxu0 0
    %2495 = vmatpush.bf16.msra.mxu0 %v2349
    %2496 = vmatmul.bf16.gmra.mxu0 %v2486
    %v2497 = vpop.f32.mrf.mxu0
    %v2498 = vadd.f32 0.0, %v2497
    %v2499 = vpop.f32.mrf.mxu0
    %2500 = vdwg.mxu0
    %2501 = vmatpush.bf16.msra.mxu0 0
    %2502 = vmatpush.bf16.msra.mxu0 0
    %2503 = vmatpush.bf16.msra.mxu0 0
    %2504 = vmatpush.bf16.msra.mxu0 0
    %2505 = vmatpush.bf16.msra.mxu0 0
    %2506 = vmatpush.bf16.msra.mxu0 0
    %2507 = vmatpush.bf16.msra.mxu0 0
    %2508 = vmatpush.bf16.msra.mxu0 %v2350
    %2509 = vmatmul.bf16.gmra.mxu0 %v2486
    %v2510 = vpop.f32.mrf.mxu0
    %v2511 = vadd.f32 0.0, %v2510
    %v2512 = vpop.f32.mrf.mxu0
    %2513 = vdwg.mxu0
    %v2515 = vunpack.c.l.b16 %v2329
    %v2516 = vpack.c.b16 %v2515, %v2515
    %v2517 = vrot.slane %v2516, 1
    %v2519 = vsel %vm147, %v2517, 0
    %2521 = vmatpush.bf16.msra.mxu0 0
    %2522 = vmatpush.bf16.msra.mxu0 0
    %2523 = vmatpush.bf16.msra.mxu0 0
    %2524 = vmatpush.bf16.msra.mxu0 0
    %2525 = vmatpush.bf16.msra.mxu0 0
    %2526 = vmatpush.bf16.msra.mxu0 0
    %2527 = vmatpush.bf16.msra.mxu0 0
    %2528 = vmatpush.bf16.msra.mxu0 %v2349
    %2529 = vmatmul.bf16.gmra.mxu0 %v2519
    %v2530 = vpop.f32.mrf.mxu0
    %v2531 = vadd.f32 0.0, %v2530
    %v2532 = vpop.f32.mrf.mxu0
    %2533 = vdwg.mxu0
    %2534 = vmatpush.bf16.msra.mxu0 0
    %2535 = vmatpush.bf16.msra.mxu0 0
    %2536 = vmatpush.bf16.msra.mxu0 0
    %2537 = vmatpush.bf16.msra.mxu0 0
    %2538 = vmatpush.bf16.msra.mxu0 0
    %2539 = vmatpush.bf16.msra.mxu0 0
    %2540 = vmatpush.bf16.msra.mxu0 0
    %2541 = vmatpush.bf16.msra.mxu0 %v2350
    %2542 = vmatmul.bf16.gmra.mxu0 %v2519
    %v2543 = vpop.f32.mrf.mxu0
    %v2544 = vadd.f32 0.0, %v2543
    %v2545 = vpop.f32.mrf.mxu0
    %2546 = vdwg.mxu0
    %v2548 = vunpack.c.l.b16 %v2330
    %v2549 = vpack.c.b16 %v2548, %v2548
    %v2550 = vrot.slane %v2549, 1
    %v2552 = vsel %vm147, %v2550, 0
    %2554 = vmatpush.bf16.msra.mxu0 0
    %2555 = vmatpush.bf16.msra.mxu0 0
    %2556 = vmatpush.bf16.msra.mxu0 0
    %2557 = vmatpush.bf16.msra.mxu0 0
    %2558 = vmatpush.bf16.msra.mxu0 0
    %2559 = vmatpush.bf16.msra.mxu0 0
    %2560 = vmatpush.bf16.msra.mxu0 0
    %2561 = vmatpush.bf16.msra.mxu0 %v2349
    %2562 = vmatmul.bf16.gmra.mxu0 %v2552
    %v2563 = vpop.f32.mrf.mxu0
    %v2564 = vadd.f32 0.0, %v2563
    %v2565 = vpop.f32.mrf.mxu0
    %2566 = vdwg.mxu0
    %2567 = vmatpush.bf16.msra.mxu0 0
    %2568 = vmatpush.bf16.msra.mxu0 0
    %2569 = vmatpush.bf16.msra.mxu0 0
    %2570 = vmatpush.bf16.msra.mxu0 0
    %2571 = vmatpush.bf16.msra.mxu0 0
    %2572 = vmatpush.bf16.msra.mxu0 0
    %2573 = vmatpush.bf16.msra.mxu0 0
    %2574 = vmatpush.bf16.msra.mxu0 %v2350
    %2575 = vmatmul.bf16.gmra.mxu0 %v2552
    %v2576 = vpop.f32.mrf.mxu0
    %v2577 = vadd.f32 0.0, %v2576
    %v2578 = vpop.f32.mrf.mxu0
    %2579 = vdwg.mxu0
    %v2581 = vunpack.c.l.b16 %v2331
    %v2582 = vpack.c.b16 %v2581, %v2581
    %v2583 = vrot.slane %v2582, 1
    %v2585 = vsel %vm147, %v2583, 0
    %2587 = vmatpush.bf16.msra.mxu0 0
    %2588 = vmatpush.bf16.msra.mxu0 0
    %2589 = vmatpush.bf16.msra.mxu0 0
    %2590 = vmatpush.bf16.msra.mxu0 0
    %2591 = vmatpush.bf16.msra.mxu0 0
    %2592 = vmatpush.bf16.msra.mxu0 0
    %2593 = vmatpush.bf16.msra.mxu0 0
    %2594 = vmatpush.bf16.msra.mxu0 %v2349
    %2595 = vmatmul.bf16.gmra.mxu0 %v2585
    %v2596 = vpop.f32.mrf.mxu0
    %v2597 = vadd.f32 0.0, %v2596
    %v2598 = vpop.f32.mrf.mxu0
    %2599 = vdwg.mxu0
    %2600 = vmatpush.bf16.msra.mxu0 0
    %2601 = vmatpush.bf16.msra.mxu0 0
    %2602 = vmatpush.bf16.msra.mxu0 0
    %2603 = vmatpush.bf16.msra.mxu0 0
    %2604 = vmatpush.bf16.msra.mxu0 0
    %2605 = vmatpush.bf16.msra.mxu0 0
    %2606 = vmatpush.bf16.msra.mxu0 0
    %2607 = vmatpush.bf16.msra.mxu0 %v2350
    %2608 = vmatmul.bf16.gmra.mxu0 %v2585
    %v2609 = vpop.f32.mrf.mxu0
    %v2610 = vadd.f32 0.0, %v2609
    %v2611 = vpop.f32.mrf.mxu0
    %2612 = vdwg.mxu0
    %v2614 = vunpack.c.l.b16 %v2332
    %v2615 = vpack.c.b16 %v2614, %v2614
    %v2616 = vrot.slane %v2615, 1
    %v2618 = vsel %vm147, %v2616, 0
    %2620 = vmatpush.bf16.msra.mxu0 0
    %2621 = vmatpush.bf16.msra.mxu0 0
    %2622 = vmatpush.bf16.msra.mxu0 0
    %2623 = vmatpush.bf16.msra.mxu0 0
    %2624 = vmatpush.bf16.msra.mxu0 0
    %2625 = vmatpush.bf16.msra.mxu0 0
    %2626 = vmatpush.bf16.msra.mxu0 0
    %2627 = vmatpush.bf16.msra.mxu0 %v2349
    %2628 = vmatmul.bf16.gmra.mxu0 %v2618
    %v2629 = vpop.f32.mrf.mxu0
    %v2630 = vadd.f32 0.0, %v2629
    %v2631 = vpop.f32.mrf.mxu0
    %2632 = vdwg.mxu0
    %2633 = vmatpush.bf16.msra.mxu0 0
    %2634 = vmatpush.bf16.msra.mxu0 0
    %2635 = vmatpush.bf16.msra.mxu0 0
    %2636 = vmatpush.bf16.msra.mxu0 0
    %2637 = vmatpush.bf16.msra.mxu0 0
    %2638 = vmatpush.bf16.msra.mxu0 0
    %2639 = vmatpush.bf16.msra.mxu0 0
    %2640 = vmatpush.bf16.msra.mxu0 %v2350
    %2641 = vmatmul.bf16.gmra.mxu0 %v2618
    %v2642 = vpop.f32.mrf.mxu0
    %v2643 = vadd.f32 0.0, %v2642
    %v2644 = vpop.f32.mrf.mxu0
    %2645 = vdwg.mxu0
    %v2647 = vunpack.c.l.b16 %v2333
    %v2648 = vpack.c.b16 %v2647, %v2647
    %v2649 = vrot.slane %v2648, 1
    %v2651 = vsel %vm147, %v2649, 0
    %2653 = vmatpush.bf16.msra.mxu0 0
    %2654 = vmatpush.bf16.msra.mxu0 0
    %2655 = vmatpush.bf16.msra.mxu0 0
    %2656 = vmatpush.bf16.msra.mxu0 0
    %2657 = vmatpush.bf16.msra.mxu0 0
    %2658 = vmatpush.bf16.msra.mxu0 0
    %2659 = vmatpush.bf16.msra.mxu0 0
    %2660 = vmatpush.bf16.msra.mxu0 %v2349
    %2661 = vmatmul.bf16.gmra.mxu0 %v2651
    %v2662 = vpop.f32.mrf.mxu0
    %v2663 = vadd.f32 0.0, %v2662
    %v2664 = vpop.f32.mrf.mxu0
    %2665 = vdwg.mxu0
    %2666 = vmatpush.bf16.msra.mxu0 0
    %2667 = vmatpush.bf16.msra.mxu0 0
    %2668 = vmatpush.bf16.msra.mxu0 0
    %2669 = vmatpush.bf16.msra.mxu0 0
    %2670 = vmatpush.bf16.msra.mxu0 0
    %2671 = vmatpush.bf16.msra.mxu0 0
    %2672 = vmatpush.bf16.msra.mxu0 0
    %2673 = vmatpush.bf16.msra.mxu0 %v2350
    %2674 = vmatmul.bf16.gmra.mxu0 %v2651
    %v2675 = vpop.f32.mrf.mxu0
    %v2676 = vadd.f32 0.0, %v2675
    %v2677 = vpop.f32.mrf.mxu0
    %2678 = vdwg.mxu0
    %v2680 = vunpack.c.l.b16 %v2334
    %v2681 = vpack.c.b16 %v2680, %v2680
    %v2682 = vrot.slane %v2681, 1
    %v2684 = vsel %vm147, %v2682, 0
    %2686 = vmatpush.bf16.msra.mxu0 0
    %2687 = vmatpush.bf16.msra.mxu0 0
    %2688 = vmatpush.bf16.msra.mxu0 0
    %2689 = vmatpush.bf16.msra.mxu0 0
    %2690 = vmatpush.bf16.msra.mxu0 0
    %2691 = vmatpush.bf16.msra.mxu0 0
    %2692 = vmatpush.bf16.msra.mxu0 0
    %2693 = vmatpush.bf16.msra.mxu0 %v2349
    %2694 = vmatmul.bf16.gmra.mxu0 %v2684
    %v2695 = vpop.f32.mrf.mxu0
    %v2696 = vadd.f32 0.0, %v2695
    %v2697 = vpop.f32.mrf.mxu0
    %2698 = vdwg.mxu0
    %2699 = vmatpush.bf16.msra.mxu0 0
    %2700 = vmatpush.bf16.msra.mxu0 0
    %2701 = vmatpush.bf16.msra.mxu0 0
    %2702 = vmatpush.bf16.msra.mxu0 0
    %2703 = vmatpush.bf16.msra.mxu0 0
    %2704 = vmatpush.bf16.msra.mxu0 0
    %2705 = vmatpush.bf16.msra.mxu0 0
    %2706 = vmatpush.bf16.msra.mxu0 %v2350
    %2707 = vmatmul.bf16.gmra.mxu0 %v2684
    %v2708 = vpop.f32.mrf.mxu0
    %v2709 = vadd.f32 0.0, %v2708
    %v2710 = vpop.f32.mrf.mxu0
    %2711 = vdwg.mxu0
    %v2713 = vunpack.c.l.b16 %v2335
    %v2714 = vpack.c.b16 %v2713, %v2713
    %v2715 = vrot.slane %v2714, 1
    %v2717 = vsel %vm147, %v2715, 0
    %2719 = vmatpush.bf16.msra.mxu0 0
    %2720 = vmatpush.bf16.msra.mxu0 0
    %2721 = vmatpush.bf16.msra.mxu0 0
    %2722 = vmatpush.bf16.msra.mxu0 0
    %2723 = vmatpush.bf16.msra.mxu0 0
    %2724 = vmatpush.bf16.msra.mxu0 0
    %2725 = vmatpush.bf16.msra.mxu0 0
    %2726 = vmatpush.bf16.msra.mxu0 %v2349
    %2727 = vmatmul.bf16.gmra.mxu0 %v2717
    %v2728 = vpop.f32.mrf.mxu0
    %v2729 = vadd.f32 0.0, %v2728
    %v2730 = vpop.f32.mrf.mxu0
    %2731 = vdwg.mxu0
    %2732 = vmatpush.bf16.msra.mxu0 0
    %2733 = vmatpush.bf16.msra.mxu0 0
    %2734 = vmatpush.bf16.msra.mxu0 0
    %2735 = vmatpush.bf16.msra.mxu0 0
    %2736 = vmatpush.bf16.msra.mxu0 0
    %2737 = vmatpush.bf16.msra.mxu0 0
    %2738 = vmatpush.bf16.msra.mxu0 0
    %2739 = vmatpush.bf16.msra.mxu0 %v2350
    %2740 = vmatmul.bf16.gmra.mxu0 %v2717
    %v2741 = vpop.f32.mrf.mxu0
    %v2742 = vadd.f32 0.0, %v2741
    %v2743 = vpop.f32.mrf.mxu0
    %2744 = vdwg.mxu0
    %v2745 = vadd.f32 %v2300, %v2366
    %v2746 = vadd.f32 %v2301, %v2379
    %v2747 = vadd.f32 %v2302, %v2399
    %v2748 = vadd.f32 %v2303, %v2412
    %v2749 = vadd.f32 %v2304, %v2432
    %v2750 = vadd.f32 %v2305, %v2445
    %v2751 = vadd.f32 %v2306, %v2465
    %v2752 = vadd.f32 %v2307, %v2478
    %v2753 = vadd.f32 %v2308, %v2498
    %v2754 = vadd.f32 %v2309, %v2511
    %v2755 = vadd.f32 %v2310, %v2531
    %v2756 = vadd.f32 %v2311, %v2544
    %v2757 = vadd.f32 %v2312, %v2564
    %v2758 = vadd.f32 %v2313, %v2577
    %v2759 = vadd.f32 %v2314, %v2597
    %v2760 = vadd.f32 %v2315, %v2610
    %v2761 = vadd.f32 %v2316, %v2630
    %v2762 = vadd.f32 %v2317, %v2643
    %v2763 = vadd.f32 %v2318, %v2663
    %v2764 = vadd.f32 %v2319, %v2676
    %v2765 = vadd.f32 %v2320, %v2696
    %v2766 = vadd.f32 %v2321, %v2709
    %v2767 = vadd.f32 %v2322, %v2729
    %v2768 = vadd.f32 %v2323, %v2742
    %s2769 = scalar_lea.vmem %s0, 8
    %v2770 = vld [vmem:[%s2769] sm:$0x7]
    %v2771 = vld [vmem:[%s2769 + $0x4] sm:$0x7]
    %v2772 = vld [vmem:[%s2769 + $0x8] sm:$0x7]
    %v2773 = vld [vmem:[%s2769 + $0xc] sm:$0x7]
    %v2774 = vld [vmem:[%s2769 + $0x10] sm:$0x7]
    %v2775 = vld [vmem:[%s2769 + $0x14] sm:$0x7]
    %v2776 = vld [vmem:[%s2769 + $0x20] sm:$0x7]
    %v2777 = vld [vmem:[%s2769 + $0x24] sm:$0x7]
    %v2778 = vld [vmem:[%s2769 + $0x28] sm:$0x7]
    %v2779 = vld [vmem:[%s2769 + $0x2c] sm:$0x7]
    %v2780 = vld [vmem:[%s2769 + $0x30] sm:$0x7]
    %v2781 = vld [vmem:[%s2769 + $0x34] sm:$0x7]
    %s2782 = scalar_lea.vmem [#allocation3], 96
    %v2783 = vld [vmem:[%s2782] sm:$0xff]
    %v2784 = vld [vmem:[%s2782 + $0x8] sm:$0xff]
    %v2787 = vunpack.c.l.b16 %v2783
    %v2788 = vunpack.c.h.b16 %v2783
    %v2789 = vunpack.c.l.b16 %v2784
    %v2790 = vunpack.c.h.b16 %v2784
    %v2791 = vpack.c.b16 %v2789, %v2787
    %v2792 = vpack.c.b16 %v2790, %v2788
    %v2796 = vsel %vm147, %v2770, 0
    %2798 = vmatpush.bf16.msra.mxu0 0
    %2799 = vmatpush.bf16.msra.mxu0 0
    %2800 = vmatpush.bf16.msra.mxu0 0
    %2801 = vmatpush.bf16.msra.mxu0 0
    %2802 = vmatpush.bf16.msra.mxu0 0
    %2803 = vmatpush.bf16.msra.mxu0 0
    %2804 = vmatpush.bf16.msra.mxu0 0
    %2805 = vmatpush.bf16.msra.mxu0 %v2791
    %2806 = vmatmul.bf16.gmra.mxu0 %v2796
    %v2807 = vpop.f32.mrf.mxu0
    %v2808 = vadd.f32 0.0, %v2807
    %v2809 = vpop.f32.mrf.mxu0
    %2810 = vdwg.mxu0
    %2811 = vmatpush.bf16.msra.mxu0 0
    %2812 = vmatpush.bf16.msra.mxu0 0
    %2813 = vmatpush.bf16.msra.mxu0 0
    %2814 = vmatpush.bf16.msra.mxu0 0
    %2815 = vmatpush.bf16.msra.mxu0 0
    %2816 = vmatpush.bf16.msra.mxu0 0
    %2817 = vmatpush.bf16.msra.mxu0 0
    %2818 = vmatpush.bf16.msra.mxu0 %v2792
    %2819 = vmatmul.bf16.gmra.mxu0 %v2796
    %v2820 = vpop.f32.mrf.mxu0
    %v2821 = vadd.f32 0.0, %v2820
    %v2822 = vpop.f32.mrf.mxu0
    %2823 = vdwg.mxu0
    %v2825 = vsel %vm147, %v2771, 0
    %2827 = vmatpush.bf16.msra.mxu0 0
    %2828 = vmatpush.bf16.msra.mxu0 0
    %2829 = vmatpush.bf16.msra.mxu0 0
    %2830 = vmatpush.bf16.msra.mxu0 0
    %2831 = vmatpush.bf16.msra.mxu0 0
    %2832 = vmatpush.bf16.msra.mxu0 0
    %2833 = vmatpush.bf16.msra.mxu0 0
    %2834 = vmatpush.bf16.msra.mxu0 %v2791
    %2835 = vmatmul.bf16.gmra.mxu0 %v2825
    %v2836 = vpop.f32.mrf.mxu0
    %v2837 = vadd.f32 0.0, %v2836
    %v2838 = vpop.f32.mrf.mxu0
    %2839 = vdwg.mxu0
    %2840 = vmatpush.bf16.msra.mxu0 0
    %2841 = vmatpush.bf16.msra.mxu0 0
    %2842 = vmatpush.bf16.msra.mxu0 0
    %2843 = vmatpush.bf16.msra.mxu0 0
    %2844 = vmatpush.bf16.msra.mxu0 0
    %2845 = vmatpush.bf16.msra.mxu0 0
    %2846 = vmatpush.bf16.msra.mxu0 0
    %2847 = vmatpush.bf16.msra.mxu0 %v2792
    %2848 = vmatmul.bf16.gmra.mxu0 %v2825
    %v2849 = vpop.f32.mrf.mxu0
    %v2850 = vadd.f32 0.0, %v2849
    %v2851 = vpop.f32.mrf.mxu0
    %2852 = vdwg.mxu0
    %v2854 = vsel %vm147, %v2772, 0
    %2856 = vmatpush.bf16.msra.mxu0 0
    %2857 = vmatpush.bf16.msra.mxu0 0
    %2858 = vmatpush.bf16.msra.mxu0 0
    %2859 = vmatpush.bf16.msra.mxu0 0
    %2860 = vmatpush.bf16.msra.mxu0 0
    %2861 = vmatpush.bf16.msra.mxu0 0
    %2862 = vmatpush.bf16.msra.mxu0 0
    %2863 = vmatpush.bf16.msra.mxu0 %v2791
    %2864 = vmatmul.bf16.gmra.mxu0 %v2854
    %v2865 = vpop.f32.mrf.mxu0
    %v2866 = vadd.f32 0.0, %v2865
    %v2867 = vpop.f32.mrf.mxu0
    %2868 = vdwg.mxu0
    %2869 = vmatpush.bf16.msra.mxu0 0
    %2870 = vmatpush.bf16.msra.mxu0 0
    %2871 = vmatpush.bf16.msra.mxu0 0
    %2872 = vmatpush.bf16.msra.mxu0 0
    %2873 = vmatpush.bf16.msra.mxu0 0
    %2874 = vmatpush.bf16.msra.mxu0 0
    %2875 = vmatpush.bf16.msra.mxu0 0
    %2876 = vmatpush.bf16.msra.mxu0 %v2792
    %2877 = vmatmul.bf16.gmra.mxu0 %v2854
    %v2878 = vpop.f32.mrf.mxu0
    %v2879 = vadd.f32 0.0, %v2878
    %v2880 = vpop.f32.mrf.mxu0
    %2881 = vdwg.mxu0
    %v2883 = vsel %vm147, %v2773, 0
    %2885 = vmatpush.bf16.msra.mxu0 0
    %2886 = vmatpush.bf16.msra.mxu0 0
    %2887 = vmatpush.bf16.msra.mxu0 0
    %2888 = vmatpush.bf16.msra.mxu0 0
    %2889 = vmatpush.bf16.msra.mxu0 0
    %2890 = vmatpush.bf16.msra.mxu0 0
    %2891 = vmatpush.bf16.msra.mxu0 0
    %2892 = vmatpush.bf16.msra.mxu0 %v2791
    %2893 = vmatmul.bf16.gmra.mxu0 %v2883
    %v2894 = vpop.f32.mrf.mxu0
    %v2895 = vadd.f32 0.0, %v2894
    %v2896 = vpop.f32.mrf.mxu0
    %2897 = vdwg.mxu0
    %2898 = vmatpush.bf16.msra.mxu0 0
    %2899 = vmatpush.bf16.msra.mxu0 0
    %2900 = vmatpush.bf16.msra.mxu0 0
    %2901 = vmatpush.bf16.msra.mxu0 0
    %2902 = vmatpush.bf16.msra.mxu0 0
    %2903 = vmatpush.bf16.msra.mxu0 0
    %2904 = vmatpush.bf16.msra.mxu0 0
    %2905 = vmatpush.bf16.msra.mxu0 %v2792
    %2906 = vmatmul.bf16.gmra.mxu0 %v2883
    %v2907 = vpop.f32.mrf.mxu0
    %v2908 = vadd.f32 0.0, %v2907
    %v2909 = vpop.f32.mrf.mxu0
    %2910 = vdwg.mxu0
    %v2912 = vsel %vm147, %v2774, 0
    %2914 = vmatpush.bf16.msra.mxu0 0
    %2915 = vmatpush.bf16.msra.mxu0 0
    %2916 = vmatpush.bf16.msra.mxu0 0
    %2917 = vmatpush.bf16.msra.mxu0 0
    %2918 = vmatpush.bf16.msra.mxu0 0
    %2919 = vmatpush.bf16.msra.mxu0 0
    %2920 = vmatpush.bf16.msra.mxu0 0
    %2921 = vmatpush.bf16.msra.mxu0 %v2791
    %2922 = vmatmul.bf16.gmra.mxu0 %v2912
    %v2923 = vpop.f32.mrf.mxu0
    %v2924 = vadd.f32 0.0, %v2923
    %v2925 = vpop.f32.mrf.mxu0
    %2926 = vdwg.mxu0
    %2927 = vmatpush.bf16.msra.mxu0 0
    %2928 = vmatpush.bf16.msra.mxu0 0
    %2929 = vmatpush.bf16.msra.mxu0 0
    %2930 = vmatpush.bf16.msra.mxu0 0
    %2931 = vmatpush.bf16.msra.mxu0 0
    %2932 = vmatpush.bf16.msra.mxu0 0
    %2933 = vmatpush.bf16.msra.mxu0 0
    %2934 = vmatpush.bf16.msra.mxu0 %v2792
    %2935 = vmatmul.bf16.gmra.mxu0 %v2912
    %v2936 = vpop.f32.mrf.mxu0
    %v2937 = vadd.f32 0.0, %v2936
    %v2938 = vpop.f32.mrf.mxu0
    %2939 = vdwg.mxu0
    %v2941 = vsel %vm147, %v2775, 0
    %2943 = vmatpush.bf16.msra.mxu0 0
    %2944 = vmatpush.bf16.msra.mxu0 0
    %2945 = vmatpush.bf16.msra.mxu0 0
    %2946 = vmatpush.bf16.msra.mxu0 0
    %2947 = vmatpush.bf16.msra.mxu0 0
    %2948 = vmatpush.bf16.msra.mxu0 0
    %2949 = vmatpush.bf16.msra.mxu0 0
    %2950 = vmatpush.bf16.msra.mxu0 %v2791
    %2951 = vmatmul.bf16.gmra.mxu0 %v2941
    %v2952 = vpop.f32.mrf.mxu0
    %v2953 = vadd.f32 0.0, %v2952
    %v2954 = vpop.f32.mrf.mxu0
    %2955 = vdwg.mxu0
    %2956 = vmatpush.bf16.msra.mxu0 0
    %2957 = vmatpush.bf16.msra.mxu0 0
    %2958 = vmatpush.bf16.msra.mxu0 0
    %2959 = vmatpush.bf16.msra.mxu0 0
    %2960 = vmatpush.bf16.msra.mxu0 0
    %2961 = vmatpush.bf16.msra.mxu0 0
    %2962 = vmatpush.bf16.msra.mxu0 0
    %2963 = vmatpush.bf16.msra.mxu0 %v2792
    %2964 = vmatmul.bf16.gmra.mxu0 %v2941
    %v2965 = vpop.f32.mrf.mxu0
    %v2966 = vadd.f32 0.0, %v2965
    %v2967 = vpop.f32.mrf.mxu0
    %2968 = vdwg.mxu0
    %v2970 = vsel %vm147, %v2776, 0
    %2972 = vmatpush.bf16.msra.mxu0 0
    %2973 = vmatpush.bf16.msra.mxu0 0
    %2974 = vmatpush.bf16.msra.mxu0 0
    %2975 = vmatpush.bf16.msra.mxu0 0
    %2976 = vmatpush.bf16.msra.mxu0 0
    %2977 = vmatpush.bf16.msra.mxu0 0
    %2978 = vmatpush.bf16.msra.mxu0 0
    %2979 = vmatpush.bf16.msra.mxu0 %v2791
    %2980 = vmatmul.bf16.gmra.mxu0 %v2970
    %v2981 = vpop.f32.mrf.mxu0
    %v2982 = vadd.f32 0.0, %v2981
    %v2983 = vpop.f32.mrf.mxu0
    %2984 = vdwg.mxu0
    %2985 = vmatpush.bf16.msra.mxu0 0
    %2986 = vmatpush.bf16.msra.mxu0 0
    %2987 = vmatpush.bf16.msra.mxu0 0
    %2988 = vmatpush.bf16.msra.mxu0 0
    %2989 = vmatpush.bf16.msra.mxu0 0
    %2990 = vmatpush.bf16.msra.mxu0 0
    %2991 = vmatpush.bf16.msra.mxu0 0
    %2992 = vmatpush.bf16.msra.mxu0 %v2792
    %2993 = vmatmul.bf16.gmra.mxu0 %v2970
    %v2994 = vpop.f32.mrf.mxu0
    %v2995 = vadd.f32 0.0, %v2994
    %v2996 = vpop.f32.mrf.mxu0
    %2997 = vdwg.mxu0
    %v2999 = vsel %vm147, %v2777, 0
    %3001 = vmatpush.bf16.msra.mxu0 0
    %3002 = vmatpush.bf16.msra.mxu0 0
    %3003 = vmatpush.bf16.msra.mxu0 0
    %3004 = vmatpush.bf16.msra.mxu0 0
    %3005 = vmatpush.bf16.msra.mxu0 0
    %3006 = vmatpush.bf16.msra.mxu0 0
    %3007 = vmatpush.bf16.msra.mxu0 0
    %3008 = vmatpush.bf16.msra.mxu0 %v2791
    %3009 = vmatmul.bf16.gmra.mxu0 %v2999
    %v3010 = vpop.f32.mrf.mxu0
    %v3011 = vadd.f32 0.0, %v3010
    %v3012 = vpop.f32.mrf.mxu0
    %3013 = vdwg.mxu0
    %3014 = vmatpush.bf16.msra.mxu0 0
    %3015 = vmatpush.bf16.msra.mxu0 0
    %3016 = vmatpush.bf16.msra.mxu0 0
    %3017 = vmatpush.bf16.msra.mxu0 0
    %3018 = vmatpush.bf16.msra.mxu0 0
    %3019 = vmatpush.bf16.msra.mxu0 0
    %3020 = vmatpush.bf16.msra.mxu0 0
    %3021 = vmatpush.bf16.msra.mxu0 %v2792
    %3022 = vmatmul.bf16.gmra.mxu0 %v2999
    %v3023 = vpop.f32.mrf.mxu0
    %v3024 = vadd.f32 0.0, %v3023
    %v3025 = vpop.f32.mrf.mxu0
    %3026 = vdwg.mxu0
    %v3028 = vsel %vm147, %v2778, 0
    %3030 = vmatpush.bf16.msra.mxu0 0
    %3031 = vmatpush.bf16.msra.mxu0 0
    %3032 = vmatpush.bf16.msra.mxu0 0
    %3033 = vmatpush.bf16.msra.mxu0 0
    %3034 = vmatpush.bf16.msra.mxu0 0
    %3035 = vmatpush.bf16.msra.mxu0 0
    %3036 = vmatpush.bf16.msra.mxu0 0
    %3037 = vmatpush.bf16.msra.mxu0 %v2791
    %3038 = vmatmul.bf16.gmra.mxu0 %v3028
    %v3039 = vpop.f32.mrf.mxu0
    %v3040 = vadd.f32 0.0, %v3039
    %v3041 = vpop.f32.mrf.mxu0
    %3042 = vdwg.mxu0
    %3043 = vmatpush.bf16.msra.mxu0 0
    %3044 = vmatpush.bf16.msra.mxu0 0
    %3045 = vmatpush.bf16.msra.mxu0 0
    %3046 = vmatpush.bf16.msra.mxu0 0
    %3047 = vmatpush.bf16.msra.mxu0 0
    %3048 = vmatpush.bf16.msra.mxu0 0
    %3049 = vmatpush.bf16.msra.mxu0 0
    %3050 = vmatpush.bf16.msra.mxu0 %v2792
    %3051 = vmatmul.bf16.gmra.mxu0 %v3028
    %v3052 = vpop.f32.mrf.mxu0
    %v3053 = vadd.f32 0.0, %v3052
    %v3054 = vpop.f32.mrf.mxu0
    %3055 = vdwg.mxu0
    %v3057 = vsel %vm147, %v2779, 0
    %3059 = vmatpush.bf16.msra.mxu0 0
    %3060 = vmatpush.bf16.msra.mxu0 0
    %3061 = vmatpush.bf16.msra.mxu0 0
    %3062 = vmatpush.bf16.msra.mxu0 0
    %3063 = vmatpush.bf16.msra.mxu0 0
    %3064 = vmatpush.bf16.msra.mxu0 0
    %3065 = vmatpush.bf16.msra.mxu0 0
    %3066 = vmatpush.bf16.msra.mxu0 %v2791
    %3067 = vmatmul.bf16.gmra.mxu0 %v3057
    %v3068 = vpop.f32.mrf.mxu0
    %v3069 = vadd.f32 0.0, %v3068
    %v3070 = vpop.f32.mrf.mxu0
    %3071 = vdwg.mxu0
    %3072 = vmatpush.bf16.msra.mxu0 0
    %3073 = vmatpush.bf16.msra.mxu0 0
    %3074 = vmatpush.bf16.msra.mxu0 0
    %3075 = vmatpush.bf16.msra.mxu0 0
    %3076 = vmatpush.bf16.msra.mxu0 0
    %3077 = vmatpush.bf16.msra.mxu0 0
    %3078 = vmatpush.bf16.msra.mxu0 0
    %3079 = vmatpush.bf16.msra.mxu0 %v2792
    %3080 = vmatmul.bf16.gmra.mxu0 %v3057
    %v3081 = vpop.f32.mrf.mxu0
    %v3082 = vadd.f32 0.0, %v3081
    %v3083 = vpop.f32.mrf.mxu0
    %3084 = vdwg.mxu0
    %v3086 = vsel %vm147, %v2780, 0
    %3088 = vmatpush.bf16.msra.mxu0 0
    %3089 = vmatpush.bf16.msra.mxu0 0
    %3090 = vmatpush.bf16.msra.mxu0 0
    %3091 = vmatpush.bf16.msra.mxu0 0
    %3092 = vmatpush.bf16.msra.mxu0 0
    %3093 = vmatpush.bf16.msra.mxu0 0
    %3094 = vmatpush.bf16.msra.mxu0 0
    %3095 = vmatpush.bf16.msra.mxu0 %v2791
    %3096 = vmatmul.bf16.gmra.mxu0 %v3086
    %v3097 = vpop.f32.mrf.mxu0
    %v3098 = vadd.f32 0.0, %v3097
    %v3099 = vpop.f32.mrf.mxu0
    %3100 = vdwg.mxu0
    %3101 = vmatpush.bf16.msra.mxu0 0
    %3102 = vmatpush.bf16.msra.mxu0 0
    %3103 = vmatpush.bf16.msra.mxu0 0
    %3104 = vmatpush.bf16.msra.mxu0 0
    %3105 = vmatpush.bf16.msra.mxu0 0
    %3106 = vmatpush.bf16.msra.mxu0 0
    %3107 = vmatpush.bf16.msra.mxu0 0
    %3108 = vmatpush.bf16.msra.mxu0 %v2792
    %3109 = vmatmul.bf16.gmra.mxu0 %v3086
    %v3110 = vpop.f32.mrf.mxu0
    %v3111 = vadd.f32 0.0, %v3110
    %v3112 = vpop.f32.mrf.mxu0
    %3113 = vdwg.mxu0
    %v3115 = vsel %vm147, %v2781, 0
    %3117 = vmatpush.bf16.msra.mxu0 0
    %3118 = vmatpush.bf16.msra.mxu0 0
    %3119 = vmatpush.bf16.msra.mxu0 0
    %3120 = vmatpush.bf16.msra.mxu0 0
    %3121 = vmatpush.bf16.msra.mxu0 0
    %3122 = vmatpush.bf16.msra.mxu0 0
    %3123 = vmatpush.bf16.msra.mxu0 0
    %3124 = vmatpush.bf16.msra.mxu0 %v2791
    %3125 = vmatmul.bf16.gmra.mxu0 %v3115
    %v3126 = vpop.f32.mrf.mxu0
    %v3127 = vadd.f32 0.0, %v3126
    %v3128 = vpop.f32.mrf.mxu0
    %3129 = vdwg.mxu0
    %3130 = vmatpush.bf16.msra.mxu0 0
    %3131 = vmatpush.bf16.msra.mxu0 0
    %3132 = vmatpush.bf16.msra.mxu0 0
    %3133 = vmatpush.bf16.msra.mxu0 0
    %3134 = vmatpush.bf16.msra.mxu0 0
    %3135 = vmatpush.bf16.msra.mxu0 0
    %3136 = vmatpush.bf16.msra.mxu0 0
    %3137 = vmatpush.bf16.msra.mxu0 %v2792
    %3138 = vmatmul.bf16.gmra.mxu0 %v3115
    %v3139 = vpop.f32.mrf.mxu0
    %v3140 = vadd.f32 0.0, %v3139
    %v3141 = vpop.f32.mrf.mxu0
    %3142 = vdwg.mxu0
    %v3143 = vadd.f32 %v2745, %v2808
    %v3144 = vadd.f32 %v2746, %v2821
    %v3145 = vadd.f32 %v2747, %v2837
    %v3146 = vadd.f32 %v2748, %v2850
    %v3147 = vadd.f32 %v2749, %v2866
    %v3148 = vadd.f32 %v2750, %v2879
    %v3149 = vadd.f32 %v2751, %v2895
    %v3150 = vadd.f32 %v2752, %v2908
    %v3151 = vadd.f32 %v2753, %v2924
    %v3152 = vadd.f32 %v2754, %v2937
    %v3153 = vadd.f32 %v2755, %v2953
    %v3154 = vadd.f32 %v2756, %v2966
    %v3155 = vadd.f32 %v2757, %v2982
    %v3156 = vadd.f32 %v2758, %v2995
    %v3157 = vadd.f32 %v2759, %v3011
    %v3158 = vadd.f32 %v2760, %v3024
    %v3159 = vadd.f32 %v2761, %v3040
    %v3160 = vadd.f32 %v2762, %v3053
    %v3161 = vadd.f32 %v2763, %v3069
    %v3162 = vadd.f32 %v2764, %v3082
    %v3163 = vadd.f32 %v2765, %v3098
    %v3164 = vadd.f32 %v2766, %v3111
    %v3165 = vadd.f32 %v2767, %v3127
    %v3166 = vadd.f32 %v2768, %v3140
    %v3167 = vld [vmem:[%s2769] sm:$0xf]
    %v3168 = vld [vmem:[%s2769 + $0x4] sm:$0xf]
    %v3169 = vld [vmem:[%s2769 + $0x8] sm:$0xf]
    %v3170 = vld [vmem:[%s2769 + $0xc] sm:$0xf]
    %v3171 = vld [vmem:[%s2769 + $0x10] sm:$0xf]
    %v3172 = vld [vmem:[%s2769 + $0x14] sm:$0xf]
    %v3173 = vld [vmem:[%s2769 + $0x20] sm:$0xf]
    %v3174 = vld [vmem:[%s2769 + $0x24] sm:$0xf]
    %v3175 = vld [vmem:[%s2769 + $0x28] sm:$0xf]
    %v3176 = vld [vmem:[%s2769 + $0x2c] sm:$0xf]
    %v3177 = vld [vmem:[%s2769 + $0x30] sm:$0xf]
    %v3178 = vld [vmem:[%s2769 + $0x34] sm:$0xf]
    %s3179 = scalar_lea.vmem [#allocation3], 112
    %v3180 = vld [vmem:[%s3179] sm:$0xff]
    %v3181 = vld [vmem:[%s3179 + $0x8] sm:$0xff]
    %v3183 = vunpack.c.l.b16 %v3167
    %v3184 = vpack.c.b16 %v3183, %v3183
    %v3186 = vshrl.u32 %v3184, 16
    %v3188 = vshll.u32 %v3184, 16
    %v3190 = vrot.slane %v3188, 1
    %v3191 = vor.u32 %v3186, %v3190
    %v3194 = vunpack.c.l.b16 %v3180
    %v3195 = vunpack.c.h.b16 %v3180
    %v3196 = vunpack.c.l.b16 %v3181
    %v3197 = vunpack.c.h.b16 %v3181
    %v3198 = vpack.c.b16 %v3196, %v3194
    %v3199 = vpack.c.b16 %v3197, %v3195
    %v3203 = vsel %vm147, %v3191, 0
    %3205 = vmatpush.bf16.msra.mxu0 0
    %3206 = vmatpush.bf16.msra.mxu0 0
    %3207 = vmatpush.bf16.msra.mxu0 0
    %3208 = vmatpush.bf16.msra.mxu0 0
    %3209 = vmatpush.bf16.msra.mxu0 0
    %3210 = vmatpush.bf16.msra.mxu0 0
    %3211 = vmatpush.bf16.msra.mxu0 0
    %3212 = vmatpush.bf16.msra.mxu0 %v3198
    %3213 = vmatmul.bf16.gmra.mxu0 %v3203
    %v3214 = vpop.f32.mrf.mxu0
    %v3215 = vadd.f32 0.0, %v3214
    %v3216 = vpop.f32.mrf.mxu0
    %3217 = vdwg.mxu0
    %3218 = vmatpush.bf16.msra.mxu0 0
    %3219 = vmatpush.bf16.msra.mxu0 0
    %3220 = vmatpush.bf16.msra.mxu0 0
    %3221 = vmatpush.bf16.msra.mxu0 0
    %3222 = vmatpush.bf16.msra.mxu0 0
    %3223 = vmatpush.bf16.msra.mxu0 0
    %3224 = vmatpush.bf16.msra.mxu0 0
    %3225 = vmatpush.bf16.msra.mxu0 %v3199
    %3226 = vmatmul.bf16.gmra.mxu0 %v3203
    %v3227 = vpop.f32.mrf.mxu0
    %v3228 = vadd.f32 0.0, %v3227
    %v3229 = vpop.f32.mrf.mxu0
    %3230 = vdwg.mxu0
    %v3232 = vunpack.c.l.b16 %v3168
    %v3233 = vpack.c.b16 %v3232, %v3232
    %v3235 = vshrl.u32 %v3233, 16
    %v3237 = vshll.u32 %v3233, 16
    %v3239 = vrot.slane %v3237, 1
    %v3240 = vor.u32 %v3235, %v3239
    %v3242 = vsel %vm147, %v3240, 0
    %3244 = vmatpush.bf16.msra.mxu0 0
    %3245 = vmatpush.bf16.msra.mxu0 0
    %3246 = vmatpush.bf16.msra.mxu0 0
    %3247 = vmatpush.bf16.msra.mxu0 0
    %3248 = vmatpush.bf16.msra.mxu0 0
    %3249 = vmatpush.bf16.msra.mxu0 0
    %3250 = vmatpush.bf16.msra.mxu0 0
    %3251 = vmatpush.bf16.msra.mxu0 %v3198
    %3252 = vmatmul.bf16.gmra.mxu0 %v3242
    %v3253 = vpop.f32.mrf.mxu0
    %v3254 = vadd.f32 0.0, %v3253
    %v3255 = vpop.f32.mrf.mxu0
    %3256 = vdwg.mxu0
    %3257 = vmatpush.bf16.msra.mxu0 0
    %3258 = vmatpush.bf16.msra.mxu0 0
    %3259 = vmatpush.bf16.msra.mxu0 0
    %3260 = vmatpush.bf16.msra.mxu0 0
    %3261 = vmatpush.bf16.msra.mxu0 0
    %3262 = vmatpush.bf16.msra.mxu0 0
    %3263 = vmatpush.bf16.msra.mxu0 0
    %3264 = vmatpush.bf16.msra.mxu0 %v3199
    %3265 = vmatmul.bf16.gmra.mxu0 %v3242
    %v3266 = vpop.f32.mrf.mxu0
    %v3267 = vadd.f32 0.0, %v3266
    %v3268 = vpop.f32.mrf.mxu0
    %3269 = vdwg.mxu0
    %v3271 = vunpack.c.l.b16 %v3169
    %v3272 = vpack.c.b16 %v3271, %v3271
    %v3274 = vshrl.u32 %v3272, 16
    %v3276 = vshll.u32 %v3272, 16
    %v3278 = vrot.slane %v3276, 1
    %v3279 = vor.u32 %v3274, %v3278
    %v3281 = vsel %vm147, %v3279, 0
    %3283 = vmatpush.bf16.msra.mxu0 0
    %3284 = vmatpush.bf16.msra.mxu0 0
    %3285 = vmatpush.bf16.msra.mxu0 0
    %3286 = vmatpush.bf16.msra.mxu0 0
    %3287 = vmatpush.bf16.msra.mxu0 0
    %3288 = vmatpush.bf16.msra.mxu0 0
    %3289 = vmatpush.bf16.msra.mxu0 0
    %3290 = vmatpush.bf16.msra.mxu0 %v3198
    %3291 = vmatmul.bf16.gmra.mxu0 %v3281
    %v3292 = vpop.f32.mrf.mxu0
    %v3293 = vadd.f32 0.0, %v3292
    %v3294 = vpop.f32.mrf.mxu0
    %3295 = vdwg.mxu0
    %3296 = vmatpush.bf16.msra.mxu0 0
    %3297 = vmatpush.bf16.msra.mxu0 0
    %3298 = vmatpush.bf16.msra.mxu0 0
    %3299 = vmatpush.bf16.msra.mxu0 0
    %3300 = vmatpush.bf16.msra.mxu0 0
    %3301 = vmatpush.bf16.msra.mxu0 0
    %3302 = vmatpush.bf16.msra.mxu0 0
    %3303 = vmatpush.bf16.msra.mxu0 %v3199
    %3304 = vmatmul.bf16.gmra.mxu0 %v3281
    %v3305 = vpop.f32.mrf.mxu0
    %v3306 = vadd.f32 0.0, %v3305
    %v3307 = vpop.f32.mrf.mxu0
    %3308 = vdwg.mxu0
    %v3310 = vunpack.c.l.b16 %v3170
    %v3311 = vpack.c.b16 %v3310, %v3310
    %v3313 = vshrl.u32 %v3311, 16
    %v3315 = vshll.u32 %v3311, 16
    %v3317 = vrot.slane %v3315, 1
    %v3318 = vor.u32 %v3313, %v3317
    %v3320 = vsel %vm147, %v3318, 0
    %3322 = vmatpush.bf16.msra.mxu0 0
    %3323 = vmatpush.bf16.msra.mxu0 0
    %3324 = vmatpush.bf16.msra.mxu0 0
    %3325 = vmatpush.bf16.msra.mxu0 0
    %3326 = vmatpush.bf16.msra.mxu0 0
    %3327 = vmatpush.bf16.msra.mxu0 0
    %3328 = vmatpush.bf16.msra.mxu0 0
    %3329 = vmatpush.bf16.msra.mxu0 %v3198
    %3330 = vmatmul.bf16.gmra.mxu0 %v3320
    %v3331 = vpop.f32.mrf.mxu0
    %v3332 = vadd.f32 0.0, %v3331
    %v3333 = vpop.f32.mrf.mxu0
    %3334 = vdwg.mxu0
    %3335 = vmatpush.bf16.msra.mxu0 0
    %3336 = vmatpush.bf16.msra.mxu0 0
    %3337 = vmatpush.bf16.msra.mxu0 0
    %3338 = vmatpush.bf16.msra.mxu0 0
    %3339 = vmatpush.bf16.msra.mxu0 0
    %3340 = vmatpush.bf16.msra.mxu0 0
    %3341 = vmatpush.bf16.msra.mxu0 0
    %3342 = vmatpush.bf16.msra.mxu0 %v3199
    %3343 = vmatmul.bf16.gmra.mxu0 %v3320
    %v3344 = vpop.f32.mrf.mxu0
    %v3345 = vadd.f32 0.0, %v3344
    %v3346 = vpop.f32.mrf.mxu0
    %3347 = vdwg.mxu0
    %v3349 = vunpack.c.l.b16 %v3171
    %v3350 = vpack.c.b16 %v3349, %v3349
    %v3352 = vshrl.u32 %v3350, 16
    %v3354 = vshll.u32 %v3350, 16
    %v3356 = vrot.slane %v3354, 1
    %v3357 = vor.u32 %v3352, %v3356
    %v3359 = vsel %vm147, %v3357, 0
    %3361 = vmatpush.bf16.msra.mxu0 0
    %3362 = vmatpush.bf16.msra.mxu0 0
    %3363 = vmatpush.bf16.msra.mxu0 0
    %3364 = vmatpush.bf16.msra.mxu0 0
    %3365 = vmatpush.bf16.msra.mxu0 0
    %3366 = vmatpush.bf16.msra.mxu0 0
    %3367 = vmatpush.bf16.msra.mxu0 0
    %3368 = vmatpush.bf16.msra.mxu0 %v3198
    %3369 = vmatmul.bf16.gmra.mxu0 %v3359
    %v3370 = vpop.f32.mrf.mxu0
    %v3371 = vadd.f32 0.0, %v3370
    %v3372 = vpop.f32.mrf.mxu0
    %3373 = vdwg.mxu0
    %3374 = vmatpush.bf16.msra.mxu0 0
    %3375 = vmatpush.bf16.msra.mxu0 0
    %3376 = vmatpush.bf16.msra.mxu0 0
    %3377 = vmatpush.bf16.msra.mxu0 0
    %3378 = vmatpush.bf16.msra.mxu0 0
    %3379 = vmatpush.bf16.msra.mxu0 0
    %3380 = vmatpush.bf16.msra.mxu0 0
    %3381 = vmatpush.bf16.msra.mxu0 %v3199
    %3382 = vmatmul.bf16.gmra.mxu0 %v3359
    %v3383 = vpop.f32.mrf.mxu0
    %v3384 = vadd.f32 0.0, %v3383
    %v3385 = vpop.f32.mrf.mxu0
    %3386 = vdwg.mxu0
    %v3388 = vunpack.c.l.b16 %v3172
    %v3389 = vpack.c.b16 %v3388, %v3388
    %v3391 = vshrl.u32 %v3389, 16
    %v3393 = vshll.u32 %v3389, 16
    %v3395 = vrot.slane %v3393, 1
    %v3396 = vor.u32 %v3391, %v3395
    %v3398 = vsel %vm147, %v3396, 0
    %3400 = vmatpush.bf16.msra.mxu0 0
    %3401 = vmatpush.bf16.msra.mxu0 0
    %3402 = vmatpush.bf16.msra.mxu0 0
    %3403 = vmatpush.bf16.msra.mxu0 0
    %3404 = vmatpush.bf16.msra.mxu0 0
    %3405 = vmatpush.bf16.msra.mxu0 0
    %3406 = vmatpush.bf16.msra.mxu0 0
    %3407 = vmatpush.bf16.msra.mxu0 %v3198
    %3408 = vmatmul.bf16.gmra.mxu0 %v3398
    %v3409 = vpop.f32.mrf.mxu0
    %v3410 = vadd.f32 0.0, %v3409
    %v3411 = vpop.f32.mrf.mxu0
    %3412 = vdwg.mxu0
    %3413 = vmatpush.bf16.msra.mxu0 0
    %3414 = vmatpush.bf16.msra.mxu0 0
    %3415 = vmatpush.bf16.msra.mxu0 0
    %3416 = vmatpush.bf16.msra.mxu0 0
    %3417 = vmatpush.bf16.msra.mxu0 0
    %3418 = vmatpush.bf16.msra.mxu0 0
    %3419 = vmatpush.bf16.msra.mxu0 0
    %3420 = vmatpush.bf16.msra.mxu0 %v3199
    %3421 = vmatmul.bf16.gmra.mxu0 %v3398
    %v3422 = vpop.f32.mrf.mxu0
    %v3423 = vadd.f32 0.0, %v3422
    %v3424 = vpop.f32.mrf.mxu0
    %3425 = vdwg.mxu0
    %v3427 = vunpack.c.l.b16 %v3173
    %v3428 = vpack.c.b16 %v3427, %v3427
    %v3430 = vshrl.u32 %v3428, 16
    %v3432 = vshll.u32 %v3428, 16
    %v3434 = vrot.slane %v3432, 1
    %v3435 = vor.u32 %v3430, %v3434
    %v3437 = vsel %vm147, %v3435, 0
    %3439 = vmatpush.bf16.msra.mxu0 0
    %3440 = vmatpush.bf16.msra.mxu0 0
    %3441 = vmatpush.bf16.msra.mxu0 0
    %3442 = vmatpush.bf16.msra.mxu0 0
    %3443 = vmatpush.bf16.msra.mxu0 0
    %3444 = vmatpush.bf16.msra.mxu0 0
    %3445 = vmatpush.bf16.msra.mxu0 0
    %3446 = vmatpush.bf16.msra.mxu0 %v3198
    %3447 = vmatmul.bf16.gmra.mxu0 %v3437
    %v3448 = vpop.f32.mrf.mxu0
    %v3449 = vadd.f32 0.0, %v3448
    %v3450 = vpop.f32.mrf.mxu0
    %3451 = vdwg.mxu0
    %3452 = vmatpush.bf16.msra.mxu0 0
    %3453 = vmatpush.bf16.msra.mxu0 0
    %3454 = vmatpush.bf16.msra.mxu0 0
    %3455 = vmatpush.bf16.msra.mxu0 0
    %3456 = vmatpush.bf16.msra.mxu0 0
    %3457 = vmatpush.bf16.msra.mxu0 0
    %3458 = vmatpush.bf16.msra.mxu0 0
    %3459 = vmatpush.bf16.msra.mxu0 %v3199
    %3460 = vmatmul.bf16.gmra.mxu0 %v3437
    %v3461 = vpop.f32.mrf.mxu0
    %v3462 = vadd.f32 0.0, %v3461
    %v3463 = vpop.f32.mrf.mxu0
    %3464 = vdwg.mxu0
    %v3466 = vunpack.c.l.b16 %v3174
    %v3467 = vpack.c.b16 %v3466, %v3466
    %v3469 = vshrl.u32 %v3467, 16
    %v3471 = vshll.u32 %v3467, 16
    %v3473 = vrot.slane %v3471, 1
    %v3474 = vor.u32 %v3469, %v3473
    %v3476 = vsel %vm147, %v3474, 0
    %3478 = vmatpush.bf16.msra.mxu0 0
    %3479 = vmatpush.bf16.msra.mxu0 0
    %3480 = vmatpush.bf16.msra.mxu0 0
    %3481 = vmatpush.bf16.msra.mxu0 0
    %3482 = vmatpush.bf16.msra.mxu0 0
    %3483 = vmatpush.bf16.msra.mxu0 0
    %3484 = vmatpush.bf16.msra.mxu0 0
    %3485 = vmatpush.bf16.msra.mxu0 %v3198
    %3486 = vmatmul.bf16.gmra.mxu0 %v3476
    %v3487 = vpop.f32.mrf.mxu0
    %v3488 = vadd.f32 0.0, %v3487
    %v3489 = vpop.f32.mrf.mxu0
    %3490 = vdwg.mxu0
    %3491 = vmatpush.bf16.msra.mxu0 0
    %3492 = vmatpush.bf16.msra.mxu0 0
    %3493 = vmatpush.bf16.msra.mxu0 0
    %3494 = vmatpush.bf16.msra.mxu0 0
    %3495 = vmatpush.bf16.msra.mxu0 0
    %3496 = vmatpush.bf16.msra.mxu0 0
    %3497 = vmatpush.bf16.msra.mxu0 0
    %3498 = vmatpush.bf16.msra.mxu0 %v3199
    %3499 = vmatmul.bf16.gmra.mxu0 %v3476
    %v3500 = vpop.f32.mrf.mxu0
    %v3501 = vadd.f32 0.0, %v3500
    %v3502 = vpop.f32.mrf.mxu0
    %3503 = vdwg.mxu0
    %v3505 = vunpack.c.l.b16 %v3175
    %v3506 = vpack.c.b16 %v3505, %v3505
    %v3508 = vshrl.u32 %v3506, 16
    %v3510 = vshll.u32 %v3506, 16
    %v3512 = vrot.slane %v3510, 1
    %v3513 = vor.u32 %v3508, %v3512
    %v3515 = vsel %vm147, %v3513, 0
    %3517 = vmatpush.bf16.msra.mxu0 0
    %3518 = vmatpush.bf16.msra.mxu0 0
    %3519 = vmatpush.bf16.msra.mxu0 0
    %3520 = vmatpush.bf16.msra.mxu0 0
    %3521 = vmatpush.bf16.msra.mxu0 0
    %3522 = vmatpush.bf16.msra.mxu0 0
    %3523 = vmatpush.bf16.msra.mxu0 0
    %3524 = vmatpush.bf16.msra.mxu0 %v3198
    %3525 = vmatmul.bf16.gmra.mxu0 %v3515
    %v3526 = vpop.f32.mrf.mxu0
    %v3527 = vadd.f32 0.0, %v3526
    %v3528 = vpop.f32.mrf.mxu0
    %3529 = vdwg.mxu0
    %3530 = vmatpush.bf16.msra.mxu0 0
    %3531 = vmatpush.bf16.msra.mxu0 0
    %3532 = vmatpush.bf16.msra.mxu0 0
    %3533 = vmatpush.bf16.msra.mxu0 0
    %3534 = vmatpush.bf16.msra.mxu0 0
    %3535 = vmatpush.bf16.msra.mxu0 0
    %3536 = vmatpush.bf16.msra.mxu0 0
    %3537 = vmatpush.bf16.msra.mxu0 %v3199
    %3538 = vmatmul.bf16.gmra.mxu0 %v3515
    %v3539 = vpop.f32.mrf.mxu0
    %v3540 = vadd.f32 0.0, %v3539
    %v3541 = vpop.f32.mrf.mxu0
    %3542 = vdwg.mxu0
    %v3544 = vunpack.c.l.b16 %v3176
    %v3545 = vpack.c.b16 %v3544, %v3544
    %v3547 = vshrl.u32 %v3545, 16
    %v3549 = vshll.u32 %v3545, 16
    %v3551 = vrot.slane %v3549, 1
    %v3552 = vor.u32 %v3547, %v3551
    %v3554 = vsel %vm147, %v3552, 0
    %3556 = vmatpush.bf16.msra.mxu0 0
    %3557 = vmatpush.bf16.msra.mxu0 0
    %3558 = vmatpush.bf16.msra.mxu0 0
    %3559 = vmatpush.bf16.msra.mxu0 0
    %3560 = vmatpush.bf16.msra.mxu0 0
    %3561 = vmatpush.bf16.msra.mxu0 0
    %3562 = vmatpush.bf16.msra.mxu0 0
    %3563 = vmatpush.bf16.msra.mxu0 %v3198
    %3564 = vmatmul.bf16.gmra.mxu0 %v3554
    %v3565 = vpop.f32.mrf.mxu0
    %v3566 = vadd.f32 0.0, %v3565
    %v3567 = vpop.f32.mrf.mxu0
    %3568 = vdwg.mxu0
    %3569 = vmatpush.bf16.msra.mxu0 0
    %3570 = vmatpush.bf16.msra.mxu0 0
    %3571 = vmatpush.bf16.msra.mxu0 0
    %3572 = vmatpush.bf16.msra.mxu0 0
    %3573 = vmatpush.bf16.msra.mxu0 0
    %3574 = vmatpush.bf16.msra.mxu0 0
    %3575 = vmatpush.bf16.msra.mxu0 0
    %3576 = vmatpush.bf16.msra.mxu0 %v3199
    %3577 = vmatmul.bf16.gmra.mxu0 %v3554
    %v3578 = vpop.f32.mrf.mxu0
    %v3579 = vadd.f32 0.0, %v3578
    %v3580 = vpop.f32.mrf.mxu0
    %3581 = vdwg.mxu0
    %v3583 = vunpack.c.l.b16 %v3177
    %v3584 = vpack.c.b16 %v3583, %v3583
    %v3586 = vshrl.u32 %v3584, 16
    %v3588 = vshll.u32 %v3584, 16
    %v3590 = vrot.slane %v3588, 1
    %v3591 = vor.u32 %v3586, %v3590
    %v3593 = vsel %vm147, %v3591, 0
    %3595 = vmatpush.bf16.msra.mxu0 0
    %3596 = vmatpush.bf16.msra.mxu0 0
    %3597 = vmatpush.bf16.msra.mxu0 0
    %3598 = vmatpush.bf16.msra.mxu0 0
    %3599 = vmatpush.bf16.msra.mxu0 0
    %3600 = vmatpush.bf16.msra.mxu0 0
    %3601 = vmatpush.bf16.msra.mxu0 0
    %3602 = vmatpush.bf16.msra.mxu0 %v3198
    %3603 = vmatmul.bf16.gmra.mxu0 %v3593
    %v3604 = vpop.f32.mrf.mxu0
    %v3605 = vadd.f32 0.0, %v3604
    %v3606 = vpop.f32.mrf.mxu0
    %3607 = vdwg.mxu0
    %3608 = vmatpush.bf16.msra.mxu0 0
    %3609 = vmatpush.bf16.msra.mxu0 0
    %3610 = vmatpush.bf16.msra.mxu0 0
    %3611 = vmatpush.bf16.msra.mxu0 0
    %3612 = vmatpush.bf16.msra.mxu0 0
    %3613 = vmatpush.bf16.msra.mxu0 0
    %3614 = vmatpush.bf16.msra.mxu0 0
    %3615 = vmatpush.bf16.msra.mxu0 %v3199
    %3616 = vmatmul.bf16.gmra.mxu0 %v3593
    %v3617 = vpop.f32.mrf.mxu0
    %v3618 = vadd.f32 0.0, %v3617
    %v3619 = vpop.f32.mrf.mxu0
    %3620 = vdwg.mxu0
    %v3622 = vunpack.c.l.b16 %v3178
    %v3623 = vpack.c.b16 %v3622, %v3622
    %v3625 = vshrl.u32 %v3623, 16
    %v3627 = vshll.u32 %v3623, 16
    %v3629 = vrot.slane %v3627, 1
    %v3630 = vor.u32 %v3625, %v3629
    %v3632 = vsel %vm147, %v3630, 0
    %3634 = vmatpush.bf16.msra.mxu0 0
    %3635 = vmatpush.bf16.msra.mxu0 0
    %3636 = vmatpush.bf16.msra.mxu0 0
    %3637 = vmatpush.bf16.msra.mxu0 0
    %3638 = vmatpush.bf16.msra.mxu0 0
    %3639 = vmatpush.bf16.msra.mxu0 0
    %3640 = vmatpush.bf16.msra.mxu0 0
    %3641 = vmatpush.bf16.msra.mxu0 %v3198
    %3642 = vmatmul.bf16.gmra.mxu0 %v3632
    %v3643 = vpop.f32.mrf.mxu0
    %v3644 = vadd.f32 0.0, %v3643
    %v3645 = vpop.f32.mrf.mxu0
    %3646 = vdwg.mxu0
    %3647 = vmatpush.bf16.msra.mxu0 0
    %3648 = vmatpush.bf16.msra.mxu0 0
    %3649 = vmatpush.bf16.msra.mxu0 0
    %3650 = vmatpush.bf16.msra.mxu0 0
    %3651 = vmatpush.bf16.msra.mxu0 0
    %3652 = vmatpush.bf16.msra.mxu0 0
    %3653 = vmatpush.bf16.msra.mxu0 0
    %3654 = vmatpush.bf16.msra.mxu0 %v3199
    %3655 = vmatmul.bf16.gmra.mxu0 %v3632
    %v3656 = vpop.f32.mrf.mxu0
    %v3657 = vadd.f32 0.0, %v3656
    %v3658 = vpop.f32.mrf.mxu0
    %3659 = vdwg.mxu0
    %v3660 = vadd.f32 %v3143, %v3215
    %v3661 = vadd.f32 %v3144, %v3228
    %v3662 = vadd.f32 %v3145, %v3254
    %v3663 = vadd.f32 %v3146, %v3267
    %v3664 = vadd.f32 %v3147, %v3293
    %v3665 = vadd.f32 %v3148, %v3306
    %v3666 = vadd.f32 %v3149, %v3332
    %v3667 = vadd.f32 %v3150, %v3345
    %v3668 = vadd.f32 %v3151, %v3371
    %v3669 = vadd.f32 %v3152, %v3384
    %v3670 = vadd.f32 %v3153, %v3410
    %v3671 = vadd.f32 %v3154, %v3423
    %v3672 = vadd.f32 %v3155, %v3449
    %v3673 = vadd.f32 %v3156, %v3462
    %v3674 = vadd.f32 %v3157, %v3488
    %v3675 = vadd.f32 %v3158, %v3501
    %v3676 = vadd.f32 %v3159, %v3527
    %v3677 = vadd.f32 %v3160, %v3540
    %v3678 = vadd.f32 %v3161, %v3566
    %v3679 = vadd.f32 %v3162, %v3579
    %v3680 = vadd.f32 %v3163, %v3605
    %v3681 = vadd.f32 %v3164, %v3618
    %v3682 = vadd.f32 %v3165, %v3644
    %v3683 = vadd.f32 %v3166, %v3657
    %v3684 = vld [vmem:[%s2769] sm:$0xe]
    %v3685 = vld [vmem:[%s2769 + $0x4] sm:$0xe]
    %v3686 = vld [vmem:[%s2769 + $0x8] sm:$0xe]
    %v3687 = vld [vmem:[%s2769 + $0xc] sm:$0xe]
    %v3688 = vld [vmem:[%s2769 + $0x10] sm:$0xe]
    %v3689 = vld [vmem:[%s2769 + $0x14] sm:$0xe]
    %v3690 = vld [vmem:[%s2769 + $0x20] sm:$0xe]
    %v3691 = vld [vmem:[%s2769 + $0x24] sm:$0xe]
    %v3692 = vld [vmem:[%s2769 + $0x28] sm:$0xe]
    %v3693 = vld [vmem:[%s2769 + $0x2c] sm:$0xe]
    %v3694 = vld [vmem:[%s2769 + $0x30] sm:$0xe]
    %v3695 = vld [vmem:[%s2769 + $0x34] sm:$0xe]
    %s3696 = scalar_lea.vmem [#allocation3], 128
    %v3697 = vld [vmem:[%s3696] sm:$0xff]
    %v3698 = vld [vmem:[%s3696 + $0x8] sm:$0xff]
    %v3700 = vunpack.c.l.b16 %v3684
    %v3701 = vpack.c.b16 %v3700, %v3700
    %v3702 = vrot.slane %v3701, 1
    %v3705 = vunpack.c.l.b16 %v3697
    %v3706 = vunpack.c.h.b16 %v3697
    %v3707 = vunpack.c.l.b16 %v3698
    %v3708 = vunpack.c.h.b16 %v3698
    %v3709 = vpack.c.b16 %v3707, %v3705
    %v3710 = vpack.c.b16 %v3708, %v3706
    %v3714 = vsel %vm147, %v3702, 0
    %3716 = vmatpush.bf16.msra.mxu0 0
    %3717 = vmatpush.bf16.msra.mxu0 0
    %3718 = vmatpush.bf16.msra.mxu0 0
    %3719 = vmatpush.bf16.msra.mxu0 0
    %3720 = vmatpush.bf16.msra.mxu0 0
    %3721 = vmatpush.bf16.msra.mxu0 0
    %3722 = vmatpush.bf16.msra.mxu0 0
    %3723 = vmatpush.bf16.msra.mxu0 %v3709
    %3724 = vmatmul.bf16.gmra.mxu0 %v3714
    %v3725 = vpop.f32.mrf.mxu0
    %v3726 = vadd.f32 0.0, %v3725
    %v3727 = vpop.f32.mrf.mxu0
    %3728 = vdwg.mxu0
    %3729 = vmatpush.bf16.msra.mxu0 0
    %3730 = vmatpush.bf16.msra.mxu0 0
    %3731 = vmatpush.bf16.msra.mxu0 0
    %3732 = vmatpush.bf16.msra.mxu0 0
    %3733 = vmatpush.bf16.msra.mxu0 0
    %3734 = vmatpush.bf16.msra.mxu0 0
    %3735 = vmatpush.bf16.msra.mxu0 0
    %3736 = vmatpush.bf16.msra.mxu0 %v3710
    %3737 = vmatmul.bf16.gmra.mxu0 %v3714
    %v3738 = vpop.f32.mrf.mxu0
    %v3739 = vadd.f32 0.0, %v3738
    %v3740 = vpop.f32.mrf.mxu0
    %3741 = vdwg.mxu0
    %v3743 = vunpack.c.l.b16 %v3685
    %v3744 = vpack.c.b16 %v3743, %v3743
    %v3745 = vrot.slane %v3744, 1
    %v3747 = vsel %vm147, %v3745, 0
    %3749 = vmatpush.bf16.msra.mxu0 0
    %3750 = vmatpush.bf16.msra.mxu0 0
    %3751 = vmatpush.bf16.msra.mxu0 0
    %3752 = vmatpush.bf16.msra.mxu0 0
    %3753 = vmatpush.bf16.msra.mxu0 0
    %3754 = vmatpush.bf16.msra.mxu0 0
    %3755 = vmatpush.bf16.msra.mxu0 0
    %3756 = vmatpush.bf16.msra.mxu0 %v3709
    %3757 = vmatmul.bf16.gmra.mxu0 %v3747
    %v3758 = vpop.f32.mrf.mxu0
    %v3759 = vadd.f32 0.0, %v3758
    %v3760 = vpop.f32.mrf.mxu0
    %3761 = vdwg.mxu0
    %3762 = vmatpush.bf16.msra.mxu0 0
    %3763 = vmatpush.bf16.msra.mxu0 0
    %3764 = vmatpush.bf16.msra.mxu0 0
    %3765 = vmatpush.bf16.msra.mxu0 0
    %3766 = vmatpush.bf16.msra.mxu0 0
    %3767 = vmatpush.bf16.msra.mxu0 0
    %3768 = vmatpush.bf16.msra.mxu0 0
    %3769 = vmatpush.bf16.msra.mxu0 %v3710
    %3770 = vmatmul.bf16.gmra.mxu0 %v3747
    %v3771 = vpop.f32.mrf.mxu0
    %v3772 = vadd.f32 0.0, %v3771
    %v3773 = vpop.f32.mrf.mxu0
    %3774 = vdwg.mxu0
    %v3776 = vunpack.c.l.b16 %v3686
    %v3777 = vpack.c.b16 %v3776, %v3776
    %v3778 = vrot.slane %v3777, 1
    %v3780 = vsel %vm147, %v3778, 0
    %3782 = vmatpush.bf16.msra.mxu0 0
    %3783 = vmatpush.bf16.msra.mxu0 0
    %3784 = vmatpush.bf16.msra.mxu0 0
    %3785 = vmatpush.bf16.msra.mxu0 0
    %3786 = vmatpush.bf16.msra.mxu0 0
    %3787 = vmatpush.bf16.msra.mxu0 0
    %3788 = vmatpush.bf16.msra.mxu0 0
    %3789 = vmatpush.bf16.msra.mxu0 %v3709
    %3790 = vmatmul.bf16.gmra.mxu0 %v3780
    %v3791 = vpop.f32.mrf.mxu0
    %v3792 = vadd.f32 0.0, %v3791
    %v3793 = vpop.f32.mrf.mxu0
    %3794 = vdwg.mxu0
    %3795 = vmatpush.bf16.msra.mxu0 0
    %3796 = vmatpush.bf16.msra.mxu0 0
    %3797 = vmatpush.bf16.msra.mxu0 0
    %3798 = vmatpush.bf16.msra.mxu0 0
    %3799 = vmatpush.bf16.msra.mxu0 0
    %3800 = vmatpush.bf16.msra.mxu0 0
    %3801 = vmatpush.bf16.msra.mxu0 0
    %3802 = vmatpush.bf16.msra.mxu0 %v3710
    %3803 = vmatmul.bf16.gmra.mxu0 %v3780
    %v3804 = vpop.f32.mrf.mxu0
    %v3805 = vadd.f32 0.0, %v3804
    %v3806 = vpop.f32.mrf.mxu0
    %3807 = vdwg.mxu0
    %v3809 = vunpack.c.l.b16 %v3687
    %v3810 = vpack.c.b16 %v3809, %v3809
    %v3811 = vrot.slane %v3810, 1
    %v3813 = vsel %vm147, %v3811, 0
    %3815 = vmatpush.bf16.msra.mxu0 0
    %3816 = vmatpush.bf16.msra.mxu0 0
    %3817 = vmatpush.bf16.msra.mxu0 0
    %3818 = vmatpush.bf16.msra.mxu0 0
    %3819 = vmatpush.bf16.msra.mxu0 0
    %3820 = vmatpush.bf16.msra.mxu0 0
    %3821 = vmatpush.bf16.msra.mxu0 0
    %3822 = vmatpush.bf16.msra.mxu0 %v3709
    %3823 = vmatmul.bf16.gmra.mxu0 %v3813
    %v3824 = vpop.f32.mrf.mxu0
    %v3825 = vadd.f32 0.0, %v3824
    %v3826 = vpop.f32.mrf.mxu0
    %3827 = vdwg.mxu0
    %3828 = vmatpush.bf16.msra.mxu0 0
    %3829 = vmatpush.bf16.msra.mxu0 0
    %3830 = vmatpush.bf16.msra.mxu0 0
    %3831 = vmatpush.bf16.msra.mxu0 0
    %3832 = vmatpush.bf16.msra.mxu0 0
    %3833 = vmatpush.bf16.msra.mxu0 0
    %3834 = vmatpush.bf16.msra.mxu0 0
    %3835 = vmatpush.bf16.msra.mxu0 %v3710
    %3836 = vmatmul.bf16.gmra.mxu0 %v3813
    %v3837 = vpop.f32.mrf.mxu0
    %v3838 = vadd.f32 0.0, %v3837
    %v3839 = vpop.f32.mrf.mxu0
    %3840 = vdwg.mxu0
    %v3842 = vunpack.c.l.b16 %v3688
    %v3843 = vpack.c.b16 %v3842, %v3842
    %v3844 = vrot.slane %v3843, 1
    %v3846 = vsel %vm147, %v3844, 0
    %3848 = vmatpush.bf16.msra.mxu0 0
    %3849 = vmatpush.bf16.msra.mxu0 0
    %3850 = vmatpush.bf16.msra.mxu0 0
    %3851 = vmatpush.bf16.msra.mxu0 0
    %3852 = vmatpush.bf16.msra.mxu0 0
    %3853 = vmatpush.bf16.msra.mxu0 0
    %3854 = vmatpush.bf16.msra.mxu0 0
    %3855 = vmatpush.bf16.msra.mxu0 %v3709
    %3856 = vmatmul.bf16.gmra.mxu0 %v3846
    %v3857 = vpop.f32.mrf.mxu0
    %v3858 = vadd.f32 0.0, %v3857
    %v3859 = vpop.f32.mrf.mxu0
    %3860 = vdwg.mxu0
    %3861 = vmatpush.bf16.msra.mxu0 0
    %3862 = vmatpush.bf16.msra.mxu0 0
    %3863 = vmatpush.bf16.msra.mxu0 0
    %3864 = vmatpush.bf16.msra.mxu0 0
    %3865 = vmatpush.bf16.msra.mxu0 0
    %3866 = vmatpush.bf16.msra.mxu0 0
    %3867 = vmatpush.bf16.msra.mxu0 0
    %3868 = vmatpush.bf16.msra.mxu0 %v3710
    %3869 = vmatmul.bf16.gmra.mxu0 %v3846
    %v3870 = vpop.f32.mrf.mxu0
    %v3871 = vadd.f32 0.0, %v3870
    %v3872 = vpop.f32.mrf.mxu0
    %3873 = vdwg.mxu0
    %v3875 = vunpack.c.l.b16 %v3689
    %v3876 = vpack.c.b16 %v3875, %v3875
    %v3877 = vrot.slane %v3876, 1
    %v3879 = vsel %vm147, %v3877, 0
    %3881 = vmatpush.bf16.msra.mxu0 0
    %3882 = vmatpush.bf16.msra.mxu0 0
    %3883 = vmatpush.bf16.msra.mxu0 0
    %3884 = vmatpush.bf16.msra.mxu0 0
    %3885 = vmatpush.bf16.msra.mxu0 0
    %3886 = vmatpush.bf16.msra.mxu0 0
    %3887 = vmatpush.bf16.msra.mxu0 0
    %3888 = vmatpush.bf16.msra.mxu0 %v3709
    %3889 = vmatmul.bf16.gmra.mxu0 %v3879
    %v3890 = vpop.f32.mrf.mxu0
    %v3891 = vadd.f32 0.0, %v3890
    %v3892 = vpop.f32.mrf.mxu0
    %3893 = vdwg.mxu0
    %3894 = vmatpush.bf16.msra.mxu0 0
    %3895 = vmatpush.bf16.msra.mxu0 0
    %3896 = vmatpush.bf16.msra.mxu0 0
    %3897 = vmatpush.bf16.msra.mxu0 0
    %3898 = vmatpush.bf16.msra.mxu0 0
    %3899 = vmatpush.bf16.msra.mxu0 0
    %3900 = vmatpush.bf16.msra.mxu0 0
    %3901 = vmatpush.bf16.msra.mxu0 %v3710
    %3902 = vmatmul.bf16.gmra.mxu0 %v3879
    %v3903 = vpop.f32.mrf.mxu0
    %v3904 = vadd.f32 0.0, %v3903
    %v3905 = vpop.f32.mrf.mxu0
    %3906 = vdwg.mxu0
    %v3908 = vunpack.c.l.b16 %v3690
    %v3909 = vpack.c.b16 %v3908, %v3908
    %v3910 = vrot.slane %v3909, 1
    %v3912 = vsel %vm147, %v3910, 0
    %3914 = vmatpush.bf16.msra.mxu0 0
    %3915 = vmatpush.bf16.msra.mxu0 0
    %3916 = vmatpush.bf16.msra.mxu0 0
    %3917 = vmatpush.bf16.msra.mxu0 0
    %3918 = vmatpush.bf16.msra.mxu0 0
    %3919 = vmatpush.bf16.msra.mxu0 0
    %3920 = vmatpush.bf16.msra.mxu0 0
    %3921 = vmatpush.bf16.msra.mxu0 %v3709
    %3922 = vmatmul.bf16.gmra.mxu0 %v3912
    %v3923 = vpop.f32.mrf.mxu0
    %v3924 = vadd.f32 0.0, %v3923
    %v3925 = vpop.f32.mrf.mxu0
    %3926 = vdwg.mxu0
    %3927 = vmatpush.bf16.msra.mxu0 0
    %3928 = vmatpush.bf16.msra.mxu0 0
    %3929 = vmatpush.bf16.msra.mxu0 0
    %3930 = vmatpush.bf16.msra.mxu0 0
    %3931 = vmatpush.bf16.msra.mxu0 0
    %3932 = vmatpush.bf16.msra.mxu0 0
    %3933 = vmatpush.bf16.msra.mxu0 0
    %3934 = vmatpush.bf16.msra.mxu0 %v3710
    %3935 = vmatmul.bf16.gmra.mxu0 %v3912
    %v3936 = vpop.f32.mrf.mxu0
    %v3937 = vadd.f32 0.0, %v3936
    %v3938 = vpop.f32.mrf.mxu0
    %3939 = vdwg.mxu0
    %v3941 = vunpack.c.l.b16 %v3691
    %v3942 = vpack.c.b16 %v3941, %v3941
    %v3943 = vrot.slane %v3942, 1
    %v3945 = vsel %vm147, %v3943, 0
    %3947 = vmatpush.bf16.msra.mxu0 0
    %3948 = vmatpush.bf16.msra.mxu0 0
    %3949 = vmatpush.bf16.msra.mxu0 0
    %3950 = vmatpush.bf16.msra.mxu0 0
    %3951 = vmatpush.bf16.msra.mxu0 0
    %3952 = vmatpush.bf16.msra.mxu0 0
    %3953 = vmatpush.bf16.msra.mxu0 0
    %3954 = vmatpush.bf16.msra.mxu0 %v3709
    %3955 = vmatmul.bf16.gmra.mxu0 %v3945
    %v3956 = vpop.f32.mrf.mxu0
    %v3957 = vadd.f32 0.0, %v3956
    %v3958 = vpop.f32.mrf.mxu0
    %3959 = vdwg.mxu0
    %3960 = vmatpush.bf16.msra.mxu0 0
    %3961 = vmatpush.bf16.msra.mxu0 0
    %3962 = vmatpush.bf16.msra.mxu0 0
    %3963 = vmatpush.bf16.msra.mxu0 0
    %3964 = vmatpush.bf16.msra.mxu0 0
    %3965 = vmatpush.bf16.msra.mxu0 0
    %3966 = vmatpush.bf16.msra.mxu0 0
    %3967 = vmatpush.bf16.msra.mxu0 %v3710
    %3968 = vmatmul.bf16.gmra.mxu0 %v3945
    %v3969 = vpop.f32.mrf.mxu0
    %v3970 = vadd.f32 0.0, %v3969
    %v3971 = vpop.f32.mrf.mxu0
    %3972 = vdwg.mxu0
    %v3974 = vunpack.c.l.b16 %v3692
    %v3975 = vpack.c.b16 %v3974, %v3974
    %v3976 = vrot.slane %v3975, 1
    %v3978 = vsel %vm147, %v3976, 0
    %3980 = vmatpush.bf16.msra.mxu0 0
    %3981 = vmatpush.bf16.msra.mxu0 0
    %3982 = vmatpush.bf16.msra.mxu0 0
    %3983 = vmatpush.bf16.msra.mxu0 0
    %3984 = vmatpush.bf16.msra.mxu0 0
    %3985 = vmatpush.bf16.msra.mxu0 0
    %3986 = vmatpush.bf16.msra.mxu0 0
    %3987 = vmatpush.bf16.msra.mxu0 %v3709
    %3988 = vmatmul.bf16.gmra.mxu0 %v3978
    %v3989 = vpop.f32.mrf.mxu0
    %v3990 = vadd.f32 0.0, %v3989
    %v3991 = vpop.f32.mrf.mxu0
    %3992 = vdwg.mxu0
    %3993 = vmatpush.bf16.msra.mxu0 0
    %3994 = vmatpush.bf16.msra.mxu0 0
    %3995 = vmatpush.bf16.msra.mxu0 0
    %3996 = vmatpush.bf16.msra.mxu0 0
    %3997 = vmatpush.bf16.msra.mxu0 0
    %3998 = vmatpush.bf16.msra.mxu0 0
    %3999 = vmatpush.bf16.msra.mxu0 0
    %4000 = vmatpush.bf16.msra.mxu0 %v3710
    %4001 = vmatmul.bf16.gmra.mxu0 %v3978
    %v4002 = vpop.f32.mrf.mxu0
    %v4003 = vadd.f32 0.0, %v4002
    %v4004 = vpop.f32.mrf.mxu0
    %4005 = vdwg.mxu0
    %v4007 = vunpack.c.l.b16 %v3693
    %v4008 = vpack.c.b16 %v4007, %v4007
    %v4009 = vrot.slane %v4008, 1
    %v4011 = vsel %vm147, %v4009, 0
    %4013 = vmatpush.bf16.msra.mxu0 0
    %4014 = vmatpush.bf16.msra.mxu0 0
    %4015 = vmatpush.bf16.msra.mxu0 0
    %4016 = vmatpush.bf16.msra.mxu0 0
    %4017 = vmatpush.bf16.msra.mxu0 0
    %4018 = vmatpush.bf16.msra.mxu0 0
    %4019 = vmatpush.bf16.msra.mxu0 0
    %4020 = vmatpush.bf16.msra.mxu0 %v3709
    %4021 = vmatmul.bf16.gmra.mxu0 %v4011
    %v4022 = vpop.f32.mrf.mxu0
    %v4023 = vadd.f32 0.0, %v4022
    %v4024 = vpop.f32.mrf.mxu0
    %4025 = vdwg.mxu0
    %4026 = vmatpush.bf16.msra.mxu0 0
    %4027 = vmatpush.bf16.msra.mxu0 0
    %4028 = vmatpush.bf16.msra.mxu0 0
    %4029 = vmatpush.bf16.msra.mxu0 0
    %4030 = vmatpush.bf16.msra.mxu0 0
    %4031 = vmatpush.bf16.msra.mxu0 0
    %4032 = vmatpush.bf16.msra.mxu0 0
    %4033 = vmatpush.bf16.msra.mxu0 %v3710
    %4034 = vmatmul.bf16.gmra.mxu0 %v4011
    %v4035 = vpop.f32.mrf.mxu0
    %v4036 = vadd.f32 0.0, %v4035
    %v4037 = vpop.f32.mrf.mxu0
    %4038 = vdwg.mxu0
    %v4040 = vunpack.c.l.b16 %v3694
    %v4041 = vpack.c.b16 %v4040, %v4040
    %v4042 = vrot.slane %v4041, 1
    %v4044 = vsel %vm147, %v4042, 0
    %4046 = vmatpush.bf16.msra.mxu0 0
    %4047 = vmatpush.bf16.msra.mxu0 0
    %4048 = vmatpush.bf16.msra.mxu0 0
    %4049 = vmatpush.bf16.msra.mxu0 0
    %4050 = vmatpush.bf16.msra.mxu0 0
    %4051 = vmatpush.bf16.msra.mxu0 0
    %4052 = vmatpush.bf16.msra.mxu0 0
    %4053 = vmatpush.bf16.msra.mxu0 %v3709
    %4054 = vmatmul.bf16.gmra.mxu0 %v4044
    %v4055 = vpop.f32.mrf.mxu0
    %v4056 = vadd.f32 0.0, %v4055
    %v4057 = vpop.f32.mrf.mxu0
    %4058 = vdwg.mxu0
    %4059 = vmatpush.bf16.msra.mxu0 0
    %4060 = vmatpush.bf16.msra.mxu0 0
    %4061 = vmatpush.bf16.msra.mxu0 0
    %4062 = vmatpush.bf16.msra.mxu0 0
    %4063 = vmatpush.bf16.msra.mxu0 0
    %4064 = vmatpush.bf16.msra.mxu0 0
    %4065 = vmatpush.bf16.msra.mxu0 0
    %4066 = vmatpush.bf16.msra.mxu0 %v3710
    %4067 = vmatmul.bf16.gmra.mxu0 %v4044
    %v4068 = vpop.f32.mrf.mxu0
    %v4069 = vadd.f32 0.0, %v4068
    %v4070 = vpop.f32.mrf.mxu0
    %4071 = vdwg.mxu0
    %v4073 = vunpack.c.l.b16 %v3695
    %v4074 = vpack.c.b16 %v4073, %v4073
    %v4075 = vrot.slane %v4074, 1
    %v4077 = vsel %vm147, %v4075, 0
    %4079 = vmatpush.bf16.msra.mxu0 0
    %4080 = vmatpush.bf16.msra.mxu0 0
    %4081 = vmatpush.bf16.msra.mxu0 0
    %4082 = vmatpush.bf16.msra.mxu0 0
    %4083 = vmatpush.bf16.msra.mxu0 0
    %4084 = vmatpush.bf16.msra.mxu0 0
    %4085 = vmatpush.bf16.msra.mxu0 0
    %4086 = vmatpush.bf16.msra.mxu0 %v3709
    %4087 = vmatmul.bf16.gmra.mxu0 %v4077
    %v4088 = vpop.f32.mrf.mxu0
    %v4089 = vadd.f32 0.0, %v4088
    %v4090 = vpop.f32.mrf.mxu0
    %4091 = vdwg.mxu0
    %4092 = vmatpush.bf16.msra.mxu0 0
    %4093 = vmatpush.bf16.msra.mxu0 0
    %4094 = vmatpush.bf16.msra.mxu0 0
    %4095 = vmatpush.bf16.msra.mxu0 0
    %4096 = vmatpush.bf16.msra.mxu0 0
    %4097 = vmatpush.bf16.msra.mxu0 0
    %4098 = vmatpush.bf16.msra.mxu0 0
    %4099 = vmatpush.bf16.msra.mxu0 %v3710
    %4100 = vmatmul.bf16.gmra.mxu0 %v4077
    %v4101 = vpop.f32.mrf.mxu0
    %v4102 = vadd.f32 0.0, %v4101
    %v4103 = vpop.f32.mrf.mxu0
    %4104 = vdwg.mxu0
    %v4105 = vadd.f32 %v3660, %v3726
    %v4106 = vadd.f32 %v3661, %v3739
    %v4107 = vadd.f32 %v3662, %v3759
    %v4108 = vadd.f32 %v3663, %v3772
    %v4109 = vadd.f32 %v3664, %v3792
    %v4110 = vadd.f32 %v3665, %v3805
    %v4111 = vadd.f32 %v3666, %v3825
    %v4112 = vadd.f32 %v3667, %v3838
    %v4113 = vadd.f32 %v3668, %v3858
    %v4114 = vadd.f32 %v3669, %v3871
    %v4115 = vadd.f32 %v3670, %v3891
    %v4116 = vadd.f32 %v3671, %v3904
    %v4117 = vadd.f32 %v3672, %v3924
    %v4118 = vadd.f32 %v3673, %v3937
    %v4119 = vadd.f32 %v3674, %v3957
    %v4120 = vadd.f32 %v3675, %v3970
    %v4121 = vadd.f32 %v3676, %v3990
    %v4122 = vadd.f32 %v3677, %v4003
    %v4123 = vadd.f32 %v3678, %v4023
    %v4124 = vadd.f32 %v3679, %v4036
    %v4125 = vadd.f32 %v3680, %v4056
    %v4126 = vadd.f32 %v3681, %v4069
    %v4127 = vadd.f32 %v3682, %v4089
    %v4128 = vadd.f32 %v3683, %v4102
    %vm4129 = vcmask 1045504
    %v4130 = vsel %vm4129, %v4105, 0.0
    %v4131 = vrot.slane %v4130, 4
    %v4132 = vadd.f32 %v4130, %v4131
    %v4133 = vrot.slane %v4132, 2
    %v4134 = vadd.f32 %v4132, %v4133
    %v4135 = vrot.slane %v4134, 1
    %v4136 = vadd.f32 %v4134, %v4135
    %vm4137 = vcmask 521216
    %v4138 = vsel %vm4137, %v4106, 0.0
    %v4139 = vrot.slane %v4138, 4
    %v4140 = vadd.f32 %v4138, %v4139
    %v4141 = vrot.slane %v4140, 2
    %v4142 = vadd.f32 %v4140, %v4141
    %v4143 = vrot.slane %v4142, 1
    %v4144 = vadd.f32 %v4142, %v4143
    %v4145 = vsel %vm4129, %v4107, 0.0
    %v4146 = vrot.slane %v4145, 4
    %v4147 = vadd.f32 %v4145, %v4146
    %v4148 = vrot.slane %v4147, 2
    %v4149 = vadd.f32 %v4147, %v4148
    %v4150 = vrot.slane %v4149, 1
    %v4151 = vadd.f32 %v4149, %v4150
    %v4152 = vsel %vm4137, %v4108, 0.0
    %v4153 = vrot.slane %v4152, 4
    %v4154 = vadd.f32 %v4152, %v4153
    %v4155 = vrot.slane %v4154, 2
    %v4156 = vadd.f32 %v4154, %v4155
    %v4157 = vrot.slane %v4156, 1
    %v4158 = vadd.f32 %v4156, %v4157
    %v4159 = vsel %vm4129, %v4109, 0.0
    %v4160 = vrot.slane %v4159, 4
    %v4161 = vadd.f32 %v4159, %v4160
    %v4162 = vrot.slane %v4161, 2
    %v4163 = vadd.f32 %v4161, %v4162
    %v4164 = vrot.slane %v4163, 1
    %v4165 = vadd.f32 %v4163, %v4164
    %v4166 = vsel %vm4137, %v4110, 0.0
    %v4167 = vrot.slane %v4166, 4
    %v4168 = vadd.f32 %v4166, %v4167
    %v4169 = vrot.slane %v4168, 2
    %v4170 = vadd.f32 %v4168, %v4169
    %v4171 = vrot.slane %v4170, 1
    %v4172 = vadd.f32 %v4170, %v4171
    %v4173 = vsel %vm4129, %v4111, 0.0
    %v4174 = vrot.slane %v4173, 4
    %v4175 = vadd.f32 %v4173, %v4174
    %v4176 = vrot.slane %v4175, 2
    %v4177 = vadd.f32 %v4175, %v4176
    %v4178 = vrot.slane %v4177, 1
    %v4179 = vadd.f32 %v4177, %v4178
    %v4180 = vsel %vm4137, %v4112, 0.0
    %v4181 = vrot.slane %v4180, 4
    %v4182 = vadd.f32 %v4180, %v4181
    %v4183 = vrot.slane %v4182, 2
    %v4184 = vadd.f32 %v4182, %v4183
    %v4185 = vrot.slane %v4184, 1
    %v4186 = vadd.f32 %v4184, %v4185
    %v4187 = vsel %vm4129, %v4113, 0.0
    %v4188 = vrot.slane %v4187, 4
    %v4189 = vadd.f32 %v4187, %v4188
    %v4190 = vrot.slane %v4189, 2
    %v4191 = vadd.f32 %v4189, %v4190
    %v4192 = vrot.slane %v4191, 1
    %v4193 = vadd.f32 %v4191, %v4192
    %v4194 = vsel %vm4137, %v4114, 0.0
    %v4195 = vrot.slane %v4194, 4
    %v4196 = vadd.f32 %v4194, %v4195
    %v4197 = vrot.slane %v4196, 2
    %v4198 = vadd.f32 %v4196, %v4197
    %v4199 = vrot.slane %v4198, 1
    %v4200 = vadd.f32 %v4198, %v4199
    %v4201 = vsel %vm4129, %v4115, 0.0
    %v4202 = vrot.slane %v4201, 4
    %v4203 = vadd.f32 %v4201, %v4202
    %v4204 = vrot.slane %v4203, 2
    %v4205 = vadd.f32 %v4203, %v4204
    %v4206 = vrot.slane %v4205, 1
    %v4207 = vadd.f32 %v4205, %v4206
    %v4208 = vsel %vm4137, %v4116, 0.0
    %v4209 = vrot.slane %v4208, 4
    %v4210 = vadd.f32 %v4208, %v4209
    %v4211 = vrot.slane %v4210, 2
    %v4212 = vadd.f32 %v4210, %v4211
    %v4213 = vrot.slane %v4212, 1
    %v4214 = vadd.f32 %v4212, %v4213
    %v4215 = vsel %vm4129, %v4117, 0.0
    %v4216 = vrot.slane %v4215, 4
    %v4217 = vadd.f32 %v4215, %v4216
    %v4218 = vrot.slane %v4217, 2
    %v4219 = vadd.f32 %v4217, %v4218
    %v4220 = vrot.slane %v4219, 1
    %v4221 = vadd.f32 %v4219, %v4220
    %v4222 = vsel %vm4137, %v4118, 0.0
    %v4223 = vrot.slane %v4222, 4
    %v4224 = vadd.f32 %v4222, %v4223
    %v4225 = vrot.slane %v4224, 2
    %v4226 = vadd.f32 %v4224, %v4225
    %v4227 = vrot.slane %v4226, 1
    %v4228 = vadd.f32 %v4226, %v4227
    %v4229 = vsel %vm4129, %v4119, 0.0
    %v4230 = vrot.slane %v4229, 4
    %v4231 = vadd.f32 %v4229, %v4230
    %v4232 = vrot.slane %v4231, 2
    %v4233 = vadd.f32 %v4231, %v4232
    %v4234 = vrot.slane %v4233, 1
    %v4235 = vadd.f32 %v4233, %v4234
    %v4236 = vsel %vm4137, %v4120, 0.0
    %v4237 = vrot.slane %v4236, 4
    %v4238 = vadd.f32 %v4236, %v4237
    %v4239 = vrot.slane %v4238, 2
    %v4240 = vadd.f32 %v4238, %v4239
    %v4241 = vrot.slane %v4240, 1
    %v4242 = vadd.f32 %v4240, %v4241
    %v4243 = vsel %vm4129, %v4121, 0.0
    %v4244 = vrot.slane %v4243, 4
    %v4245 = vadd.f32 %v4243, %v4244
    %v4246 = vrot.slane %v4245, 2
    %v4247 = vadd.f32 %v4245, %v4246
    %v4248 = vrot.slane %v4247, 1
    %v4249 = vadd.f32 %v4247, %v4248
    %v4250 = vsel %vm4137, %v4122, 0.0
    %v4251 = vrot.slane %v4250, 4
    %v4252 = vadd.f32 %v4250, %v4251
    %v4253 = vrot.slane %v4252, 2
    %v4254 = vadd.f32 %v4252, %v4253
    %v4255 = vrot.slane %v4254, 1
    %v4256 = vadd.f32 %v4254, %v4255
    %v4257 = vsel %vm4129, %v4123, 0.0
    %v4258 = vrot.slane %v4257, 4
    %v4259 = vadd.f32 %v4257, %v4258
    %v4260 = vrot.slane %v4259, 2
    %v4261 = vadd.f32 %v4259, %v4260
    %v4262 = vrot.slane %v4261, 1
    %v4263 = vadd.f32 %v4261, %v4262
    %v4264 = vsel %vm4137, %v4124, 0.0
    %v4265 = vrot.slane %v4264, 4
    %v4266 = vadd.f32 %v4264, %v4265
    %v4267 = vrot.slane %v4266, 2
    %v4268 = vadd.f32 %v4266, %v4267
    %v4269 = vrot.slane %v4268, 1
    %v4270 = vadd.f32 %v4268, %v4269
    %v4271 = vsel %vm4129, %v4125, 0.0
    %v4272 = vrot.slane %v4271, 4
    %v4273 = vadd.f32 %v4271, %v4272
    %v4274 = vrot.slane %v4273, 2
    %v4275 = vadd.f32 %v4273, %v4274
    %v4276 = vrot.slane %v4275, 1
    %v4277 = vadd.f32 %v4275, %v4276
    %v4278 = vsel %vm4137, %v4126, 0.0
    %v4279 = vrot.slane %v4278, 4
    %v4280 = vadd.f32 %v4278, %v4279
    %v4281 = vrot.slane %v4280, 2
    %v4282 = vadd.f32 %v4280, %v4281
    %v4283 = vrot.slane %v4282, 1
    %v4284 = vadd.f32 %v4282, %v4283
    %v4285 = vsel %vm4129, %v4127, 0.0
    %v4286 = vrot.slane %v4285, 4
    %v4287 = vadd.f32 %v4285, %v4286
    %v4288 = vrot.slane %v4287, 2
    %v4289 = vadd.f32 %v4287, %v4288
    %v4290 = vrot.slane %v4289, 1
    %v4291 = vadd.f32 %v4289, %v4290
    %v4292 = vsel %vm4137, %v4128, 0.0
    %v4293 = vrot.slane %v4292, 4
    %v4294 = vadd.f32 %v4292, %v4293
    %v4295 = vrot.slane %v4294, 2
    %v4296 = vadd.f32 %v4294, %v4295
    %v4297 = vrot.slane %v4296, 1
    %v4298 = vadd.f32 %v4296, %v4297
    %v4299 = vadd.f32 %v4136, %v4151
    %v4300 = vadd.f32 %v4299, %v4165
    %v4301 = vadd.f32 %v4300, %v4179
    %v4302 = vadd.f32 %v4301, %v4193
    %v4303 = vadd.f32 %v4302, %v4207
    %v4304 = vadd.f32 %v4303, %v4221
    %v4305 = vadd.f32 %v4304, %v4235
    %v4306 = vadd.f32 %v4305, %v4249
    %v4307 = vadd.f32 %v4306, %v4263
    %v4308 = vadd.f32 %v4307, %v4277
    %v4309 = vadd.f32 %v4308, %v4291
    %vm4310 = vcmask 523264
    %v4311 = vsel %vm4310, %v4144, 0.0
    %v4312 = vsel %vm4310, %v4158, 0.0
    %v4313 = vadd.f32 %v4311, %v4312
    %v4314 = vsel %vm4310, %v4172, 0.0
    %v4315 = vadd.f32 %v4313, %v4314
    %v4316 = vsel %vm4310, %v4186, 0.0
    %v4317 = vadd.f32 %v4315, %v4316
    %v4318 = vsel %vm4310, %v4200, 0.0
    %v4319 = vadd.f32 %v4317, %v4318
    %v4320 = vsel %vm4310, %v4214, 0.0
    %v4321 = vadd.f32 %v4319, %v4320
    %v4322 = vsel %vm4310, %v4228, 0.0
    %v4323 = vadd.f32 %v4321, %v4322
    %v4324 = vsel %vm4310, %v4242, 0.0
    %v4325 = vadd.f32 %v4323, %v4324
    %v4326 = vsel %vm4310, %v4256, 0.0
    %v4327 = vadd.f32 %v4325, %v4326
    %v4328 = vsel %vm4310, %v4270, 0.0
    %v4329 = vadd.f32 %v4327, %v4328
    %v4330 = vsel %vm4310, %v4284, 0.0
    %v4331 = vadd.f32 %v4329, %v4330
    %v4332 = vsel %vm4310, %v4298, 0.0
    %v4333 = vadd.f32 %v4331, %v4332
    %v4334 = vmul.f32 %v4105, %v4105
    %v4335 = vmul.f32 %v4106, %v4106
    %v4336 = vmul.f32 %v4107, %v4107
    %v4337 = vmul.f32 %v4108, %v4108
    %v4338 = vmul.f32 %v4109, %v4109
    %v4339 = vmul.f32 %v4110, %v4110
    %v4340 = vmul.f32 %v4111, %v4111
    %v4341 = vmul.f32 %v4112, %v4112
    %v4342 = vmul.f32 %v4113, %v4113
    %v4343 = vmul.f32 %v4114, %v4114
    %v4344 = vmul.f32 %v4115, %v4115
    %v4345 = vmul.f32 %v4116, %v4116
    %v4346 = vmul.f32 %v4117, %v4117
    %v4347 = vmul.f32 %v4118, %v4118
    %v4348 = vmul.f32 %v4119, %v4119
    %v4349 = vmul.f32 %v4120, %v4120
    %v4350 = vmul.f32 %v4121, %v4121
    %v4351 = vmul.f32 %v4122, %v4122
    %v4352 = vmul.f32 %v4123, %v4123
    %v4353 = vmul.f32 %v4124, %v4124
    %v4354 = vmul.f32 %v4125, %v4125
    %v4355 = vmul.f32 %v4126, %v4126
    %v4356 = vmul.f32 %v4127, %v4127
    %v4357 = vmul.f32 %v4128, %v4128
    %v4358 = vsel %vm4129, %v4334, 0.0
    %v4359 = vrot.slane %v4358, 4
    %v4360 = vadd.f32 %v4358, %v4359
    %v4361 = vrot.slane %v4360, 2
    %v4362 = vadd.f32 %v4360, %v4361
    %v4363 = vrot.slane %v4362, 1
    %v4364 = vadd.f32 %v4362, %v4363
    %v4365 = vsel %vm4137, %v4335, 0.0
    %v4366 = vrot.slane %v4365, 4
    %v4367 = vadd.f32 %v4365, %v4366
    %v4368 = vrot.slane %v4367, 2
    %v4369 = vadd.f32 %v4367, %v4368
    %v4370 = vrot.slane %v4369, 1
    %v4371 = vadd.f32 %v4369, %v4370
    %v4372 = vsel %vm4129, %v4336, 0.0
    %v4373 = vrot.slane %v4372, 4
    %v4374 = vadd.f32 %v4372, %v4373
    %v4375 = vrot.slane %v4374, 2
    %v4376 = vadd.f32 %v4374, %v4375
    %v4377 = vrot.slane %v4376, 1
    %v4378 = vadd.f32 %v4376, %v4377
    %v4379 = vsel %vm4137, %v4337, 0.0
    %v4380 = vrot.slane %v4379, 4
    %v4381 = vadd.f32 %v4379, %v4380
    %v4382 = vrot.slane %v4381, 2
    %v4383 = vadd.f32 %v4381, %v4382
    %v4384 = vrot.slane %v4383, 1
    %v4385 = vadd.f32 %v4383, %v4384
    %v4386 = vsel %vm4129, %v4338, 0.0
    %v4387 = vrot.slane %v4386, 4
    %v4388 = vadd.f32 %v4386, %v4387
    %v4389 = vrot.slane %v4388, 2
    %v4390 = vadd.f32 %v4388, %v4389
    %v4391 = vrot.slane %v4390, 1
    %v4392 = vadd.f32 %v4390, %v4391
    %v4393 = vsel %vm4137, %v4339, 0.0
    %v4394 = vrot.slane %v4393, 4
    %v4395 = vadd.f32 %v4393, %v4394
    %v4396 = vrot.slane %v4395, 2
    %v4397 = vadd.f32 %v4395, %v4396
    %v4398 = vrot.slane %v4397, 1
    %v4399 = vadd.f32 %v4397, %v4398
    %v4400 = vsel %vm4129, %v4340, 0.0
    %v4401 = vrot.slane %v4400, 4
    %v4402 = vadd.f32 %v4400, %v4401
    %v4403 = vrot.slane %v4402, 2
    %v4404 = vadd.f32 %v4402, %v4403
    %v4405 = vrot.slane %v4404, 1
    %v4406 = vadd.f32 %v4404, %v4405
    %v4407 = vsel %vm4137, %v4341, 0.0
    %v4408 = vrot.slane %v4407, 4
    %v4409 = vadd.f32 %v4407, %v4408
    %v4410 = vrot.slane %v4409, 2
    %v4411 = vadd.f32 %v4409, %v4410
    %v4412 = vrot.slane %v4411, 1
    %v4413 = vadd.f32 %v4411, %v4412
    %v4414 = vsel %vm4129, %v4342, 0.0
    %v4415 = vrot.slane %v4414, 4
    %v4416 = vadd.f32 %v4414, %v4415
    %v4417 = vrot.slane %v4416, 2
    %v4418 = vadd.f32 %v4416, %v4417
    %v4419 = vrot.slane %v4418, 1
    %v4420 = vadd.f32 %v4418, %v4419
    %v4421 = vsel %vm4137, %v4343, 0.0
    %v4422 = vrot.slane %v4421, 4
    %v4423 = vadd.f32 %v4421, %v4422
    %v4424 = vrot.slane %v4423, 2
    %v4425 = vadd.f32 %v4423, %v4424
    %v4426 = vrot.slane %v4425, 1
    %v4427 = vadd.f32 %v4425, %v4426
    %v4428 = vsel %vm4129, %v4344, 0.0
    %v4429 = vrot.slane %v4428, 4
    %v4430 = vadd.f32 %v4428, %v4429
    %v4431 = vrot.slane %v4430, 2
    %v4432 = vadd.f32 %v4430, %v4431
    %v4433 = vrot.slane %v4432, 1
    %v4434 = vadd.f32 %v4432, %v4433
    %v4435 = vsel %vm4137, %v4345, 0.0
    %v4436 = vrot.slane %v4435, 4
    %v4437 = vadd.f32 %v4435, %v4436
    %v4438 = vrot.slane %v4437, 2
    %v4439 = vadd.f32 %v4437, %v4438
    %v4440 = vrot.slane %v4439, 1
    %v4441 = vadd.f32 %v4439, %v4440
    %v4442 = vsel %vm4129, %v4346, 0.0
    %v4443 = vrot.slane %v4442, 4
    %v4444 = vadd.f32 %v4442, %v4443
    %v4445 = vrot.slane %v4444, 2
    %v4446 = vadd.f32 %v4444, %v4445
    %v4447 = vrot.slane %v4446, 1
    %v4448 = vadd.f32 %v4446, %v4447
    %v4449 = vsel %vm4137, %v4347, 0.0
    %v4450 = vrot.slane %v4449, 4
    %v4451 = vadd.f32 %v4449, %v4450
    %v4452 = vrot.slane %v4451, 2
    %v4453 = vadd.f32 %v4451, %v4452
    %v4454 = vrot.slane %v4453, 1
    %v4455 = vadd.f32 %v4453, %v4454
    %v4456 = vsel %vm4129, %v4348, 0.0
    %v4457 = vrot.slane %v4456, 4
    %v4458 = vadd.f32 %v4456, %v4457
    %v4459 = vrot.slane %v4458, 2
    %v4460 = vadd.f32 %v4458, %v4459
    %v4461 = vrot.slane %v4460, 1
    %v4462 = vadd.f32 %v4460, %v4461
    %v4463 = vsel %vm4137, %v4349, 0.0
    %v4464 = vrot.slane %v4463, 4
    %v4465 = vadd.f32 %v4463, %v4464
    %v4466 = vrot.slane %v4465, 2
    %v4467 = vadd.f32 %v4465, %v4466
    %v4468 = vrot.slane %v4467, 1
    %v4469 = vadd.f32 %v4467, %v4468
    %v4470 = vsel %vm4129, %v4350, 0.0
    %v4471 = vrot.slane %v4470, 4
    %v4472 = vadd.f32 %v4470, %v4471
    %v4473 = vrot.slane %v4472, 2
    %v4474 = vadd.f32 %v4472, %v4473
    %v4475 = vrot.slane %v4474, 1
    %v4476 = vadd.f32 %v4474, %v4475
    %v4477 = vsel %vm4137, %v4351, 0.0
    %v4478 = vrot.slane %v4477, 4
    %v4479 = vadd.f32 %v4477, %v4478
    %v4480 = vrot.slane %v4479, 2
    %v4481 = vadd.f32 %v4479, %v4480
    %v4482 = vrot.slane %v4481, 1
    %v4483 = vadd.f32 %v4481, %v4482
    %v4484 = vsel %vm4129, %v4352, 0.0
    %v4485 = vrot.slane %v4484, 4
    %v4486 = vadd.f32 %v4484, %v4485
    %v4487 = vrot.slane %v4486, 2
    %v4488 = vadd.f32 %v4486, %v4487
    %v4489 = vrot.slane %v4488, 1
    %v4490 = vadd.f32 %v4488, %v4489
    %v4491 = vsel %vm4137, %v4353, 0.0
    %v4492 = vrot.slane %v4491, 4
    %v4493 = vadd.f32 %v4491, %v4492
    %v4494 = vrot.slane %v4493, 2
    %v4495 = vadd.f32 %v4493, %v4494
    %v4496 = vrot.slane %v4495, 1
    %v4497 = vadd.f32 %v4495, %v4496
    %v4498 = vsel %vm4129, %v4354, 0.0
    %v4499 = vrot.slane %v4498, 4
    %v4500 = vadd.f32 %v4498, %v4499
    %v4501 = vrot.slane %v4500, 2
    %v4502 = vadd.f32 %v4500, %v4501
    %v4503 = vrot.slane %v4502, 1
    %v4504 = vadd.f32 %v4502, %v4503
    %v4505 = vsel %vm4137, %v4355, 0.0
    %v4506 = vrot.slane %v4505, 4
    %v4507 = vadd.f32 %v4505, %v4506
    %v4508 = vrot.slane %v4507, 2
    %v4509 = vadd.f32 %v4507, %v4508
    %v4510 = vrot.slane %v4509, 1
    %v4511 = vadd.f32 %v4509, %v4510
    %v4512 = vsel %vm4129, %v4356, 0.0
    %v4513 = vrot.slane %v4512, 4
    %v4514 = vadd.f32 %v4512, %v4513
    %v4515 = vrot.slane %v4514, 2
    %v4516 = vadd.f32 %v4514, %v4515
    %v4517 = vrot.slane %v4516, 1
    %v4518 = vadd.f32 %v4516, %v4517
    %v4519 = vsel %vm4137, %v4357, 0.0
    %v4520 = vrot.slane %v4519, 4
    %v4521 = vadd.f32 %v4519, %v4520
    %v4522 = vrot.slane %v4521, 2
    %v4523 = vadd.f32 %v4521, %v4522
    %v4524 = vrot.slane %v4523, 1
    %v4525 = vadd.f32 %v4523, %v4524
    %v4526 = vadd.f32 %v4364, %v4378
    %v4527 = vadd.f32 %v4526, %v4392
    %v4528 = vadd.f32 %v4527, %v4406
    %v4529 = vadd.f32 %v4528, %v4420
    %v4530 = vadd.f32 %v4529, %v4434
    %v4531 = vadd.f32 %v4530, %v4448
    %v4532 = vadd.f32 %v4531, %v4462
    %v4533 = vadd.f32 %v4532, %v4476
    %v4534 = vadd.f32 %v4533, %v4490
    %v4535 = vadd.f32 %v4534, %v4504
    %v4536 = vadd.f32 %v4535, %v4518
    %v4537 = vsel %vm4310, %v4371, 0.0
    %v4538 = vsel %vm4310, %v4385, 0.0
    %v4539 = vadd.f32 %v4537, %v4538
    %v4540 = vsel %vm4310, %v4399, 0.0
    %v4541 = vadd.f32 %v4539, %v4540
    %v4542 = vsel %vm4310, %v4413, 0.0
    %v4543 = vadd.f32 %v4541, %v4542
    %v4544 = vsel %vm4310, %v4427, 0.0
    %v4545 = vadd.f32 %v4543, %v4544
    %v4546 = vsel %vm4310, %v4441, 0.0
    %v4547 = vadd.f32 %v4545, %v4546
    %v4548 = vsel %vm4310, %v4455, 0.0
    %v4549 = vadd.f32 %v4547, %v4548
    %v4550 = vsel %vm4310, %v4469, 0.0
    %v4551 = vadd.f32 %v4549, %v4550
    %v4552 = vsel %vm4310, %v4483, 0.0
    %v4553 = vadd.f32 %v4551, %v4552
    %v4554 = vsel %vm4310, %v4497, 0.0
    %v4555 = vadd.f32 %v4553, %v4554
    %v4556 = vsel %vm4310, %v4511, 0.0
    %v4557 = vadd.f32 %v4555, %v4556
    %v4558 = vsel %vm4310, %v4525, 0.0
    %v4559 = vadd.f32 %v4557, %v4558
    %v4560 = vld [vmem:[%s3] sm:$0xff]
    %v4561 = vld [vmem:[%s3 + $0x8] sm:$0xff]
    %v4562 = vld [vmem:[%s3 + $0x10] sm:$0xff]
    %v4563 = vld [vmem:[%s3 + $0x18] sm:$0xff]
    %v4564 = vld [vmem:[%s3 + $0x20] sm:$0xff]
    %v4565 = vld [vmem:[%s3 + $0x28] sm:$0xff]
    %v4566 = vld [vmem:[%s3 + $0x30] sm:$0xff]
    %v4567 = vld [vmem:[%s3 + $0x38] sm:$0xff]
    %v4568 = vld [vmem:[%s3 + $0x40] sm:$0xff]
    %v4569 = vld [vmem:[%s3 + $0x48] sm:$0xff]
    %v4570 = vld [vmem:[%s3 + $0x50] sm:$0xff]
    %v4571 = vld [vmem:[%s3 + $0x58] sm:$0xff]
    %v4572 = vld [vmem:[%s3 + $0x60] sm:$0xff]
    %v4573 = vld [vmem:[%s3 + $0x68] sm:$0xff]
    %v4574 = vld [vmem:[%s3 + $0x70] sm:$0xff]
    %v4575 = vld [vmem:[%s3 + $0x78] sm:$0xff]
    %v4576 = vld [vmem:[%s3 + $0x80] sm:$0xff]
    %v4577 = vld [vmem:[%s3 + $0x88] sm:$0xff]
    %v4578 = vld [vmem:[%s3 + $0x90] sm:$0xff]
    %v4579 = vld [vmem:[%s3 + $0x98] sm:$0xff]
    %v4580 = vld [vmem:[%s3 + $0xa0] sm:$0xff]
    %v4581 = vld [vmem:[%s3 + $0xa8] sm:$0xff]
    %v4582 = vld [vmem:[%s3 + $0xb0] sm:$0xff]
    %v4583 = vld [vmem:[%s3 + $0xb8] sm:$0xff]
    %v4585 = vsel %vm4310, %v4333, 0
    %4587 = vmatpush.msra.mxu0 %v4575
    %4588 = vmatpush.msra.mxu0 %v4574
    %4589 = vmatpush.msra.mxu0 %v4573
    %4590 = vmatpush.msra.mxu0 %v4572
    %4591 = vmatpush.msra.mxu0 %v4571
    %4592 = vmatpush.msra.mxu0 %v4570
    %4593 = vmatpush.msra.mxu0 %v4569
    %4594 = vmatpush.msra.mxu0 %v4568
    %4595 = vmatpush.msra.mxu0 %v4567
    %4596 = vmatpush.msra.mxu0 %v4566
    %4597 = vmatpush.msra.mxu0 %v4565
    %4598 = vmatpush.msra.mxu0 %v4564
    %4599 = vmatpush.msra.mxu0 %v4563
    %4600 = vmatpush.msra.mxu0 %v4562
    %4601 = vmatpush.msra.mxu0 %v4561
    %4602 = vmatpush.msra.mxu0 %v4560
    %4603 = vmatmul.f32.gmra.mxu0 %v4309
    %v4604 = vpop.f32.mrf.mxu0
    %v4605 = vadd.f32 0.0, %v4604
    %4606 = vdwg.mxu0
    %4607 = vmatpush.msra.mxu0 0.0
    %4608 = vmatpush.msra.mxu0 0.0
    %4609 = vmatpush.msra.mxu0 0.0
    %4610 = vmatpush.msra.mxu0 0.0
    %4611 = vmatpush.msra.mxu0 0.0
    %4612 = vmatpush.msra.mxu0 0.0
    %4613 = vmatpush.msra.mxu0 0.0
    %4614 = vmatpush.msra.mxu0 0.0
    %4615 = vmatpush.msra.mxu0 %v4583
    %4616 = vmatpush.msra.mxu0 %v4582
    %4617 = vmatpush.msra.mxu0 %v4581
    %4618 = vmatpush.msra.mxu0 %v4580
    %4619 = vmatpush.msra.mxu0 %v4579
    %4620 = vmatpush.msra.mxu0 %v4578
    %4621 = vmatpush.msra.mxu0 %v4577
    %4622 = vmatpush.msra.mxu0 %v4576
    %4623 = vmatmul.f32.gmra.mxu0 %v4585
    %v4624 = vpop.f32.mrf.mxu0
    %v4625 = vadd.f32 %v4605, %v4624
    %4626 = vdwg.mxu0
    %v4627 = vmul.f32 %v4625, 0.0023148148
    %v4629 = vsel %vm4310, %v4559, 0
    %4631 = vmatpush.msra.mxu0 %v4575
    %4632 = vmatpush.msra.mxu0 %v4574
    %4633 = vmatpush.msra.mxu0 %v4573
    %4634 = vmatpush.msra.mxu0 %v4572
    %4635 = vmatpush.msra.mxu0 %v4571
    %4636 = vmatpush.msra.mxu0 %v4570
    %4637 = vmatpush.msra.mxu0 %v4569
    %4638 = vmatpush.msra.mxu0 %v4568
    %4639 = vmatpush.msra.mxu0 %v4567
    %4640 = vmatpush.msra.mxu0 %v4566
    %4641 = vmatpush.msra.mxu0 %v4565
    %4642 = vmatpush.msra.mxu0 %v4564
    %4643 = vmatpush.msra.mxu0 %v4563
    %4644 = vmatpush.msra.mxu0 %v4562
    %4645 = vmatpush.msra.mxu0 %v4561
    %4646 = vmatpush.msra.mxu0 %v4560
    %4647 = vmatmul.f32.gmra.mxu0 %v4536
    %v4648 = vpop.f32.mrf.mxu0
    %v4649 = vadd.f32 0.0, %v4648
    %4650 = vdwg.mxu0
    %4651 = vmatpush.msra.mxu0 0.0
    %4652 = vmatpush.msra.mxu0 0.0
    %4653 = vmatpush.msra.mxu0 0.0
    %4654 = vmatpush.msra.mxu0 0.0
    %4655 = vmatpush.msra.mxu0 0.0
    %4656 = vmatpush.msra.mxu0 0.0
    %4657 = vmatpush.msra.mxu0 0.0
    %4658 = vmatpush.msra.mxu0 0.0
    %4659 = vmatpush.msra.mxu0 %v4583
    %4660 = vmatpush.msra.mxu0 %v4582
    %4661 = vmatpush.msra.mxu0 %v4581
    %4662 = vmatpush.msra.mxu0 %v4580
    %4663 = vmatpush.msra.mxu0 %v4579
    %4664 = vmatpush.msra.mxu0 %v4578
    %4665 = vmatpush.msra.mxu0 %v4577
    %4666 = vmatpush.msra.mxu0 %v4576
    %4667 = vmatmul.f32.gmra.mxu0 %v4629
    %v4668 = vpop.f32.mrf.mxu0
    %v4669 = vadd.f32 %v4649, %v4668
    %4670 = vdwg.mxu0
    %v4671 = vmul.f32 %v4669, 0.0023148148
    %v4672 = vmul.f32 %v4627, %v4627
    %v4673 = vsub.f32 %v4671, %v4672
    %v4674 = vmax.f32 %v4673, 0.0
    %v4675 = vld [vmem:[#allocation8] sm:$0x1]
    %v4676 = vadd.f32 %v4674, 1e-05
    %v4677 = vrsqrt.pop %v4676
    %v4678 = vmul.f32 %v4677, %v4676
    %v4679 = vmul.f32 %v4678, %v4677
    %v4680 = vmul.f32 0.5, %v4679
    %v4681 = vsub.f32 1.5, %v4680
    %v4682 = vmul.f32 %v4677, %v4681
    %vm4683 = vweird.f32 %v4676
    %vm4684 = vweird.f32 %v4677
    %vm4685 = vmor %vm4683, %vm4684
    %v4686 = vsel %vm4685, %v4677, %v4682
    %v4687 = vmul.f32 %v4675, %v4686
    %v4688 = vld [vmem:[%s8] sm:$0x1]
    %v4689 = vmul.f32 %v4627, %v4687
    %v4690 = vsub.f32 %v4688, %v4689
    %v4691 = vld [vmem:[#allocation5] sm:$0xff]
    %v4692 = vld [vmem:[#allocation5 + $0x8] sm:$0xff]
    %v4693 = vld [vmem:[#allocation5 + $0x10] sm:$0xff]
    %v4694 = vld [vmem:[#allocation5 + $0x18] sm:$0xff]
    %v4695 = vld [vmem:[#allocation5 + $0x20] sm:$0xff]
    %v4696 = vld [vmem:[#allocation5 + $0x28] sm:$0xff]
    %v4697 = vld [vmem:[#allocation5 + $0x30] sm:$0xff]
    %v4698 = vld [vmem:[#allocation5 + $0x38] sm:$0xff]
    %vm4699 = vcmask 261120
    %v4701 = vsel %vm4699, %v4687, 0
    %4703 = vmatpush.msra.mxu0 0.0
    %4704 = vmatpush.msra.mxu0 0.0
    %4705 = vmatpush.msra.mxu0 0.0
    %4706 = vmatpush.msra.mxu0 0.0
    %4707 = vmatpush.msra.mxu0 0.0
    %4708 = vmatpush.msra.mxu0 0.0
    %4709 = vmatpush.msra.mxu0 0.0
    %4710 = vmatpush.msra.mxu0 0.0
    %4711 = vmatpush.msra.mxu0 0.0
    %4712 = vmatpush.msra.mxu0 0.0
    %4713 = vmatpush.msra.mxu0 0.0
    %4714 = vmatpush.msra.mxu0 0.0
    %4715 = vmatpush.msra.mxu0 %v4697
    %4716 = vmatpush.msra.mxu0 %v4695
    %4717 = vmatpush.msra.mxu0 %v4693
    %4718 = vmatpush.msra.mxu0 %v4691
    %4719 = vmatmul.f32.gmra.mxu0 %v4701
    %v4720 = vpop.f32.mrf.mxu0
    %v4721 = vadd.f32 0.0, %v4720
    %4722 = vdwg.mxu0
    %4723 = vmatpush.msra.mxu0 0.0
    %4724 = vmatpush.msra.mxu0 0.0
    %4725 = vmatpush.msra.mxu0 0.0
    %4726 = vmatpush.msra.mxu0 0.0
    %4727 = vmatpush.msra.mxu0 0.0
    %4728 = vmatpush.msra.mxu0 0.0
    %4729 = vmatpush.msra.mxu0 0.0
    %4730 = vmatpush.msra.mxu0 0.0
    %4731 = vmatpush.msra.mxu0 0.0
    %4732 = vmatpush.msra.mxu0 0.0
    %4733 = vmatpush.msra.mxu0 0.0
    %4734 = vmatpush.msra.mxu0 0.0
    %4735 = vmatpush.msra.mxu0 %v4698
    %4736 = vmatpush.msra.mxu0 %v4696
    %4737 = vmatpush.msra.mxu0 %v4694
    %4738 = vmatpush.msra.mxu0 %v4692
    %4739 = vmatmul.f32.gmra.mxu0 %v4701
    %v4740 = vpop.f32.mrf.mxu0
    %v4741 = vadd.f32 0.0, %v4740
    %4742 = vdwg.mxu0
    %v4744 = vsel %vm4699, %v4690, 0
    %4746 = vmatpush.msra.mxu0 0.0
    %4747 = vmatpush.msra.mxu0 0.0
    %4748 = vmatpush.msra.mxu0 0.0
    %4749 = vmatpush.msra.mxu0 0.0
    %4750 = vmatpush.msra.mxu0 0.0
    %4751 = vmatpush.msra.mxu0 0.0
    %4752 = vmatpush.msra.mxu0 0.0
    %4753 = vmatpush.msra.mxu0 0.0
    %4754 = vmatpush.msra.mxu0 0.0
    %4755 = vmatpush.msra.mxu0 0.0
    %4756 = vmatpush.msra.mxu0 0.0
    %4757 = vmatpush.msra.mxu0 0.0
    %4758 = vmatpush.msra.mxu0 %v4697
    %4759 = vmatpush.msra.mxu0 %v4695
    %4760 = vmatpush.msra.mxu0 %v4693
    %4761 = vmatpush.msra.mxu0 %v4691
    %4762 = vmatmul.f32.gmra.mxu0 %v4744
    %v4763 = vpop.f32.mrf.mxu0
    %v4764 = vadd.f32 0.0, %v4763
    %4765 = vdwg.mxu0
    %4766 = vmatpush.msra.mxu0 0.0
    %4767 = vmatpush.msra.mxu0 0.0
    %4768 = vmatpush.msra.mxu0 0.0
    %4769 = vmatpush.msra.mxu0 0.0
    %4770 = vmatpush.msra.mxu0 0.0
    %4771 = vmatpush.msra.mxu0 0.0
    %4772 = vmatpush.msra.mxu0 0.0
    %4773 = vmatpush.msra.mxu0 0.0
    %4774 = vmatpush.msra.mxu0 0.0
    %4775 = vmatpush.msra.mxu0 0.0
    %4776 = vmatpush.msra.mxu0 0.0
    %4777 = vmatpush.msra.mxu0 0.0
    %4778 = vmatpush.msra.mxu0 %v4698
    %4779 = vmatpush.msra.mxu0 %v4696
    %4780 = vmatpush.msra.mxu0 %v4694
    %4781 = vmatpush.msra.mxu0 %v4692
    %4782 = vmatmul.f32.gmra.mxu0 %v4744
    %v4783 = vpop.f32.mrf.mxu0
    %v4784 = vadd.f32 0.0, %v4783
    %4785 = vdwg.mxu0
    %v4786 = vperm.slane %v4721, 0
    %v4787 = vperm.slane %v4741, 0
    %v4788 = vmul.f32 %v4105, %v4786
    %v4789 = vmul.f32 %v4106, %v4787
    %v4790 = vmul.f32 %v4107, %v4786
    %v4791 = vmul.f32 %v4108, %v4787
    %v4792 = vmul.f32 %v4109, %v4786
    %v4793 = vmul.f32 %v4110, %v4787
    %v4794 = vmul.f32 %v4111, %v4786
    %v4795 = vmul.f32 %v4112, %v4787
    %v4796 = vmul.f32 %v4113, %v4786
    %v4797 = vmul.f32 %v4114, %v4787
    %v4798 = vmul.f32 %v4115, %v4786
    %v4799 = vmul.f32 %v4116, %v4787
    %v4800 = vmul.f32 %v4117, %v4786
    %v4801 = vmul.f32 %v4118, %v4787
    %v4802 = vmul.f32 %v4119, %v4786
    %v4803 = vmul.f32 %v4120, %v4787
    %v4804 = vmul.f32 %v4121, %v4786
    %v4805 = vmul.f32 %v4122, %v4787
    %v4806 = vmul.f32 %v4123, %v4786
    %v4807 = vmul.f32 %v4124, %v4787
    %v4808 = vmul.f32 %v4125, %v4786
    %v4809 = vmul.f32 %v4126, %v4787
    %v4810 = vmul.f32 %v4127, %v4786
    %v4811 = vmul.f32 %v4128, %v4787
    %v4812 = vperm.slane %v4764, 0
    %v4813 = vperm.slane %v4784, 0
    %v4814 = vadd.f32 %v4788, %v4812
    %v4815 = vadd.f32 %v4789, %v4813
    %v4816 = vadd.f32 %v4790, %v4812
    %v4817 = vadd.f32 %v4791, %v4813
    %v4818 = vadd.f32 %v4792, %v4812
    %v4819 = vadd.f32 %v4793, %v4813
    %v4820 = vadd.f32 %v4794, %v4812
    %v4821 = vadd.f32 %v4795, %v4813
    %v4822 = vadd.f32 %v4796, %v4812
    %v4823 = vadd.f32 %v4797, %v4813
    %v4824 = vadd.f32 %v4798, %v4812
    %v4825 = vadd.f32 %v4799, %v4813
    %v4826 = vadd.f32 %v4800, %v4812
    %v4827 = vadd.f32 %v4801, %v4813
    %v4828 = vadd.f32 %v4802, %v4812
    %v4829 = vadd.f32 %v4803, %v4813
    %v4830 = vadd.f32 %v4804, %v4812
    %v4831 = vadd.f32 %v4805, %v4813
    %v4832 = vadd.f32 %v4806, %v4812
    %v4833 = vadd.f32 %v4807, %v4813
    %v4834 = vadd.f32 %v4808, %v4812
    %v4835 = vadd.f32 %v4809, %v4813
    %v4836 = vadd.f32 %v4810, %v4812
    %v4837 = vadd.f32 %v4811, %v4813
    %v4838 = vmax.f32 %v4814, 0.0
    %v4839 = vmax.f32 %v4815, 0.0
    %v4840 = vmax.f32 %v4816, 0.0
    %v4841 = vmax.f32 %v4817, 0.0
    %v4842 = vmax.f32 %v4818, 0.0
    %v4843 = vmax.f32 %v4819, 0.0
    %v4844 = vmax.f32 %v4820, 0.0
    %v4845 = vmax.f32 %v4821, 0.0
    %v4846 = vmax.f32 %v4822, 0.0
    %v4847 = vmax.f32 %v4823, 0.0
    %v4848 = vmax.f32 %v4824, 0.0
    %v4849 = vmax.f32 %v4825, 0.0
    %v4850 = vmax.f32 %v4826, 0.0
    %v4851 = vmax.f32 %v4827, 0.0
    %v4852 = vmax.f32 %v4828, 0.0
    %v4853 = vmax.f32 %v4829, 0.0
    %v4854 = vmax.f32 %v4830, 0.0
    %v4855 = vmax.f32 %v4831, 0.0
    %v4856 = vmax.f32 %v4832, 0.0
    %v4857 = vmax.f32 %v4833, 0.0
    %v4858 = vmax.f32 %v4834, 0.0
    %v4859 = vmax.f32 %v4835, 0.0
    %v4860 = vmax.f32 %v4836, 0.0
    %v4861 = vmax.f32 %v4837, 0.0
    %v4862 = vpack.c.bf16 %v4839, %v4838
    %v4863 = vpack.c.bf16 %v4841, %v4840
    %v4864 = vpack.c.bf16 %v4843, %v4842
    %v4865 = vpack.c.bf16 %v4845, %v4844
    %v4866 = vpack.c.bf16 %v4847, %v4846
    %v4867 = vpack.c.bf16 %v4849, %v4848
    %v4868 = vpack.c.bf16 %v4851, %v4850
    %v4869 = vpack.c.bf16 %v4853, %v4852
    %v4870 = vpack.c.bf16 %v4855, %v4854
    %v4871 = vpack.c.bf16 %v4857, %v4856
    %v4872 = vpack.c.bf16 %v4859, %v4858
    %v4873 = vpack.c.bf16 %v4861, %v4860
    %vm4874 = vcmask 1042432
    %vm4875 = vcmask 522244
    %vm4876 = vmor %vm4875, %vm4874
    %4877 = vst.msk [vmem:[#allocation2] sm:$0x77] %vm4876, %v4862
    %4878 = vst.msk [vmem:[#allocation2 + $0x8] sm:$0x77] %vm4876, %v4863
    %4879 = vst.msk [vmem:[#allocation2 + $0x10] sm:$0x77] %vm4876, %v4864
    %4880 = vst.msk [vmem:[#allocation2 + $0x18] sm:$0x77] %vm4876, %v4865
    %4881 = vst.msk [vmem:[#allocation2 + $0x20] sm:$0x77] %vm4876, %v4866
    %4882 = vst.msk [vmem:[#allocation2 + $0x28] sm:$0x77] %vm4876, %v4867
    %4883 = vst.msk [vmem:[#allocation2 + $0x30] sm:$0x77] %vm4876, %v4868
    %4884 = vst.msk [vmem:[#allocation2 + $0x38] sm:$0x77] %vm4876, %v4869
    %4885 = vst.msk [vmem:[#allocation2 + $0x40] sm:$0x77] %vm4876, %v4870
    %4886 = vst.msk [vmem:[#allocation2 + $0x48] sm:$0x77] %vm4876, %v4871
    %4887 = vst.msk [vmem:[#allocation2 + $0x50] sm:$0x77] %vm4876, %v4872
    %4888 = vst.msk [vmem:[#allocation2 + $0x58] sm:$0x77] %vm4876, %v4873
    %v4889 = vld [vmem:[#allocation2] sm:$0x33]
    %v4890 = vld [vmem:[#allocation2 + $0x8] sm:$0x33]
    %v4891 = vld [vmem:[#allocation2 + $0x10] sm:$0x33]
    %v4892 = vld [vmem:[#allocation2 + $0x18] sm:$0x33]
    %v4893 = vld [vmem:[#allocation2 + $0x30] sm:$0x33]
    %v4894 = vld [vmem:[#allocation2 + $0x38] sm:$0x33]
    %v4895 = vld [vmem:[#allocation2 + $0x40] sm:$0x33]
    %v4896 = vld [vmem:[#allocation2 + $0x48] sm:$0x33]
    %v4897 = vld [vmem:[%s2] sm:$0xf]
    %v4898 = vld [vmem:[%s2 + $0x4] sm:$0xf]
    %v4899 = vld [vmem:[%s2 + $0x8] sm:$0xf]
    %v4900 = vld [vmem:[%s2 + $0xc] sm:$0xf]
    %v4901 = vld [vmem:[%s2 + $0x10] sm:$0xf]
    %v4902 = vld [vmem:[%s2 + $0x14] sm:$0xf]
    %v4903 = vld [vmem:[%s2 + $0x18] sm:$0xf]
    %v4904 = vld [vmem:[%s2 + $0x1c] sm:$0xf]
    %v4905 = vld [vmem:[%s2 + $0x20] sm:$0xf]
    %v4906 = vld [vmem:[%s2 + $0x24] sm:$0xf]
    %v4907 = vld [vmem:[%s2 + $0x28] sm:$0xf]
    %v4908 = vld [vmem:[%s2 + $0x2c] sm:$0xf]
    %v4909 = vld [vmem:[%s2 + $0x30] sm:$0xf]
    %v4910 = vld [vmem:[%s2 + $0x34] sm:$0xf]
    %v4911 = vld [vmem:[%s2 + $0x38] sm:$0xf]
    %v4912 = vld [vmem:[%s2 + $0x3c] sm:$0xf]
    %v4913 = vld [vmem:[%s2 + $0x40] sm:$0xf]
    %v4914 = vld [vmem:[%s2 + $0x44] sm:$0xf]
    %v4915 = vld [vmem:[%s2 + $0x48] sm:$0xf]
    %v4916 = vld [vmem:[%s2 + $0x4c] sm:$0xf]
    %v4917 = vld [vmem:[%s2 + $0x50] sm:$0xf]
    %v4918 = vld [vmem:[%s2 + $0x54] sm:$0xf]
    %v4919 = vld [vmem:[%s2 + $0x58] sm:$0xf]
    %v4920 = vld [vmem:[%s2 + $0x5c] sm:$0xf]
    %v4921 = vld [vmem:[#allocation2] sm:$0x77]
    %v4922 = vld [vmem:[#allocation2 + $0x8] sm:$0x77]
    %v4923 = vld [vmem:[#allocation2 + $0x10] sm:$0x77]
    %v4924 = vld [vmem:[#allocation2 + $0x18] sm:$0x77]
    %v4925 = vld [vmem:[#allocation2 + $0x30] sm:$0x77]
    %v4926 = vld [vmem:[#allocation2 + $0x38] sm:$0x77]
    %v4927 = vld [vmem:[#allocation2 + $0x40] sm:$0x77]
    %v4928 = vld [vmem:[#allocation2 + $0x48] sm:$0x77]
    %s4929 = scalar_lea.vmem %s2, 96
    %v4930 = vld [vmem:[%s4929] sm:$0xf]
    %v4931 = vld [vmem:[%s4929 + $0x4] sm:$0xf]
    %v4932 = vld [vmem:[%s4929 + $0x8] sm:$0xf]
    %v4933 = vld [vmem:[%s4929 + $0xc] sm:$0xf]
    %v4934 = vld [vmem:[%s4929 + $0x10] sm:$0xf]
    %v4935 = vld [vmem:[%s4929 + $0x14] sm:$0xf]
    %v4936 = vld [vmem:[%s4929 + $0x18] sm:$0xf]
    %v4937 = vld [vmem:[%s4929 + $0x1c] sm:$0xf]
    %v4938 = vld [vmem:[%s4929 + $0x20] sm:$0xf]
    %v4939 = vld [vmem:[%s4929 + $0x24] sm:$0xf]
    %v4940 = vld [vmem:[%s4929 + $0x28] sm:$0xf]
    %v4941 = vld [vmem:[%s4929 + $0x2c] sm:$0xf]
    %v4942 = vld [vmem:[%s4929 + $0x30] sm:$0xf]
    %v4943 = vld [vmem:[%s4929 + $0x34] sm:$0xf]
    %v4944 = vld [vmem:[%s4929 + $0x38] sm:$0xf]
    %v4945 = vld [vmem:[%s4929 + $0x3c] sm:$0xf]
    %v4946 = vld [vmem:[%s4929 + $0x40] sm:$0xf]
    %v4947 = vld [vmem:[%s4929 + $0x44] sm:$0xf]
    %v4948 = vld [vmem:[%s4929 + $0x48] sm:$0xf]
    %v4949 = vld [vmem:[%s4929 + $0x4c] sm:$0xf]
    %v4950 = vld [vmem:[%s4929 + $0x50] sm:$0xf]
    %v4951 = vld [vmem:[%s4929 + $0x54] sm:$0xf]
    %v4952 = vld [vmem:[%s4929 + $0x58] sm:$0xf]
    %v4953 = vld [vmem:[%s4929 + $0x5c] sm:$0xf]
    %v4955 = vunpack.c.l.b16 %v4921
    %v4956 = vunpack.c.h.b16 %v4921
    %v4957 = vpack.c.b16 %v4955, %v4955
    %v4958 = vpack.c.b16 %v4956, %v4956
    %v4960 = vshrl.u32 %v4957, 16
    %v4962 = vshll.u32 %v4957, 16
    %v4964 = vrot.slane %v4962, 1
    %v4965 = vor.u32 %v4960, %v4964
    %v4967 = vshrl.u32 %v4958, 16
    %v4969 = vshll.u32 %v4958, 16
    %v4971 = vrot.slane %v4969, 1
    %v4972 = vor.u32 %v4967, %v4971
    %v4998 = vunpack.c.l.b16 %v4930
    %v4999 = vunpack.c.l.b16 %v4931
    %v5000 = vunpack.c.l.b16 %v4932
    %v5001 = vunpack.c.l.b16 %v4933
    %v5002 = vunpack.c.l.b16 %v4934
    %v5003 = vunpack.c.l.b16 %v4935
    %v5004 = vunpack.c.l.b16 %v4936
    %v5005 = vunpack.c.l.b16 %v4937
    %v5006 = vunpack.c.l.b16 %v4938
    %v5007 = vunpack.c.l.b16 %v4939
    %v5008 = vunpack.c.l.b16 %v4940
    %v5009 = vunpack.c.l.b16 %v4941
    %v5010 = vunpack.c.l.b16 %v4942
    %v5011 = vunpack.c.l.b16 %v4943
    %v5012 = vunpack.c.l.b16 %v4944
    %v5013 = vunpack.c.l.b16 %v4945
    %v5014 = vunpack.c.l.b16 %v4946
    %v5015 = vunpack.c.l.b16 %v4947
    %v5016 = vunpack.c.l.b16 %v4948
    %v5017 = vunpack.c.l.b16 %v4949
    %v5018 = vunpack.c.l.b16 %v4950
    %v5019 = vunpack.c.l.b16 %v4951
    %v5020 = vunpack.c.l.b16 %v4952
    %v5021 = vunpack.c.l.b16 %v4953
    %v5022 = vpack.c.b16 %v4999, %v4998
    %v5023 = vpack.c.b16 %v5001, %v5000
    %v5024 = vpack.c.b16 %v5003, %v5002
    %v5025 = vpack.c.b16 %v5005, %v5004
    %v5026 = vpack.c.b16 %v5007, %v5006
    %v5027 = vpack.c.b16 %v5009, %v5008
    %v5028 = vpack.c.b16 %v5011, %v5010
    %v5029 = vpack.c.b16 %v5013, %v5012
    %v5030 = vpack.c.b16 %v5015, %v5014
    %v5031 = vpack.c.b16 %v5017, %v5016
    %v5032 = vpack.c.b16 %v5019, %v5018
    %v5033 = vpack.c.b16 %v5021, %v5020
    %v5047 = vsel %vm4310, %v4972, 0
    %5049 = vmatpush.bf16.msra.mxu0 %v5029
    %5050 = vmatpush.bf16.msra.mxu0 %v5028
    %5051 = vmatpush.bf16.msra.mxu0 %v5027
    %5052 = vmatpush.bf16.msra.mxu0 %v5026
    %5053 = vmatpush.bf16.msra.mxu0 %v5025
    %5054 = vmatpush.bf16.msra.mxu0 %v5024
    %5055 = vmatpush.bf16.msra.mxu0 %v5023
    %5056 = vmatpush.bf16.msra.mxu0 %v5022
    %5057 = vmatmul.bf16.gmra.mxu0 %v4965
    %v5058 = vpop.f32.mrf.mxu0
    %v5059 = vadd.f32 0.0, %v5058
    %v5060 = vpop.f32.mrf.mxu0
    %5061 = vdwg.mxu0
    %5062 = vmatpush.bf16.msra.mxu0 0
    %5063 = vmatpush.bf16.msra.mxu0 0
    %5064 = vmatpush.bf16.msra.mxu0 0
    %5065 = vmatpush.bf16.msra.mxu0 0
    %5066 = vmatpush.bf16.msra.mxu0 %v5033
    %5067 = vmatpush.bf16.msra.mxu0 %v5032
    %5068 = vmatpush.bf16.msra.mxu0 %v5031
    %5069 = vmatpush.bf16.msra.mxu0 %v5030
    %5070 = vmatmul.bf16.gmra.mxu0 %v5047
    %v5071 = vpop.f32.mrf.mxu0
    %v5072 = vadd.f32 %v5059, %v5071
    %v5073 = vpop.f32.mrf.mxu0
    %5074 = vdwg.mxu0
    %v5076 = vunpack.c.l.b16 %v4922
    %v5077 = vunpack.c.h.b16 %v4922
    %v5078 = vpack.c.b16 %v5076, %v5076
    %v5079 = vpack.c.b16 %v5077, %v5077
    %v5081 = vshrl.u32 %v5078, 16
    %v5083 = vshll.u32 %v5078, 16
    %v5085 = vrot.slane %v5083, 1
    %v5086 = vor.u32 %v5081, %v5085
    %v5088 = vshrl.u32 %v5079, 16
    %v5090 = vshll.u32 %v5079, 16
    %v5092 = vrot.slane %v5090, 1
    %v5093 = vor.u32 %v5088, %v5092
    %v5096 = vsel %vm4310, %v5093, 0
    %5098 = vmatpush.bf16.msra.mxu0 %v5029
    %5099 = vmatpush.bf16.msra.mxu0 %v5028
    %5100 = vmatpush.bf16.msra.mxu0 %v5027
    %5101 = vmatpush.bf16.msra.mxu0 %v5026
    %5102 = vmatpush.bf16.msra.mxu0 %v5025
    %5103 = vmatpush.bf16.msra.mxu0 %v5024
    %5104 = vmatpush.bf16.msra.mxu0 %v5023
    %5105 = vmatpush.bf16.msra.mxu0 %v5022
    %5106 = vmatmul.bf16.gmra.mxu0 %v5086
    %v5107 = vpop.f32.mrf.mxu0
    %v5108 = vadd.f32 0.0, %v5107
    %v5109 = vpop.f32.mrf.mxu0
    %5110 = vdwg.mxu0
    %5111 = vmatpush.bf16.msra.mxu0 0
    %5112 = vmatpush.bf16.msra.mxu0 0
    %5113 = vmatpush.bf16.msra.mxu0 0
    %5114 = vmatpush.bf16.msra.mxu0 0
    %5115 = vmatpush.bf16.msra.mxu0 %v5033
    %5116 = vmatpush.bf16.msra.mxu0 %v5032
    %5117 = vmatpush.bf16.msra.mxu0 %v5031
    %5118 = vmatpush.bf16.msra.mxu0 %v5030
    %5119 = vmatmul.bf16.gmra.mxu0 %v5096
    %v5120 = vpop.f32.mrf.mxu0
    %v5121 = vadd.f32 %v5108, %v5120
    %v5122 = vpop.f32.mrf.mxu0
    %5123 = vdwg.mxu0
    %v5125 = vunpack.c.l.b16 %v4923
    %v5126 = vunpack.c.h.b16 %v4923
    %v5127 = vpack.c.b16 %v5125, %v5125
    %v5128 = vpack.c.b16 %v5126, %v5126
    %v5130 = vshrl.u32 %v5127, 16
    %v5132 = vshll.u32 %v5127, 16
    %v5134 = vrot.slane %v5132, 1
    %v5135 = vor.u32 %v5130, %v5134
    %v5137 = vshrl.u32 %v5128, 16
    %v5139 = vshll.u32 %v5128, 16
    %v5141 = vrot.slane %v5139, 1
    %v5142 = vor.u32 %v5137, %v5141
    %v5145 = vsel %vm4310, %v5142, 0
    %5147 = vmatpush.bf16.msra.mxu0 %v5029
    %5148 = vmatpush.bf16.msra.mxu0 %v5028
    %5149 = vmatpush.bf16.msra.mxu0 %v5027
    %5150 = vmatpush.bf16.msra.mxu0 %v5026
    %5151 = vmatpush.bf16.msra.mxu0 %v5025
    %5152 = vmatpush.bf16.msra.mxu0 %v5024
    %5153 = vmatpush.bf16.msra.mxu0 %v5023
    %5154 = vmatpush.bf16.msra.mxu0 %v5022
    %5155 = vmatmul.bf16.gmra.mxu0 %v5135
    %v5156 = vpop.f32.mrf.mxu0
    %v5157 = vadd.f32 0.0, %v5156
    %v5158 = vpop.f32.mrf.mxu0
    %5159 = vdwg.mxu0
    %5160 = vmatpush.bf16.msra.mxu0 0
    %5161 = vmatpush.bf16.msra.mxu0 0
    %5162 = vmatpush.bf16.msra.mxu0 0
    %5163 = vmatpush.bf16.msra.mxu0 0
    %5164 = vmatpush.bf16.msra.mxu0 %v5033
    %5165 = vmatpush.bf16.msra.mxu0 %v5032
    %5166 = vmatpush.bf16.msra.mxu0 %v5031
    %5167 = vmatpush.bf16.msra.mxu0 %v5030
    %5168 = vmatmul.bf16.gmra.mxu0 %v5145
    %v5169 = vpop.f32.mrf.mxu0
    %v5170 = vadd.f32 %v5157, %v5169
    %v5171 = vpop.f32.mrf.mxu0
    %5172 = vdwg.mxu0
    %v5174 = vunpack.c.l.b16 %v4924
    %v5175 = vunpack.c.h.b16 %v4924
    %v5176 = vpack.c.b16 %v5174, %v5174
    %v5177 = vpack.c.b16 %v5175, %v5175
    %v5179 = vshrl.u32 %v5176, 16
    %v5181 = vshll.u32 %v5176, 16
    %v5183 = vrot.slane %v5181, 1
    %v5184 = vor.u32 %v5179, %v5183
    %v5186 = vshrl.u32 %v5177, 16
    %v5188 = vshll.u32 %v5177, 16
    %v5190 = vrot.slane %v5188, 1
    %v5191 = vor.u32 %v5186, %v5190
    %v5194 = vsel %vm4310, %v5191, 0
    %5196 = vmatpush.bf16.msra.mxu0 %v5029
    %5197 = vmatpush.bf16.msra.mxu0 %v5028
    %5198 = vmatpush.bf16.msra.mxu0 %v5027
    %5199 = vmatpush.bf16.msra.mxu0 %v5026
    %5200 = vmatpush.bf16.msra.mxu0 %v5025
    %5201 = vmatpush.bf16.msra.mxu0 %v5024
    %5202 = vmatpush.bf16.msra.mxu0 %v5023
    %5203 = vmatpush.bf16.msra.mxu0 %v5022
    %5204 = vmatmul.bf16.gmra.mxu0 %v5184
    %v5205 = vpop.f32.mrf.mxu0
    %v5206 = vadd.f32 0.0, %v5205
    %v5207 = vpop.f32.mrf.mxu0
    %5208 = vdwg.mxu0
    %5209 = vmatpush.bf16.msra.mxu0 0
    %5210 = vmatpush.bf16.msra.mxu0 0
    %5211 = vmatpush.bf16.msra.mxu0 0
    %5212 = vmatpush.bf16.msra.mxu0 0
    %5213 = vmatpush.bf16.msra.mxu0 %v5033
    %5214 = vmatpush.bf16.msra.mxu0 %v5032
    %5215 = vmatpush.bf16.msra.mxu0 %v5031
    %5216 = vmatpush.bf16.msra.mxu0 %v5030
    %5217 = vmatmul.bf16.gmra.mxu0 %v5194
    %v5218 = vpop.f32.mrf.mxu0
    %v5219 = vadd.f32 %v5206, %v5218
    %v5220 = vpop.f32.mrf.mxu0
    %5221 = vdwg.mxu0
    %v5223 = vunpack.c.l.b16 %v4925
    %v5224 = vunpack.c.h.b16 %v4925
    %v5225 = vpack.c.b16 %v5223, %v5223
    %v5226 = vpack.c.b16 %v5224, %v5224
    %v5228 = vshrl.u32 %v5225, 16
    %v5230 = vshll.u32 %v5225, 16
    %v5232 = vrot.slane %v5230, 1
    %v5233 = vor.u32 %v5228, %v5232
    %v5235 = vshrl.u32 %v5226, 16
    %v5237 = vshll.u32 %v5226, 16
    %v5239 = vrot.slane %v5237, 1
    %v5240 = vor.u32 %v5235, %v5239
    %v5243 = vsel %vm4310, %v5240, 0
    %5245 = vmatpush.bf16.msra.mxu0 %v5029
    %5246 = vmatpush.bf16.msra.mxu0 %v5028
    %5247 = vmatpush.bf16.msra.mxu0 %v5027
    %5248 = vmatpush.bf16.msra.mxu0 %v5026
    %5249 = vmatpush.bf16.msra.mxu0 %v5025
    %5250 = vmatpush.bf16.msra.mxu0 %v5024
    %5251 = vmatpush.bf16.msra.mxu0 %v5023
    %5252 = vmatpush.bf16.msra.mxu0 %v5022
    %5253 = vmatmul.bf16.gmra.mxu0 %v5233
    %v5254 = vpop.f32.mrf.mxu0
    %v5255 = vadd.f32 0.0, %v5254
    %v5256 = vpop.f32.mrf.mxu0
    %5257 = vdwg.mxu0
    %5258 = vmatpush.bf16.msra.mxu0 0
    %5259 = vmatpush.bf16.msra.mxu0 0
    %5260 = vmatpush.bf16.msra.mxu0 0
    %5261 = vmatpush.bf16.msra.mxu0 0
    %5262 = vmatpush.bf16.msra.mxu0 %v5033
    %5263 = vmatpush.bf16.msra.mxu0 %v5032
    %5264 = vmatpush.bf16.msra.mxu0 %v5031
    %5265 = vmatpush.bf16.msra.mxu0 %v5030
    %5266 = vmatmul.bf16.gmra.mxu0 %v5243
    %v5267 = vpop.f32.mrf.mxu0
    %v5268 = vadd.f32 %v5255, %v5267
    %v5269 = vpop.f32.mrf.mxu0
    %5270 = vdwg.mxu0
    %v5272 = vunpack.c.l.b16 %v4926
    %v5273 = vunpack.c.h.b16 %v4926
    %v5274 = vpack.c.b16 %v5272, %v5272
    %v5275 = vpack.c.b16 %v5273, %v5273
    %v5277 = vshrl.u32 %v5274, 16
    %v5279 = vshll.u32 %v5274, 16
    %v5281 = vrot.slane %v5279, 1
    %v5282 = vor.u32 %v5277, %v5281
    %v5284 = vshrl.u32 %v5275, 16
    %v5286 = vshll.u32 %v5275, 16
    %v5288 = vrot.slane %v5286, 1
    %v5289 = vor.u32 %v5284, %v5288
    %v5292 = vsel %vm4310, %v5289, 0
    %5294 = vmatpush.bf16.msra.mxu0 %v5029
    %5295 = vmatpush.bf16.msra.mxu0 %v5028
    %5296 = vmatpush.bf16.msra.mxu0 %v5027
    %5297 = vmatpush.bf16.msra.mxu0 %v5026
    %5298 = vmatpush.bf16.msra.mxu0 %v5025
    %5299 = vmatpush.bf16.msra.mxu0 %v5024
    %5300 = vmatpush.bf16.msra.mxu0 %v5023
    %5301 = vmatpush.bf16.msra.mxu0 %v5022
    %5302 = vmatmul.bf16.gmra.mxu0 %v5282
    %v5303 = vpop.f32.mrf.mxu0
    %v5304 = vadd.f32 0.0, %v5303
    %v5305 = vpop.f32.mrf.mxu0
    %5306 = vdwg.mxu0
    %5307 = vmatpush.bf16.msra.mxu0 0
    %5308 = vmatpush.bf16.msra.mxu0 0
    %5309 = vmatpush.bf16.msra.mxu0 0
    %5310 = vmatpush.bf16.msra.mxu0 0
    %5311 = vmatpush.bf16.msra.mxu0 %v5033
    %5312 = vmatpush.bf16.msra.mxu0 %v5032
    %5313 = vmatpush.bf16.msra.mxu0 %v5031
    %5314 = vmatpush.bf16.msra.mxu0 %v5030
    %5315 = vmatmul.bf16.gmra.mxu0 %v5292
    %v5316 = vpop.f32.mrf.mxu0
    %v5317 = vadd.f32 %v5304, %v5316
    %v5318 = vpop.f32.mrf.mxu0
    %5319 = vdwg.mxu0
    %v5321 = vunpack.c.l.b16 %v4927
    %v5322 = vunpack.c.h.b16 %v4927
    %v5323 = vpack.c.b16 %v5321, %v5321
    %v5324 = vpack.c.b16 %v5322, %v5322
    %v5326 = vshrl.u32 %v5323, 16
    %v5328 = vshll.u32 %v5323, 16
    %v5330 = vrot.slane %v5328, 1
    %v5331 = vor.u32 %v5326, %v5330
    %v5333 = vshrl.u32 %v5324, 16
    %v5335 = vshll.u32 %v5324, 16
    %v5337 = vrot.slane %v5335, 1
    %v5338 = vor.u32 %v5333, %v5337
    %v5341 = vsel %vm4310, %v5338, 0
    %5343 = vmatpush.bf16.msra.mxu0 %v5029
    %5344 = vmatpush.bf16.msra.mxu0 %v5028
    %5345 = vmatpush.bf16.msra.mxu0 %v5027
    %5346 = vmatpush.bf16.msra.mxu0 %v5026
    %5347 = vmatpush.bf16.msra.mxu0 %v5025
    %5348 = vmatpush.bf16.msra.mxu0 %v5024
    %5349 = vmatpush.bf16.msra.mxu0 %v5023
    %5350 = vmatpush.bf16.msra.mxu0 %v5022
    %5351 = vmatmul.bf16.gmra.mxu0 %v5331
    %v5352 = vpop.f32.mrf.mxu0
    %v5353 = vadd.f32 0.0, %v5352
    %v5354 = vpop.f32.mrf.mxu0
    %5355 = vdwg.mxu0
    %5356 = vmatpush.bf16.msra.mxu0 0
    %5357 = vmatpush.bf16.msra.mxu0 0
    %5358 = vmatpush.bf16.msra.mxu0 0
    %5359 = vmatpush.bf16.msra.mxu0 0
    %5360 = vmatpush.bf16.msra.mxu0 %v5033
    %5361 = vmatpush.bf16.msra.mxu0 %v5032
    %5362 = vmatpush.bf16.msra.mxu0 %v5031
    %5363 = vmatpush.bf16.msra.mxu0 %v5030
    %5364 = vmatmul.bf16.gmra.mxu0 %v5341
    %v5365 = vpop.f32.mrf.mxu0
    %v5366 = vadd.f32 %v5353, %v5365
    %v5367 = vpop.f32.mrf.mxu0
    %5368 = vdwg.mxu0
    %v5370 = vunpack.c.l.b16 %v4928
    %v5371 = vunpack.c.h.b16 %v4928
    %v5372 = vpack.c.b16 %v5370, %v5370
    %v5373 = vpack.c.b16 %v5371, %v5371
    %v5375 = vshrl.u32 %v5372, 16
    %v5377 = vshll.u32 %v5372, 16
    %v5379 = vrot.slane %v5377, 1
    %v5380 = vor.u32 %v5375, %v5379
    %v5382 = vshrl.u32 %v5373, 16
    %v5384 = vshll.u32 %v5373, 16
    %v5386 = vrot.slane %v5384, 1
    %v5387 = vor.u32 %v5382, %v5386
    %v5390 = vsel %vm4310, %v5387, 0
    %5392 = vmatpush.bf16.msra.mxu0 %v5029
    %5393 = vmatpush.bf16.msra.mxu0 %v5028
    %5394 = vmatpush.bf16.msra.mxu0 %v5027
    %5395 = vmatpush.bf16.msra.mxu0 %v5026
    %5396 = vmatpush.bf16.msra.mxu0 %v5025
    %5397 = vmatpush.bf16.msra.mxu0 %v5024
    %5398 = vmatpush.bf16.msra.mxu0 %v5023
    %5399 = vmatpush.bf16.msra.mxu0 %v5022
    %5400 = vmatmul.bf16.gmra.mxu0 %v5380
    %v5401 = vpop.f32.mrf.mxu0
    %v5402 = vadd.f32 0.0, %v5401
    %v5403 = vpop.f32.mrf.mxu0
    %5404 = vdwg.mxu0
    %5405 = vmatpush.bf16.msra.mxu0 0
    %5406 = vmatpush.bf16.msra.mxu0 0
    %5407 = vmatpush.bf16.msra.mxu0 0
    %5408 = vmatpush.bf16.msra.mxu0 0
    %5409 = vmatpush.bf16.msra.mxu0 %v5033
    %5410 = vmatpush.bf16.msra.mxu0 %v5032
    %5411 = vmatpush.bf16.msra.mxu0 %v5031
    %5412 = vmatpush.bf16.msra.mxu0 %v5030
    %5413 = vmatmul.bf16.gmra.mxu0 %v5390
    %v5414 = vpop.f32.mrf.mxu0
    %v5415 = vadd.f32 %v5402, %v5414
    %v5416 = vpop.f32.mrf.mxu0
    %5417 = vdwg.mxu0
    %v5419 = vunpack.c.l.b16 %v4889
    %v5420 = vunpack.c.h.b16 %v4889
    %v5421 = vpack.c.b16 %v5419, %v5419
    %v5422 = vpack.c.b16 %v5420, %v5420
    %v5448 = vunpack.c.l.b16 %v4897
    %v5449 = vunpack.c.l.b16 %v4898
    %v5450 = vunpack.c.l.b16 %v4899
    %v5451 = vunpack.c.l.b16 %v4900
    %v5452 = vunpack.c.l.b16 %v4901
    %v5453 = vunpack.c.l.b16 %v4902
    %v5454 = vunpack.c.l.b16 %v4903
    %v5455 = vunpack.c.l.b16 %v4904
    %v5456 = vunpack.c.l.b16 %v4905
    %v5457 = vunpack.c.l.b16 %v4906
    %v5458 = vunpack.c.l.b16 %v4907
    %v5459 = vunpack.c.l.b16 %v4908
    %v5460 = vunpack.c.l.b16 %v4909
    %v5461 = vunpack.c.l.b16 %v4910
    %v5462 = vunpack.c.l.b16 %v4911
    %v5463 = vunpack.c.l.b16 %v4912
    %v5464 = vunpack.c.l.b16 %v4913
    %v5465 = vunpack.c.l.b16 %v4914
    %v5466 = vunpack.c.l.b16 %v4915
    %v5467 = vunpack.c.l.b16 %v4916
    %v5468 = vunpack.c.l.b16 %v4917
    %v5469 = vunpack.c.l.b16 %v4918
    %v5470 = vunpack.c.l.b16 %v4919
    %v5471 = vunpack.c.l.b16 %v4920
    %v5472 = vpack.c.b16 %v5449, %v5448
    %v5473 = vpack.c.b16 %v5451, %v5450
    %v5474 = vpack.c.b16 %v5453, %v5452
    %v5475 = vpack.c.b16 %v5455, %v5454
    %v5476 = vpack.c.b16 %v5457, %v5456
    %v5477 = vpack.c.b16 %v5459, %v5458
    %v5478 = vpack.c.b16 %v5461, %v5460
    %v5479 = vpack.c.b16 %v5463, %v5462
    %v5480 = vpack.c.b16 %v5465, %v5464
    %v5481 = vpack.c.b16 %v5467, %v5466
    %v5482 = vpack.c.b16 %v5469, %v5468
    %v5483 = vpack.c.b16 %v5471, %v5470
    %v5497 = vsel %vm4310, %v5422, 0
    %5499 = vmatpush.bf16.msra.mxu0 %v5479
    %5500 = vmatpush.bf16.msra.mxu0 %v5478
    %5501 = vmatpush.bf16.msra.mxu0 %v5477
    %5502 = vmatpush.bf16.msra.mxu0 %v5476
    %5503 = vmatpush.bf16.msra.mxu0 %v5475
    %5504 = vmatpush.bf16.msra.mxu0 %v5474
    %5505 = vmatpush.bf16.msra.mxu0 %v5473
    %5506 = vmatpush.bf16.msra.mxu0 %v5472
    %5507 = vmatmul.bf16.gmra.mxu0 %v5421
    %v5508 = vpop.f32.mrf.mxu0
    %v5509 = vadd.f32 %v5072, %v5508
    %v5510 = vpop.f32.mrf.mxu0
    %5511 = vdwg.mxu0
    %5512 = vmatpush.bf16.msra.mxu0 0
    %5513 = vmatpush.bf16.msra.mxu0 0
    %5514 = vmatpush.bf16.msra.mxu0 0
    %5515 = vmatpush.bf16.msra.mxu0 0
    %5516 = vmatpush.bf16.msra.mxu0 %v5483
    %5517 = vmatpush.bf16.msra.mxu0 %v5482
    %5518 = vmatpush.bf16.msra.mxu0 %v5481
    %5519 = vmatpush.bf16.msra.mxu0 %v5480
    %5520 = vmatmul.bf16.gmra.mxu0 %v5497
    %v5521 = vpop.f32.mrf.mxu0
    %v5522 = vadd.f32 %v5509, %v5521
    %v5523 = vpop.f32.mrf.mxu0
    %5524 = vdwg.mxu0
    %v5526 = vunpack.c.l.b16 %v4890
    %v5527 = vunpack.c.h.b16 %v4890
    %v5528 = vpack.c.b16 %v5526, %v5526
    %v5529 = vpack.c.b16 %v5527, %v5527
    %v5532 = vsel %vm4310, %v5529, 0
    %5534 = vmatpush.bf16.msra.mxu0 %v5479
    %5535 = vmatpush.bf16.msra.mxu0 %v5478
    %5536 = vmatpush.bf16.msra.mxu0 %v5477
    %5537 = vmatpush.bf16.msra.mxu0 %v5476
    %5538 = vmatpush.bf16.msra.mxu0 %v5475
    %5539 = vmatpush.bf16.msra.mxu0 %v5474
    %5540 = vmatpush.bf16.msra.mxu0 %v5473
    %5541 = vmatpush.bf16.msra.mxu0 %v5472
    %5542 = vmatmul.bf16.gmra.mxu0 %v5528
    %v5543 = vpop.f32.mrf.mxu0
    %v5544 = vadd.f32 %v5121, %v5543
    %v5545 = vpop.f32.mrf.mxu0
    %5546 = vdwg.mxu0
    %5547 = vmatpush.bf16.msra.mxu0 0
    %5548 = vmatpush.bf16.msra.mxu0 0
    %5549 = vmatpush.bf16.msra.mxu0 0
    %5550 = vmatpush.bf16.msra.mxu0 0
    %5551 = vmatpush.bf16.msra.mxu0 %v5483
    %5552 = vmatpush.bf16.msra.mxu0 %v5482
    %5553 = vmatpush.bf16.msra.mxu0 %v5481
    %5554 = vmatpush.bf16.msra.mxu0 %v5480
    %5555 = vmatmul.bf16.gmra.mxu0 %v5532
    %v5556 = vpop.f32.mrf.mxu0
    %v5557 = vadd.f32 %v5544, %v5556
    %v5558 = vpop.f32.mrf.mxu0
    %5559 = vdwg.mxu0
    %v5561 = vunpack.c.l.b16 %v4891
    %v5562 = vunpack.c.h.b16 %v4891
    %v5563 = vpack.c.b16 %v5561, %v5561
    %v5564 = vpack.c.b16 %v5562, %v5562
    %v5567 = vsel %vm4310, %v5564, 0
    %5569 = vmatpush.bf16.msra.mxu0 %v5479
    %5570 = vmatpush.bf16.msra.mxu0 %v5478
    %5571 = vmatpush.bf16.msra.mxu0 %v5477
    %5572 = vmatpush.bf16.msra.mxu0 %v5476
    %5573 = vmatpush.bf16.msra.mxu0 %v5475
    %5574 = vmatpush.bf16.msra.mxu0 %v5474
    %5575 = vmatpush.bf16.msra.mxu0 %v5473
    %5576 = vmatpush.bf16.msra.mxu0 %v5472
    %5577 = vmatmul.bf16.gmra.mxu0 %v5563
    %v5578 = vpop.f32.mrf.mxu0
    %v5579 = vadd.f32 %v5170, %v5578
    %v5580 = vpop.f32.mrf.mxu0
    %5581 = vdwg.mxu0
    %5582 = vmatpush.bf16.msra.mxu0 0
    %5583 = vmatpush.bf16.msra.mxu0 0
    %5584 = vmatpush.bf16.msra.mxu0 0
    %5585 = vmatpush.bf16.msra.mxu0 0
    %5586 = vmatpush.bf16.msra.mxu0 %v5483
    %5587 = vmatpush.bf16.msra.mxu0 %v5482
    %5588 = vmatpush.bf16.msra.mxu0 %v5481
    %5589 = vmatpush.bf16.msra.mxu0 %v5480
    %5590 = vmatmul.bf16.gmra.mxu0 %v5567
    %v5591 = vpop.f32.mrf.mxu0
    %v5592 = vadd.f32 %v5579, %v5591
    %v5593 = vpop.f32.mrf.mxu0
    %5594 = vdwg.mxu0
    %v5596 = vunpack.c.l.b16 %v4892
    %v5597 = vunpack.c.h.b16 %v4892
    %v5598 = vpack.c.b16 %v5596, %v5596
    %v5599 = vpack.c.b16 %v5597, %v5597
    %v5602 = vsel %vm4310, %v5599, 0
    %5604 = vmatpush.bf16.msra.mxu0 %v5479
    %5605 = vmatpush.bf16.msra.mxu0 %v5478
    %5606 = vmatpush.bf16.msra.mxu0 %v5477
    %5607 = vmatpush.bf16.msra.mxu0 %v5476
    %5608 = vmatpush.bf16.msra.mxu0 %v5475
    %5609 = vmatpush.bf16.msra.mxu0 %v5474
    %5610 = vmatpush.bf16.msra.mxu0 %v5473
    %5611 = vmatpush.bf16.msra.mxu0 %v5472
    %5612 = vmatmul.bf16.gmra.mxu0 %v5598
    %v5613 = vpop.f32.mrf.mxu0
    %v5614 = vadd.f32 %v5219, %v5613
    %v5615 = vpop.f32.mrf.mxu0
    %5616 = vdwg.mxu0
    %5617 = vmatpush.bf16.msra.mxu0 0
    %5618 = vmatpush.bf16.msra.mxu0 0
    %5619 = vmatpush.bf16.msra.mxu0 0
    %5620 = vmatpush.bf16.msra.mxu0 0
    %5621 = vmatpush.bf16.msra.mxu0 %v5483
    %5622 = vmatpush.bf16.msra.mxu0 %v5482
    %5623 = vmatpush.bf16.msra.mxu0 %v5481
    %5624 = vmatpush.bf16.msra.mxu0 %v5480
    %5625 = vmatmul.bf16.gmra.mxu0 %v5602
    %v5626 = vpop.f32.mrf.mxu0
    %v5627 = vadd.f32 %v5614, %v5626
    %v5628 = vpop.f32.mrf.mxu0
    %5629 = vdwg.mxu0
    %v5631 = vunpack.c.l.b16 %v4893
    %v5632 = vunpack.c.h.b16 %v4893
    %v5633 = vpack.c.b16 %v5631, %v5631
    %v5634 = vpack.c.b16 %v5632, %v5632
    %v5637 = vsel %vm4310, %v5634, 0
    %5639 = vmatpush.bf16.msra.mxu0 %v5479
    %5640 = vmatpush.bf16.msra.mxu0 %v5478
    %5641 = vmatpush.bf16.msra.mxu0 %v5477
    %5642 = vmatpush.bf16.msra.mxu0 %v5476
    %5643 = vmatpush.bf16.msra.mxu0 %v5475
    %5644 = vmatpush.bf16.msra.mxu0 %v5474
    %5645 = vmatpush.bf16.msra.mxu0 %v5473
    %5646 = vmatpush.bf16.msra.mxu0 %v5472
    %5647 = vmatmul.bf16.gmra.mxu0 %v5633
    %v5648 = vpop.f32.mrf.mxu0
    %v5649 = vadd.f32 %v5268, %v5648
    %v5650 = vpop.f32.mrf.mxu0
    %5651 = vdwg.mxu0
    %5652 = vmatpush.bf16.msra.mxu0 0
    %5653 = vmatpush.bf16.msra.mxu0 0
    %5654 = vmatpush.bf16.msra.mxu0 0
    %5655 = vmatpush.bf16.msra.mxu0 0
    %5656 = vmatpush.bf16.msra.mxu0 %v5483
    %5657 = vmatpush.bf16.msra.mxu0 %v5482
    %5658 = vmatpush.bf16.msra.mxu0 %v5481
    %5659 = vmatpush.bf16.msra.mxu0 %v5480
    %5660 = vmatmul.bf16.gmra.mxu0 %v5637
    %v5661 = vpop.f32.mrf.mxu0
    %v5662 = vadd.f32 %v5649, %v5661
    %v5663 = vpop.f32.mrf.mxu0
    %5664 = vdwg.mxu0
    %v5666 = vunpack.c.l.b16 %v4894
    %v5667 = vunpack.c.h.b16 %v4894
    %v5668 = vpack.c.b16 %v5666, %v5666
    %v5669 = vpack.c.b16 %v5667, %v5667
    %v5672 = vsel %vm4310, %v5669, 0
    %5674 = vmatpush.bf16.msra.mxu0 %v5479
    %5675 = vmatpush.bf16.msra.mxu0 %v5478
    %5676 = vmatpush.bf16.msra.mxu0 %v5477
    %5677 = vmatpush.bf16.msra.mxu0 %v5476
    %5678 = vmatpush.bf16.msra.mxu0 %v5475
    %5679 = vmatpush.bf16.msra.mxu0 %v5474
    %5680 = vmatpush.bf16.msra.mxu0 %v5473
    %5681 = vmatpush.bf16.msra.mxu0 %v5472
    %5682 = vmatmul.bf16.gmra.mxu0 %v5668
    %v5683 = vpop.f32.mrf.mxu0
    %v5684 = vadd.f32 %v5317, %v5683
    %v5685 = vpop.f32.mrf.mxu0
    %5686 = vdwg.mxu0
    %5687 = vmatpush.bf16.msra.mxu0 0
    %5688 = vmatpush.bf16.msra.mxu0 0
    %5689 = vmatpush.bf16.msra.mxu0 0
    %5690 = vmatpush.bf16.msra.mxu0 0
    %5691 = vmatpush.bf16.msra.mxu0 %v5483
    %5692 = vmatpush.bf16.msra.mxu0 %v5482
    %5693 = vmatpush.bf16.msra.mxu0 %v5481
    %5694 = vmatpush.bf16.msra.mxu0 %v5480
    %5695 = vmatmul.bf16.gmra.mxu0 %v5672
    %v5696 = vpop.f32.mrf.mxu0
    %v5697 = vadd.f32 %v5684, %v5696
    %v5698 = vpop.f32.mrf.mxu0
    %5699 = vdwg.mxu0
    %v5701 = vunpack.c.l.b16 %v4895
    %v5702 = vunpack.c.h.b16 %v4895
    %v5703 = vpack.c.b16 %v5701, %v5701
    %v5704 = vpack.c.b16 %v5702, %v5702
    %v5707 = vsel %vm4310, %v5704, 0
    %5709 = vmatpush.bf16.msra.mxu0 %v5479
    %5710 = vmatpush.bf16.msra.mxu0 %v5478
    %5711 = vmatpush.bf16.msra.mxu0 %v5477
    %5712 = vmatpush.bf16.msra.mxu0 %v5476
    %5713 = vmatpush.bf16.msra.mxu0 %v5475
    %5714 = vmatpush.bf16.msra.mxu0 %v5474
    %5715 = vmatpush.bf16.msra.mxu0 %v5473
    %5716 = vmatpush.bf16.msra.mxu0 %v5472
    %5717 = vmatmul.bf16.gmra.mxu0 %v5703
    %v5718 = vpop.f32.mrf.mxu0
    %v5719 = vadd.f32 %v5366, %v5718
    %v5720 = vpop.f32.mrf.mxu0
    %5721 = vdwg.mxu0
    %5722 = vmatpush.bf16.msra.mxu0 0
    %5723 = vmatpush.bf16.msra.mxu0 0
    %5724 = vmatpush.bf16.msra.mxu0 0
    %5725 = vmatpush.bf16.msra.mxu0 0
    %5726 = vmatpush.bf16.msra.mxu0 %v5483
    %5727 = vmatpush.bf16.msra.mxu0 %v5482
    %5728 = vmatpush.bf16.msra.mxu0 %v5481
    %5729 = vmatpush.bf16.msra.mxu0 %v5480
    %5730 = vmatmul.bf16.gmra.mxu0 %v5707
    %v5731 = vpop.f32.mrf.mxu0
    %v5732 = vadd.f32 %v5719, %v5731
    %v5733 = vpop.f32.mrf.mxu0
    %5734 = vdwg.mxu0
    %v5736 = vunpack.c.l.b16 %v4896
    %v5737 = vunpack.c.h.b16 %v4896
    %v5738 = vpack.c.b16 %v5736, %v5736
    %v5739 = vpack.c.b16 %v5737, %v5737
    %v5742 = vsel %vm4310, %v5739, 0
    %5744 = vmatpush.bf16.msra.mxu0 %v5479
    %5745 = vmatpush.bf16.msra.mxu0 %v5478
    %5746 = vmatpush.bf16.msra.mxu0 %v5477
    %5747 = vmatpush.bf16.msra.mxu0 %v5476
    %5748 = vmatpush.bf16.msra.mxu0 %v5475
    %5749 = vmatpush.bf16.msra.mxu0 %v5474
    %5750 = vmatpush.bf16.msra.mxu0 %v5473
    %5751 = vmatpush.bf16.msra.mxu0 %v5472
    %5752 = vmatmul.bf16.gmra.mxu0 %v5738
    %v5753 = vpop.f32.mrf.mxu0
    %v5754 = vadd.f32 %v5415, %v5753
    %v5755 = vpop.f32.mrf.mxu0
    %5756 = vdwg.mxu0
    %5757 = vmatpush.bf16.msra.mxu0 0
    %5758 = vmatpush.bf16.msra.mxu0 0
    %5759 = vmatpush.bf16.msra.mxu0 0
    %5760 = vmatpush.bf16.msra.mxu0 0
    %5761 = vmatpush.bf16.msra.mxu0 %v5483
    %5762 = vmatpush.bf16.msra.mxu0 %v5482
    %5763 = vmatpush.bf16.msra.mxu0 %v5481
    %5764 = vmatpush.bf16.msra.mxu0 %v5480
    %5765 = vmatmul.bf16.gmra.mxu0 %v5742
    %v5766 = vpop.f32.mrf.mxu0
    %v5767 = vadd.f32 %v5754, %v5766
    %v5768 = vpop.f32.mrf.mxu0
    %5769 = vdwg.mxu0
    %v5770 = vld [vmem:[#allocation2] sm:$0x66]
    %v5771 = vld [vmem:[#allocation2 + $0x8] sm:$0x66]
    %v5772 = vld [vmem:[#allocation2 + $0x10] sm:$0x66]
    %v5773 = vld [vmem:[#allocation2 + $0x18] sm:$0x66]
    %v5774 = vld [vmem:[#allocation2 + $0x30] sm:$0x66]
    %v5775 = vld [vmem:[#allocation2 + $0x38] sm:$0x66]
    %v5776 = vld [vmem:[#allocation2 + $0x40] sm:$0x66]
    %v5777 = vld [vmem:[#allocation2 + $0x48] sm:$0x66]
    %s5778 = scalar_lea.vmem %s2, 192
    %v5779 = vld [vmem:[%s5778] sm:$0xf]
    %v5780 = vld [vmem:[%s5778 + $0x4] sm:$0xf]
    %v5781 = vld [vmem:[%s5778 + $0x8] sm:$0xf]
    %v5782 = vld [vmem:[%s5778 + $0xc] sm:$0xf]
    %v5783 = vld [vmem:[%s5778 + $0x10] sm:$0xf]
    %v5784 = vld [vmem:[%s5778 + $0x14] sm:$0xf]
    %v5785 = vld [vmem:[%s5778 + $0x18] sm:$0xf]
    %v5786 = vld [vmem:[%s5778 + $0x1c] sm:$0xf]
    %v5787 = vld [vmem:[%s5778 + $0x20] sm:$0xf]
    %v5788 = vld [vmem:[%s5778 + $0x24] sm:$0xf]
    %v5789 = vld [vmem:[%s5778 + $0x28] sm:$0xf]
    %v5790 = vld [vmem:[%s5778 + $0x2c] sm:$0xf]
    %v5791 = vld [vmem:[%s5778 + $0x30] sm:$0xf]
    %v5792 = vld [vmem:[%s5778 + $0x34] sm:$0xf]
    %v5793 = vld [vmem:[%s5778 + $0x38] sm:$0xf]
    %v5794 = vld [vmem:[%s5778 + $0x3c] sm:$0xf]
    %v5795 = vld [vmem:[%s5778 + $0x40] sm:$0xf]
    %v5796 = vld [vmem:[%s5778 + $0x44] sm:$0xf]
    %v5797 = vld [vmem:[%s5778 + $0x48] sm:$0xf]
    %v5798 = vld [vmem:[%s5778 + $0x4c] sm:$0xf]
    %v5799 = vld [vmem:[%s5778 + $0x50] sm:$0xf]
    %v5800 = vld [vmem:[%s5778 + $0x54] sm:$0xf]
    %v5801 = vld [vmem:[%s5778 + $0x58] sm:$0xf]
    %v5802 = vld [vmem:[%s5778 + $0x5c] sm:$0xf]
    %v5804 = vunpack.c.l.b16 %v5770
    %v5805 = vunpack.c.h.b16 %v5770
    %v5806 = vpack.c.b16 %v5804, %v5804
    %v5807 = vpack.c.b16 %v5805, %v5805
    %v5808 = vrot.slane %v5806, 1
    %v5809 = vrot.slane %v5807, 1
    %v5835 = vunpack.c.l.b16 %v5779
    %v5836 = vunpack.c.l.b16 %v5780
    %v5837 = vunpack.c.l.b16 %v5781
    %v5838 = vunpack.c.l.b16 %v5782
    %v5839 = vunpack.c.l.b16 %v5783
    %v5840 = vunpack.c.l.b16 %v5784
    %v5841 = vunpack.c.l.b16 %v5785
    %v5842 = vunpack.c.l.b16 %v5786
    %v5843 = vunpack.c.l.b16 %v5787
    %v5844 = vunpack.c.l.b16 %v5788
    %v5845 = vunpack.c.l.b16 %v5789
    %v5846 = vunpack.c.l.b16 %v5790
    %v5847 = vunpack.c.l.b16 %v5791
    %v5848 = vunpack.c.l.b16 %v5792
    %v5849 = vunpack.c.l.b16 %v5793
    %v5850 = vunpack.c.l.b16 %v5794
    %v5851 = vunpack.c.l.b16 %v5795
    %v5852 = vunpack.c.l.b16 %v5796
    %v5853 = vunpack.c.l.b16 %v5797
    %v5854 = vunpack.c.l.b16 %v5798
    %v5855 = vunpack.c.l.b16 %v5799
    %v5856 = vunpack.c.l.b16 %v5800
    %v5857 = vunpack.c.l.b16 %v5801
    %v5858 = vunpack.c.l.b16 %v5802
    %v5859 = vpack.c.b16 %v5836, %v5835
    %v5860 = vpack.c.b16 %v5838, %v5837
    %v5861 = vpack.c.b16 %v5840, %v5839
    %v5862 = vpack.c.b16 %v5842, %v5841
    %v5863 = vpack.c.b16 %v5844, %v5843
    %v5864 = vpack.c.b16 %v5846, %v5845
    %v5865 = vpack.c.b16 %v5848, %v5847
    %v5866 = vpack.c.b16 %v5850, %v5849
    %v5867 = vpack.c.b16 %v5852, %v5851
    %v5868 = vpack.c.b16 %v5854, %v5853
    %v5869 = vpack.c.b16 %v5856, %v5855
    %v5870 = vpack.c.b16 %v5858, %v5857
    %v5884 = vsel %vm4310, %v5809, 0
    %5886 = vmatpush.bf16.msra.mxu0 %v5866
    %5887 = vmatpush.bf16.msra.mxu0 %v5865
    %5888 = vmatpush.bf16.msra.mxu0 %v5864
    %5889 = vmatpush.bf16.msra.mxu0 %v5863
    %5890 = vmatpush.bf16.msra.mxu0 %v5862
    %5891 = vmatpush.bf16.msra.mxu0 %v5861
    %5892 = vmatpush.bf16.msra.mxu0 %v5860
    %5893 = vmatpush.bf16.msra.mxu0 %v5859
    %5894 = vmatmul.bf16.gmra.mxu0 %v5808
    %v5895 = vpop.f32.mrf.mxu0
    %v5896 = vadd.f32 0.0, %v5895
    %v5897 = vpop.f32.mrf.mxu0
    %5898 = vdwg.mxu0
    %5899 = vmatpush.bf16.msra.mxu0 0
    %5900 = vmatpush.bf16.msra.mxu0 0
    %5901 = vmatpush.bf16.msra.mxu0 0
    %5902 = vmatpush.bf16.msra.mxu0 0
    %5903 = vmatpush.bf16.msra.mxu0 %v5870
    %5904 = vmatpush.bf16.msra.mxu0 %v5869
    %5905 = vmatpush.bf16.msra.mxu0 %v5868
    %5906 = vmatpush.bf16.msra.mxu0 %v5867
    %5907 = vmatmul.bf16.gmra.mxu0 %v5884
    %v5908 = vpop.f32.mrf.mxu0
    %v5909 = vadd.f32 %v5896, %v5908
    %v5910 = vpop.f32.mrf.mxu0
    %5911 = vdwg.mxu0
    %v5913 = vunpack.c.l.b16 %v5771
    %v5914 = vunpack.c.h.b16 %v5771
    %v5915 = vpack.c.b16 %v5913, %v5913
    %v5916 = vpack.c.b16 %v5914, %v5914
    %v5917 = vrot.slane %v5915, 1
    %v5918 = vrot.slane %v5916, 1
    %v5921 = vsel %vm4310, %v5918, 0
    %5923 = vmatpush.bf16.msra.mxu0 %v5866
    %5924 = vmatpush.bf16.msra.mxu0 %v5865
    %5925 = vmatpush.bf16.msra.mxu0 %v5864
    %5926 = vmatpush.bf16.msra.mxu0 %v5863
    %5927 = vmatpush.bf16.msra.mxu0 %v5862
    %5928 = vmatpush.bf16.msra.mxu0 %v5861
    %5929 = vmatpush.bf16.msra.mxu0 %v5860
    %5930 = vmatpush.bf16.msra.mxu0 %v5859
    %5931 = vmatmul.bf16.gmra.mxu0 %v5917
    %v5932 = vpop.f32.mrf.mxu0
    %v5933 = vadd.f32 0.0, %v5932
    %v5934 = vpop.f32.mrf.mxu0
    %5935 = vdwg.mxu0
    %5936 = vmatpush.bf16.msra.mxu0 0
    %5937 = vmatpush.bf16.msra.mxu0 0
    %5938 = vmatpush.bf16.msra.mxu0 0
    %5939 = vmatpush.bf16.msra.mxu0 0
    %5940 = vmatpush.bf16.msra.mxu0 %v5870
    %5941 = vmatpush.bf16.msra.mxu0 %v5869
    %5942 = vmatpush.bf16.msra.mxu0 %v5868
    %5943 = vmatpush.bf16.msra.mxu0 %v5867
    %5944 = vmatmul.bf16.gmra.mxu0 %v5921
    %v5945 = vpop.f32.mrf.mxu0
    %v5946 = vadd.f32 %v5933, %v5945
    %v5947 = vpop.f32.mrf.mxu0
    %5948 = vdwg.mxu0
    %v5950 = vunpack.c.l.b16 %v5772
    %v5951 = vunpack.c.h.b16 %v5772
    %v5952 = vpack.c.b16 %v5950, %v5950
    %v5953 = vpack.c.b16 %v5951, %v5951
    %v5954 = vrot.slane %v5952, 1
    %v5955 = vrot.slane %v5953, 1
    %v5958 = vsel %vm4310, %v5955, 0
    %5960 = vmatpush.bf16.msra.mxu0 %v5866
    %5961 = vmatpush.bf16.msra.mxu0 %v5865
    %5962 = vmatpush.bf16.msra.mxu0 %v5864
    %5963 = vmatpush.bf16.msra.mxu0 %v5863
    %5964 = vmatpush.bf16.msra.mxu0 %v5862
    %5965 = vmatpush.bf16.msra.mxu0 %v5861
    %5966 = vmatpush.bf16.msra.mxu0 %v5860
    %5967 = vmatpush.bf16.msra.mxu0 %v5859
    %5968 = vmatmul.bf16.gmra.mxu0 %v5954
    %v5969 = vpop.f32.mrf.mxu0
    %v5970 = vadd.f32 0.0, %v5969
    %v5971 = vpop.f32.mrf.mxu0
    %5972 = vdwg.mxu0
    %5973 = vmatpush.bf16.msra.mxu0 0
    %5974 = vmatpush.bf16.msra.mxu0 0
    %5975 = vmatpush.bf16.msra.mxu0 0
    %5976 = vmatpush.bf16.msra.mxu0 0
    %5977 = vmatpush.bf16.msra.mxu0 %v5870
    %5978 = vmatpush.bf16.msra.mxu0 %v5869
    %5979 = vmatpush.bf16.msra.mxu0 %v5868
    %5980 = vmatpush.bf16.msra.mxu0 %v5867
    %5981 = vmatmul.bf16.gmra.mxu0 %v5958
    %v5982 = vpop.f32.mrf.mxu0
    %v5983 = vadd.f32 %v5970, %v5982
    %v5984 = vpop.f32.mrf.mxu0
    %5985 = vdwg.mxu0
    %v5987 = vunpack.c.l.b16 %v5773
    %v5988 = vunpack.c.h.b16 %v5773
    %v5989 = vpack.c.b16 %v5987, %v5987
    %v5990 = vpack.c.b16 %v5988, %v5988
    %v5991 = vrot.slane %v5989, 1
    %v5992 = vrot.slane %v5990, 1
    %v5995 = vsel %vm4310, %v5992, 0
    %5997 = vmatpush.bf16.msra.mxu0 %v5866
    %5998 = vmatpush.bf16.msra.mxu0 %v5865
    %5999 = vmatpush.bf16.msra.mxu0 %v5864
    %6000 = vmatpush.bf16.msra.mxu0 %v5863
    %6001 = vmatpush.bf16.msra.mxu0 %v5862
    %6002 = vmatpush.bf16.msra.mxu0 %v5861
    %6003 = vmatpush.bf16.msra.mxu0 %v5860
    %6004 = vmatpush.bf16.msra.mxu0 %v5859
    %6005 = vmatmul.bf16.gmra.mxu0 %v5991
    %v6006 = vpop.f32.mrf.mxu0
    %v6007 = vadd.f32 0.0, %v6006
    %v6008 = vpop.f32.mrf.mxu0
    %6009 = vdwg.mxu0
    %6010 = vmatpush.bf16.msra.mxu0 0
    %6011 = vmatpush.bf16.msra.mxu0 0
    %6012 = vmatpush.bf16.msra.mxu0 0
    %6013 = vmatpush.bf16.msra.mxu0 0
    %6014 = vmatpush.bf16.msra.mxu0 %v5870
    %6015 = vmatpush.bf16.msra.mxu0 %v5869
    %6016 = vmatpush.bf16.msra.mxu0 %v5868
    %6017 = vmatpush.bf16.msra.mxu0 %v5867
    %6018 = vmatmul.bf16.gmra.mxu0 %v5995
    %v6019 = vpop.f32.mrf.mxu0
    %v6020 = vadd.f32 %v6007, %v6019
    %v6021 = vpop.f32.mrf.mxu0
    %6022 = vdwg.mxu0
    %v6024 = vunpack.c.l.b16 %v5774
    %v6025 = vunpack.c.h.b16 %v5774
    %v6026 = vpack.c.b16 %v6024, %v6024
    %v6027 = vpack.c.b16 %v6025, %v6025
    %v6028 = vrot.slane %v6026, 1
    %v6029 = vrot.slane %v6027, 1
    %v6032 = vsel %vm4310, %v6029, 0
    %6034 = vmatpush.bf16.msra.mxu0 %v5866
    %6035 = vmatpush.bf16.msra.mxu0 %v5865
    %6036 = vmatpush.bf16.msra.mxu0 %v5864
    %6037 = vmatpush.bf16.msra.mxu0 %v5863
    %6038 = vmatpush.bf16.msra.mxu0 %v5862
    %6039 = vmatpush.bf16.msra.mxu0 %v5861
    %6040 = vmatpush.bf16.msra.mxu0 %v5860
    %6041 = vmatpush.bf16.msra.mxu0 %v5859
    %6042 = vmatmul.bf16.gmra.mxu0 %v6028
    %v6043 = vpop.f32.mrf.mxu0
    %v6044 = vadd.f32 0.0, %v6043
    %v6045 = vpop.f32.mrf.mxu0
    %6046 = vdwg.mxu0
    %6047 = vmatpush.bf16.msra.mxu0 0
    %6048 = vmatpush.bf16.msra.mxu0 0
    %6049 = vmatpush.bf16.msra.mxu0 0
    %6050 = vmatpush.bf16.msra.mxu0 0
    %6051 = vmatpush.bf16.msra.mxu0 %v5870
    %6052 = vmatpush.bf16.msra.mxu0 %v5869
    %6053 = vmatpush.bf16.msra.mxu0 %v5868
    %6054 = vmatpush.bf16.msra.mxu0 %v5867
    %6055 = vmatmul.bf16.gmra.mxu0 %v6032
    %v6056 = vpop.f32.mrf.mxu0
    %v6057 = vadd.f32 %v6044, %v6056
    %v6058 = vpop.f32.mrf.mxu0
    %6059 = vdwg.mxu0
    %v6061 = vunpack.c.l.b16 %v5775
    %v6062 = vunpack.c.h.b16 %v5775
    %v6063 = vpack.c.b16 %v6061, %v6061
    %v6064 = vpack.c.b16 %v6062, %v6062
    %v6065 = vrot.slane %v6063, 1
    %v6066 = vrot.slane %v6064, 1
    %v6069 = vsel %vm4310, %v6066, 0
    %6071 = vmatpush.bf16.msra.mxu0 %v5866
    %6072 = vmatpush.bf16.msra.mxu0 %v5865
    %6073 = vmatpush.bf16.msra.mxu0 %v5864
    %6074 = vmatpush.bf16.msra.mxu0 %v5863
    %6075 = vmatpush.bf16.msra.mxu0 %v5862
    %6076 = vmatpush.bf16.msra.mxu0 %v5861
    %6077 = vmatpush.bf16.msra.mxu0 %v5860
    %6078 = vmatpush.bf16.msra.mxu0 %v5859
    %6079 = vmatmul.bf16.gmra.mxu0 %v6065
    %v6080 = vpop.f32.mrf.mxu0
    %v6081 = vadd.f32 0.0, %v6080
    %v6082 = vpop.f32.mrf.mxu0
    %6083 = vdwg.mxu0
    %6084 = vmatpush.bf16.msra.mxu0 0
    %6085 = vmatpush.bf16.msra.mxu0 0
    %6086 = vmatpush.bf16.msra.mxu0 0
    %6087 = vmatpush.bf16.msra.mxu0 0
    %6088 = vmatpush.bf16.msra.mxu0 %v5870
    %6089 = vmatpush.bf16.msra.mxu0 %v5869
    %6090 = vmatpush.bf16.msra.mxu0 %v5868
    %6091 = vmatpush.bf16.msra.mxu0 %v5867
    %6092 = vmatmul.bf16.gmra.mxu0 %v6069
    %v6093 = vpop.f32.mrf.mxu0
    %v6094 = vadd.f32 %v6081, %v6093
    %v6095 = vpop.f32.mrf.mxu0
    %6096 = vdwg.mxu0
    %v6098 = vunpack.c.l.b16 %v5776
    %v6099 = vunpack.c.h.b16 %v5776
    %v6100 = vpack.c.b16 %v6098, %v6098
    %v6101 = vpack.c.b16 %v6099, %v6099
    %v6102 = vrot.slane %v6100, 1
    %v6103 = vrot.slane %v6101, 1
    %v6106 = vsel %vm4310, %v6103, 0
    %6108 = vmatpush.bf16.msra.mxu0 %v5866
    %6109 = vmatpush.bf16.msra.mxu0 %v5865
    %6110 = vmatpush.bf16.msra.mxu0 %v5864
    %6111 = vmatpush.bf16.msra.mxu0 %v5863
    %6112 = vmatpush.bf16.msra.mxu0 %v5862
    %6113 = vmatpush.bf16.msra.mxu0 %v5861
    %6114 = vmatpush.bf16.msra.mxu0 %v5860
    %6115 = vmatpush.bf16.msra.mxu0 %v5859
    %6116 = vmatmul.bf16.gmra.mxu0 %v6102
    %v6117 = vpop.f32.mrf.mxu0
    %v6118 = vadd.f32 0.0, %v6117
    %v6119 = vpop.f32.mrf.mxu0
    %6120 = vdwg.mxu0
    %6121 = vmatpush.bf16.msra.mxu0 0
    %6122 = vmatpush.bf16.msra.mxu0 0
    %6123 = vmatpush.bf16.msra.mxu0 0
    %6124 = vmatpush.bf16.msra.mxu0 0
    %6125 = vmatpush.bf16.msra.mxu0 %v5870
    %6126 = vmatpush.bf16.msra.mxu0 %v5869
    %6127 = vmatpush.bf16.msra.mxu0 %v5868
    %6128 = vmatpush.bf16.msra.mxu0 %v5867
    %6129 = vmatmul.bf16.gmra.mxu0 %v6106
    %v6130 = vpop.f32.mrf.mxu0
    %v6131 = vadd.f32 %v6118, %v6130
    %v6132 = vpop.f32.mrf.mxu0
    %6133 = vdwg.mxu0
    %v6135 = vunpack.c.l.b16 %v5777
    %v6136 = vunpack.c.h.b16 %v5777
    %v6137 = vpack.c.b16 %v6135, %v6135
    %v6138 = vpack.c.b16 %v6136, %v6136
    %v6139 = vrot.slane %v6137, 1
    %v6140 = vrot.slane %v6138, 1
    %v6143 = vsel %vm4310, %v6140, 0
    %6145 = vmatpush.bf16.msra.mxu0 %v5866
    %6146 = vmatpush.bf16.msra.mxu0 %v5865
    %6147 = vmatpush.bf16.msra.mxu0 %v5864
    %6148 = vmatpush.bf16.msra.mxu0 %v5863
    %6149 = vmatpush.bf16.msra.mxu0 %v5862
    %6150 = vmatpush.bf16.msra.mxu0 %v5861
    %6151 = vmatpush.bf16.msra.mxu0 %v5860
    %6152 = vmatpush.bf16.msra.mxu0 %v5859
    %6153 = vmatmul.bf16.gmra.mxu0 %v6139
    %v6154 = vpop.f32.mrf.mxu0
    %v6155 = vadd.f32 0.0, %v6154
    %v6156 = vpop.f32.mrf.mxu0
    %6157 = vdwg.mxu0
    %6158 = vmatpush.bf16.msra.mxu0 0
    %6159 = vmatpush.bf16.msra.mxu0 0
    %6160 = vmatpush.bf16.msra.mxu0 0
    %6161 = vmatpush.bf16.msra.mxu0 0
    %6162 = vmatpush.bf16.msra.mxu0 %v5870
    %6163 = vmatpush.bf16.msra.mxu0 %v5869
    %6164 = vmatpush.bf16.msra.mxu0 %v5868
    %6165 = vmatpush.bf16.msra.mxu0 %v5867
    %6166 = vmatmul.bf16.gmra.mxu0 %v6143
    %v6167 = vpop.f32.mrf.mxu0
    %v6168 = vadd.f32 %v6155, %v6167
    %v6169 = vpop.f32.mrf.mxu0
    %6170 = vdwg.mxu0
    %v6171 = vadd.f32 %v5522, %v5909
    %v6172 = vadd.f32 %v5557, %v5946
    %v6173 = vadd.f32 %v5592, %v5983
    %v6174 = vadd.f32 %v5627, %v6020
    %v6175 = vadd.f32 %v5662, %v6057
    %v6176 = vadd.f32 %v5697, %v6094
    %v6177 = vadd.f32 %v5732, %v6131
    %v6178 = vadd.f32 %v5767, %v6168
    %s6179 = scalar_lea.vmem [#allocation2], 8
    %v6180 = vld [vmem:[%s6179] sm:$0x33]
    %v6181 = vld [vmem:[%s6179 + $0x8] sm:$0x33]
    %v6182 = vld [vmem:[%s6179 + $0x10] sm:$0x33]
    %v6183 = vld [vmem:[%s6179 + $0x18] sm:$0x33]
    %v6184 = vld [vmem:[%s6179 + $0x30] sm:$0x33]
    %v6185 = vld [vmem:[%s6179 + $0x38] sm:$0x33]
    %v6186 = vld [vmem:[%s6179 + $0x40] sm:$0x33]
    %v6187 = vld [vmem:[%s6179 + $0x48] sm:$0x33]
    %s6188 = scalar_lea.vmem %s2, 288
    %v6189 = vld [vmem:[%s6188] sm:$0xf]
    %v6190 = vld [vmem:[%s6188 + $0x4] sm:$0xf]
    %v6191 = vld [vmem:[%s6188 + $0x8] sm:$0xf]
    %v6192 = vld [vmem:[%s6188 + $0xc] sm:$0xf]
    %v6193 = vld [vmem:[%s6188 + $0x10] sm:$0xf]
    %v6194 = vld [vmem:[%s6188 + $0x14] sm:$0xf]
    %v6195 = vld [vmem:[%s6188 + $0x18] sm:$0xf]
    %v6196 = vld [vmem:[%s6188 + $0x1c] sm:$0xf]
    %v6197 = vld [vmem:[%s6188 + $0x20] sm:$0xf]
    %v6198 = vld [vmem:[%s6188 + $0x24] sm:$0xf]
    %v6199 = vld [vmem:[%s6188 + $0x28] sm:$0xf]
    %v6200 = vld [vmem:[%s6188 + $0x2c] sm:$0xf]
    %v6201 = vld [vmem:[%s6188 + $0x30] sm:$0xf]
    %v6202 = vld [vmem:[%s6188 + $0x34] sm:$0xf]
    %v6203 = vld [vmem:[%s6188 + $0x38] sm:$0xf]
    %v6204 = vld [vmem:[%s6188 + $0x3c] sm:$0xf]
    %v6205 = vld [vmem:[%s6188 + $0x40] sm:$0xf]
    %v6206 = vld [vmem:[%s6188 + $0x44] sm:$0xf]
    %v6207 = vld [vmem:[%s6188 + $0x48] sm:$0xf]
    %v6208 = vld [vmem:[%s6188 + $0x4c] sm:$0xf]
    %v6209 = vld [vmem:[%s6188 + $0x50] sm:$0xf]
    %v6210 = vld [vmem:[%s6188 + $0x54] sm:$0xf]
    %v6211 = vld [vmem:[%s6188 + $0x58] sm:$0xf]
    %v6212 = vld [vmem:[%s6188 + $0x5c] sm:$0xf]
    %v6214 = vunpack.c.l.b16 %v6180
    %v6215 = vunpack.c.h.b16 %v6180
    %v6216 = vpack.c.b16 %v6214, %v6214
    %v6217 = vpack.c.b16 %v6215, %v6215
    %v6243 = vunpack.c.l.b16 %v6189
    %v6244 = vunpack.c.l.b16 %v6190
    %v6245 = vunpack.c.l.b16 %v6191
    %v6246 = vunpack.c.l.b16 %v6192
    %v6247 = vunpack.c.l.b16 %v6193
    %v6248 = vunpack.c.l.b16 %v6194
    %v6249 = vunpack.c.l.b16 %v6195
    %v6250 = vunpack.c.l.b16 %v6196
    %v6251 = vunpack.c.l.b16 %v6197
    %v6252 = vunpack.c.l.b16 %v6198
    %v6253 = vunpack.c.l.b16 %v6199
    %v6254 = vunpack.c.l.b16 %v6200
    %v6255 = vunpack.c.l.b16 %v6201
    %v6256 = vunpack.c.l.b16 %v6202
    %v6257 = vunpack.c.l.b16 %v6203
    %v6258 = vunpack.c.l.b16 %v6204
    %v6259 = vunpack.c.l.b16 %v6205
    %v6260 = vunpack.c.l.b16 %v6206
    %v6261 = vunpack.c.l.b16 %v6207
    %v6262 = vunpack.c.l.b16 %v6208
    %v6263 = vunpack.c.l.b16 %v6209
    %v6264 = vunpack.c.l.b16 %v6210
    %v6265 = vunpack.c.l.b16 %v6211
    %v6266 = vunpack.c.l.b16 %v6212
    %v6267 = vpack.c.b16 %v6244, %v6243
    %v6268 = vpack.c.b16 %v6246, %v6245
    %v6269 = vpack.c.b16 %v6248, %v6247
    %v6270 = vpack.c.b16 %v6250, %v6249
    %v6271 = vpack.c.b16 %v6252, %v6251
    %v6272 = vpack.c.b16 %v6254, %v6253
    %v6273 = vpack.c.b16 %v6256, %v6255
    %v6274 = vpack.c.b16 %v6258, %v6257
    %v6275 = vpack.c.b16 %v6260, %v6259
    %v6276 = vpack.c.b16 %v6262, %v6261
    %v6277 = vpack.c.b16 %v6264, %v6263
    %v6278 = vpack.c.b16 %v6266, %v6265
    %v6292 = vsel %vm4310, %v6217, 0
    %6294 = vmatpush.bf16.msra.mxu0 %v6274
    %6295 = vmatpush.bf16.msra.mxu0 %v6273
    %6296 = vmatpush.bf16.msra.mxu0 %v6272
    %6297 = vmatpush.bf16.msra.mxu0 %v6271
    %6298 = vmatpush.bf16.msra.mxu0 %v6270
    %6299 = vmatpush.bf16.msra.mxu0 %v6269
    %6300 = vmatpush.bf16.msra.mxu0 %v6268
    %6301 = vmatpush.bf16.msra.mxu0 %v6267
    %6302 = vmatmul.bf16.gmra.mxu0 %v6216
    %v6303 = vpop.f32.mrf.mxu0
    %v6304 = vadd.f32 0.0, %v6303
    %v6305 = vpop.f32.mrf.mxu0
    %6306 = vdwg.mxu0
    %6307 = vmatpush.bf16.msra.mxu0 0
    %6308 = vmatpush.bf16.msra.mxu0 0
    %6309 = vmatpush.bf16.msra.mxu0 0
    %6310 = vmatpush.bf16.msra.mxu0 0
    %6311 = vmatpush.bf16.msra.mxu0 %v6278
    %6312 = vmatpush.bf16.msra.mxu0 %v6277
    %6313 = vmatpush.bf16.msra.mxu0 %v6276
    %6314 = vmatpush.bf16.msra.mxu0 %v6275
    %6315 = vmatmul.bf16.gmra.mxu0 %v6292
    %v6316 = vpop.f32.mrf.mxu0
    %v6317 = vadd.f32 %v6304, %v6316
    %v6318 = vpop.f32.mrf.mxu0
    %6319 = vdwg.mxu0
    %v6321 = vunpack.c.l.b16 %v6181
    %v6322 = vunpack.c.h.b16 %v6181
    %v6323 = vpack.c.b16 %v6321, %v6321
    %v6324 = vpack.c.b16 %v6322, %v6322
    %v6327 = vsel %vm4310, %v6324, 0
    %6329 = vmatpush.bf16.msra.mxu0 %v6274
    %6330 = vmatpush.bf16.msra.mxu0 %v6273
    %6331 = vmatpush.bf16.msra.mxu0 %v6272
    %6332 = vmatpush.bf16.msra.mxu0 %v6271
    %6333 = vmatpush.bf16.msra.mxu0 %v6270
    %6334 = vmatpush.bf16.msra.mxu0 %v6269
    %6335 = vmatpush.bf16.msra.mxu0 %v6268
    %6336 = vmatpush.bf16.msra.mxu0 %v6267
    %6337 = vmatmul.bf16.gmra.mxu0 %v6323
    %v6338 = vpop.f32.mrf.mxu0
    %v6339 = vadd.f32 0.0, %v6338
    %v6340 = vpop.f32.mrf.mxu0
    %6341 = vdwg.mxu0
    %6342 = vmatpush.bf16.msra.mxu0 0
    %6343 = vmatpush.bf16.msra.mxu0 0
    %6344 = vmatpush.bf16.msra.mxu0 0
    %6345 = vmatpush.bf16.msra.mxu0 0
    %6346 = vmatpush.bf16.msra.mxu0 %v6278
    %6347 = vmatpush.bf16.msra.mxu0 %v6277
    %6348 = vmatpush.bf16.msra.mxu0 %v6276
    %6349 = vmatpush.bf16.msra.mxu0 %v6275
    %6350 = vmatmul.bf16.gmra.mxu0 %v6327
    %v6351 = vpop.f32.mrf.mxu0
    %v6352 = vadd.f32 %v6339, %v6351
    %v6353 = vpop.f32.mrf.mxu0
    %6354 = vdwg.mxu0
    %v6356 = vunpack.c.l.b16 %v6182
    %v6357 = vunpack.c.h.b16 %v6182
    %v6358 = vpack.c.b16 %v6356, %v6356
    %v6359 = vpack.c.b16 %v6357, %v6357
    %v6362 = vsel %vm4310, %v6359, 0
    %6364 = vmatpush.bf16.msra.mxu0 %v6274
    %6365 = vmatpush.bf16.msra.mxu0 %v6273
    %6366 = vmatpush.bf16.msra.mxu0 %v6272
    %6367 = vmatpush.bf16.msra.mxu0 %v6271
    %6368 = vmatpush.bf16.msra.mxu0 %v6270
    %6369 = vmatpush.bf16.msra.mxu0 %v6269
    %6370 = vmatpush.bf16.msra.mxu0 %v6268
    %6371 = vmatpush.bf16.msra.mxu0 %v6267
    %6372 = vmatmul.bf16.gmra.mxu0 %v6358
    %v6373 = vpop.f32.mrf.mxu0
    %v6374 = vadd.f32 0.0, %v6373
    %v6375 = vpop.f32.mrf.mxu0
    %6376 = vdwg.mxu0
    %6377 = vmatpush.bf16.msra.mxu0 0
    %6378 = vmatpush.bf16.msra.mxu0 0
    %6379 = vmatpush.bf16.msra.mxu0 0
    %6380 = vmatpush.bf16.msra.mxu0 0
    %6381 = vmatpush.bf16.msra.mxu0 %v6278
    %6382 = vmatpush.bf16.msra.mxu0 %v6277
    %6383 = vmatpush.bf16.msra.mxu0 %v6276
    %6384 = vmatpush.bf16.msra.mxu0 %v6275
    %6385 = vmatmul.bf16.gmra.mxu0 %v6362
    %v6386 = vpop.f32.mrf.mxu0
    %v6387 = vadd.f32 %v6374, %v6386
    %v6388 = vpop.f32.mrf.mxu0
    %6389 = vdwg.mxu0
    %v6391 = vunpack.c.l.b16 %v6183
    %v6392 = vunpack.c.h.b16 %v6183
    %v6393 = vpack.c.b16 %v6391, %v6391
    %v6394 = vpack.c.b16 %v6392, %v6392
    %v6397 = vsel %vm4310, %v6394, 0
    %6399 = vmatpush.bf16.msra.mxu0 %v6274
    %6400 = vmatpush.bf16.msra.mxu0 %v6273
    %6401 = vmatpush.bf16.msra.mxu0 %v6272
    %6402 = vmatpush.bf16.msra.mxu0 %v6271
    %6403 = vmatpush.bf16.msra.mxu0 %v6270
    %6404 = vmatpush.bf16.msra.mxu0 %v6269
    %6405 = vmatpush.bf16.msra.mxu0 %v6268
    %6406 = vmatpush.bf16.msra.mxu0 %v6267
    %6407 = vmatmul.bf16.gmra.mxu0 %v6393
    %v6408 = vpop.f32.mrf.mxu0
    %v6409 = vadd.f32 0.0, %v6408
    %v6410 = vpop.f32.mrf.mxu0
    %6411 = vdwg.mxu0
    %6412 = vmatpush.bf16.msra.mxu0 0
    %6413 = vmatpush.bf16.msra.mxu0 0
    %6414 = vmatpush.bf16.msra.mxu0 0
    %6415 = vmatpush.bf16.msra.mxu0 0
    %6416 = vmatpush.bf16.msra.mxu0 %v6278
    %6417 = vmatpush.bf16.msra.mxu0 %v6277
    %6418 = vmatpush.bf16.msra.mxu0 %v6276
    %6419 = vmatpush.bf16.msra.mxu0 %v6275
    %6420 = vmatmul.bf16.gmra.mxu0 %v6397
    %v6421 = vpop.f32.mrf.mxu0
    %v6422 = vadd.f32 %v6409, %v6421
    %v6423 = vpop.f32.mrf.mxu0
    %6424 = vdwg.mxu0
    %v6426 = vunpack.c.l.b16 %v6184
    %v6427 = vunpack.c.h.b16 %v6184
    %v6428 = vpack.c.b16 %v6426, %v6426
    %v6429 = vpack.c.b16 %v6427, %v6427
    %v6432 = vsel %vm4310, %v6429, 0
    %6434 = vmatpush.bf16.msra.mxu0 %v6274
    %6435 = vmatpush.bf16.msra.mxu0 %v6273
    %6436 = vmatpush.bf16.msra.mxu0 %v6272
    %6437 = vmatpush.bf16.msra.mxu0 %v6271
    %6438 = vmatpush.bf16.msra.mxu0 %v6270
    %6439 = vmatpush.bf16.msra.mxu0 %v6269
    %6440 = vmatpush.bf16.msra.mxu0 %v6268
    %6441 = vmatpush.bf16.msra.mxu0 %v6267
    %6442 = vmatmul.bf16.gmra.mxu0 %v6428
    %v6443 = vpop.f32.mrf.mxu0
    %v6444 = vadd.f32 0.0, %v6443
    %v6445 = vpop.f32.mrf.mxu0
    %6446 = vdwg.mxu0
    %6447 = vmatpush.bf16.msra.mxu0 0
    %6448 = vmatpush.bf16.msra.mxu0 0
    %6449 = vmatpush.bf16.msra.mxu0 0
    %6450 = vmatpush.bf16.msra.mxu0 0
    %6451 = vmatpush.bf16.msra.mxu0 %v6278
    %6452 = vmatpush.bf16.msra.mxu0 %v6277
    %6453 = vmatpush.bf16.msra.mxu0 %v6276
    %6454 = vmatpush.bf16.msra.mxu0 %v6275
    %6455 = vmatmul.bf16.gmra.mxu0 %v6432
    %v6456 = vpop.f32.mrf.mxu0
    %v6457 = vadd.f32 %v6444, %v6456
    %v6458 = vpop.f32.mrf.mxu0
    %6459 = vdwg.mxu0
    %v6461 = vunpack.c.l.b16 %v6185
    %v6462 = vunpack.c.h.b16 %v6185
    %v6463 = vpack.c.b16 %v6461, %v6461
    %v6464 = vpack.c.b16 %v6462, %v6462
    %v6467 = vsel %vm4310, %v6464, 0
    %6469 = vmatpush.bf16.msra.mxu0 %v6274
    %6470 = vmatpush.bf16.msra.mxu0 %v6273
    %6471 = vmatpush.bf16.msra.mxu0 %v6272
    %6472 = vmatpush.bf16.msra.mxu0 %v6271
    %6473 = vmatpush.bf16.msra.mxu0 %v6270
    %6474 = vmatpush.bf16.msra.mxu0 %v6269
    %6475 = vmatpush.bf16.msra.mxu0 %v6268
    %6476 = vmatpush.bf16.msra.mxu0 %v6267
    %6477 = vmatmul.bf16.gmra.mxu0 %v6463
    %v6478 = vpop.f32.mrf.mxu0
    %v6479 = vadd.f32 0.0, %v6478
    %v6480 = vpop.f32.mrf.mxu0
    %6481 = vdwg.mxu0
    %6482 = vmatpush.bf16.msra.mxu0 0
    %6483 = vmatpush.bf16.msra.mxu0 0
    %6484 = vmatpush.bf16.msra.mxu0 0
    %6485 = vmatpush.bf16.msra.mxu0 0
    %6486 = vmatpush.bf16.msra.mxu0 %v6278
    %6487 = vmatpush.bf16.msra.mxu0 %v6277
    %6488 = vmatpush.bf16.msra.mxu0 %v6276
    %6489 = vmatpush.bf16.msra.mxu0 %v6275
    %6490 = vmatmul.bf16.gmra.mxu0 %v6467
    %v6491 = vpop.f32.mrf.mxu0
    %v6492 = vadd.f32 %v6479, %v6491
    %v6493 = vpop.f32.mrf.mxu0
    %6494 = vdwg.mxu0
    %v6496 = vunpack.c.l.b16 %v6186
    %v6497 = vunpack.c.h.b16 %v6186
    %v6498 = vpack.c.b16 %v6496, %v6496
    %v6499 = vpack.c.b16 %v6497, %v6497
    %v6502 = vsel %vm4310, %v6499, 0
    %6504 = vmatpush.bf16.msra.mxu0 %v6274
    %6505 = vmatpush.bf16.msra.mxu0 %v6273
    %6506 = vmatpush.bf16.msra.mxu0 %v6272
    %6507 = vmatpush.bf16.msra.mxu0 %v6271
    %6508 = vmatpush.bf16.msra.mxu0 %v6270
    %6509 = vmatpush.bf16.msra.mxu0 %v6269
    %6510 = vmatpush.bf16.msra.mxu0 %v6268
    %6511 = vmatpush.bf16.msra.mxu0 %v6267
    %6512 = vmatmul.bf16.gmra.mxu0 %v6498
    %v6513 = vpop.f32.mrf.mxu0
    %v6514 = vadd.f32 0.0, %v6513
    %v6515 = vpop.f32.mrf.mxu0
    %6516 = vdwg.mxu0
    %6517 = vmatpush.bf16.msra.mxu0 0
    %6518 = vmatpush.bf16.msra.mxu0 0
    %6519 = vmatpush.bf16.msra.mxu0 0
    %6520 = vmatpush.bf16.msra.mxu0 0
    %6521 = vmatpush.bf16.msra.mxu0 %v6278
    %6522 = vmatpush.bf16.msra.mxu0 %v6277
    %6523 = vmatpush.bf16.msra.mxu0 %v6276
    %6524 = vmatpush.bf16.msra.mxu0 %v6275
    %6525 = vmatmul.bf16.gmra.mxu0 %v6502
    %v6526 = vpop.f32.mrf.mxu0
    %v6527 = vadd.f32 %v6514, %v6526
    %v6528 = vpop.f32.mrf.mxu0
    %6529 = vdwg.mxu0
    %v6531 = vunpack.c.l.b16 %v6187
    %v6532 = vunpack.c.h.b16 %v6187
    %v6533 = vpack.c.b16 %v6531, %v6531
    %v6534 = vpack.c.b16 %v6532, %v6532
    %v6537 = vsel %vm4310, %v6534, 0
    %6539 = vmatpush.bf16.msra.mxu0 %v6274
    %6540 = vmatpush.bf16.msra.mxu0 %v6273
    %6541 = vmatpush.bf16.msra.mxu0 %v6272
    %6542 = vmatpush.bf16.msra.mxu0 %v6271
    %6543 = vmatpush.bf16.msra.mxu0 %v6270
    %6544 = vmatpush.bf16.msra.mxu0 %v6269
    %6545 = vmatpush.bf16.msra.mxu0 %v6268
    %6546 = vmatpush.bf16.msra.mxu0 %v6267
    %6547 = vmatmul.bf16.gmra.mxu0 %v6533
    %v6548 = vpop.f32.mrf.mxu0
    %v6549 = vadd.f32 0.0, %v6548
    %v6550 = vpop.f32.mrf.mxu0
    %6551 = vdwg.mxu0
    %6552 = vmatpush.bf16.msra.mxu0 0
    %6553 = vmatpush.bf16.msra.mxu0 0
    %6554 = vmatpush.bf16.msra.mxu0 0
    %6555 = vmatpush.bf16.msra.mxu0 0
    %6556 = vmatpush.bf16.msra.mxu0 %v6278
    %6557 = vmatpush.bf16.msra.mxu0 %v6277
    %6558 = vmatpush.bf16.msra.mxu0 %v6276
    %6559 = vmatpush.bf16.msra.mxu0 %v6275
    %6560 = vmatmul.bf16.gmra.mxu0 %v6537
    %v6561 = vpop.f32.mrf.mxu0
    %v6562 = vadd.f32 %v6549, %v6561
    %v6563 = vpop.f32.mrf.mxu0
    %6564 = vdwg.mxu0
    %v6565 = vadd.f32 %v6171, %v6317
    %v6566 = vadd.f32 %v6172, %v6352
    %v6567 = vadd.f32 %v6173, %v6387
    %v6568 = vadd.f32 %v6174, %v6422
    %v6569 = vadd.f32 %v6175, %v6457
    %v6570 = vadd.f32 %v6176, %v6492
    %v6571 = vadd.f32 %v6177, %v6527
    %v6572 = vadd.f32 %v6178, %v6562
    %v6573 = vld [vmem:[%s6179] sm:$0x77]
    %v6574 = vld [vmem:[%s6179 + $0x8] sm:$0x77]
    %v6575 = vld [vmem:[%s6179 + $0x10] sm:$0x77]
    %v6576 = vld [vmem:[%s6179 + $0x18] sm:$0x77]
    %v6577 = vld [vmem:[%s6179 + $0x30] sm:$0x77]
    %v6578 = vld [vmem:[%s6179 + $0x38] sm:$0x77]
    %v6579 = vld [vmem:[%s6179 + $0x40] sm:$0x77]
    %v6580 = vld [vmem:[%s6179 + $0x48] sm:$0x77]
    %s6581 = scalar_lea.vmem %s2, 384
    %v6582 = vld [vmem:[%s6581] sm:$0xf]
    %v6583 = vld [vmem:[%s6581 + $0x4] sm:$0xf]
    %v6584 = vld [vmem:[%s6581 + $0x8] sm:$0xf]
    %v6585 = vld [vmem:[%s6581 + $0xc] sm:$0xf]
    %v6586 = vld [vmem:[%s6581 + $0x10] sm:$0xf]
    %v6587 = vld [vmem:[%s6581 + $0x14] sm:$0xf]
    %v6588 = vld [vmem:[%s6581 + $0x18] sm:$0xf]
    %v6589 = vld [vmem:[%s6581 + $0x1c] sm:$0xf]
    %v6590 = vld [vmem:[%s6581 + $0x20] sm:$0xf]
    %v6591 = vld [vmem:[%s6581 + $0x24] sm:$0xf]
    %v6592 = vld [vmem:[%s6581 + $0x28] sm:$0xf]
    %v6593 = vld [vmem:[%s6581 + $0x2c] sm:$0xf]
    %v6594 = vld [vmem:[%s6581 + $0x30] sm:$0xf]
    %v6595 = vld [vmem:[%s6581 + $0x34] sm:$0xf]
    %v6596 = vld [vmem:[%s6581 + $0x38] sm:$0xf]
    %v6597 = vld [vmem:[%s6581 + $0x3c] sm:$0xf]
    %v6598 = vld [vmem:[%s6581 + $0x40] sm:$0xf]
    %v6599 = vld [vmem:[%s6581 + $0x44] sm:$0xf]
    %v6600 = vld [vmem:[%s6581 + $0x48] sm:$0xf]
    %v6601 = vld [vmem:[%s6581 + $0x4c] sm:$0xf]
    %v6602 = vld [vmem:[%s6581 + $0x50] sm:$0xf]
    %v6603 = vld [vmem:[%s6581 + $0x54] sm:$0xf]
    %v6604 = vld [vmem:[%s6581 + $0x58] sm:$0xf]
    %v6605 = vld [vmem:[%s6581 + $0x5c] sm:$0xf]
    %v6607 = vunpack.c.l.b16 %v6573
    %v6608 = vunpack.c.h.b16 %v6573
    %v6609 = vpack.c.b16 %v6607, %v6607
    %v6610 = vpack.c.b16 %v6608, %v6608
    %v6612 = vshrl.u32 %v6609, 16
    %v6614 = vshll.u32 %v6609, 16
    %v6616 = vrot.slane %v6614, 1
    %v6617 = vor.u32 %v6612, %v6616
    %v6619 = vshrl.u32 %v6610, 16
    %v6621 = vshll.u32 %v6610, 16
    %v6623 = vrot.slane %v6621, 1
    %v6624 = vor.u32 %v6619, %v6623
    %v6650 = vunpack.c.l.b16 %v6582
    %v6651 = vunpack.c.l.b16 %v6583
    %v6652 = vunpack.c.l.b16 %v6584
    %v6653 = vunpack.c.l.b16 %v6585
    %v6654 = vunpack.c.l.b16 %v6586
    %v6655 = vunpack.c.l.b16 %v6587
    %v6656 = vunpack.c.l.b16 %v6588
    %v6657 = vunpack.c.l.b16 %v6589
    %v6658 = vunpack.c.l.b16 %v6590
    %v6659 = vunpack.c.l.b16 %v6591
    %v6660 = vunpack.c.l.b16 %v6592
    %v6661 = vunpack.c.l.b16 %v6593
    %v6662 = vunpack.c.l.b16 %v6594
    %v6663 = vunpack.c.l.b16 %v6595
    %v6664 = vunpack.c.l.b16 %v6596
    %v6665 = vunpack.c.l.b16 %v6597
    %v6666 = vunpack.c.l.b16 %v6598
    %v6667 = vunpack.c.l.b16 %v6599
    %v6668 = vunpack.c.l.b16 %v6600
    %v6669 = vunpack.c.l.b16 %v6601
    %v6670 = vunpack.c.l.b16 %v6602
    %v6671 = vunpack.c.l.b16 %v6603
    %v6672 = vunpack.c.l.b16 %v6604
    %v6673 = vunpack.c.l.b16 %v6605
    %v6674 = vpack.c.b16 %v6651, %v6650
    %v6675 = vpack.c.b16 %v6653, %v6652
    %v6676 = vpack.c.b16 %v6655, %v6654
    %v6677 = vpack.c.b16 %v6657, %v6656
    %v6678 = vpack.c.b16 %v6659, %v6658
    %v6679 = vpack.c.b16 %v6661, %v6660
    %v6680 = vpack.c.b16 %v6663, %v6662
    %v6681 = vpack.c.b16 %v6665, %v6664
    %v6682 = vpack.c.b16 %v6667, %v6666
    %v6683 = vpack.c.b16 %v6669, %v6668
    %v6684 = vpack.c.b16 %v6671, %v6670
    %v6685 = vpack.c.b16 %v6673, %v6672
    %v6699 = vsel %vm4310, %v6624, 0
    %6701 = vmatpush.bf16.msra.mxu0 %v6681
    %6702 = vmatpush.bf16.msra.mxu0 %v6680
    %6703 = vmatpush.bf16.msra.mxu0 %v6679
    %6704 = vmatpush.bf16.msra.mxu0 %v6678
    %6705 = vmatpush.bf16.msra.mxu0 %v6677
    %6706 = vmatpush.bf16.msra.mxu0 %v6676
    %6707 = vmatpush.bf16.msra.mxu0 %v6675
    %6708 = vmatpush.bf16.msra.mxu0 %v6674
    %6709 = vmatmul.bf16.gmra.mxu0 %v6617
    %v6710 = vpop.f32.mrf.mxu0
    %v6711 = vadd.f32 0.0, %v6710
    %v6712 = vpop.f32.mrf.mxu0
    %6713 = vdwg.mxu0
    %6714 = vmatpush.bf16.msra.mxu0 0
    %6715 = vmatpush.bf16.msra.mxu0 0
    %6716 = vmatpush.bf16.msra.mxu0 0
    %6717 = vmatpush.bf16.msra.mxu0 0
    %6718 = vmatpush.bf16.msra.mxu0 %v6685
    %6719 = vmatpush.bf16.msra.mxu0 %v6684
    %6720 = vmatpush.bf16.msra.mxu0 %v6683
    %6721 = vmatpush.bf16.msra.mxu0 %v6682
    %6722 = vmatmul.bf16.gmra.mxu0 %v6699
    %v6723 = vpop.f32.mrf.mxu0
    %v6724 = vadd.f32 %v6711, %v6723
    %v6725 = vpop.f32.mrf.mxu0
    %6726 = vdwg.mxu0
    %v6728 = vunpack.c.l.b16 %v6574
    %v6729 = vunpack.c.h.b16 %v6574
    %v6730 = vpack.c.b16 %v6728, %v6728
    %v6731 = vpack.c.b16 %v6729, %v6729
    %v6733 = vshrl.u32 %v6730, 16
    %v6735 = vshll.u32 %v6730, 16
    %v6737 = vrot.slane %v6735, 1
    %v6738 = vor.u32 %v6733, %v6737
    %v6740 = vshrl.u32 %v6731, 16
    %v6742 = vshll.u32 %v6731, 16
    %v6744 = vrot.slane %v6742, 1
    %v6745 = vor.u32 %v6740, %v6744
    %v6748 = vsel %vm4310, %v6745, 0
    %6750 = vmatpush.bf16.msra.mxu0 %v6681
    %6751 = vmatpush.bf16.msra.mxu0 %v6680
    %6752 = vmatpush.bf16.msra.mxu0 %v6679
    %6753 = vmatpush.bf16.msra.mxu0 %v6678
    %6754 = vmatpush.bf16.msra.mxu0 %v6677
    %6755 = vmatpush.bf16.msra.mxu0 %v6676
    %6756 = vmatpush.bf16.msra.mxu0 %v6675
    %6757 = vmatpush.bf16.msra.mxu0 %v6674
    %6758 = vmatmul.bf16.gmra.mxu0 %v6738
    %v6759 = vpop.f32.mrf.mxu0
    %v6760 = vadd.f32 0.0, %v6759
    %v6761 = vpop.f32.mrf.mxu0
    %6762 = vdwg.mxu0
    %6763 = vmatpush.bf16.msra.mxu0 0
    %6764 = vmatpush.bf16.msra.mxu0 0
    %6765 = vmatpush.bf16.msra.mxu0 0
    %6766 = vmatpush.bf16.msra.mxu0 0
    %6767 = vmatpush.bf16.msra.mxu0 %v6685
    %6768 = vmatpush.bf16.msra.mxu0 %v6684
    %6769 = vmatpush.bf16.msra.mxu0 %v6683
    %6770 = vmatpush.bf16.msra.mxu0 %v6682
    %6771 = vmatmul.bf16.gmra.mxu0 %v6748
    %v6772 = vpop.f32.mrf.mxu0
    %v6773 = vadd.f32 %v6760, %v6772
    %v6774 = vpop.f32.mrf.mxu0
    %6775 = vdwg.mxu0
    %v6777 = vunpack.c.l.b16 %v6575
    %v6778 = vunpack.c.h.b16 %v6575
    %v6779 = vpack.c.b16 %v6777, %v6777
    %v6780 = vpack.c.b16 %v6778, %v6778
    %v6782 = vshrl.u32 %v6779, 16
    %v6784 = vshll.u32 %v6779, 16
    %v6786 = vrot.slane %v6784, 1
    %v6787 = vor.u32 %v6782, %v6786
    %v6789 = vshrl.u32 %v6780, 16
    %v6791 = vshll.u32 %v6780, 16
    %v6793 = vrot.slane %v6791, 1
    %v6794 = vor.u32 %v6789, %v6793
    %v6797 = vsel %vm4310, %v6794, 0
    %6799 = vmatpush.bf16.msra.mxu0 %v6681
    %6800 = vmatpush.bf16.msra.mxu0 %v6680
    %6801 = vmatpush.bf16.msra.mxu0 %v6679
    %6802 = vmatpush.bf16.msra.mxu0 %v6678
    %6803 = vmatpush.bf16.msra.mxu0 %v6677
    %6804 = vmatpush.bf16.msra.mxu0 %v6676
    %6805 = vmatpush.bf16.msra.mxu0 %v6675
    %6806 = vmatpush.bf16.msra.mxu0 %v6674
    %6807 = vmatmul.bf16.gmra.mxu0 %v6787
    %v6808 = vpop.f32.mrf.mxu0
    %v6809 = vadd.f32 0.0, %v6808
    %v6810 = vpop.f32.mrf.mxu0
    %6811 = vdwg.mxu0
    %6812 = vmatpush.bf16.msra.mxu0 0
    %6813 = vmatpush.bf16.msra.mxu0 0
    %6814 = vmatpush.bf16.msra.mxu0 0
    %6815 = vmatpush.bf16.msra.mxu0 0
    %6816 = vmatpush.bf16.msra.mxu0 %v6685
    %6817 = vmatpush.bf16.msra.mxu0 %v6684
    %6818 = vmatpush.bf16.msra.mxu0 %v6683
    %6819 = vmatpush.bf16.msra.mxu0 %v6682
    %6820 = vmatmul.bf16.gmra.mxu0 %v6797
    %v6821 = vpop.f32.mrf.mxu0
    %v6822 = vadd.f32 %v6809, %v6821
    %v6823 = vpop.f32.mrf.mxu0
    %6824 = vdwg.mxu0
    %v6826 = vunpack.c.l.b16 %v6576
    %v6827 = vunpack.c.h.b16 %v6576
    %v6828 = vpack.c.b16 %v6826, %v6826
    %v6829 = vpack.c.b16 %v6827, %v6827
    %v6831 = vshrl.u32 %v6828, 16
    %v6833 = vshll.u32 %v6828, 16
    %v6835 = vrot.slane %v6833, 1
    %v6836 = vor.u32 %v6831, %v6835
    %v6838 = vshrl.u32 %v6829, 16
    %v6840 = vshll.u32 %v6829, 16
    %v6842 = vrot.slane %v6840, 1
    %v6843 = vor.u32 %v6838, %v6842
    %v6846 = vsel %vm4310, %v6843, 0
    %6848 = vmatpush.bf16.msra.mxu0 %v6681
    %6849 = vmatpush.bf16.msra.mxu0 %v6680
    %6850 = vmatpush.bf16.msra.mxu0 %v6679
    %6851 = vmatpush.bf16.msra.mxu0 %v6678
    %6852 = vmatpush.bf16.msra.mxu0 %v6677
    %6853 = vmatpush.bf16.msra.mxu0 %v6676
    %6854 = vmatpush.bf16.msra.mxu0 %v6675
    %6855 = vmatpush.bf16.msra.mxu0 %v6674
    %6856 = vmatmul.bf16.gmra.mxu0 %v6836
    %v6857 = vpop.f32.mrf.mxu0
    %v6858 = vadd.f32 0.0, %v6857
    %v6859 = vpop.f32.mrf.mxu0
    %6860 = vdwg.mxu0
    %6861 = vmatpush.bf16.msra.mxu0 0
    %6862 = vmatpush.bf16.msra.mxu0 0
    %6863 = vmatpush.bf16.msra.mxu0 0
    %6864 = vmatpush.bf16.msra.mxu0 0
    %6865 = vmatpush.bf16.msra.mxu0 %v6685
    %6866 = vmatpush.bf16.msra.mxu0 %v6684
    %6867 = vmatpush.bf16.msra.mxu0 %v6683
    %6868 = vmatpush.bf16.msra.mxu0 %v6682
    %6869 = vmatmul.bf16.gmra.mxu0 %v6846
    %v6870 = vpop.f32.mrf.mxu0
    %v6871 = vadd.f32 %v6858, %v6870
    %v6872 = vpop.f32.mrf.mxu0
    %6873 = vdwg.mxu0
    %v6875 = vunpack.c.l.b16 %v6577
    %v6876 = vunpack.c.h.b16 %v6577
    %v6877 = vpack.c.b16 %v6875, %v6875
    %v6878 = vpack.c.b16 %v6876, %v6876
    %v6880 = vshrl.u32 %v6877, 16
    %v6882 = vshll.u32 %v6877, 16
    %v6884 = vrot.slane %v6882, 1
    %v6885 = vor.u32 %v6880, %v6884
    %v6887 = vshrl.u32 %v6878, 16
    %v6889 = vshll.u32 %v6878, 16
    %v6891 = vrot.slane %v6889, 1
    %v6892 = vor.u32 %v6887, %v6891
    %v6895 = vsel %vm4310, %v6892, 0
    %6897 = vmatpush.bf16.msra.mxu0 %v6681
    %6898 = vmatpush.bf16.msra.mxu0 %v6680
    %6899 = vmatpush.bf16.msra.mxu0 %v6679
    %6900 = vmatpush.bf16.msra.mxu0 %v6678
    %6901 = vmatpush.bf16.msra.mxu0 %v6677
    %6902 = vmatpush.bf16.msra.mxu0 %v6676
    %6903 = vmatpush.bf16.msra.mxu0 %v6675
    %6904 = vmatpush.bf16.msra.mxu0 %v6674
    %6905 = vmatmul.bf16.gmra.mxu0 %v6885
    %v6906 = vpop.f32.mrf.mxu0
    %v6907 = vadd.f32 0.0, %v6906
    %v6908 = vpop.f32.mrf.mxu0
    %6909 = vdwg.mxu0
    %6910 = vmatpush.bf16.msra.mxu0 0
    %6911 = vmatpush.bf16.msra.mxu0 0
    %6912 = vmatpush.bf16.msra.mxu0 0
    %6913 = vmatpush.bf16.msra.mxu0 0
    %6914 = vmatpush.bf16.msra.mxu0 %v6685
    %6915 = vmatpush.bf16.msra.mxu0 %v6684
    %6916 = vmatpush.bf16.msra.mxu0 %v6683
    %6917 = vmatpush.bf16.msra.mxu0 %v6682
    %6918 = vmatmul.bf16.gmra.mxu0 %v6895
    %v6919 = vpop.f32.mrf.mxu0
    %v6920 = vadd.f32 %v6907, %v6919
    %v6921 = vpop.f32.mrf.mxu0
    %6922 = vdwg.mxu0
    %v6924 = vunpack.c.l.b16 %v6578
    %v6925 = vunpack.c.h.b16 %v6578
    %v6926 = vpack.c.b16 %v6924, %v6924
    %v6927 = vpack.c.b16 %v6925, %v6925
    %v6929 = vshrl.u32 %v6926, 16
    %v6931 = vshll.u32 %v6926, 16
    %v6933 = vrot.slane %v6931, 1
    %v6934 = vor.u32 %v6929, %v6933
    %v6936 = vshrl.u32 %v6927, 16
    %v6938 = vshll.u32 %v6927, 16
    %v6940 = vrot.slane %v6938, 1
    %v6941 = vor.u32 %v6936, %v6940
    %v6944 = vsel %vm4310, %v6941, 0
    %6946 = vmatpush.bf16.msra.mxu0 %v6681
    %6947 = vmatpush.bf16.msra.mxu0 %v6680
    %6948 = vmatpush.bf16.msra.mxu0 %v6679
    %6949 = vmatpush.bf16.msra.mxu0 %v6678
    %6950 = vmatpush.bf16.msra.mxu0 %v6677
    %6951 = vmatpush.bf16.msra.mxu0 %v6676
    %6952 = vmatpush.bf16.msra.mxu0 %v6675
    %6953 = vmatpush.bf16.msra.mxu0 %v6674
    %6954 = vmatmul.bf16.gmra.mxu0 %v6934
    %v6955 = vpop.f32.mrf.mxu0
    %v6956 = vadd.f32 0.0, %v6955
    %v6957 = vpop.f32.mrf.mxu0
    %6958 = vdwg.mxu0
    %6959 = vmatpush.bf16.msra.mxu0 0
    %6960 = vmatpush.bf16.msra.mxu0 0
    %6961 = vmatpush.bf16.msra.mxu0 0
    %6962 = vmatpush.bf16.msra.mxu0 0
    %6963 = vmatpush.bf16.msra.mxu0 %v6685
    %6964 = vmatpush.bf16.msra.mxu0 %v6684
    %6965 = vmatpush.bf16.msra.mxu0 %v6683
    %6966 = vmatpush.bf16.msra.mxu0 %v6682
    %6967 = vmatmul.bf16.gmra.mxu0 %v6944
    %v6968 = vpop.f32.mrf.mxu0
    %v6969 = vadd.f32 %v6956, %v6968
    %v6970 = vpop.f32.mrf.mxu0
    %6971 = vdwg.mxu0
    %v6973 = vunpack.c.l.b16 %v6579
    %v6974 = vunpack.c.h.b16 %v6579
    %v6975 = vpack.c.b16 %v6973, %v6973
    %v6976 = vpack.c.b16 %v6974, %v6974
    %v6978 = vshrl.u32 %v6975, 16
    %v6980 = vshll.u32 %v6975, 16
    %v6982 = vrot.slane %v6980, 1
    %v6983 = vor.u32 %v6978, %v6982
    %v6985 = vshrl.u32 %v6976, 16
    %v6987 = vshll.u32 %v6976, 16
    %v6989 = vrot.slane %v6987, 1
    %v6990 = vor.u32 %v6985, %v6989
    %v6993 = vsel %vm4310, %v6990, 0
    %6995 = vmatpush.bf16.msra.mxu0 %v6681
    %6996 = vmatpush.bf16.msra.mxu0 %v6680
    %6997 = vmatpush.bf16.msra.mxu0 %v6679
    %6998 = vmatpush.bf16.msra.mxu0 %v6678
    %6999 = vmatpush.bf16.msra.mxu0 %v6677
    %7000 = vmatpush.bf16.msra.mxu0 %v6676
    %7001 = vmatpush.bf16.msra.mxu0 %v6675
    %7002 = vmatpush.bf16.msra.mxu0 %v6674
    %7003 = vmatmul.bf16.gmra.mxu0 %v6983
    %v7004 = vpop.f32.mrf.mxu0
    %v7005 = vadd.f32 0.0, %v7004
    %v7006 = vpop.f32.mrf.mxu0
    %7007 = vdwg.mxu0
    %7008 = vmatpush.bf16.msra.mxu0 0
    %7009 = vmatpush.bf16.msra.mxu0 0
    %7010 = vmatpush.bf16.msra.mxu0 0
    %7011 = vmatpush.bf16.msra.mxu0 0
    %7012 = vmatpush.bf16.msra.mxu0 %v6685
    %7013 = vmatpush.bf16.msra.mxu0 %v6684
    %7014 = vmatpush.bf16.msra.mxu0 %v6683
    %7015 = vmatpush.bf16.msra.mxu0 %v6682
    %7016 = vmatmul.bf16.gmra.mxu0 %v6993
    %v7017 = vpop.f32.mrf.mxu0
    %v7018 = vadd.f32 %v7005, %v7017
    %v7019 = vpop.f32.mrf.mxu0
    %7020 = vdwg.mxu0
    %v7022 = vunpack.c.l.b16 %v6580
    %v7023 = vunpack.c.h.b16 %v6580
    %v7024 = vpack.c.b16 %v7022, %v7022
    %v7025 = vpack.c.b16 %v7023, %v7023
    %v7027 = vshrl.u32 %v7024, 16
    %v7029 = vshll.u32 %v7024, 16
    %v7031 = vrot.slane %v7029, 1
    %v7032 = vor.u32 %v7027, %v7031
    %v7034 = vshrl.u32 %v7025, 16
    %v7036 = vshll.u32 %v7025, 16
    %v7038 = vrot.slane %v7036, 1
    %v7039 = vor.u32 %v7034, %v7038
    %v7042 = vsel %vm4310, %v7039, 0
    %7044 = vmatpush.bf16.msra.mxu0 %v6681
    %7045 = vmatpush.bf16.msra.mxu0 %v6680
    %7046 = vmatpush.bf16.msra.mxu0 %v6679
    %7047 = vmatpush.bf16.msra.mxu0 %v6678
    %7048 = vmatpush.bf16.msra.mxu0 %v6677
    %7049 = vmatpush.bf16.msra.mxu0 %v6676
    %7050 = vmatpush.bf16.msra.mxu0 %v6675
    %7051 = vmatpush.bf16.msra.mxu0 %v6674
    %7052 = vmatmul.bf16.gmra.mxu0 %v7032
    %v7053 = vpop.f32.mrf.mxu0
    %v7054 = vadd.f32 0.0, %v7053
    %v7055 = vpop.f32.mrf.mxu0
    %7056 = vdwg.mxu0
    %7057 = vmatpush.bf16.msra.mxu0 0
    %7058 = vmatpush.bf16.msra.mxu0 0
    %7059 = vmatpush.bf16.msra.mxu0 0
    %7060 = vmatpush.bf16.msra.mxu0 0
    %7061 = vmatpush.bf16.msra.mxu0 %v6685
    %7062 = vmatpush.bf16.msra.mxu0 %v6684
    %7063 = vmatpush.bf16.msra.mxu0 %v6683
    %7064 = vmatpush.bf16.msra.mxu0 %v6682
    %7065 = vmatmul.bf16.gmra.mxu0 %v7042
    %v7066 = vpop.f32.mrf.mxu0
    %v7067 = vadd.f32 %v7054, %v7066
    %v7068 = vpop.f32.mrf.mxu0
    %7069 = vdwg.mxu0
    %v7070 = vadd.f32 %v6565, %v6724
    %v7071 = vadd.f32 %v6566, %v6773
    %v7072 = vadd.f32 %v6567, %v6822
    %v7073 = vadd.f32 %v6568, %v6871
    %v7074 = vadd.f32 %v6569, %v6920
    %v7075 = vadd.f32 %v6570, %v6969
    %v7076 = vadd.f32 %v6571, %v7018
    %v7077 = vadd.f32 %v6572, %v7067
    %v7078 = vld [vmem:[%s6179] sm:$0x66]
    %v7079 = vld [vmem:[%s6179 + $0x8] sm:$0x66]
    %v7080 = vld [vmem:[%s6179 + $0x10] sm:$0x66]
    %v7081 = vld [vmem:[%s6179 + $0x18] sm:$0x66]
    %v7082 = vld [vmem:[%s6179 + $0x30] sm:$0x66]
    %v7083 = vld [vmem:[%s6179 + $0x38] sm:$0x66]
    %v7084 = vld [vmem:[%s6179 + $0x40] sm:$0x66]
    %v7085 = vld [vmem:[%s6179 + $0x48] sm:$0x66]
    %s7086 = scalar_lea.vmem %s2, 480
    %v7087 = vld [vmem:[%s7086] sm:$0xf]
    %v7088 = vld [vmem:[%s7086 + $0x4] sm:$0xf]
    %v7089 = vld [vmem:[%s7086 + $0x8] sm:$0xf]
    %v7090 = vld [vmem:[%s7086 + $0xc] sm:$0xf]
    %v7091 = vld [vmem:[%s7086 + $0x10] sm:$0xf]
    %v7092 = vld [vmem:[%s7086 + $0x14] sm:$0xf]
    %v7093 = vld [vmem:[%s7086 + $0x18] sm:$0xf]
    %v7094 = vld [vmem:[%s7086 + $0x1c] sm:$0xf]
    %v7095 = vld [vmem:[%s7086 + $0x20] sm:$0xf]
    %v7096 = vld [vmem:[%s7086 + $0x24] sm:$0xf]
    %v7097 = vld [vmem:[%s7086 + $0x28] sm:$0xf]
    %v7098 = vld [vmem:[%s7086 + $0x2c] sm:$0xf]
    %v7099 = vld [vmem:[%s7086 + $0x30] sm:$0xf]
    %v7100 = vld [vmem:[%s7086 + $0x34] sm:$0xf]
    %v7101 = vld [vmem:[%s7086 + $0x38] sm:$0xf]
    %v7102 = vld [vmem:[%s7086 + $0x3c] sm:$0xf]
    %v7103 = vld [vmem:[%s7086 + $0x40] sm:$0xf]
    %v7104 = vld [vmem:[%s7086 + $0x44] sm:$0xf]
    %v7105 = vld [vmem:[%s7086 + $0x48] sm:$0xf]
    %v7106 = vld [vmem:[%s7086 + $0x4c] sm:$0xf]
    %v7107 = vld [vmem:[%s7086 + $0x50] sm:$0xf]
    %v7108 = vld [vmem:[%s7086 + $0x54] sm:$0xf]
    %v7109 = vld [vmem:[%s7086 + $0x58] sm:$0xf]
    %v7110 = vld [vmem:[%s7086 + $0x5c] sm:$0xf]
    %v7112 = vunpack.c.l.b16 %v7078
    %v7113 = vunpack.c.h.b16 %v7078
    %v7114 = vpack.c.b16 %v7112, %v7112
    %v7115 = vpack.c.b16 %v7113, %v7113
    %v7116 = vrot.slane %v7114, 1
    %v7117 = vrot.slane %v7115, 1
    %v7143 = vunpack.c.l.b16 %v7087
    %v7144 = vunpack.c.l.b16 %v7088
    %v7145 = vunpack.c.l.b16 %v7089
    %v7146 = vunpack.c.l.b16 %v7090
    %v7147 = vunpack.c.l.b16 %v7091
    %v7148 = vunpack.c.l.b16 %v7092
    %v7149 = vunpack.c.l.b16 %v7093
    %v7150 = vunpack.c.l.b16 %v7094
    %v7151 = vunpack.c.l.b16 %v7095
    %v7152 = vunpack.c.l.b16 %v7096
    %v7153 = vunpack.c.l.b16 %v7097
    %v7154 = vunpack.c.l.b16 %v7098
    %v7155 = vunpack.c.l.b16 %v7099
    %v7156 = vunpack.c.l.b16 %v7100
    %v7157 = vunpack.c.l.b16 %v7101
    %v7158 = vunpack.c.l.b16 %v7102
    %v7159 = vunpack.c.l.b16 %v7103
    %v7160 = vunpack.c.l.b16 %v7104
    %v7161 = vunpack.c.l.b16 %v7105
    %v7162 = vunpack.c.l.b16 %v7106
    %v7163 = vunpack.c.l.b16 %v7107
    %v7164 = vunpack.c.l.b16 %v7108
    %v7165 = vunpack.c.l.b16 %v7109
    %v7166 = vunpack.c.l.b16 %v7110
    %v7167 = vpack.c.b16 %v7144, %v7143
    %v7168 = vpack.c.b16 %v7146, %v7145
    %v7169 = vpack.c.b16 %v7148, %v7147
    %v7170 = vpack.c.b16 %v7150, %v7149
    %v7171 = vpack.c.b16 %v7152, %v7151
    %v7172 = vpack.c.b16 %v7154, %v7153
    %v7173 = vpack.c.b16 %v7156, %v7155
    %v7174 = vpack.c.b16 %v7158, %v7157
    %v7175 = vpack.c.b16 %v7160, %v7159
    %v7176 = vpack.c.b16 %v7162, %v7161
    %v7177 = vpack.c.b16 %v7164, %v7163
    %v7178 = vpack.c.b16 %v7166, %v7165
    %v7192 = vsel %vm4310, %v7117, 0
    %7194 = vmatpush.bf16.msra.mxu0 %v7174
    %7195 = vmatpush.bf16.msra.mxu0 %v7173
    %7196 = vmatpush.bf16.msra.mxu0 %v7172
    %7197 = vmatpush.bf16.msra.mxu0 %v7171
    %7198 = vmatpush.bf16.msra.mxu0 %v7170
    %7199 = vmatpush.bf16.msra.mxu0 %v7169
    %7200 = vmatpush.bf16.msra.mxu0 %v7168
    %7201 = vmatpush.bf16.msra.mxu0 %v7167
    %7202 = vmatmul.bf16.gmra.mxu0 %v7116
    %v7203 = vpop.f32.mrf.mxu0
    %v7204 = vadd.f32 0.0, %v7203
    %v7205 = vpop.f32.mrf.mxu0
    %7206 = vdwg.mxu0
    %7207 = vmatpush.bf16.msra.mxu0 0
    %7208 = vmatpush.bf16.msra.mxu0 0
    %7209 = vmatpush.bf16.msra.mxu0 0
    %7210 = vmatpush.bf16.msra.mxu0 0
    %7211 = vmatpush.bf16.msra.mxu0 %v7178
    %7212 = vmatpush.bf16.msra.mxu0 %v7177
    %7213 = vmatpush.bf16.msra.mxu0 %v7176
    %7214 = vmatpush.bf16.msra.mxu0 %v7175
    %7215 = vmatmul.bf16.gmra.mxu0 %v7192
    %v7216 = vpop.f32.mrf.mxu0
    %v7217 = vadd.f32 %v7204, %v7216
    %v7218 = vpop.f32.mrf.mxu0
    %7219 = vdwg.mxu0
    %v7221 = vunpack.c.l.b16 %v7079
    %v7222 = vunpack.c.h.b16 %v7079
    %v7223 = vpack.c.b16 %v7221, %v7221
    %v7224 = vpack.c.b16 %v7222, %v7222
    %v7225 = vrot.slane %v7223, 1
    %v7226 = vrot.slane %v7224, 1
    %v7229 = vsel %vm4310, %v7226, 0
    %7231 = vmatpush.bf16.msra.mxu0 %v7174
    %7232 = vmatpush.bf16.msra.mxu0 %v7173
    %7233 = vmatpush.bf16.msra.mxu0 %v7172
    %7234 = vmatpush.bf16.msra.mxu0 %v7171
    %7235 = vmatpush.bf16.msra.mxu0 %v7170
    %7236 = vmatpush.bf16.msra.mxu0 %v7169
    %7237 = vmatpush.bf16.msra.mxu0 %v7168
    %7238 = vmatpush.bf16.msra.mxu0 %v7167
    %7239 = vmatmul.bf16.gmra.mxu0 %v7225
    %v7240 = vpop.f32.mrf.mxu0
    %v7241 = vadd.f32 0.0, %v7240
    %v7242 = vpop.f32.mrf.mxu0
    %7243 = vdwg.mxu0
    %7244 = vmatpush.bf16.msra.mxu0 0
    %7245 = vmatpush.bf16.msra.mxu0 0
    %7246 = vmatpush.bf16.msra.mxu0 0
    %7247 = vmatpush.bf16.msra.mxu0 0
    %7248 = vmatpush.bf16.msra.mxu0 %v7178
    %7249 = vmatpush.bf16.msra.mxu0 %v7177
    %7250 = vmatpush.bf16.msra.mxu0 %v7176
    %7251 = vmatpush.bf16.msra.mxu0 %v7175
    %7252 = vmatmul.bf16.gmra.mxu0 %v7229
    %v7253 = vpop.f32.mrf.mxu0
    %v7254 = vadd.f32 %v7241, %v7253
    %v7255 = vpop.f32.mrf.mxu0
    %7256 = vdwg.mxu0
    %v7258 = vunpack.c.l.b16 %v7080
    %v7259 = vunpack.c.h.b16 %v7080
    %v7260 = vpack.c.b16 %v7258, %v7258
    %v7261 = vpack.c.b16 %v7259, %v7259
    %v7262 = vrot.slane %v7260, 1
    %v7263 = vrot.slane %v7261, 1
    %v7266 = vsel %vm4310, %v7263, 0
    %7268 = vmatpush.bf16.msra.mxu0 %v7174
    %7269 = vmatpush.bf16.msra.mxu0 %v7173
    %7270 = vmatpush.bf16.msra.mxu0 %v7172
    %7271 = vmatpush.bf16.msra.mxu0 %v7171
    %7272 = vmatpush.bf16.msra.mxu0 %v7170
    %7273 = vmatpush.bf16.msra.mxu0 %v7169
    %7274 = vmatpush.bf16.msra.mxu0 %v7168
    %7275 = vmatpush.bf16.msra.mxu0 %v7167
    %7276 = vmatmul.bf16.gmra.mxu0 %v7262
    %v7277 = vpop.f32.mrf.mxu0
    %v7278 = vadd.f32 0.0, %v7277
    %v7279 = vpop.f32.mrf.mxu0
    %7280 = vdwg.mxu0
    %7281 = vmatpush.bf16.msra.mxu0 0
    %7282 = vmatpush.bf16.msra.mxu0 0
    %7283 = vmatpush.bf16.msra.mxu0 0
    %7284 = vmatpush.bf16.msra.mxu0 0
    %7285 = vmatpush.bf16.msra.mxu0 %v7178
    %7286 = vmatpush.bf16.msra.mxu0 %v7177
    %7287 = vmatpush.bf16.msra.mxu0 %v7176
    %7288 = vmatpush.bf16.msra.mxu0 %v7175
    %7289 = vmatmul.bf16.gmra.mxu0 %v7266
    %v7290 = vpop.f32.mrf.mxu0
    %v7291 = vadd.f32 %v7278, %v7290
    %v7292 = vpop.f32.mrf.mxu0
    %7293 = vdwg.mxu0
    %v7295 = vunpack.c.l.b16 %v7081
    %v7296 = vunpack.c.h.b16 %v7081
    %v7297 = vpack.c.b16 %v7295, %v7295
    %v7298 = vpack.c.b16 %v7296, %v7296
    %v7299 = vrot.slane %v7297, 1
    %v7300 = vrot.slane %v7298, 1
    %v7303 = vsel %vm4310, %v7300, 0
    %7305 = vmatpush.bf16.msra.mxu0 %v7174
    %7306 = vmatpush.bf16.msra.mxu0 %v7173
    %7307 = vmatpush.bf16.msra.mxu0 %v7172
    %7308 = vmatpush.bf16.msra.mxu0 %v7171
    %7309 = vmatpush.bf16.msra.mxu0 %v7170
    %7310 = vmatpush.bf16.msra.mxu0 %v7169
    %7311 = vmatpush.bf16.msra.mxu0 %v7168
    %7312 = vmatpush.bf16.msra.mxu0 %v7167
    %7313 = vmatmul.bf16.gmra.mxu0 %v7299
    %v7314 = vpop.f32.mrf.mxu0
    %v7315 = vadd.f32 0.0, %v7314
    %v7316 = vpop.f32.mrf.mxu0
    %7317 = vdwg.mxu0
    %7318 = vmatpush.bf16.msra.mxu0 0
    %7319 = vmatpush.bf16.msra.mxu0 0
    %7320 = vmatpush.bf16.msra.mxu0 0
    %7321 = vmatpush.bf16.msra.mxu0 0
    %7322 = vmatpush.bf16.msra.mxu0 %v7178
    %7323 = vmatpush.bf16.msra.mxu0 %v7177
    %7324 = vmatpush.bf16.msra.mxu0 %v7176
    %7325 = vmatpush.bf16.msra.mxu0 %v7175
    %7326 = vmatmul.bf16.gmra.mxu0 %v7303
    %v7327 = vpop.f32.mrf.mxu0
    %v7328 = vadd.f32 %v7315, %v7327
    %v7329 = vpop.f32.mrf.mxu0
    %7330 = vdwg.mxu0
    %v7332 = vunpack.c.l.b16 %v7082
    %v7333 = vunpack.c.h.b16 %v7082
    %v7334 = vpack.c.b16 %v7332, %v7332
    %v7335 = vpack.c.b16 %v7333, %v7333
    %v7336 = vrot.slane %v7334, 1
    %v7337 = vrot.slane %v7335, 1
    %v7340 = vsel %vm4310, %v7337, 0
    %7342 = vmatpush.bf16.msra.mxu0 %v7174
    %7343 = vmatpush.bf16.msra.mxu0 %v7173
    %7344 = vmatpush.bf16.msra.mxu0 %v7172
    %7345 = vmatpush.bf16.msra.mxu0 %v7171
    %7346 = vmatpush.bf16.msra.mxu0 %v7170
    %7347 = vmatpush.bf16.msra.mxu0 %v7169
    %7348 = vmatpush.bf16.msra.mxu0 %v7168
    %7349 = vmatpush.bf16.msra.mxu0 %v7167
    %7350 = vmatmul.bf16.gmra.mxu0 %v7336
    %v7351 = vpop.f32.mrf.mxu0
    %v7352 = vadd.f32 0.0, %v7351
    %v7353 = vpop.f32.mrf.mxu0
    %7354 = vdwg.mxu0
    %7355 = vmatpush.bf16.msra.mxu0 0
    %7356 = vmatpush.bf16.msra.mxu0 0
    %7357 = vmatpush.bf16.msra.mxu0 0
    %7358 = vmatpush.bf16.msra.mxu0 0
    %7359 = vmatpush.bf16.msra.mxu0 %v7178
    %7360 = vmatpush.bf16.msra.mxu0 %v7177
    %7361 = vmatpush.bf16.msra.mxu0 %v7176
    %7362 = vmatpush.bf16.msra.mxu0 %v7175
    %7363 = vmatmul.bf16.gmra.mxu0 %v7340
    %v7364 = vpop.f32.mrf.mxu0
    %v7365 = vadd.f32 %v7352, %v7364
    %v7366 = vpop.f32.mrf.mxu0
    %7367 = vdwg.mxu0
    %v7369 = vunpack.c.l.b16 %v7083
    %v7370 = vunpack.c.h.b16 %v7083
    %v7371 = vpack.c.b16 %v7369, %v7369
    %v7372 = vpack.c.b16 %v7370, %v7370
    %v7373 = vrot.slane %v7371, 1
    %v7374 = vrot.slane %v7372, 1
    %v7377 = vsel %vm4310, %v7374, 0
    %7379 = vmatpush.bf16.msra.mxu0 %v7174
    %7380 = vmatpush.bf16.msra.mxu0 %v7173
    %7381 = vmatpush.bf16.msra.mxu0 %v7172
    %7382 = vmatpush.bf16.msra.mxu0 %v7171
    %7383 = vmatpush.bf16.msra.mxu0 %v7170
    %7384 = vmatpush.bf16.msra.mxu0 %v7169
    %7385 = vmatpush.bf16.msra.mxu0 %v7168
    %7386 = vmatpush.bf16.msra.mxu0 %v7167
    %7387 = vmatmul.bf16.gmra.mxu0 %v7373
    %v7388 = vpop.f32.mrf.mxu0
    %v7389 = vadd.f32 0.0, %v7388
    %v7390 = vpop.f32.mrf.mxu0
    %7391 = vdwg.mxu0
    %7392 = vmatpush.bf16.msra.mxu0 0
    %7393 = vmatpush.bf16.msra.mxu0 0
    %7394 = vmatpush.bf16.msra.mxu0 0
    %7395 = vmatpush.bf16.msra.mxu0 0
    %7396 = vmatpush.bf16.msra.mxu0 %v7178
    %7397 = vmatpush.bf16.msra.mxu0 %v7177
    %7398 = vmatpush.bf16.msra.mxu0 %v7176
    %7399 = vmatpush.bf16.msra.mxu0 %v7175
    %7400 = vmatmul.bf16.gmra.mxu0 %v7377
    %v7401 = vpop.f32.mrf.mxu0
    %v7402 = vadd.f32 %v7389, %v7401
    %v7403 = vpop.f32.mrf.mxu0
    %7404 = vdwg.mxu0
    %v7406 = vunpack.c.l.b16 %v7084
    %v7407 = vunpack.c.h.b16 %v7084
    %v7408 = vpack.c.b16 %v7406, %v7406
    %v7409 = vpack.c.b16 %v7407, %v7407
    %v7410 = vrot.slane %v7408, 1
    %v7411 = vrot.slane %v7409, 1
    %v7414 = vsel %vm4310, %v7411, 0
    %7416 = vmatpush.bf16.msra.mxu0 %v7174
    %7417 = vmatpush.bf16.msra.mxu0 %v7173
    %7418 = vmatpush.bf16.msra.mxu0 %v7172
    %7419 = vmatpush.bf16.msra.mxu0 %v7171
    %7420 = vmatpush.bf16.msra.mxu0 %v7170
    %7421 = vmatpush.bf16.msra.mxu0 %v7169
    %7422 = vmatpush.bf16.msra.mxu0 %v7168
    %7423 = vmatpush.bf16.msra.mxu0 %v7167
    %7424 = vmatmul.bf16.gmra.mxu0 %v7410
    %v7425 = vpop.f32.mrf.mxu0
    %v7426 = vadd.f32 0.0, %v7425
    %v7427 = vpop.f32.mrf.mxu0
    %7428 = vdwg.mxu0
    %7429 = vmatpush.bf16.msra.mxu0 0
    %7430 = vmatpush.bf16.msra.mxu0 0
    %7431 = vmatpush.bf16.msra.mxu0 0
    %7432 = vmatpush.bf16.msra.mxu0 0
    %7433 = vmatpush.bf16.msra.mxu0 %v7178
    %7434 = vmatpush.bf16.msra.mxu0 %v7177
    %7435 = vmatpush.bf16.msra.mxu0 %v7176
    %7436 = vmatpush.bf16.msra.mxu0 %v7175
    %7437 = vmatmul.bf16.gmra.mxu0 %v7414
    %v7438 = vpop.f32.mrf.mxu0
    %v7439 = vadd.f32 %v7426, %v7438
    %v7440 = vpop.f32.mrf.mxu0
    %7441 = vdwg.mxu0
    %v7443 = vunpack.c.l.b16 %v7085
    %v7444 = vunpack.c.h.b16 %v7085
    %v7445 = vpack.c.b16 %v7443, %v7443
    %v7446 = vpack.c.b16 %v7444, %v7444
    %v7447 = vrot.slane %v7445, 1
    %v7448 = vrot.slane %v7446, 1
    %v7451 = vsel %vm4310, %v7448, 0
    %7453 = vmatpush.bf16.msra.mxu0 %v7174
    %7454 = vmatpush.bf16.msra.mxu0 %v7173
    %7455 = vmatpush.bf16.msra.mxu0 %v7172
    %7456 = vmatpush.bf16.msra.mxu0 %v7171
    %7457 = vmatpush.bf16.msra.mxu0 %v7170
    %7458 = vmatpush.bf16.msra.mxu0 %v7169
    %7459 = vmatpush.bf16.msra.mxu0 %v7168
    %7460 = vmatpush.bf16.msra.mxu0 %v7167
    %7461 = vmatmul.bf16.gmra.mxu0 %v7447
    %v7462 = vpop.f32.mrf.mxu0
    %v7463 = vadd.f32 0.0, %v7462
    %v7464 = vpop.f32.mrf.mxu0
    %7465 = vdwg.mxu0
    %7466 = vmatpush.bf16.msra.mxu0 0
    %7467 = vmatpush.bf16.msra.mxu0 0
    %7468 = vmatpush.bf16.msra.mxu0 0
    %7469 = vmatpush.bf16.msra.mxu0 0
    %7470 = vmatpush.bf16.msra.mxu0 %v7178
    %7471 = vmatpush.bf16.msra.mxu0 %v7177
    %7472 = vmatpush.bf16.msra.mxu0 %v7176
    %7473 = vmatpush.bf16.msra.mxu0 %v7175
    %7474 = vmatmul.bf16.gmra.mxu0 %v7451
    %v7475 = vpop.f32.mrf.mxu0
    %v7476 = vadd.f32 %v7463, %v7475
    %v7477 = vpop.f32.mrf.mxu0
    %7478 = vdwg.mxu0
    %v7479 = vadd.f32 %v7070, %v7217
    %v7480 = vadd.f32 %v7071, %v7254
    %v7481 = vadd.f32 %v7072, %v7291
    %v7482 = vadd.f32 %v7073, %v7328
    %v7483 = vadd.f32 %v7074, %v7365
    %v7484 = vadd.f32 %v7075, %v7402
    %v7485 = vadd.f32 %v7076, %v7439
    %v7486 = vadd.f32 %v7077, %v7476
    %s7487 = scalar_lea.vmem [#allocation2], 16
    %v7488 = vld [vmem:[%s7487] sm:$0x33]
    %v7489 = vld [vmem:[%s7487 + $0x8] sm:$0x33]
    %v7490 = vld [vmem:[%s7487 + $0x10] sm:$0x33]
    %v7491 = vld [vmem:[%s7487 + $0x18] sm:$0x33]
    %v7492 = vld [vmem:[%s7487 + $0x30] sm:$0x33]
    %v7493 = vld [vmem:[%s7487 + $0x38] sm:$0x33]
    %v7494 = vld [vmem:[%s7487 + $0x40] sm:$0x33]
    %v7495 = vld [vmem:[%s7487 + $0x48] sm:$0x33]
    %s7496 = scalar_lea.vmem %s2, 576
    %v7497 = vld [vmem:[%s7496] sm:$0xf]
    %v7498 = vld [vmem:[%s7496 + $0x4] sm:$0xf]
    %v7499 = vld [vmem:[%s7496 + $0x8] sm:$0xf]
    %v7500 = vld [vmem:[%s7496 + $0xc] sm:$0xf]
    %v7501 = vld [vmem:[%s7496 + $0x10] sm:$0xf]
    %v7502 = vld [vmem:[%s7496 + $0x14] sm:$0xf]
    %v7503 = vld [vmem:[%s7496 + $0x18] sm:$0xf]
    %v7504 = vld [vmem:[%s7496 + $0x1c] sm:$0xf]
    %v7505 = vld [vmem:[%s7496 + $0x20] sm:$0xf]
    %v7506 = vld [vmem:[%s7496 + $0x24] sm:$0xf]
    %v7507 = vld [vmem:[%s7496 + $0x28] sm:$0xf]
    %v7508 = vld [vmem:[%s7496 + $0x2c] sm:$0xf]
    %v7509 = vld [vmem:[%s7496 + $0x30] sm:$0xf]
    %v7510 = vld [vmem:[%s7496 + $0x34] sm:$0xf]
    %v7511 = vld [vmem:[%s7496 + $0x38] sm:$0xf]
    %v7512 = vld [vmem:[%s7496 + $0x3c] sm:$0xf]
    %v7513 = vld [vmem:[%s7496 + $0x40] sm:$0xf]
    %v7514 = vld [vmem:[%s7496 + $0x44] sm:$0xf]
    %v7515 = vld [vmem:[%s7496 + $0x48] sm:$0xf]
    %v7516 = vld [vmem:[%s7496 + $0x4c] sm:$0xf]
    %v7517 = vld [vmem:[%s7496 + $0x50] sm:$0xf]
    %v7518 = vld [vmem:[%s7496 + $0x54] sm:$0xf]
    %v7519 = vld [vmem:[%s7496 + $0x58] sm:$0xf]
    %v7520 = vld [vmem:[%s7496 + $0x5c] sm:$0xf]
    %v7522 = vunpack.c.l.b16 %v7488
    %v7523 = vunpack.c.h.b16 %v7488
    %v7524 = vpack.c.b16 %v7522, %v7522
    %v7525 = vpack.c.b16 %v7523, %v7523
    %v7551 = vunpack.c.l.b16 %v7497
    %v7552 = vunpack.c.l.b16 %v7498
    %v7553 = vunpack.c.l.b16 %v7499
    %v7554 = vunpack.c.l.b16 %v7500
    %v7555 = vunpack.c.l.b16 %v7501
    %v7556 = vunpack.c.l.b16 %v7502
    %v7557 = vunpack.c.l.b16 %v7503
    %v7558 = vunpack.c.l.b16 %v7504
    %v7559 = vunpack.c.l.b16 %v7505
    %v7560 = vunpack.c.l.b16 %v7506
    %v7561 = vunpack.c.l.b16 %v7507
    %v7562 = vunpack.c.l.b16 %v7508
    %v7563 = vunpack.c.l.b16 %v7509
    %v7564 = vunpack.c.l.b16 %v7510
    %v7565 = vunpack.c.l.b16 %v7511
    %v7566 = vunpack.c.l.b16 %v7512
    %v7567 = vunpack.c.l.b16 %v7513
    %v7568 = vunpack.c.l.b16 %v7514
    %v7569 = vunpack.c.l.b16 %v7515
    %v7570 = vunpack.c.l.b16 %v7516
    %v7571 = vunpack.c.l.b16 %v7517
    %v7572 = vunpack.c.l.b16 %v7518
    %v7573 = vunpack.c.l.b16 %v7519
    %v7574 = vunpack.c.l.b16 %v7520
    %v7575 = vpack.c.b16 %v7552, %v7551
    %v7576 = vpack.c.b16 %v7554, %v7553
    %v7577 = vpack.c.b16 %v7556, %v7555
    %v7578 = vpack.c.b16 %v7558, %v7557
    %v7579 = vpack.c.b16 %v7560, %v7559
    %v7580 = vpack.c.b16 %v7562, %v7561
    %v7581 = vpack.c.b16 %v7564, %v7563
    %v7582 = vpack.c.b16 %v7566, %v7565
    %v7583 = vpack.c.b16 %v7568, %v7567
    %v7584 = vpack.c.b16 %v7570, %v7569
    %v7585 = vpack.c.b16 %v7572, %v7571
    %v7586 = vpack.c.b16 %v7574, %v7573
    %v7600 = vsel %vm4310, %v7525, 0
    %7602 = vmatpush.bf16.msra.mxu0 %v7582
    %7603 = vmatpush.bf16.msra.mxu0 %v7581
    %7604 = vmatpush.bf16.msra.mxu0 %v7580
    %7605 = vmatpush.bf16.msra.mxu0 %v7579
    %7606 = vmatpush.bf16.msra.mxu0 %v7578
    %7607 = vmatpush.bf16.msra.mxu0 %v7577
    %7608 = vmatpush.bf16.msra.mxu0 %v7576
    %7609 = vmatpush.bf16.msra.mxu0 %v7575
    %7610 = vmatmul.bf16.gmra.mxu0 %v7524
    %v7611 = vpop.f32.mrf.mxu0
    %v7612 = vadd.f32 0.0, %v7611
    %v7613 = vpop.f32.mrf.mxu0
    %7614 = vdwg.mxu0
    %7615 = vmatpush.bf16.msra.mxu0 0
    %7616 = vmatpush.bf16.msra.mxu0 0
    %7617 = vmatpush.bf16.msra.mxu0 0
    %7618 = vmatpush.bf16.msra.mxu0 0
    %7619 = vmatpush.bf16.msra.mxu0 %v7586
    %7620 = vmatpush.bf16.msra.mxu0 %v7585
    %7621 = vmatpush.bf16.msra.mxu0 %v7584
    %7622 = vmatpush.bf16.msra.mxu0 %v7583
    %7623 = vmatmul.bf16.gmra.mxu0 %v7600
    %v7624 = vpop.f32.mrf.mxu0
    %v7625 = vadd.f32 %v7612, %v7624
    %v7626 = vpop.f32.mrf.mxu0
    %7627 = vdwg.mxu0
    %v7629 = vunpack.c.l.b16 %v7489
    %v7630 = vunpack.c.h.b16 %v7489
    %v7631 = vpack.c.b16 %v7629, %v7629
    %v7632 = vpack.c.b16 %v7630, %v7630
    %v7635 = vsel %vm4310, %v7632, 0
    %7637 = vmatpush.bf16.msra.mxu0 %v7582
    %7638 = vmatpush.bf16.msra.mxu0 %v7581
    %7639 = vmatpush.bf16.msra.mxu0 %v7580
    %7640 = vmatpush.bf16.msra.mxu0 %v7579
    %7641 = vmatpush.bf16.msra.mxu0 %v7578
    %7642 = vmatpush.bf16.msra.mxu0 %v7577
    %7643 = vmatpush.bf16.msra.mxu0 %v7576
    %7644 = vmatpush.bf16.msra.mxu0 %v7575
    %7645 = vmatmul.bf16.gmra.mxu0 %v7631
    %v7646 = vpop.f32.mrf.mxu0
    %v7647 = vadd.f32 0.0, %v7646
    %v7648 = vpop.f32.mrf.mxu0
    %7649 = vdwg.mxu0
    %7650 = vmatpush.bf16.msra.mxu0 0
    %7651 = vmatpush.bf16.msra.mxu0 0
    %7652 = vmatpush.bf16.msra.mxu0 0
    %7653 = vmatpush.bf16.msra.mxu0 0
    %7654 = vmatpush.bf16.msra.mxu0 %v7586
    %7655 = vmatpush.bf16.msra.mxu0 %v7585
    %7656 = vmatpush.bf16.msra.mxu0 %v7584
    %7657 = vmatpush.bf16.msra.mxu0 %v7583
    %7658 = vmatmul.bf16.gmra.mxu0 %v7635
    %v7659 = vpop.f32.mrf.mxu0
    %v7660 = vadd.f32 %v7647, %v7659
    %v7661 = vpop.f32.mrf.mxu0
    %7662 = vdwg.mxu0
    %v7664 = vunpack.c.l.b16 %v7490
    %v7665 = vunpack.c.h.b16 %v7490
    %v7666 = vpack.c.b16 %v7664, %v7664
    %v7667 = vpack.c.b16 %v7665, %v7665
    %v7670 = vsel %vm4310, %v7667, 0
    %7672 = vmatpush.bf16.msra.mxu0 %v7582
    %7673 = vmatpush.bf16.msra.mxu0 %v7581
    %7674 = vmatpush.bf16.msra.mxu0 %v7580
    %7675 = vmatpush.bf16.msra.mxu0 %v7579
    %7676 = vmatpush.bf16.msra.mxu0 %v7578
    %7677 = vmatpush.bf16.msra.mxu0 %v7577
    %7678 = vmatpush.bf16.msra.mxu0 %v7576
    %7679 = vmatpush.bf16.msra.mxu0 %v7575
    %7680 = vmatmul.bf16.gmra.mxu0 %v7666
    %v7681 = vpop.f32.mrf.mxu0
    %v7682 = vadd.f32 0.0, %v7681
    %v7683 = vpop.f32.mrf.mxu0
    %7684 = vdwg.mxu0
    %7685 = vmatpush.bf16.msra.mxu0 0
    %7686 = vmatpush.bf16.msra.mxu0 0
    %7687 = vmatpush.bf16.msra.mxu0 0
    %7688 = vmatpush.bf16.msra.mxu0 0
    %7689 = vmatpush.bf16.msra.mxu0 %v7586
    %7690 = vmatpush.bf16.msra.mxu0 %v7585
    %7691 = vmatpush.bf16.msra.mxu0 %v7584
    %7692 = vmatpush.bf16.msra.mxu0 %v7583
    %7693 = vmatmul.bf16.gmra.mxu0 %v7670
    %v7694 = vpop.f32.mrf.mxu0
    %v7695 = vadd.f32 %v7682, %v7694
    %v7696 = vpop.f32.mrf.mxu0
    %7697 = vdwg.mxu0
    %v7699 = vunpack.c.l.b16 %v7491
    %v7700 = vunpack.c.h.b16 %v7491
    %v7701 = vpack.c.b16 %v7699, %v7699
    %v7702 = vpack.c.b16 %v7700, %v7700
    %v7705 = vsel %vm4310, %v7702, 0
    %7707 = vmatpush.bf16.msra.mxu0 %v7582
    %7708 = vmatpush.bf16.msra.mxu0 %v7581
    %7709 = vmatpush.bf16.msra.mxu0 %v7580
    %7710 = vmatpush.bf16.msra.mxu0 %v7579
    %7711 = vmatpush.bf16.msra.mxu0 %v7578
    %7712 = vmatpush.bf16.msra.mxu0 %v7577
    %7713 = vmatpush.bf16.msra.mxu0 %v7576
    %7714 = vmatpush.bf16.msra.mxu0 %v7575
    %7715 = vmatmul.bf16.gmra.mxu0 %v7701
    %v7716 = vpop.f32.mrf.mxu0
    %v7717 = vadd.f32 0.0, %v7716
    %v7718 = vpop.f32.mrf.mxu0
    %7719 = vdwg.mxu0
    %7720 = vmatpush.bf16.msra.mxu0 0
    %7721 = vmatpush.bf16.msra.mxu0 0
    %7722 = vmatpush.bf16.msra.mxu0 0
    %7723 = vmatpush.bf16.msra.mxu0 0
    %7724 = vmatpush.bf16.msra.mxu0 %v7586
    %7725 = vmatpush.bf16.msra.mxu0 %v7585
    %7726 = vmatpush.bf16.msra.mxu0 %v7584
    %7727 = vmatpush.bf16.msra.mxu0 %v7583
    %7728 = vmatmul.bf16.gmra.mxu0 %v7705
    %v7729 = vpop.f32.mrf.mxu0
    %v7730 = vadd.f32 %v7717, %v7729
    %v7731 = vpop.f32.mrf.mxu0
    %7732 = vdwg.mxu0
    %v7734 = vunpack.c.l.b16 %v7492
    %v7735 = vunpack.c.h.b16 %v7492
    %v7736 = vpack.c.b16 %v7734, %v7734
    %v7737 = vpack.c.b16 %v7735, %v7735
    %v7740 = vsel %vm4310, %v7737, 0
    %7742 = vmatpush.bf16.msra.mxu0 %v7582
    %7743 = vmatpush.bf16.msra.mxu0 %v7581
    %7744 = vmatpush.bf16.msra.mxu0 %v7580
    %7745 = vmatpush.bf16.msra.mxu0 %v7579
    %7746 = vmatpush.bf16.msra.mxu0 %v7578
    %7747 = vmatpush.bf16.msra.mxu0 %v7577
    %7748 = vmatpush.bf16.msra.mxu0 %v7576
    %7749 = vmatpush.bf16.msra.mxu0 %v7575
    %7750 = vmatmul.bf16.gmra.mxu0 %v7736
    %v7751 = vpop.f32.mrf.mxu0
    %v7752 = vadd.f32 0.0, %v7751
    %v7753 = vpop.f32.mrf.mxu0
    %7754 = vdwg.mxu0
    %7755 = vmatpush.bf16.msra.mxu0 0
    %7756 = vmatpush.bf16.msra.mxu0 0
    %7757 = vmatpush.bf16.msra.mxu0 0
    %7758 = vmatpush.bf16.msra.mxu0 0
    %7759 = vmatpush.bf16.msra.mxu0 %v7586
    %7760 = vmatpush.bf16.msra.mxu0 %v7585
    %7761 = vmatpush.bf16.msra.mxu0 %v7584
    %7762 = vmatpush.bf16.msra.mxu0 %v7583
    %7763 = vmatmul.bf16.gmra.mxu0 %v7740
    %v7764 = vpop.f32.mrf.mxu0
    %v7765 = vadd.f32 %v7752, %v7764
    %v7766 = vpop.f32.mrf.mxu0
    %7767 = vdwg.mxu0
    %v7769 = vunpack.c.l.b16 %v7493
    %v7770 = vunpack.c.h.b16 %v7493
    %v7771 = vpack.c.b16 %v7769, %v7769
    %v7772 = vpack.c.b16 %v7770, %v7770
    %v7775 = vsel %vm4310, %v7772, 0
    %7777 = vmatpush.bf16.msra.mxu0 %v7582
    %7778 = vmatpush.bf16.msra.mxu0 %v7581
    %7779 = vmatpush.bf16.msra.mxu0 %v7580
    %7780 = vmatpush.bf16.msra.mxu0 %v7579
    %7781 = vmatpush.bf16.msra.mxu0 %v7578
    %7782 = vmatpush.bf16.msra.mxu0 %v7577
    %7783 = vmatpush.bf16.msra.mxu0 %v7576
    %7784 = vmatpush.bf16.msra.mxu0 %v7575
    %7785 = vmatmul.bf16.gmra.mxu0 %v7771
    %v7786 = vpop.f32.mrf.mxu0
    %v7787 = vadd.f32 0.0, %v7786
    %v7788 = vpop.f32.mrf.mxu0
    %7789 = vdwg.mxu0
    %7790 = vmatpush.bf16.msra.mxu0 0
    %7791 = vmatpush.bf16.msra.mxu0 0
    %7792 = vmatpush.bf16.msra.mxu0 0
    %7793 = vmatpush.bf16.msra.mxu0 0
    %7794 = vmatpush.bf16.msra.mxu0 %v7586
    %7795 = vmatpush.bf16.msra.mxu0 %v7585
    %7796 = vmatpush.bf16.msra.mxu0 %v7584
    %7797 = vmatpush.bf16.msra.mxu0 %v7583
    %7798 = vmatmul.bf16.gmra.mxu0 %v7775
    %v7799 = vpop.f32.mrf.mxu0
    %v7800 = vadd.f32 %v7787, %v7799
    %v7801 = vpop.f32.mrf.mxu0
    %7802 = vdwg.mxu0
    %v7804 = vunpack.c.l.b16 %v7494
    %v7805 = vunpack.c.h.b16 %v7494
    %v7806 = vpack.c.b16 %v7804, %v7804
    %v7807 = vpack.c.b16 %v7805, %v7805
    %v7810 = vsel %vm4310, %v7807, 0
    %7812 = vmatpush.bf16.msra.mxu0 %v7582
    %7813 = vmatpush.bf16.msra.mxu0 %v7581
    %7814 = vmatpush.bf16.msra.mxu0 %v7580
    %7815 = vmatpush.bf16.msra.mxu0 %v7579
    %7816 = vmatpush.bf16.msra.mxu0 %v7578
    %7817 = vmatpush.bf16.msra.mxu0 %v7577
    %7818 = vmatpush.bf16.msra.mxu0 %v7576
    %7819 = vmatpush.bf16.msra.mxu0 %v7575
    %7820 = vmatmul.bf16.gmra.mxu0 %v7806
    %v7821 = vpop.f32.mrf.mxu0
    %v7822 = vadd.f32 0.0, %v7821
    %v7823 = vpop.f32.mrf.mxu0
    %7824 = vdwg.mxu0
    %7825 = vmatpush.bf16.msra.mxu0 0
    %7826 = vmatpush.bf16.msra.mxu0 0
    %7827 = vmatpush.bf16.msra.mxu0 0
    %7828 = vmatpush.bf16.msra.mxu0 0
    %7829 = vmatpush.bf16.msra.mxu0 %v7586
    %7830 = vmatpush.bf16.msra.mxu0 %v7585
    %7831 = vmatpush.bf16.msra.mxu0 %v7584
    %7832 = vmatpush.bf16.msra.mxu0 %v7583
    %7833 = vmatmul.bf16.gmra.mxu0 %v7810
    %v7834 = vpop.f32.mrf.mxu0
    %v7835 = vadd.f32 %v7822, %v7834
    %v7836 = vpop.f32.mrf.mxu0
    %7837 = vdwg.mxu0
    %v7839 = vunpack.c.l.b16 %v7495
    %v7840 = vunpack.c.h.b16 %v7495
    %v7841 = vpack.c.b16 %v7839, %v7839
    %v7842 = vpack.c.b16 %v7840, %v7840
    %v7845 = vsel %vm4310, %v7842, 0
    %7847 = vmatpush.bf16.msra.mxu0 %v7582
    %7848 = vmatpush.bf16.msra.mxu0 %v7581
    %7849 = vmatpush.bf16.msra.mxu0 %v7580
    %7850 = vmatpush.bf16.msra.mxu0 %v7579
    %7851 = vmatpush.bf16.msra.mxu0 %v7578
    %7852 = vmatpush.bf16.msra.mxu0 %v7577
    %7853 = vmatpush.bf16.msra.mxu0 %v7576
    %7854 = vmatpush.bf16.msra.mxu0 %v7575
    %7855 = vmatmul.bf16.gmra.mxu0 %v7841
    %v7856 = vpop.f32.mrf.mxu0
    %v7857 = vadd.f32 0.0, %v7856
    %v7858 = vpop.f32.mrf.mxu0
    %7859 = vdwg.mxu0
    %7860 = vmatpush.bf16.msra.mxu0 0
    %7861 = vmatpush.bf16.msra.mxu0 0
    %7862 = vmatpush.bf16.msra.mxu0 0
    %7863 = vmatpush.bf16.msra.mxu0 0
    %7864 = vmatpush.bf16.msra.mxu0 %v7586
    %7865 = vmatpush.bf16.msra.mxu0 %v7585
    %7866 = vmatpush.bf16.msra.mxu0 %v7584
    %7867 = vmatpush.bf16.msra.mxu0 %v7583
    %7868 = vmatmul.bf16.gmra.mxu0 %v7845
    %v7869 = vpop.f32.mrf.mxu0
    %v7870 = vadd.f32 %v7857, %v7869
    %v7871 = vpop.f32.mrf.mxu0
    %7872 = vdwg.mxu0
    %v7873 = vadd.f32 %v7479, %v7625
    %v7874 = vadd.f32 %v7480, %v7660
    %v7875 = vadd.f32 %v7481, %v7695
    %v7876 = vadd.f32 %v7482, %v7730
    %v7877 = vadd.f32 %v7483, %v7765
    %v7878 = vadd.f32 %v7484, %v7800
    %v7879 = vadd.f32 %v7485, %v7835
    %v7880 = vadd.f32 %v7486, %v7870
    %v7881 = vld [vmem:[%s7487] sm:$0x77]
    %v7882 = vld [vmem:[%s7487 + $0x8] sm:$0x77]
    %v7883 = vld [vmem:[%s7487 + $0x10] sm:$0x77]
    %v7884 = vld [vmem:[%s7487 + $0x18] sm:$0x77]
    %v7885 = vld [vmem:[%s7487 + $0x30] sm:$0x77]
    %v7886 = vld [vmem:[%s7487 + $0x38] sm:$0x77]
    %v7887 = vld [vmem:[%s7487 + $0x40] sm:$0x77]
    %v7888 = vld [vmem:[%s7487 + $0x48] sm:$0x77]
    %s7889 = scalar_lea.vmem %s2, 672
    %v7890 = vld [vmem:[%s7889] sm:$0xf]
    %v7891 = vld [vmem:[%s7889 + $0x4] sm:$0xf]
    %v7892 = vld [vmem:[%s7889 + $0x8] sm:$0xf]
    %v7893 = vld [vmem:[%s7889 + $0xc] sm:$0xf]
    %v7894 = vld [vmem:[%s7889 + $0x10] sm:$0xf]
    %v7895 = vld [vmem:[%s7889 + $0x14] sm:$0xf]
    %v7896 = vld [vmem:[%s7889 + $0x18] sm:$0xf]
    %v7897 = vld [vmem:[%s7889 + $0x1c] sm:$0xf]
    %v7898 = vld [vmem:[%s7889 + $0x20] sm:$0xf]
    %v7899 = vld [vmem:[%s7889 + $0x24] sm:$0xf]
    %v7900 = vld [vmem:[%s7889 + $0x28] sm:$0xf]
    %v7901 = vld [vmem:[%s7889 + $0x2c] sm:$0xf]
    %v7902 = vld [vmem:[%s7889 + $0x30] sm:$0xf]
    %v7903 = vld [vmem:[%s7889 + $0x34] sm:$0xf]
    %v7904 = vld [vmem:[%s7889 + $0x38] sm:$0xf]
    %v7905 = vld [vmem:[%s7889 + $0x3c] sm:$0xf]
    %v7906 = vld [vmem:[%s7889 + $0x40] sm:$0xf]
    %v7907 = vld [vmem:[%s7889 + $0x44] sm:$0xf]
    %v7908 = vld [vmem:[%s7889 + $0x48] sm:$0xf]
    %v7909 = vld [vmem:[%s7889 + $0x4c] sm:$0xf]
    %v7910 = vld [vmem:[%s7889 + $0x50] sm:$0xf]
    %v7911 = vld [vmem:[%s7889 + $0x54] sm:$0xf]
    %v7912 = vld [vmem:[%s7889 + $0x58] sm:$0xf]
    %v7913 = vld [vmem:[%s7889 + $0x5c] sm:$0xf]
    %v7915 = vunpack.c.l.b16 %v7881
    %v7916 = vunpack.c.h.b16 %v7881
    %v7917 = vpack.c.b16 %v7915, %v7915
    %v7918 = vpack.c.b16 %v7916, %v7916
    %v7920 = vshrl.u32 %v7917, 16
    %v7922 = vshll.u32 %v7917, 16
    %v7924 = vrot.slane %v7922, 1
    %v7925 = vor.u32 %v7920, %v7924
    %v7927 = vshrl.u32 %v7918, 16
    %v7929 = vshll.u32 %v7918, 16
    %v7931 = vrot.slane %v7929, 1
    %v7932 = vor.u32 %v7927, %v7931
    %v7958 = vunpack.c.l.b16 %v7890
    %v7959 = vunpack.c.l.b16 %v7891
    %v7960 = vunpack.c.l.b16 %v7892
    %v7961 = vunpack.c.l.b16 %v7893
    %v7962 = vunpack.c.l.b16 %v7894
    %v7963 = vunpack.c.l.b16 %v7895
    %v7964 = vunpack.c.l.b16 %v7896
    %v7965 = vunpack.c.l.b16 %v7897
    %v7966 = vunpack.c.l.b16 %v7898
    %v7967 = vunpack.c.l.b16 %v7899
    %v7968 = vunpack.c.l.b16 %v7900
    %v7969 = vunpack.c.l.b16 %v7901
    %v7970 = vunpack.c.l.b16 %v7902
    %v7971 = vunpack.c.l.b16 %v7903
    %v7972 = vunpack.c.l.b16 %v7904
    %v7973 = vunpack.c.l.b16 %v7905
    %v7974 = vunpack.c.l.b16 %v7906
    %v7975 = vunpack.c.l.b16 %v7907
    %v7976 = vunpack.c.l.b16 %v7908
    %v7977 = vunpack.c.l.b16 %v7909
    %v7978 = vunpack.c.l.b16 %v7910
    %v7979 = vunpack.c.l.b16 %v7911
    %v7980 = vunpack.c.l.b16 %v7912
    %v7981 = vunpack.c.l.b16 %v7913
    %v7982 = vpack.c.b16 %v7959, %v7958
    %v7983 = vpack.c.b16 %v7961, %v7960
    %v7984 = vpack.c.b16 %v7963, %v7962
    %v7985 = vpack.c.b16 %v7965, %v7964
    %v7986 = vpack.c.b16 %v7967, %v7966
    %v7987 = vpack.c.b16 %v7969, %v7968
    %v7988 = vpack.c.b16 %v7971, %v7970
    %v7989 = vpack.c.b16 %v7973, %v7972
    %v7990 = vpack.c.b16 %v7975, %v7974
    %v7991 = vpack.c.b16 %v7977, %v7976
    %v7992 = vpack.c.b16 %v7979, %v7978
    %v7993 = vpack.c.b16 %v7981, %v7980
    %v8007 = vsel %vm4310, %v7932, 0
    %8009 = vmatpush.bf16.msra.mxu0 %v7989
    %8010 = vmatpush.bf16.msra.mxu0 %v7988
    %8011 = vmatpush.bf16.msra.mxu0 %v7987
    %8012 = vmatpush.bf16.msra.mxu0 %v7986
    %8013 = vmatpush.bf16.msra.mxu0 %v7985
    %8014 = vmatpush.bf16.msra.mxu0 %v7984
    %8015 = vmatpush.bf16.msra.mxu0 %v7983
    %8016 = vmatpush.bf16.msra.mxu0 %v7982
    %8017 = vmatmul.bf16.gmra.mxu0 %v7925
    %v8018 = vpop.f32.mrf.mxu0
    %v8019 = vadd.f32 0.0, %v8018
    %v8020 = vpop.f32.mrf.mxu0
    %8021 = vdwg.mxu0
    %8022 = vmatpush.bf16.msra.mxu0 0
    %8023 = vmatpush.bf16.msra.mxu0 0
    %8024 = vmatpush.bf16.msra.mxu0 0
    %8025 = vmatpush.bf16.msra.mxu0 0
    %8026 = vmatpush.bf16.msra.mxu0 %v7993
    %8027 = vmatpush.bf16.msra.mxu0 %v7992
    %8028 = vmatpush.bf16.msra.mxu0 %v7991
    %8029 = vmatpush.bf16.msra.mxu0 %v7990
    %8030 = vmatmul.bf16.gmra.mxu0 %v8007
    %v8031 = vpop.f32.mrf.mxu0
    %v8032 = vadd.f32 %v8019, %v8031
    %v8033 = vpop.f32.mrf.mxu0
    %8034 = vdwg.mxu0
    %v8036 = vunpack.c.l.b16 %v7882
    %v8037 = vunpack.c.h.b16 %v7882
    %v8038 = vpack.c.b16 %v8036, %v8036
    %v8039 = vpack.c.b16 %v8037, %v8037
    %v8041 = vshrl.u32 %v8038, 16
    %v8043 = vshll.u32 %v8038, 16
    %v8045 = vrot.slane %v8043, 1
    %v8046 = vor.u32 %v8041, %v8045
    %v8048 = vshrl.u32 %v8039, 16
    %v8050 = vshll.u32 %v8039, 16
    %v8052 = vrot.slane %v8050, 1
    %v8053 = vor.u32 %v8048, %v8052
    %v8056 = vsel %vm4310, %v8053, 0
    %8058 = vmatpush.bf16.msra.mxu0 %v7989
    %8059 = vmatpush.bf16.msra.mxu0 %v7988
    %8060 = vmatpush.bf16.msra.mxu0 %v7987
    %8061 = vmatpush.bf16.msra.mxu0 %v7986
    %8062 = vmatpush.bf16.msra.mxu0 %v7985
    %8063 = vmatpush.bf16.msra.mxu0 %v7984
    %8064 = vmatpush.bf16.msra.mxu0 %v7983
    %8065 = vmatpush.bf16.msra.mxu0 %v7982
    %8066 = vmatmul.bf16.gmra.mxu0 %v8046
    %v8067 = vpop.f32.mrf.mxu0
    %v8068 = vadd.f32 0.0, %v8067
    %v8069 = vpop.f32.mrf.mxu0
    %8070 = vdwg.mxu0
    %8071 = vmatpush.bf16.msra.mxu0 0
    %8072 = vmatpush.bf16.msra.mxu0 0
    %8073 = vmatpush.bf16.msra.mxu0 0
    %8074 = vmatpush.bf16.msra.mxu0 0
    %8075 = vmatpush.bf16.msra.mxu0 %v7993
    %8076 = vmatpush.bf16.msra.mxu0 %v7992
    %8077 = vmatpush.bf16.msra.mxu0 %v7991
    %8078 = vmatpush.bf16.msra.mxu0 %v7990
    %8079 = vmatmul.bf16.gmra.mxu0 %v8056
    %v8080 = vpop.f32.mrf.mxu0
    %v8081 = vadd.f32 %v8068, %v8080
    %v8082 = vpop.f32.mrf.mxu0
    %8083 = vdwg.mxu0
    %v8085 = vunpack.c.l.b16 %v7883
    %v8086 = vunpack.c.h.b16 %v7883
    %v8087 = vpack.c.b16 %v8085, %v8085
    %v8088 = vpack.c.b16 %v8086, %v8086
    %v8090 = vshrl.u32 %v8087, 16
    %v8092 = vshll.u32 %v8087, 16
    %v8094 = vrot.slane %v8092, 1
    %v8095 = vor.u32 %v8090, %v8094
    %v8097 = vshrl.u32 %v8088, 16
    %v8099 = vshll.u32 %v8088, 16
    %v8101 = vrot.slane %v8099, 1
    %v8102 = vor.u32 %v8097, %v8101
    %v8105 = vsel %vm4310, %v8102, 0
    %8107 = vmatpush.bf16.msra.mxu0 %v7989
    %8108 = vmatpush.bf16.msra.mxu0 %v7988
    %8109 = vmatpush.bf16.msra.mxu0 %v7987
    %8110 = vmatpush.bf16.msra.mxu0 %v7986
    %8111 = vmatpush.bf16.msra.mxu0 %v7985
    %8112 = vmatpush.bf16.msra.mxu0 %v7984
    %8113 = vmatpush.bf16.msra.mxu0 %v7983
    %8114 = vmatpush.bf16.msra.mxu0 %v7982
    %8115 = vmatmul.bf16.gmra.mxu0 %v8095
    %v8116 = vpop.f32.mrf.mxu0
    %v8117 = vadd.f32 0.0, %v8116
    %v8118 = vpop.f32.mrf.mxu0
    %8119 = vdwg.mxu0
    %8120 = vmatpush.bf16.msra.mxu0 0
    %8121 = vmatpush.bf16.msra.mxu0 0
    %8122 = vmatpush.bf16.msra.mxu0 0
    %8123 = vmatpush.bf16.msra.mxu0 0
    %8124 = vmatpush.bf16.msra.mxu0 %v7993
    %8125 = vmatpush.bf16.msra.mxu0 %v7992
    %8126 = vmatpush.bf16.msra.mxu0 %v7991
    %8127 = vmatpush.bf16.msra.mxu0 %v7990
    %8128 = vmatmul.bf16.gmra.mxu0 %v8105
    %v8129 = vpop.f32.mrf.mxu0
    %v8130 = vadd.f32 %v8117, %v8129
    %v8131 = vpop.f32.mrf.mxu0
    %8132 = vdwg.mxu0
    %v8134 = vunpack.c.l.b16 %v7884
    %v8135 = vunpack.c.h.b16 %v7884
    %v8136 = vpack.c.b16 %v8134, %v8134
    %v8137 = vpack.c.b16 %v8135, %v8135
    %v8139 = vshrl.u32 %v8136, 16
    %v8141 = vshll.u32 %v8136, 16
    %v8143 = vrot.slane %v8141, 1
    %v8144 = vor.u32 %v8139, %v8143
    %v8146 = vshrl.u32 %v8137, 16
    %v8148 = vshll.u32 %v8137, 16
    %v8150 = vrot.slane %v8148, 1
    %v8151 = vor.u32 %v8146, %v8150
    %v8154 = vsel %vm4310, %v8151, 0
    %8156 = vmatpush.bf16.msra.mxu0 %v7989
    %8157 = vmatpush.bf16.msra.mxu0 %v7988
    %8158 = vmatpush.bf16.msra.mxu0 %v7987
    %8159 = vmatpush.bf16.msra.mxu0 %v7986
    %8160 = vmatpush.bf16.msra.mxu0 %v7985
    %8161 = vmatpush.bf16.msra.mxu0 %v7984
    %8162 = vmatpush.bf16.msra.mxu0 %v7983
    %8163 = vmatpush.bf16.msra.mxu0 %v7982
    %8164 = vmatmul.bf16.gmra.mxu0 %v8144
    %v8165 = vpop.f32.mrf.mxu0
    %v8166 = vadd.f32 0.0, %v8165
    %v8167 = vpop.f32.mrf.mxu0
    %8168 = vdwg.mxu0
    %8169 = vmatpush.bf16.msra.mxu0 0
    %8170 = vmatpush.bf16.msra.mxu0 0
    %8171 = vmatpush.bf16.msra.mxu0 0
    %8172 = vmatpush.bf16.msra.mxu0 0
    %8173 = vmatpush.bf16.msra.mxu0 %v7993
    %8174 = vmatpush.bf16.msra.mxu0 %v7992
    %8175 = vmatpush.bf16.msra.mxu0 %v7991
    %8176 = vmatpush.bf16.msra.mxu0 %v7990
    %8177 = vmatmul.bf16.gmra.mxu0 %v8154
    %v8178 = vpop.f32.mrf.mxu0
    %v8179 = vadd.f32 %v8166, %v8178
    %v8180 = vpop.f32.mrf.mxu0
    %8181 = vdwg.mxu0
    %v8183 = vunpack.c.l.b16 %v7885
    %v8184 = vunpack.c.h.b16 %v7885
    %v8185 = vpack.c.b16 %v8183, %v8183
    %v8186 = vpack.c.b16 %v8184, %v8184
    %v8188 = vshrl.u32 %v8185, 16
    %v8190 = vshll.u32 %v8185, 16
    %v8192 = vrot.slane %v8190, 1
    %v8193 = vor.u32 %v8188, %v8192
    %v8195 = vshrl.u32 %v8186, 16
    %v8197 = vshll.u32 %v8186, 16
    %v8199 = vrot.slane %v8197, 1
    %v8200 = vor.u32 %v8195, %v8199
    %v8203 = vsel %vm4310, %v8200, 0
    %8205 = vmatpush.bf16.msra.mxu0 %v7989
    %8206 = vmatpush.bf16.msra.mxu0 %v7988
    %8207 = vmatpush.bf16.msra.mxu0 %v7987
    %8208 = vmatpush.bf16.msra.mxu0 %v7986
    %8209 = vmatpush.bf16.msra.mxu0 %v7985
    %8210 = vmatpush.bf16.msra.mxu0 %v7984
    %8211 = vmatpush.bf16.msra.mxu0 %v7983
    %8212 = vmatpush.bf16.msra.mxu0 %v7982
    %8213 = vmatmul.bf16.gmra.mxu0 %v8193
    %v8214 = vpop.f32.mrf.mxu0
    %v8215 = vadd.f32 0.0, %v8214
    %v8216 = vpop.f32.mrf.mxu0
    %8217 = vdwg.mxu0
    %8218 = vmatpush.bf16.msra.mxu0 0
    %8219 = vmatpush.bf16.msra.mxu0 0
    %8220 = vmatpush.bf16.msra.mxu0 0
    %8221 = vmatpush.bf16.msra.mxu0 0
    %8222 = vmatpush.bf16.msra.mxu0 %v7993
    %8223 = vmatpush.bf16.msra.mxu0 %v7992
    %8224 = vmatpush.bf16.msra.mxu0 %v7991
    %8225 = vmatpush.bf16.msra.mxu0 %v7990
    %8226 = vmatmul.bf16.gmra.mxu0 %v8203
    %v8227 = vpop.f32.mrf.mxu0
    %v8228 = vadd.f32 %v8215, %v8227
    %v8229 = vpop.f32.mrf.mxu0
    %8230 = vdwg.mxu0
    %v8232 = vunpack.c.l.b16 %v7886
    %v8233 = vunpack.c.h.b16 %v7886
    %v8234 = vpack.c.b16 %v8232, %v8232
    %v8235 = vpack.c.b16 %v8233, %v8233
    %v8237 = vshrl.u32 %v8234, 16
    %v8239 = vshll.u32 %v8234, 16
    %v8241 = vrot.slane %v8239, 1
    %v8242 = vor.u32 %v8237, %v8241
    %v8244 = vshrl.u32 %v8235, 16
    %v8246 = vshll.u32 %v8235, 16
    %v8248 = vrot.slane %v8246, 1
    %v8249 = vor.u32 %v8244, %v8248
    %v8252 = vsel %vm4310, %v8249, 0
    %8254 = vmatpush.bf16.msra.mxu0 %v7989
    %8255 = vmatpush.bf16.msra.mxu0 %v7988
    %8256 = vmatpush.bf16.msra.mxu0 %v7987
    %8257 = vmatpush.bf16.msra.mxu0 %v7986
    %8258 = vmatpush.bf16.msra.mxu0 %v7985
    %8259 = vmatpush.bf16.msra.mxu0 %v7984
    %8260 = vmatpush.bf16.msra.mxu0 %v7983
    %8261 = vmatpush.bf16.msra.mxu0 %v7982
    %8262 = vmatmul.bf16.gmra.mxu0 %v8242
    %v8263 = vpop.f32.mrf.mxu0
    %v8264 = vadd.f32 0.0, %v8263
    %v8265 = vpop.f32.mrf.mxu0
    %8266 = vdwg.mxu0
    %8267 = vmatpush.bf16.msra.mxu0 0
    %8268 = vmatpush.bf16.msra.mxu0 0
    %8269 = vmatpush.bf16.msra.mxu0 0
    %8270 = vmatpush.bf16.msra.mxu0 0
    %8271 = vmatpush.bf16.msra.mxu0 %v7993
    %8272 = vmatpush.bf16.msra.mxu0 %v7992
    %8273 = vmatpush.bf16.msra.mxu0 %v7991
    %8274 = vmatpush.bf16.msra.mxu0 %v7990
    %8275 = vmatmul.bf16.gmra.mxu0 %v8252
    %v8276 = vpop.f32.mrf.mxu0
    %v8277 = vadd.f32 %v8264, %v8276
    %v8278 = vpop.f32.mrf.mxu0
    %8279 = vdwg.mxu0
    %v8281 = vunpack.c.l.b16 %v7887
    %v8282 = vunpack.c.h.b16 %v7887
    %v8283 = vpack.c.b16 %v8281, %v8281
    %v8284 = vpack.c.b16 %v8282, %v8282
    %v8286 = vshrl.u32 %v8283, 16
    %v8288 = vshll.u32 %v8283, 16
    %v8290 = vrot.slane %v8288, 1
    %v8291 = vor.u32 %v8286, %v8290
    %v8293 = vshrl.u32 %v8284, 16
    %v8295 = vshll.u32 %v8284, 16
    %v8297 = vrot.slane %v8295, 1
    %v8298 = vor.u32 %v8293, %v8297
    %v8301 = vsel %vm4310, %v8298, 0
    %8303 = vmatpush.bf16.msra.mxu0 %v7989
    %8304 = vmatpush.bf16.msra.mxu0 %v7988
    %8305 = vmatpush.bf16.msra.mxu0 %v7987
    %8306 = vmatpush.bf16.msra.mxu0 %v7986
    %8307 = vmatpush.bf16.msra.mxu0 %v7985
    %8308 = vmatpush.bf16.msra.mxu0 %v7984
    %8309 = vmatpush.bf16.msra.mxu0 %v7983
    %8310 = vmatpush.bf16.msra.mxu0 %v7982
    %8311 = vmatmul.bf16.gmra.mxu0 %v8291
    %v8312 = vpop.f32.mrf.mxu0
    %v8313 = vadd.f32 0.0, %v8312
    %v8314 = vpop.f32.mrf.mxu0
    %8315 = vdwg.mxu0
    %8316 = vmatpush.bf16.msra.mxu0 0
    %8317 = vmatpush.bf16.msra.mxu0 0
    %8318 = vmatpush.bf16.msra.mxu0 0
    %8319 = vmatpush.bf16.msra.mxu0 0
    %8320 = vmatpush.bf16.msra.mxu0 %v7993
    %8321 = vmatpush.bf16.msra.mxu0 %v7992
    %8322 = vmatpush.bf16.msra.mxu0 %v7991
    %8323 = vmatpush.bf16.msra.mxu0 %v7990
    %8324 = vmatmul.bf16.gmra.mxu0 %v8301
    %v8325 = vpop.f32.mrf.mxu0
    %v8326 = vadd.f32 %v8313, %v8325
    %v8327 = vpop.f32.mrf.mxu0
    %8328 = vdwg.mxu0
    %v8330 = vunpack.c.l.b16 %v7888
    %v8331 = vunpack.c.h.b16 %v7888
    %v8332 = vpack.c.b16 %v8330, %v8330
    %v8333 = vpack.c.b16 %v8331, %v8331
    %v8335 = vshrl.u32 %v8332, 16
    %v8337 = vshll.u32 %v8332, 16
    %v8339 = vrot.slane %v8337, 1
    %v8340 = vor.u32 %v8335, %v8339
    %v8342 = vshrl.u32 %v8333, 16
    %v8344 = vshll.u32 %v8333, 16
    %v8346 = vrot.slane %v8344, 1
    %v8347 = vor.u32 %v8342, %v8346
    %v8350 = vsel %vm4310, %v8347, 0
    %8352 = vmatpush.bf16.msra.mxu0 %v7989
    %8353 = vmatpush.bf16.msra.mxu0 %v7988
    %8354 = vmatpush.bf16.msra.mxu0 %v7987
    %8355 = vmatpush.bf16.msra.mxu0 %v7986
    %8356 = vmatpush.bf16.msra.mxu0 %v7985
    %8357 = vmatpush.bf16.msra.mxu0 %v7984
    %8358 = vmatpush.bf16.msra.mxu0 %v7983
    %8359 = vmatpush.bf16.msra.mxu0 %v7982
    %8360 = vmatmul.bf16.gmra.mxu0 %v8340
    %v8361 = vpop.f32.mrf.mxu0
    %v8362 = vadd.f32 0.0, %v8361
    %v8363 = vpop.f32.mrf.mxu0
    %8364 = vdwg.mxu0
    %8365 = vmatpush.bf16.msra.mxu0 0
    %8366 = vmatpush.bf16.msra.mxu0 0
    %8367 = vmatpush.bf16.msra.mxu0 0
    %8368 = vmatpush.bf16.msra.mxu0 0
    %8369 = vmatpush.bf16.msra.mxu0 %v7993
    %8370 = vmatpush.bf16.msra.mxu0 %v7992
    %8371 = vmatpush.bf16.msra.mxu0 %v7991
    %8372 = vmatpush.bf16.msra.mxu0 %v7990
    %8373 = vmatmul.bf16.gmra.mxu0 %v8350
    %v8374 = vpop.f32.mrf.mxu0
    %v8375 = vadd.f32 %v8362, %v8374
    %v8376 = vpop.f32.mrf.mxu0
    %8377 = vdwg.mxu0
    %v8378 = vadd.f32 %v7873, %v8032
    %v8379 = vadd.f32 %v7874, %v8081
    %v8380 = vadd.f32 %v7875, %v8130
    %v8381 = vadd.f32 %v7876, %v8179
    %v8382 = vadd.f32 %v7877, %v8228
    %v8383 = vadd.f32 %v7878, %v8277
    %v8384 = vadd.f32 %v7879, %v8326
    %v8385 = vadd.f32 %v7880, %v8375
    %v8386 = vld [vmem:[%s7487] sm:$0x66]
    %v8387 = vld [vmem:[%s7487 + $0x8] sm:$0x66]
    %v8388 = vld [vmem:[%s7487 + $0x10] sm:$0x66]
    %v8389 = vld [vmem:[%s7487 + $0x18] sm:$0x66]
    %v8390 = vld [vmem:[%s7487 + $0x30] sm:$0x66]
    %v8391 = vld [vmem:[%s7487 + $0x38] sm:$0x66]
    %v8392 = vld [vmem:[%s7487 + $0x40] sm:$0x66]
    %v8393 = vld [vmem:[%s7487 + $0x48] sm:$0x66]
    %s8394 = scalar_lea.vmem %s2, 768
    %v8395 = vld [vmem:[%s8394] sm:$0xf]
    %v8396 = vld [vmem:[%s8394 + $0x4] sm:$0xf]
    %v8397 = vld [vmem:[%s8394 + $0x8] sm:$0xf]
    %v8398 = vld [vmem:[%s8394 + $0xc] sm:$0xf]
    %v8399 = vld [vmem:[%s8394 + $0x10] sm:$0xf]
    %v8400 = vld [vmem:[%s8394 + $0x14] sm:$0xf]
    %v8401 = vld [vmem:[%s8394 + $0x18] sm:$0xf]
    %v8402 = vld [vmem:[%s8394 + $0x1c] sm:$0xf]
    %v8403 = vld [vmem:[%s8394 + $0x20] sm:$0xf]
    %v8404 = vld [vmem:[%s8394 + $0x24] sm:$0xf]
    %v8405 = vld [vmem:[%s8394 + $0x28] sm:$0xf]
    %v8406 = vld [vmem:[%s8394 + $0x2c] sm:$0xf]
    %v8407 = vld [vmem:[%s8394 + $0x30] sm:$0xf]
    %v8408 = vld [vmem:[%s8394 + $0x34] sm:$0xf]
    %v8409 = vld [vmem:[%s8394 + $0x38] sm:$0xf]
    %v8410 = vld [vmem:[%s8394 + $0x3c] sm:$0xf]
    %v8411 = vld [vmem:[%s8394 + $0x40] sm:$0xf]
    %v8412 = vld [vmem:[%s8394 + $0x44] sm:$0xf]
    %v8413 = vld [vmem:[%s8394 + $0x48] sm:$0xf]
    %v8414 = vld [vmem:[%s8394 + $0x4c] sm:$0xf]
    %v8415 = vld [vmem:[%s8394 + $0x50] sm:$0xf]
    %v8416 = vld [vmem:[%s8394 + $0x54] sm:$0xf]
    %v8417 = vld [vmem:[%s8394 + $0x58] sm:$0xf]
    %v8418 = vld [vmem:[%s8394 + $0x5c] sm:$0xf]
    %v8420 = vunpack.c.l.b16 %v8386
    %v8421 = vunpack.c.h.b16 %v8386
    %v8422 = vpack.c.b16 %v8420, %v8420
    %v8423 = vpack.c.b16 %v8421, %v8421
    %v8424 = vrot.slane %v8422, 1
    %v8425 = vrot.slane %v8423, 1
    %v8451 = vunpack.c.l.b16 %v8395
    %v8452 = vunpack.c.l.b16 %v8396
    %v8453 = vunpack.c.l.b16 %v8397
    %v8454 = vunpack.c.l.b16 %v8398
    %v8455 = vunpack.c.l.b16 %v8399
    %v8456 = vunpack.c.l.b16 %v8400
    %v8457 = vunpack.c.l.b16 %v8401
    %v8458 = vunpack.c.l.b16 %v8402
    %v8459 = vunpack.c.l.b16 %v8403
    %v8460 = vunpack.c.l.b16 %v8404
    %v8461 = vunpack.c.l.b16 %v8405
    %v8462 = vunpack.c.l.b16 %v8406
    %v8463 = vunpack.c.l.b16 %v8407
    %v8464 = vunpack.c.l.b16 %v8408
    %v8465 = vunpack.c.l.b16 %v8409
    %v8466 = vunpack.c.l.b16 %v8410
    %v8467 = vunpack.c.l.b16 %v8411
    %v8468 = vunpack.c.l.b16 %v8412
    %v8469 = vunpack.c.l.b16 %v8413
    %v8470 = vunpack.c.l.b16 %v8414
    %v8471 = vunpack.c.l.b16 %v8415
    %v8472 = vunpack.c.l.b16 %v8416
    %v8473 = vunpack.c.l.b16 %v8417
    %v8474 = vunpack.c.l.b16 %v8418
    %v8475 = vpack.c.b16 %v8452, %v8451
    %v8476 = vpack.c.b16 %v8454, %v8453
    %v8477 = vpack.c.b16 %v8456, %v8455
    %v8478 = vpack.c.b16 %v8458, %v8457
    %v8479 = vpack.c.b16 %v8460, %v8459
    %v8480 = vpack.c.b16 %v8462, %v8461
    %v8481 = vpack.c.b16 %v8464, %v8463
    %v8482 = vpack.c.b16 %v8466, %v8465
    %v8483 = vpack.c.b16 %v8468, %v8467
    %v8484 = vpack.c.b16 %v8470, %v8469
    %v8485 = vpack.c.b16 %v8472, %v8471
    %v8486 = vpack.c.b16 %v8474, %v8473
    %v8500 = vsel %vm4310, %v8425, 0
    %8502 = vmatpush.bf16.msra.mxu0 %v8482
    %8503 = vmatpush.bf16.msra.mxu0 %v8481
    %8504 = vmatpush.bf16.msra.mxu0 %v8480
    %8505 = vmatpush.bf16.msra.mxu0 %v8479
    %8506 = vmatpush.bf16.msra.mxu0 %v8478
    %8507 = vmatpush.bf16.msra.mxu0 %v8477
    %8508 = vmatpush.bf16.msra.mxu0 %v8476
    %8509 = vmatpush.bf16.msra.mxu0 %v8475
    %8510 = vmatmul.bf16.gmra.mxu0 %v8424
    %v8511 = vpop.f32.mrf.mxu0
    %v8512 = vadd.f32 0.0, %v8511
    %v8513 = vpop.f32.mrf.mxu0
    %8514 = vdwg.mxu0
    %8515 = vmatpush.bf16.msra.mxu0 0
    %8516 = vmatpush.bf16.msra.mxu0 0
    %8517 = vmatpush.bf16.msra.mxu0 0
    %8518 = vmatpush.bf16.msra.mxu0 0
    %8519 = vmatpush.bf16.msra.mxu0 %v8486
    %8520 = vmatpush.bf16.msra.mxu0 %v8485
    %8521 = vmatpush.bf16.msra.mxu0 %v8484
    %8522 = vmatpush.bf16.msra.mxu0 %v8483
    %8523 = vmatmul.bf16.gmra.mxu0 %v8500
    %v8524 = vpop.f32.mrf.mxu0
    %v8525 = vadd.f32 %v8512, %v8524
    %v8526 = vpop.f32.mrf.mxu0
    %8527 = vdwg.mxu0
    %v8529 = vunpack.c.l.b16 %v8387
    %v8530 = vunpack.c.h.b16 %v8387
    %v8531 = vpack.c.b16 %v8529, %v8529
    %v8532 = vpack.c.b16 %v8530, %v8530
    %v8533 = vrot.slane %v8531, 1
    %v8534 = vrot.slane %v8532, 1
    %v8537 = vsel %vm4310, %v8534, 0
    %8539 = vmatpush.bf16.msra.mxu0 %v8482
    %8540 = vmatpush.bf16.msra.mxu0 %v8481
    %8541 = vmatpush.bf16.msra.mxu0 %v8480
    %8542 = vmatpush.bf16.msra.mxu0 %v8479
    %8543 = vmatpush.bf16.msra.mxu0 %v8478
    %8544 = vmatpush.bf16.msra.mxu0 %v8477
    %8545 = vmatpush.bf16.msra.mxu0 %v8476
    %8546 = vmatpush.bf16.msra.mxu0 %v8475
    %8547 = vmatmul.bf16.gmra.mxu0 %v8533
    %v8548 = vpop.f32.mrf.mxu0
    %v8549 = vadd.f32 0.0, %v8548
    %v8550 = vpop.f32.mrf.mxu0
    %8551 = vdwg.mxu0
    %8552 = vmatpush.bf16.msra.mxu0 0
    %8553 = vmatpush.bf16.msra.mxu0 0
    %8554 = vmatpush.bf16.msra.mxu0 0
    %8555 = vmatpush.bf16.msra.mxu0 0
    %8556 = vmatpush.bf16.msra.mxu0 %v8486
    %8557 = vmatpush.bf16.msra.mxu0 %v8485
    %8558 = vmatpush.bf16.msra.mxu0 %v8484
    %8559 = vmatpush.bf16.msra.mxu0 %v8483
    %8560 = vmatmul.bf16.gmra.mxu0 %v8537
    %v8561 = vpop.f32.mrf.mxu0
    %v8562 = vadd.f32 %v8549, %v8561
    %v8563 = vpop.f32.mrf.mxu0
    %8564 = vdwg.mxu0
    %v8566 = vunpack.c.l.b16 %v8388
    %v8567 = vunpack.c.h.b16 %v8388
    %v8568 = vpack.c.b16 %v8566, %v8566
    %v8569 = vpack.c.b16 %v8567, %v8567
    %v8570 = vrot.slane %v8568, 1
    %v8571 = vrot.slane %v8569, 1
    %v8574 = vsel %vm4310, %v8571, 0
    %8576 = vmatpush.bf16.msra.mxu0 %v8482
    %8577 = vmatpush.bf16.msra.mxu0 %v8481
    %8578 = vmatpush.bf16.msra.mxu0 %v8480
    %8579 = vmatpush.bf16.msra.mxu0 %v8479
    %8580 = vmatpush.bf16.msra.mxu0 %v8478
    %8581 = vmatpush.bf16.msra.mxu0 %v8477
    %8582 = vmatpush.bf16.msra.mxu0 %v8476
    %8583 = vmatpush.bf16.msra.mxu0 %v8475
    %8584 = vmatmul.bf16.gmra.mxu0 %v8570
    %v8585 = vpop.f32.mrf.mxu0
    %v8586 = vadd.f32 0.0, %v8585
    %v8587 = vpop.f32.mrf.mxu0
    %8588 = vdwg.mxu0
    %8589 = vmatpush.bf16.msra.mxu0 0
    %8590 = vmatpush.bf16.msra.mxu0 0
    %8591 = vmatpush.bf16.msra.mxu0 0
    %8592 = vmatpush.bf16.msra.mxu0 0
    %8593 = vmatpush.bf16.msra.mxu0 %v8486
    %8594 = vmatpush.bf16.msra.mxu0 %v8485
    %8595 = vmatpush.bf16.msra.mxu0 %v8484
    %8596 = vmatpush.bf16.msra.mxu0 %v8483
    %8597 = vmatmul.bf16.gmra.mxu0 %v8574
    %v8598 = vpop.f32.mrf.mxu0
    %v8599 = vadd.f32 %v8586, %v8598
    %v8600 = vpop.f32.mrf.mxu0
    %8601 = vdwg.mxu0
    %v8603 = vunpack.c.l.b16 %v8389
    %v8604 = vunpack.c.h.b16 %v8389
    %v8605 = vpack.c.b16 %v8603, %v8603
    %v8606 = vpack.c.b16 %v8604, %v8604
    %v8607 = vrot.slane %v8605, 1
    %v8608 = vrot.slane %v8606, 1
    %v8611 = vsel %vm4310, %v8608, 0
    %8613 = vmatpush.bf16.msra.mxu0 %v8482
    %8614 = vmatpush.bf16.msra.mxu0 %v8481
    %8615 = vmatpush.bf16.msra.mxu0 %v8480
    %8616 = vmatpush.bf16.msra.mxu0 %v8479
    %8617 = vmatpush.bf16.msra.mxu0 %v8478
    %8618 = vmatpush.bf16.msra.mxu0 %v8477
    %8619 = vmatpush.bf16.msra.mxu0 %v8476
    %8620 = vmatpush.bf16.msra.mxu0 %v8475
    %8621 = vmatmul.bf16.gmra.mxu0 %v8607
    %v8622 = vpop.f32.mrf.mxu0
    %v8623 = vadd.f32 0.0, %v8622
    %v8624 = vpop.f32.mrf.mxu0
    %8625 = vdwg.mxu0
    %8626 = vmatpush.bf16.msra.mxu0 0
    %8627 = vmatpush.bf16.msra.mxu0 0
    %8628 = vmatpush.bf16.msra.mxu0 0
    %8629 = vmatpush.bf16.msra.mxu0 0
    %8630 = vmatpush.bf16.msra.mxu0 %v8486
    %8631 = vmatpush.bf16.msra.mxu0 %v8485
    %8632 = vmatpush.bf16.msra.mxu0 %v8484
    %8633 = vmatpush.bf16.msra.mxu0 %v8483
    %8634 = vmatmul.bf16.gmra.mxu0 %v8611
    %v8635 = vpop.f32.mrf.mxu0
    %v8636 = vadd.f32 %v8623, %v8635
    %v8637 = vpop.f32.mrf.mxu0
    %8638 = vdwg.mxu0
    %v8640 = vunpack.c.l.b16 %v8390
    %v8641 = vunpack.c.h.b16 %v8390
    %v8642 = vpack.c.b16 %v8640, %v8640
    %v8643 = vpack.c.b16 %v8641, %v8641
    %v8644 = vrot.slane %v8642, 1
    %v8645 = vrot.slane %v8643, 1
    %v8648 = vsel %vm4310, %v8645, 0
    %8650 = vmatpush.bf16.msra.mxu0 %v8482
    %8651 = vmatpush.bf16.msra.mxu0 %v8481
    %8652 = vmatpush.bf16.msra.mxu0 %v8480
    %8653 = vmatpush.bf16.msra.mxu0 %v8479
    %8654 = vmatpush.bf16.msra.mxu0 %v8478
    %8655 = vmatpush.bf16.msra.mxu0 %v8477
    %8656 = vmatpush.bf16.msra.mxu0 %v8476
    %8657 = vmatpush.bf16.msra.mxu0 %v8475
    %8658 = vmatmul.bf16.gmra.mxu0 %v8644
    %v8659 = vpop.f32.mrf.mxu0
    %v8660 = vadd.f32 0.0, %v8659
    %v8661 = vpop.f32.mrf.mxu0
    %8662 = vdwg.mxu0
    %8663 = vmatpush.bf16.msra.mxu0 0
    %8664 = vmatpush.bf16.msra.mxu0 0
    %8665 = vmatpush.bf16.msra.mxu0 0
    %8666 = vmatpush.bf16.msra.mxu0 0
    %8667 = vmatpush.bf16.msra.mxu0 %v8486
    %8668 = vmatpush.bf16.msra.mxu0 %v8485
    %8669 = vmatpush.bf16.msra.mxu0 %v8484
    %8670 = vmatpush.bf16.msra.mxu0 %v8483
    %8671 = vmatmul.bf16.gmra.mxu0 %v8648
    %v8672 = vpop.f32.mrf.mxu0
    %v8673 = vadd.f32 %v8660, %v8672
    %v8674 = vpop.f32.mrf.mxu0
    %8675 = vdwg.mxu0
    %v8677 = vunpack.c.l.b16 %v8391
    %v8678 = vunpack.c.h.b16 %v8391
    %v8679 = vpack.c.b16 %v8677, %v8677
    %v8680 = vpack.c.b16 %v8678, %v8678
    %v8681 = vrot.slane %v8679, 1
    %v8682 = vrot.slane %v8680, 1
    %v8685 = vsel %vm4310, %v8682, 0
    %8687 = vmatpush.bf16.msra.mxu0 %v8482
    %8688 = vmatpush.bf16.msra.mxu0 %v8481
    %8689 = vmatpush.bf16.msra.mxu0 %v8480
    %8690 = vmatpush.bf16.msra.mxu0 %v8479
    %8691 = vmatpush.bf16.msra.mxu0 %v8478
    %8692 = vmatpush.bf16.msra.mxu0 %v8477
    %8693 = vmatpush.bf16.msra.mxu0 %v8476
    %8694 = vmatpush.bf16.msra.mxu0 %v8475
    %8695 = vmatmul.bf16.gmra.mxu0 %v8681
    %v8696 = vpop.f32.mrf.mxu0
    %v8697 = vadd.f32 0.0, %v8696
    %v8698 = vpop.f32.mrf.mxu0
    %8699 = vdwg.mxu0
    %8700 = vmatpush.bf16.msra.mxu0 0
    %8701 = vmatpush.bf16.msra.mxu0 0
    %8702 = vmatpush.bf16.msra.mxu0 0
    %8703 = vmatpush.bf16.msra.mxu0 0
    %8704 = vmatpush.bf16.msra.mxu0 %v8486
    %8705 = vmatpush.bf16.msra.mxu0 %v8485
    %8706 = vmatpush.bf16.msra.mxu0 %v8484
    %8707 = vmatpush.bf16.msra.mxu0 %v8483
    %8708 = vmatmul.bf16.gmra.mxu0 %v8685
    %v8709 = vpop.f32.mrf.mxu0
    %v8710 = vadd.f32 %v8697, %v8709
    %v8711 = vpop.f32.mrf.mxu0
    %8712 = vdwg.mxu0
    %v8714 = vunpack.c.l.b16 %v8392
    %v8715 = vunpack.c.h.b16 %v8392
    %v8716 = vpack.c.b16 %v8714, %v8714
    %v8717 = vpack.c.b16 %v8715, %v8715
    %v8718 = vrot.slane %v8716, 1
    %v8719 = vrot.slane %v8717, 1
    %v8722 = vsel %vm4310, %v8719, 0
    %8724 = vmatpush.bf16.msra.mxu0 %v8482
    %8725 = vmatpush.bf16.msra.mxu0 %v8481
    %8726 = vmatpush.bf16.msra.mxu0 %v8480
    %8727 = vmatpush.bf16.msra.mxu0 %v8479
    %8728 = vmatpush.bf16.msra.mxu0 %v8478
    %8729 = vmatpush.bf16.msra.mxu0 %v8477
    %8730 = vmatpush.bf16.msra.mxu0 %v8476
    %8731 = vmatpush.bf16.msra.mxu0 %v8475
    %8732 = vmatmul.bf16.gmra.mxu0 %v8718
    %v8733 = vpop.f32.mrf.mxu0
    %v8734 = vadd.f32 0.0, %v8733
    %v8735 = vpop.f32.mrf.mxu0
    %8736 = vdwg.mxu0
    %8737 = vmatpush.bf16.msra.mxu0 0
    %8738 = vmatpush.bf16.msra.mxu0 0
    %8739 = vmatpush.bf16.msra.mxu0 0
    %8740 = vmatpush.bf16.msra.mxu0 0
    %8741 = vmatpush.bf16.msra.mxu0 %v8486
    %8742 = vmatpush.bf16.msra.mxu0 %v8485
    %8743 = vmatpush.bf16.msra.mxu0 %v8484
    %8744 = vmatpush.bf16.msra.mxu0 %v8483
    %8745 = vmatmul.bf16.gmra.mxu0 %v8722
    %v8746 = vpop.f32.mrf.mxu0
    %v8747 = vadd.f32 %v8734, %v8746
    %v8748 = vpop.f32.mrf.mxu0
    %8749 = vdwg.mxu0
    %v8751 = vunpack.c.l.b16 %v8393
    %v8752 = vunpack.c.h.b16 %v8393
    %v8753 = vpack.c.b16 %v8751, %v8751
    %v8754 = vpack.c.b16 %v8752, %v8752
    %v8755 = vrot.slane %v8753, 1
    %v8756 = vrot.slane %v8754, 1
    %v8759 = vsel %vm4310, %v8756, 0
    %8761 = vmatpush.bf16.msra.mxu0 %v8482
    %8762 = vmatpush.bf16.msra.mxu0 %v8481
    %8763 = vmatpush.bf16.msra.mxu0 %v8480
    %8764 = vmatpush.bf16.msra.mxu0 %v8479
    %8765 = vmatpush.bf16.msra.mxu0 %v8478
    %8766 = vmatpush.bf16.msra.mxu0 %v8477
    %8767 = vmatpush.bf16.msra.mxu0 %v8476
    %8768 = vmatpush.bf16.msra.mxu0 %v8475
    %8769 = vmatmul.bf16.gmra.mxu0 %v8755
    %v8770 = vpop.f32.mrf.mxu0
    %v8771 = vadd.f32 0.0, %v8770
    %v8772 = vpop.f32.mrf.mxu0
    %8773 = vdwg.mxu0
    %8774 = vmatpush.bf16.msra.mxu0 0
    %8775 = vmatpush.bf16.msra.mxu0 0
    %8776 = vmatpush.bf16.msra.mxu0 0
    %8777 = vmatpush.bf16.msra.mxu0 0
    %8778 = vmatpush.bf16.msra.mxu0 %v8486
    %8779 = vmatpush.bf16.msra.mxu0 %v8485
    %8780 = vmatpush.bf16.msra.mxu0 %v8484
    %8781 = vmatpush.bf16.msra.mxu0 %v8483
    %8782 = vmatmul.bf16.gmra.mxu0 %v8759
    %v8783 = vpop.f32.mrf.mxu0
    %v8784 = vadd.f32 %v8771, %v8783
    %v8785 = vpop.f32.mrf.mxu0
    %8786 = vdwg.mxu0
    %v8787 = vadd.f32 %v8378, %v8525
    %v8788 = vadd.f32 %v8379, %v8562
    %v8789 = vadd.f32 %v8380, %v8599
    %v8790 = vadd.f32 %v8381, %v8636
    %v8791 = vadd.f32 %v8382, %v8673
    %v8792 = vadd.f32 %v8383, %v8710
    %v8793 = vadd.f32 %v8384, %v8747
    %v8794 = vadd.f32 %v8385, %v8784
    %vm8795 = vcmask 257024
    %v8796 = vsel %vm8795, %v8787, 0.0
    %v8797 = vrot.slane %v8796, 4
    %v8798 = vadd.f32 %v8796, %v8797
    %v8799 = vrot.slane %v8798, 2
    %v8800 = vadd.f32 %v8798, %v8799
    %v8801 = vrot.slane %v8800, 1
    %v8802 = vadd.f32 %v8800, %v8801
    %v8803 = vsel %vm8795, %v8788, 0.0
    %v8804 = vrot.slane %v8803, 4
    %v8805 = vadd.f32 %v8803, %v8804
    %v8806 = vrot.slane %v8805, 2
    %v8807 = vadd.f32 %v8805, %v8806
    %v8808 = vrot.slane %v8807, 1
    %v8809 = vadd.f32 %v8807, %v8808
    %v8810 = vsel %vm8795, %v8789, 0.0
    %v8811 = vrot.slane %v8810, 4
    %v8812 = vadd.f32 %v8810, %v8811
    %v8813 = vrot.slane %v8812, 2
    %v8814 = vadd.f32 %v8812, %v8813
    %v8815 = vrot.slane %v8814, 1
    %v8816 = vadd.f32 %v8814, %v8815
    %v8817 = vsel %vm8795, %v8790, 0.0
    %v8818 = vrot.slane %v8817, 4
    %v8819 = vadd.f32 %v8817, %v8818
    %v8820 = vrot.slane %v8819, 2
    %v8821 = vadd.f32 %v8819, %v8820
    %v8822 = vrot.slane %v8821, 1
    %v8823 = vadd.f32 %v8821, %v8822
    %v8824 = vsel %vm8795, %v8791, 0.0
    %v8825 = vrot.slane %v8824, 4
    %v8826 = vadd.f32 %v8824, %v8825
    %v8827 = vrot.slane %v8826, 2
    %v8828 = vadd.f32 %v8826, %v8827
    %v8829 = vrot.slane %v8828, 1
    %v8830 = vadd.f32 %v8828, %v8829
    %v8831 = vsel %vm8795, %v8792, 0.0
    %v8832 = vrot.slane %v8831, 4
    %v8833 = vadd.f32 %v8831, %v8832
    %v8834 = vrot.slane %v8833, 2
    %v8835 = vadd.f32 %v8833, %v8834
    %v8836 = vrot.slane %v8835, 1
    %v8837 = vadd.f32 %v8835, %v8836
    %v8838 = vsel %vm8795, %v8793, 0.0
    %v8839 = vrot.slane %v8838, 4
    %v8840 = vadd.f32 %v8838, %v8839
    %v8841 = vrot.slane %v8840, 2
    %v8842 = vadd.f32 %v8840, %v8841
    %v8843 = vrot.slane %v8842, 1
    %v8844 = vadd.f32 %v8842, %v8843
    %v8845 = vsel %vm8795, %v8794, 0.0
    %v8846 = vrot.slane %v8845, 4
    %v8847 = vadd.f32 %v8845, %v8846
    %v8848 = vrot.slane %v8847, 2
    %v8849 = vadd.f32 %v8847, %v8848
    %v8850 = vrot.slane %v8849, 1
    %v8851 = vadd.f32 %v8849, %v8850
    %v8852 = vsel %vm4699, %v8802, 0.0
    %v8853 = vsel %vm4699, %v8809, 0.0
    %v8854 = vadd.f32 %v8852, %v8853
    %v8855 = vsel %vm4699, %v8816, 0.0
    %v8856 = vadd.f32 %v8854, %v8855
    %v8857 = vsel %vm4699, %v8823, 0.0
    %v8858 = vadd.f32 %v8856, %v8857
    %v8859 = vsel %vm4699, %v8830, 0.0
    %v8860 = vadd.f32 %v8858, %v8859
    %v8861 = vsel %vm4699, %v8837, 0.0
    %v8862 = vadd.f32 %v8860, %v8861
    %v8863 = vsel %vm4699, %v8844, 0.0
    %v8864 = vadd.f32 %v8862, %v8863
    %v8865 = vsel %vm4699, %v8851, 0.0
    %v8866 = vadd.f32 %v8864, %v8865
    %v8867 = vmul.f32 %v8787, %v8787
    %v8868 = vmul.f32 %v8788, %v8788
    %v8869 = vmul.f32 %v8789, %v8789
    %v8870 = vmul.f32 %v8790, %v8790
    %v8871 = vmul.f32 %v8791, %v8791
    %v8872 = vmul.f32 %v8792, %v8792
    %v8873 = vmul.f32 %v8793, %v8793
    %v8874 = vmul.f32 %v8794, %v8794
    %v8875 = vsel %vm8795, %v8867, 0.0
    %v8876 = vrot.slane %v8875, 4
    %v8877 = vadd.f32 %v8875, %v8876
    %v8878 = vrot.slane %v8877, 2
    %v8879 = vadd.f32 %v8877, %v8878
    %v8880 = vrot.slane %v8879, 1
    %v8881 = vadd.f32 %v8879, %v8880
    %v8882 = vsel %vm8795, %v8868, 0.0
    %v8883 = vrot.slane %v8882, 4
    %v8884 = vadd.f32 %v8882, %v8883
    %v8885 = vrot.slane %v8884, 2
    %v8886 = vadd.f32 %v8884, %v8885
    %v8887 = vrot.slane %v8886, 1
    %v8888 = vadd.f32 %v8886, %v8887
    %v8889 = vsel %vm8795, %v8869, 0.0
    %v8890 = vrot.slane %v8889, 4
    %v8891 = vadd.f32 %v8889, %v8890
    %v8892 = vrot.slane %v8891, 2
    %v8893 = vadd.f32 %v8891, %v8892
    %v8894 = vrot.slane %v8893, 1
    %v8895 = vadd.f32 %v8893, %v8894
    %v8896 = vsel %vm8795, %v8870, 0.0
    %v8897 = vrot.slane %v8896, 4
    %v8898 = vadd.f32 %v8896, %v8897
    %v8899 = vrot.slane %v8898, 2
    %v8900 = vadd.f32 %v8898, %v8899
    %v8901 = vrot.slane %v8900, 1
    %v8902 = vadd.f32 %v8900, %v8901
    %v8903 = vsel %vm8795, %v8871, 0.0
    %v8904 = vrot.slane %v8903, 4
    %v8905 = vadd.f32 %v8903, %v8904
    %v8906 = vrot.slane %v8905, 2
    %v8907 = vadd.f32 %v8905, %v8906
    %v8908 = vrot.slane %v8907, 1
    %v8909 = vadd.f32 %v8907, %v8908
    %v8910 = vsel %vm8795, %v8872, 0.0
    %v8911 = vrot.slane %v8910, 4
    %v8912 = vadd.f32 %v8910, %v8911
    %v8913 = vrot.slane %v8912, 2
    %v8914 = vadd.f32 %v8912, %v8913
    %v8915 = vrot.slane %v8914, 1
    %v8916 = vadd.f32 %v8914, %v8915
    %v8917 = vsel %vm8795, %v8873, 0.0
    %v8918 = vrot.slane %v8917, 4
    %v8919 = vadd.f32 %v8917, %v8918
    %v8920 = vrot.slane %v8919, 2
    %v8921 = vadd.f32 %v8919, %v8920
    %v8922 = vrot.slane %v8921, 1
    %v8923 = vadd.f32 %v8921, %v8922
    %v8924 = vsel %vm8795, %v8874, 0.0
    %v8925 = vrot.slane %v8924, 4
    %v8926 = vadd.f32 %v8924, %v8925
    %v8927 = vrot.slane %v8926, 2
    %v8928 = vadd.f32 %v8926, %v8927
    %v8929 = vrot.slane %v8928, 1
    %v8930 = vadd.f32 %v8928, %v8929
    %v8931 = vsel %vm4699, %v8881, 0.0
    %v8932 = vsel %vm4699, %v8888, 0.0
    %v8933 = vadd.f32 %v8931, %v8932
    %v8934 = vsel %vm4699, %v8895, 0.0
    %v8935 = vadd.f32 %v8933, %v8934
    %v8936 = vsel %vm4699, %v8902, 0.0
    %v8937 = vadd.f32 %v8935, %v8936
    %v8938 = vsel %vm4699, %v8909, 0.0
    %v8939 = vadd.f32 %v8937, %v8938
    %v8940 = vsel %vm4699, %v8916, 0.0
    %v8941 = vadd.f32 %v8939, %v8940
    %v8942 = vsel %vm4699, %v8923, 0.0
    %v8943 = vadd.f32 %v8941, %v8942
    %v8944 = vsel %vm4699, %v8930, 0.0
    %v8945 = vadd.f32 %v8943, %v8944
    %v8946 = vld [vmem:[%s5] sm:$0xff]
    %v8947 = vld [vmem:[%s5 + $0x8] sm:$0xff]
    %v8948 = vld [vmem:[%s5 + $0x10] sm:$0xff]
    %v8949 = vld [vmem:[%s5 + $0x18] sm:$0xff]
    %v8951 = vsel %vm4699, %v8866, 0
    %8953 = vmatpush.msra.mxu0 0.0
    %8954 = vmatpush.msra.mxu0 0.0
    %8955 = vmatpush.msra.mxu0 0.0
    %8956 = vmatpush.msra.mxu0 0.0
    %8957 = vmatpush.msra.mxu0 0.0
    %8958 = vmatpush.msra.mxu0 0.0
    %8959 = vmatpush.msra.mxu0 0.0
    %8960 = vmatpush.msra.mxu0 0.0
    %8961 = vmatpush.msra.mxu0 0.0
    %8962 = vmatpush.msra.mxu0 0.0
    %8963 = vmatpush.msra.mxu0 0.0
    %8964 = vmatpush.msra.mxu0 0.0
    %8965 = vmatpush.msra.mxu0 %v8949
    %8966 = vmatpush.msra.mxu0 %v8948
    %8967 = vmatpush.msra.mxu0 %v8947
    %8968 = vmatpush.msra.mxu0 %v8946
    %8969 = vmatmul.f32.gmra.mxu0 %v8951
    %v8970 = vpop.f32.mrf.mxu0
    %v8971 = vadd.f32 0.0, %v8970
    %8972 = vdwg.mxu0
    %v8973 = vmul.f32 %v8971, 0.0078125
    %v8975 = vsel %vm4699, %v8945, 0
    %8977 = vmatpush.msra.mxu0 0.0
    %8978 = vmatpush.msra.mxu0 0.0
    %8979 = vmatpush.msra.mxu0 0.0
    %8980 = vmatpush.msra.mxu0 0.0
    %8981 = vmatpush.msra.mxu0 0.0
    %8982 = vmatpush.msra.mxu0 0.0
    %8983 = vmatpush.msra.mxu0 0.0
    %8984 = vmatpush.msra.mxu0 0.0
    %8985 = vmatpush.msra.mxu0 0.0
    %8986 = vmatpush.msra.mxu0 0.0
    %8987 = vmatpush.msra.mxu0 0.0
    %8988 = vmatpush.msra.mxu0 0.0
    %8989 = vmatpush.msra.mxu0 %v8949
    %8990 = vmatpush.msra.mxu0 %v8948
    %8991 = vmatpush.msra.mxu0 %v8947
    %8992 = vmatpush.msra.mxu0 %v8946
    %8993 = vmatmul.f32.gmra.mxu0 %v8975
    %v8994 = vpop.f32.mrf.mxu0
    %v8995 = vadd.f32 0.0, %v8994
    %8996 = vdwg.mxu0
    %v8997 = vmul.f32 %v8995, 0.0078125
    %v8998 = vmul.f32 %v8973, %v8973
    %v8999 = vsub.f32 %v8997, %v8998
    %v9000 = vmax.f32 %v8999, 0.0
    %v9001 = vld [vmem:[%s9] sm:$0x1]
    %v9002 = vadd.f32 %v9000, 1e-05
    %v9003 = vrsqrt.pop %v9002
    %v9004 = vmul.f32 %v9003, %v9002
    %v9005 = vmul.f32 %v9004, %v9003
    %v9006 = vmul.f32 0.5, %v9005
    %v9007 = vsub.f32 1.5, %v9006
    %v9008 = vmul.f32 %v9003, %v9007
    %vm9009 = vweird.f32 %v9002
    %vm9010 = vweird.f32 %v9003
    %vm9011 = vmor %vm9009, %vm9010
    %v9012 = vsel %vm9011, %v9003, %v9008
    %v9013 = vmul.f32 %v9001, %v9012
    %v9014 = vld [vmem:[%s10] sm:$0x1]
    %v9015 = vmul.f32 %v8973, %v9013
    %v9016 = vsub.f32 %v9014, %v9015
    %v9017 = vld [vmem:[#allocation7] sm:$0xff]
    %vm9018 = vcmask 64512
    %v9020 = vsel %vm9018, %v9013, 0
    %9022 = vmatpush.msra.mxu0 0.0
    %9023 = vmatpush.msra.mxu0 0.0
    %9024 = vmatpush.msra.mxu0 0.0
    %9025 = vmatpush.msra.mxu0 0.0
    %9026 = vmatpush.msra.mxu0 0.0
    %9027 = vmatpush.msra.mxu0 0.0
    %9028 = vmatpush.msra.mxu0 0.0
    %9029 = vmatpush.msra.mxu0 0.0
    %9030 = vmatpush.msra.mxu0 0.0
    %9031 = vmatpush.msra.mxu0 0.0
    %9032 = vmatpush.msra.mxu0 0.0
    %9033 = vmatpush.msra.mxu0 0.0
    %9034 = vmatpush.msra.mxu0 0.0
    %9035 = vmatpush.msra.mxu0 0.0
    %9036 = vmatpush.msra.mxu0 0.0
    %9037 = vmatpush.msra.mxu0 %v9017
    %9038 = vmatmul.f32.gmra.mxu0 %v9020
    %v9039 = vpop.f32.mrf.mxu0
    %v9040 = vadd.f32 0.0, %v9039
    %9041 = vdwg.mxu0
    %v9043 = vsel %vm9018, %v9016, 0
    %9045 = vmatpush.msra.mxu0 0.0
    %9046 = vmatpush.msra.mxu0 0.0
    %9047 = vmatpush.msra.mxu0 0.0
    %9048 = vmatpush.msra.mxu0 0.0
    %9049 = vmatpush.msra.mxu0 0.0
    %9050 = vmatpush.msra.mxu0 0.0
    %9051 = vmatpush.msra.mxu0 0.0
    %9052 = vmatpush.msra.mxu0 0.0
    %9053 = vmatpush.msra.mxu0 0.0
    %9054 = vmatpush.msra.mxu0 0.0
    %9055 = vmatpush.msra.mxu0 0.0
    %9056 = vmatpush.msra.mxu0 0.0
    %9057 = vmatpush.msra.mxu0 0.0
    %9058 = vmatpush.msra.mxu0 0.0
    %9059 = vmatpush.msra.mxu0 0.0
    %9060 = vmatpush.msra.mxu0 %v9017
    %9061 = vmatmul.f32.gmra.mxu0 %v9043
    %v9062 = vpop.f32.mrf.mxu0
    %v9063 = vadd.f32 0.0, %v9062
    %9064 = vdwg.mxu0
    %v9065 = vperm.slane %v9040, 0
    %v9066 = vmul.f32 %v8787, %v9065
    %v9067 = vmul.f32 %v8788, %v9065
    %v9068 = vmul.f32 %v8789, %v9065
    %v9069 = vmul.f32 %v8790, %v9065
    %v9070 = vmul.f32 %v8791, %v9065
    %v9071 = vmul.f32 %v8792, %v9065
    %v9072 = vmul.f32 %v8793, %v9065
    %v9073 = vmul.f32 %v8794, %v9065
    %v9074 = vperm.slane %v9063, 0
    %v9075 = vadd.f32 %v9066, %v9074
    %v9076 = vadd.f32 %v9067, %v9074
    %v9077 = vadd.f32 %v9068, %v9074
    %v9078 = vadd.f32 %v9069, %v9074
    %v9079 = vadd.f32 %v9070, %v9074
    %v9080 = vadd.f32 %v9071, %v9074
    %v9081 = vadd.f32 %v9072, %v9074
    %v9082 = vadd.f32 %v9073, %v9074
    %v9083 = vmax.f32 %v9075, 0.0
    %v9084 = vmax.f32 %v9076, 0.0
    %v9085 = vmax.f32 %v9077, 0.0
    %v9086 = vmax.f32 %v9078, 0.0
    %v9087 = vmax.f32 %v9079, 0.0
    %v9088 = vmax.f32 %v9080, 0.0
    %v9089 = vmax.f32 %v9081, 0.0
    %v9090 = vmax.f32 %v9082, 0.0
    %v9091 = vsel %vm8795, %v9083, -inf
    %v9092 = vsel %vm8795, %v9084, -inf
    %v9093 = vsel %vm8795, %v9085, -inf
    %v9094 = vmax.f32 %v9091, %v9093
    %v9095 = vsel %vm8795, %v9086, -inf
    %v9096 = vmax.f32 %v9092, %v9095
    %v9097 = vmax.f32 %v9094, %v9096
    %v9098 = vsel %vm8795, %v9087, -inf
    %v9099 = vsel %vm8795, %v9088, -inf
    %v9100 = vsel %vm8795, %v9089, -inf
    %v9101 = vmax.f32 %v9098, %v9100
    %v9102 = vsel %vm8795, %v9090, -inf
    %v9103 = vmax.f32 %v9099, %v9102
    %v9104 = vmax.f32 %v9101, %v9103
    %v9105 = vsel %vm8795, %v9097, -inf
    %v9106 = vrot.slane %v9105, 4
    %v9107 = vmax.f32 %v9105, %v9106
    %v9108 = vrot.slane %v9107, 2
    %v9109 = vmax.f32 %v9107, %v9108
    %v9110 = vrot.slane %v9109, 1
    %v9111 = vmax.f32 %v9109, %v9110
    %v9112 = vsel %vm8795, %v9104, -inf
    %v9113 = vrot.slane %v9112, 4
    %v9114 = vmax.f32 %v9112, %v9113
    %v9115 = vrot.slane %v9114, 2
    %v9116 = vmax.f32 %v9114, %v9115
    %v9117 = vrot.slane %v9116, 1
    %v9118 = vmax.f32 %v9116, %v9117
    %9121 = vrot.lane.b32.xlu0 %v9111, 120
    %v9122 = vpop.permute.xlu0 %9121
    %9123 = vrot.lane.b32.xlu0 %v9118, 120
    %v9124 = vpop.permute.xlu0 %9123
    %v9127 = vmax.f32 %v9111, %v9122
    %v9128 = vmax.f32 %v9118, %v9124
    %9129 = vrot.lane.b32.xlu0 %v9111, 112
    %v9130 = vpop.permute.xlu0 %9129
    %9131 = vrot.lane.b32.xlu0 %v9118, 112
    %v9132 = vpop.permute.xlu0 %9131
    %v9135 = vmax.f32 %v9127, %v9130
    %v9136 = vmax.f32 %v9128, %v9132
    %9137 = vrot.lane.b32.xlu0 %v9111, 104
    %v9138 = vpop.permute.xlu0 %9137
    %9139 = vrot.lane.b32.xlu0 %v9118, 104
    %v9140 = vpop.permute.xlu0 %9139
    %v9143 = vmax.f32 %v9135, %v9138
    %v9144 = vmax.f32 %v9136, %v9140
    %v9145 = vtanh.pop %v9143
    %v9146 = vtanh.pop %v9144
    %v9149 = vrot.slane %v9146, 7
    %vm9150 = vcmask 1041409
    %v9151 = vsel %vm9150, %v9149, %v9145
    %vm9153 = vcmask 58368
    %9154 = vst.msk [vmem:[%s11] sm:$0x3] %vm9153, %v9151
    // Predicated region
    $region62: #{forward.1} parent=1 // pred_check
      _
    $region63: #{forward.1} parent=1 // pred_check_branch
      %9156 = sbr.rel (0) target = $region65
    $region64: #{forward.1} parent=1 // pred_region
      _
    $region65: #{forward.1} parent=1 // pred_fallthru
      _
    // Predicated region
    $region66: #{forward.1} parent=1 // pred_check
      _
    $region67: #{forward.1} parent=1 // pred_check_branch
      %9158 = sbr.rel (0) target = $region69
    $region68: #{forward.1} parent=1 // pred_region
      _
    $region69: #{forward.1} parent=1 // pred_fallthru
      _
    %9159 = vsyncpa [#allocation4], 1
    %9160 = vsyncpa [#allocation6], 1
    %9161 = vsyncpa [#allocation9], 1

</llo_original>
